<compile_context>
chip_gen: v7x
topology: tpu7x:2x2x1
jax: 0.10.0
libtpu: 0.0.40
codegen_flags: <defaults>
</compile_context>

<pallas_src>
import functools

import jax
import jax.numpy as jnp
from jax.experimental import pallas as pl
from jax.experimental.pallas import tpu as pltpu

NEG_SLOPE = 0.01   # F.leaky_relu default negative_slope
BN_EPS = 1e-5      # torch BatchNorm1d default eps


def _leaky(x):
    return jnp.where(x >= 0, x, NEG_SLOPE * x)


# ----------------------------------------------------------------------------
# Kernel A: both ProteinCNN encoders, fused (conv + leaky + batch-stat BN) x 3
# ----------------------------------------------------------------------------
def _encoder_pair_kernel(x_ref,
                         w1_ref, b1_ref, g1_ref, s1_ref,
                         w2_ref, b2_ref, g2_ref, s2_ref,
                         w3_ref, b3_ref, g3_ref, s3_ref,
                         o_ref, *, B, C, taps):
    # x_ref: (1, B, L, C) channel-last block for this encoder.
    # w*_ref: (1, K, C, C); b/g/s refs: (1, 1, C). o_ref: (1, B, L3, C).
    xs = [x_ref[0, b] for b in range(B)]                       # B x (L, C)

    def conv_bn_layer(xs, K, w_ref, b_ref, g_ref, s_ref):
        lin = xs[0].shape[0]
        lout = lin - K + 1
        w_taps = [w_ref[0, k] for k in range(K)]               # K x (C, C)
        bias = b_ref[0]                                        # (1, C)
        ys = []
        for xb in xs:
            acc = jnp.zeros((lout, C), jnp.float32)
            for k in range(K):                                 # unrolled taps -> MXU matmuls
                acc = acc + jnp.dot(xb[k:k + lout, :], w_taps[k],
                                    preferred_element_type=jnp.float32)
            ys.append(_leaky(acc + bias))
        # BatchNorm1d training statistics: per-channel over (batch, length), in-kernel.
        n = float(B * lout)
        mean = sum(jnp.sum(y, axis=0, keepdims=True) for y in ys) / n          # (1, C)
        var = sum(jnp.sum((y - mean) ** 2, axis=0, keepdims=True) for y in ys) / n
        scale = g_ref[0] * jax.lax.rsqrt(var + BN_EPS)
        shift = s_ref[0] - mean * scale
        return [y * scale + shift for y in ys]

    xs = conv_bn_layer(xs, taps[0], w1_ref, b1_ref, g1_ref, s1_ref)
    xs = conv_bn_layer(xs, taps[1], w2_ref, b2_ref, g2_ref, s2_ref)
    xs = conv_bn_layer(xs, taps[2], w3_ref, b3_ref, g3_ref, s3_ref)
    for b in range(B):
        o_ref[0, b] = xs[b]


def encoder_pair(x2, p):
    """x2: (2, B, L, C) channel-last, stacked [enc1 input, enc2 input]."""
    E, B, L, C = x2.shape
    taps = (3, 6, 9)
    L3 = L - sum(taps) + len(taps)

    def wspec(K):
        return pl.BlockSpec((1, K, C, C), lambda e: (e, 0, 0, 0))

    def vspec():
        return pl.BlockSpec((1, 1, C), lambda e: (e, 0, 0))

    in_specs = [pl.BlockSpec((1, B, L, C), lambda e: (e, 0, 0, 0))]
    args = [x2]
    for i, K in zip((1, 2, 3), taps):
        in_specs += [wspec(K), vspec(), vspec(), vspec()]
        args += [p[f"conv{i}_w"], p[f"conv{i}_b"], p[f"bn{i}_g"], p[f"bn{i}_b"]]

    kernel = functools.partial(_encoder_pair_kernel, B=B, C=C, taps=taps)
    return pl.pallas_call(
        kernel,
        out_shape=jax.ShapeDtypeStruct((E, B, L3, C), jnp.float32),
        grid=(E,),
        in_specs=in_specs,
        out_specs=pl.BlockSpec((1, B, L3, C), lambda e: (e, 0, 0, 0)),
        compiler_params=pltpu.CompilerParams(dimension_semantics=("parallel",)),
    )(*args)


# ----------------------------------------------------------------------------
# Kernel B: BAN layer + MLP decoder, fused, single invocation
# ----------------------------------------------------------------------------
def _bn_rows(x, gamma, beta):
    # Training-mode BatchNorm1d over the batch axis (rows) of a 2-D activation.
    mean = jnp.mean(x, axis=0, keepdims=True)
    var = jnp.mean((x - mean) ** 2, axis=0, keepdims=True)     # biased, like torch
    return (x - mean) * jax.lax.rsqrt(var + BN_EPS) * gamma + beta


def _ban_decoder_kernel(v_ref, q_ref,
                        vw_ref, vb_ref, qw_ref, qb_ref,
                        hm_ref, hb_ref, pool_ref, bg_ref, bs_ref,
                        f1w_ref, f1b_ref, dg_ref, ds_ref,
                        f3w_ref, f3b_ref,
                        o_ref, fus_ref, *, B):
    # v_ref/q_ref: (B, L, C).  fus_ref scratch: (B, K3).  o_ref: (B, 1).
    vw, vb = vw_ref[...], vb_ref[...]
    qw, qb = qw_ref[...], qb_ref[...]
    hm, hb = hm_ref[...], hb_ref[...]          # (1, K3), (1, 1): summed over heads
    for b in range(B):
        # FCNet (Dropout treated as identity) -> weight_norm Linear -> ReLU
        v_ = jnp.maximum(jnp.dot(v_ref[b], vw, preferred_element_type=jnp.float32) + vb, 0.0)
        q_ = jnp.maximum(jnp.dot(q_ref[b], qw, preferred_element_type=jnp.float32) + qb, 0.0)
        # Per-head attention maps are discarded by AffinityNet and the pooled logits
        # are linear in att and summed over heads, so heads collapse exactly into one
        # matmul against sum_h h_mat[h]  (+ sum_h h_bias):
        att = jax.lax.dot_general(v_ * hm, q_, (((1,), (1,)), ((), ())),
                                  preferred_element_type=jnp.float32)       # (Lv, Lq)
        att = att + hb
        tmp = jnp.dot(att, q_, preferred_element_type=jnp.float32)          # (Lv, K3)
        fus_ref[pl.ds(b, 1), :] = jnp.sum(v_ * tmp, axis=0, keepdims=True)  # (1, K3)
    fusion = fus_ref[...]                                                   # (B, K3)
    # AvgPool1d(k, stride=k) * k  ==  contiguous group-sum, done as a 0/1 matmul.
    logits = jnp.dot(fusion, pool_ref[...], preferred_element_type=jnp.float32)  # (B, C)
    logits = _bn_rows(logits, bg_ref[...], bs_ref[...])
    # MLPDecoder: fc1 -> leaky -> BN -> fc3, all in-kernel.
    h = _leaky(jnp.dot(logits, f1w_ref[...], preferred_element_type=jnp.float32) + f1b_ref[...])
    h = _bn_rows(h, dg_ref[...], ds_ref[...])
    o_ref[...] = jnp.dot(h, f3w_ref[...], preferred_element_type=jnp.float32) + f3b_ref[...]


def ban_decoder(v, q, p):
    B, Lv, C = v.shape
    K3 = p["v_w"].shape[1]
    h_mat_sum = jnp.sum(p["h_mat"], axis=0, keepdims=True)       # (1, K3)
    h_bias_sum = jnp.sum(p["h_bias"]).reshape(1, 1)              # (1, 1)

    args = [v, q,
            p["v_w"], p["v_b"].reshape(1, K3), p["q_w"], p["q_b"].reshape(1, K3),
            h_mat_sum, h_bias_sum, p["pool"],
            p["ban_bn_g"].reshape(1, -1), p["ban_bn_b"].reshape(1, -1),
            p["fc1_w"], p["fc1_b"].reshape(1, -1),
            p["dec_bn_g"].reshape(1, -1), p["dec_bn_b"].reshape(1, -1),
            p["fc3_w"], p["fc3_b"].reshape(1, 1)]

    def full_spec(shape):
        return pl.BlockSpec(tuple(shape), lambda i, _n=len(shape): (0,) * _n)

    kernel = functools.partial(_ban_decoder_kernel, B=B)
    return pl.pallas_call(
        kernel,
        out_shape=jax.ShapeDtypeStruct((B, 1), jnp.float32),
        grid=(1,),
        in_specs=[full_spec(a.shape) for a in args],
        out_specs=full_spec((B, 1)),
        scratch_shapes=[pltpu.VMEM((B, K3), jnp.float32)],
        compiler_params=pltpu.CompilerParams(dimension_semantics=("arbitrary",)),
    )(*args)


# ----------------------------------------------------------------------------
# Forward pass
# ----------------------------------------------------------------------------
def affinity_net_forward(c1, c2, p):
    # torch: v.transpose(2,1) -> conv(NCL); here inputs stay channel-last (B, L, C).
    x2 = jnp.stack([c1, c2], axis=0)                    # (2, B, L, C)
    enc = encoder_pair(x2, p)                           # (2, B, L3, C) channel-last
    E, B, L3, C = enc.shape
    # torch: v.view(B, L3, -1) on the NCL-contiguous (B, C, L3) tensor is a reshape,
    # NOT a transpose -> emulate exactly (tiny XLA glue between the two fused kernels).
    scr = jnp.reshape(jnp.transpose(enc, (0, 1, 3, 2)), (E, B, L3, C))
    return ban_decoder(scr[0], scr[1], p)               # (B, 1) affinity score


# ----------------------------------------------------------------------------
# Deterministic parameter init (encoder params stacked over the 2 encoders)
# ----------------------------------------------------------------------------
def init_params(key, dim, h_out, k_ban):
    keys = iter(jax.random.split(key, 64))

    def nrm(shape, scale=0.05):
        return scale * jax.random.normal(next(keys), shape, jnp.float32)

    p = {}
    for i, K in zip((1, 2, 3), (3, 6, 9)):
        p[f"conv{i}_w"] = nrm((2, K, dim, dim))          # stacked [encode, encode1]
        p[f"conv{i}_b"] = nrm((2, 1, dim))
        p[f"bn{i}_g"] = jnp.ones((2, 1, dim), jnp.float32)
        p[f"bn{i}_b"] = jnp.zeros((2, 1, dim), jnp.float32)
    K3 = dim * k_ban
    p["v_w"] = nrm((dim, K3)); p["v_b"] = nrm((K3,))
    p["q_w"] = nrm((dim, K3)); p["q_b"] = nrm((K3,))
    p["h_mat"] = nrm((h_out, K3), 1.0)   # weight_norm dim=None == identity at init
    p["h_bias"] = nrm((h_out,), 1.0)
    p["pool"] = (jnp.arange(K3)[:, None] // k_ban ==
                 jnp.arange(dim)[None, :]).astype(jnp.float32)
    p["ban_bn_g"] = jnp.ones((dim,), jnp.float32)
    p["ban_bn_b"] = jnp.zeros((dim,), jnp.float32)
    p["fc1_w"] = nrm((dim, 128)); p["fc1_b"] = nrm((128,))
    p["dec_bn_g"] = jnp.ones((128,), jnp.float32)
    p["dec_bn_b"] = jnp.zeros((128,), jnp.float32)
    p["fc3_w"] = nrm((128, 1)); p["fc3_b"] = nrm((1,))
    return p


if __name__ == "__main__":
    # Small shapes consistent with AffinityNet(dim, len): dim=32, seq len 24
    # (long enough for the k=3,6,9 conv stack: 24 -> 22 -> 17 -> 9).
    B, L, DIM, H_OUT, K_BAN = 2, 24, 32, 2, 3

    root = jax.random.PRNGKey(0)
    kp, k1, k2 = jax.random.split(root, 3)
    params = init_params(kp, DIM, H_OUT, K_BAN)
    c1 = jax.random.normal(k1, (B, L, DIM), jnp.float32)   # protein 1: (B, len, dim)
    c2 = jax.random.normal(k2, (B, L, DIM), jnp.float32)   # protein 2: (B, len, dim)

    fwd = jax.jit(affinity_net_forward)
    score = fwd(c1, c2, params)
    jax.block_until_ready(score)

    assert score.shape == (B, 1), score.shape
    assert score.dtype == jnp.float32
    assert bool(jnp.all(jnp.isfinite(score)))
    print("KERNEL_OK")
</pallas_src>

<mosaic_0001>
module attributes {stable_mosaic.version = 11 : i64} {
  func.func @_encoder_pair_kernel(%arg0: i32, %arg1: memref<1x2x24x32xf32, #tpu.memory_space<vmem>>, %arg2: memref<1x3x32x32xf32, #tpu.memory_space<vmem>>, %arg3: memref<1x1x32xf32, #tpu.memory_space<vmem>>, %arg4: memref<1x1x32xf32, #tpu.memory_space<vmem>>, %arg5: memref<1x1x32xf32, #tpu.memory_space<vmem>>, %arg6: memref<1x6x32x32xf32, #tpu.memory_space<vmem>>, %arg7: memref<1x1x32xf32, #tpu.memory_space<vmem>>, %arg8: memref<1x1x32xf32, #tpu.memory_space<vmem>>, %arg9: memref<1x1x32xf32, #tpu.memory_space<vmem>>, %arg10: memref<1x9x32x32xf32, #tpu.memory_space<vmem>>, %arg11: memref<1x1x32xf32, #tpu.memory_space<vmem>>, %arg12: memref<1x1x32xf32, #tpu.memory_space<vmem>>, %arg13: memref<1x1x32xf32, #tpu.memory_space<vmem>>, %arg14: memref<1x2x9x32xf32, #tpu.memory_space<vmem>>) attributes {dimension_semantics = [#tpu.dimension_semantics<parallel>], iteration_bounds = array<i64: 2>, scalar_prefetch = 0 : i64, scratch_operands = 0 : i64, tpu.core_type = #tpu.core_type<tc>, window_params = [{transform_indices = @transform_0, window_bounds = array<i64: 1, 2, 24, 32>}, {transform_indices = @transform_1, window_bounds = array<i64: 1, 3, 32, 32>}, {transform_indices = @transform_2, window_bounds = array<i64: 1, 1, 32>}, {transform_indices = @transform_3, window_bounds = array<i64: 1, 1, 32>}, {transform_indices = @transform_4, window_bounds = array<i64: 1, 1, 32>}, {transform_indices = @transform_5, window_bounds = array<i64: 1, 6, 32, 32>}, {transform_indices = @transform_6, window_bounds = array<i64: 1, 1, 32>}, {transform_indices = @transform_7, window_bounds = array<i64: 1, 1, 32>}, {transform_indices = @transform_8, window_bounds = array<i64: 1, 1, 32>}, {transform_indices = @transform_9, window_bounds = array<i64: 1, 9, 32, 32>}, {transform_indices = @transform_10, window_bounds = array<i64: 1, 1, 32>}, {transform_indices = @transform_11, window_bounds = array<i64: 1, 1, 32>}, {transform_indices = @transform_12, window_bounds = array<i64: 1, 1, 32>}, {transform_indices = @transform_13, window_bounds = array<i64: 1, 2, 9, 32>}]} {
    %c0 = arith.constant 0 : index
    %c0_0 = arith.constant 0 : index
    %c0_1 = arith.constant 0 : index
    %c0_2 = arith.constant 0 : index
    %0 = vector.load %arg1[%c0, %c0_0, %c0_1, %c0_2] : memref<1x2x24x32xf32, #tpu.memory_space<vmem>>, vector<1x1x24x32xf32>
    %1 = vector.shape_cast %0 : vector<1x1x24x32xf32> to vector<24x32xf32>
    %c0_3 = arith.constant 0 : index
    %c1 = arith.constant 1 : index
    %c0_4 = arith.constant 0 : index
    %c0_5 = arith.constant 0 : index
    %2 = vector.load %arg1[%c0_3, %c1, %c0_4, %c0_5] : memref<1x2x24x32xf32, #tpu.memory_space<vmem>>, vector<1x1x24x32xf32>
    %3 = vector.shape_cast %2 : vector<1x1x24x32xf32> to vector<24x32xf32>
    %c0_6 = arith.constant 0 : index
    %c0_7 = arith.constant 0 : index
    %c0_8 = arith.constant 0 : index
    %c0_9 = arith.constant 0 : index
    %4 = vector.load %arg2[%c0_6, %c0_7, %c0_8, %c0_9] : memref<1x3x32x32xf32, #tpu.memory_space<vmem>>, vector<1x1x32x32xf32>
    %5 = vector.shape_cast %4 : vector<1x1x32x32xf32> to vector<32x32xf32>
    %c0_10 = arith.constant 0 : index
    %c1_11 = arith.constant 1 : index
    %c0_12 = arith.constant 0 : index
    %c0_13 = arith.constant 0 : index
    %6 = vector.load %arg2[%c0_10, %c1_11, %c0_12, %c0_13] : memref<1x3x32x32xf32, #tpu.memory_space<vmem>>, vector<1x1x32x32xf32>
    %7 = vector.shape_cast %6 : vector<1x1x32x32xf32> to vector<32x32xf32>
    %c0_14 = arith.constant 0 : index
    %c2 = arith.constant 2 : index
    %c0_15 = arith.constant 0 : index
    %c0_16 = arith.constant 0 : index
    %8 = vector.load %arg2[%c0_14, %c2, %c0_15, %c0_16] : memref<1x3x32x32xf32, #tpu.memory_space<vmem>>, vector<1x1x32x32xf32>
    %9 = vector.shape_cast %8 : vector<1x1x32x32xf32> to vector<32x32xf32>
    %c0_17 = arith.constant 0 : index
    %c0_18 = arith.constant 0 : index
    %c0_19 = arith.constant 0 : index
    %10 = vector.load %arg3[%c0_17, %c0_18, %c0_19] : memref<1x1x32xf32, #tpu.memory_space<vmem>>, vector<1x1x32xf32>
    %11 = vector.shape_cast %10 : vector<1x1x32xf32> to vector<1x32xf32>
    %cst = arith.constant 0.000000e+00 : f32
    %12 = vector.broadcast %cst : f32 to vector<22x32xf32>
    %13 = vector.extract_strided_slice %1 {offsets = [0, 0], sizes = [22, 32], strides = [1, 1]} : vector<24x32xf32> to vector<22x32xf32>
    %cst_20 = arith.constant dense<0.000000e+00> : vector<22x32xf32>
    %14 = tpu.matmul %13, %5, %cst_20 {dimension_numbers = #tpu.dot_dimension_numbers<[1], [0], [0], [1], [0, 0, 1, 1], [], []>} : vector<22x32xf32>, vector<32x32xf32>, vector<22x32xf32> -> vector<22x32xf32>
    %15 = arith.addf %12, %14 : vector<22x32xf32>
    %16 = vector.extract_strided_slice %1 {offsets = [1, 0], sizes = [22, 32], strides = [1, 1]} : vector<24x32xf32> to vector<22x32xf32>
    %cst_21 = arith.constant dense<0.000000e+00> : vector<22x32xf32>
    %17 = tpu.matmul %16, %7, %cst_21 {dimension_numbers = #tpu.dot_dimension_numbers<[1], [0], [0], [1], [0, 0, 1, 1], [], []>} : vector<22x32xf32>, vector<32x32xf32>, vector<22x32xf32> -> vector<22x32xf32>
    %18 = arith.addf %15, %17 : vector<22x32xf32>
    %19 = vector.extract_strided_slice %1 {offsets = [2, 0], sizes = [22, 32], strides = [1, 1]} : vector<24x32xf32> to vector<22x32xf32>
    %cst_22 = arith.constant dense<0.000000e+00> : vector<22x32xf32>
    %20 = tpu.matmul %19, %9, %cst_22 {dimension_numbers = #tpu.dot_dimension_numbers<[1], [0], [0], [1], [0, 0, 1, 1], [], []>} : vector<22x32xf32>, vector<32x32xf32>, vector<22x32xf32> -> vector<22x32xf32>
    %21 = arith.addf %18, %20 : vector<22x32xf32>
    %22 = vector.broadcast %11 : vector<1x32xf32> to vector<22x32xf32>
    %23 = arith.addf %21, %22 : vector<22x32xf32>
    %cst_23 = arith.constant 0.000000e+00 : f32
    %24 = vector.broadcast %cst_23 : f32 to vector<22x32xf32>
    %25 = arith.cmpf oge, %23, %24 : vector<22x32xf32>
    %cst_24 = arith.constant 0.00999999977 : f32
    %26 = vector.broadcast %cst_24 : f32 to vector<22x32xf32>
    %27 = arith.mulf %26, %23 : vector<22x32xf32>
    %28 = arith.select %25, %23, %27 : vector<22x32xi1>, vector<22x32xf32>
    %cst_25 = arith.constant 0.000000e+00 : f32
    %29 = vector.broadcast %cst_25 : f32 to vector<22x32xf32>
    %30 = vector.extract_strided_slice %3 {offsets = [0, 0], sizes = [22, 32], strides = [1, 1]} : vector<24x32xf32> to vector<22x32xf32>
    %cst_26 = arith.constant dense<0.000000e+00> : vector<22x32xf32>
    %31 = tpu.matmul %30, %5, %cst_26 {dimension_numbers = #tpu.dot_dimension_numbers<[1], [0], [0], [1], [0, 0, 1, 1], [], []>} : vector<22x32xf32>, vector<32x32xf32>, vector<22x32xf32> -> vector<22x32xf32>
    %32 = arith.addf %29, %31 : vector<22x32xf32>
    %33 = vector.extract_strided_slice %3 {offsets = [1, 0], sizes = [22, 32], strides = [1, 1]} : vector<24x32xf32> to vector<22x32xf32>
    %cst_27 = arith.constant dense<0.000000e+00> : vector<22x32xf32>
    %34 = tpu.matmul %33, %7, %cst_27 {dimension_numbers = #tpu.dot_dimension_numbers<[1], [0], [0], [1], [0, 0, 1, 1], [], []>} : vector<22x32xf32>, vector<32x32xf32>, vector<22x32xf32> -> vector<22x32xf32>
    %35 = arith.addf %32, %34 : vector<22x32xf32>
    %36 = vector.extract_strided_slice %3 {offsets = [2, 0], sizes = [22, 32], strides = [1, 1]} : vector<24x32xf32> to vector<22x32xf32>
    %cst_28 = arith.constant dense<0.000000e+00> : vector<22x32xf32>
    %37 = tpu.matmul %36, %9, %cst_28 {dimension_numbers = #tpu.dot_dimension_numbers<[1], [0], [0], [1], [0, 0, 1, 1], [], []>} : vector<22x32xf32>, vector<32x32xf32>, vector<22x32xf32> -> vector<22x32xf32>
    %38 = arith.addf %35, %37 : vector<22x32xf32>
    %39 = vector.broadcast %11 : vector<1x32xf32> to vector<22x32xf32>
    %40 = arith.addf %38, %39 : vector<22x32xf32>
    %cst_29 = arith.constant 0.000000e+00 : f32
    %41 = vector.broadcast %cst_29 : f32 to vector<22x32xf32>
    %42 = arith.cmpf oge, %40, %41 : vector<22x32xf32>
    %cst_30 = arith.constant 0.00999999977 : f32
    %43 = vector.broadcast %cst_30 : f32 to vector<22x32xf32>
    %44 = arith.mulf %43, %40 : vector<22x32xf32>
    %45 = arith.select %42, %40, %44 : vector<22x32xi1>, vector<22x32xf32>
    %cst_31 = arith.constant dense<0.000000e+00> : vector<32xf32>
    %46 = vector.multi_reduction <add>, %28, %cst_31 [0] : vector<22x32xf32> to vector<32xf32>
    %47 = vector.shape_cast %46 : vector<32xf32> to vector<1x32xf32>
    %cst_32 = arith.constant 0.000000e+00 : f32
    %48 = vector.broadcast %cst_32 : f32 to vector<1x32xf32>
    %49 = arith.addf %48, %47 : vector<1x32xf32>
    %cst_33 = arith.constant dense<0.000000e+00> : vector<32xf32>
    %50 = vector.multi_reduction <add>, %45, %cst_33 [0] : vector<22x32xf32> to vector<32xf32>
    %51 = vector.shape_cast %50 : vector<32xf32> to vector<1x32xf32>
    %52 = arith.addf %49, %51 : vector<1x32xf32>
    %cst_34 = arith.constant 4.400000e+01 : f32
    %53 = vector.broadcast %cst_34 : f32 to vector<1x32xf32>
    %54 = arith.divf %52, %53 : vector<1x32xf32>
    %55 = vector.broadcast %54 : vector<1x32xf32> to vector<22x32xf32>
    %56 = arith.subf %28, %55 : vector<22x32xf32>
    %57 = arith.mulf %56, %56 : vector<22x32xf32>
    %cst_35 = arith.constant dense<0.000000e+00> : vector<32xf32>
    %58 = vector.multi_reduction <add>, %57, %cst_35 [0] : vector<22x32xf32> to vector<32xf32>
    %59 = vector.shape_cast %58 : vector<32xf32> to vector<1x32xf32>
    %cst_36 = arith.constant 0.000000e+00 : f32
    %60 = vector.broadcast %cst_36 : f32 to vector<1x32xf32>
    %61 = arith.addf %60, %59 : vector<1x32xf32>
    %62 = vector.broadcast %54 : vector<1x32xf32> to vector<22x32xf32>
    %63 = arith.subf %45, %62 : vector<22x32xf32>
    %64 = arith.mulf %63, %63 : vector<22x32xf32>
    %cst_37 = arith.constant dense<0.000000e+00> : vector<32xf32>
    %65 = vector.multi_reduction <add>, %64, %cst_37 [0] : vector<22x32xf32> to vector<32xf32>
    %66 = vector.shape_cast %65 : vector<32xf32> to vector<1x32xf32>
    %67 = arith.addf %61, %66 : vector<1x32xf32>
    %cst_38 = arith.constant 4.400000e+01 : f32
    %68 = vector.broadcast %cst_38 : f32 to vector<1x32xf32>
    %69 = arith.divf %67, %68 : vector<1x32xf32>
    %c0_39 = arith.constant 0 : index
    %c0_40 = arith.constant 0 : index
    %c0_41 = arith.constant 0 : index
    %70 = vector.load %arg4[%c0_39, %c0_40, %c0_41] : memref<1x1x32xf32, #tpu.memory_space<vmem>>, vector<1x1x32xf32>
    %71 = vector.shape_cast %70 : vector<1x1x32xf32> to vector<1x32xf32>
    %cst_42 = arith.constant 9.99999974E-6 : f32
    %72 = vector.broadcast %cst_42 : f32 to vector<1x32xf32>
    %73 = arith.addf %69, %72 : vector<1x32xf32>
    %74 = math.rsqrt %73 : vector<1x32xf32>
    %75 = arith.mulf %71, %74 : vector<1x32xf32>
    %c0_43 = arith.constant 0 : index
    %c0_44 = arith.constant 0 : index
    %c0_45 = arith.constant 0 : index
    %76 = vector.load %arg5[%c0_43, %c0_44, %c0_45] : memref<1x1x32xf32, #tpu.memory_space<vmem>>, vector<1x1x32xf32>
    %77 = vector.shape_cast %76 : vector<1x1x32xf32> to vector<1x32xf32>
    %78 = arith.mulf %54, %75 : vector<1x32xf32>
    %79 = arith.subf %77, %78 : vector<1x32xf32>
    %80 = vector.broadcast %75 : vector<1x32xf32> to vector<22x32xf32>
    %81 = arith.mulf %28, %80 : vector<22x32xf32>
    %82 = vector.broadcast %79 : vector<1x32xf32> to vector<22x32xf32>
    %83 = arith.addf %81, %82 : vector<22x32xf32>
    %84 = vector.broadcast %75 : vector<1x32xf32> to vector<22x32xf32>
    %85 = arith.mulf %45, %84 : vector<22x32xf32>
    %86 = vector.broadcast %79 : vector<1x32xf32> to vector<22x32xf32>
    %87 = arith.addf %85, %86 : vector<22x32xf32>
    %c0_46 = arith.constant 0 : index
    %c0_47 = arith.constant 0 : index
    %c0_48 = arith.constant 0 : index
    %c0_49 = arith.constant 0 : index
    %88 = vector.load %arg6[%c0_46, %c0_47, %c0_48, %c0_49] : memref<1x6x32x32xf32, #tpu.memory_space<vmem>>, vector<1x1x32x32xf32>
    %89 = vector.shape_cast %88 : vector<1x1x32x32xf32> to vector<32x32xf32>
    %c0_50 = arith.constant 0 : index
    %c1_51 = arith.constant 1 : index
    %c0_52 = arith.constant 0 : index
    %c0_53 = arith.constant 0 : index
    %90 = vector.load %arg6[%c0_50, %c1_51, %c0_52, %c0_53] : memref<1x6x32x32xf32, #tpu.memory_space<vmem>>, vector<1x1x32x32xf32>
    %91 = vector.shape_cast %90 : vector<1x1x32x32xf32> to vector<32x32xf32>
    %c0_54 = arith.constant 0 : index
    %c2_55 = arith.constant 2 : index
    %c0_56 = arith.constant 0 : index
    %c0_57 = arith.constant 0 : index
    %92 = vector.load %arg6[%c0_54, %c2_55, %c0_56, %c0_57] : memref<1x6x32x32xf32, #tpu.memory_space<vmem>>, vector<1x1x32x32xf32>
    %93 = vector.shape_cast %92 : vector<1x1x32x32xf32> to vector<32x32xf32>
    %c0_58 = arith.constant 0 : index
    %c3 = arith.constant 3 : index
    %c0_59 = arith.constant 0 : index
    %c0_60 = arith.constant 0 : index
    %94 = vector.load %arg6[%c0_58, %c3, %c0_59, %c0_60] : memref<1x6x32x32xf32, #tpu.memory_space<vmem>>, vector<1x1x32x32xf32>
    %95 = vector.shape_cast %94 : vector<1x1x32x32xf32> to vector<32x32xf32>
    %c0_61 = arith.constant 0 : index
    %c4 = arith.constant 4 : index
    %c0_62 = arith.constant 0 : index
    %c0_63 = arith.constant 0 : index
    %96 = vector.load %arg6[%c0_61, %c4, %c0_62, %c0_63] : memref<1x6x32x32xf32, #tpu.memory_space<vmem>>, vector<1x1x32x32xf32>
    %97 = vector.shape_cast %96 : vector<1x1x32x32xf32> to vector<32x32xf32>
    %c0_64 = arith.constant 0 : index
    %c5 = arith.constant 5 : index
    %c0_65 = arith.constant 0 : index
    %c0_66 = arith.constant 0 : index
    %98 = vector.load %arg6[%c0_64, %c5, %c0_65, %c0_66] : memref<1x6x32x32xf32, #tpu.memory_space<vmem>>, vector<1x1x32x32xf32>
    %99 = vector.shape_cast %98 : vector<1x1x32x32xf32> to vector<32x32xf32>
    %c0_67 = arith.constant 0 : index
    %c0_68 = arith.constant 0 : index
    %c0_69 = arith.constant 0 : index
    %100 = vector.load %arg7[%c0_67, %c0_68, %c0_69] : memref<1x1x32xf32, #tpu.memory_space<vmem>>, vector<1x1x32xf32>
    %101 = vector.shape_cast %100 : vector<1x1x32xf32> to vector<1x32xf32>
    %cst_70 = arith.constant 0.000000e+00 : f32
    %102 = vector.broadcast %cst_70 : f32 to vector<17x32xf32>
    %103 = vector.extract_strided_slice %83 {offsets = [0, 0], sizes = [17, 32], strides = [1, 1]} : vector<22x32xf32> to vector<17x32xf32>
    %cst_71 = arith.constant dense<0.000000e+00> : vector<17x32xf32>
    %104 = tpu.matmul %103, %89, %cst_71 {dimension_numbers = #tpu.dot_dimension_numbers<[1], [0], [0], [1], [0, 0, 1, 1], [], []>} : vector<17x32xf32>, vector<32x32xf32>, vector<17x32xf32> -> vector<17x32xf32>
    %105 = arith.addf %102, %104 : vector<17x32xf32>
    %106 = vector.extract_strided_slice %83 {offsets = [1, 0], sizes = [17, 32], strides = [1, 1]} : vector<22x32xf32> to vector<17x32xf32>
    %cst_72 = arith.constant dense<0.000000e+00> : vector<17x32xf32>
    %107 = tpu.matmul %106, %91, %cst_72 {dimension_numbers = #tpu.dot_dimension_numbers<[1], [0], [0], [1], [0, 0, 1, 1], [], []>} : vector<17x32xf32>, vector<32x32xf32>, vector<17x32xf32> -> vector<17x32xf32>
    %108 = arith.addf %105, %107 : vector<17x32xf32>
    %109 = vector.extract_strided_slice %83 {offsets = [2, 0], sizes = [17, 32], strides = [1, 1]} : vector<22x32xf32> to vector<17x32xf32>
    %cst_73 = arith.constant dense<0.000000e+00> : vector<17x32xf32>
    %110 = tpu.matmul %109, %93, %cst_73 {dimension_numbers = #tpu.dot_dimension_numbers<[1], [0], [0], [1], [0, 0, 1, 1], [], []>} : vector<17x32xf32>, vector<32x32xf32>, vector<17x32xf32> -> vector<17x32xf32>
    %111 = arith.addf %108, %110 : vector<17x32xf32>
    %112 = vector.extract_strided_slice %83 {offsets = [3, 0], sizes = [17, 32], strides = [1, 1]} : vector<22x32xf32> to vector<17x32xf32>
    %cst_74 = arith.constant dense<0.000000e+00> : vector<17x32xf32>
    %113 = tpu.matmul %112, %95, %cst_74 {dimension_numbers = #tpu.dot_dimension_numbers<[1], [0], [0], [1], [0, 0, 1, 1], [], []>} : vector<17x32xf32>, vector<32x32xf32>, vector<17x32xf32> -> vector<17x32xf32>
    %114 = arith.addf %111, %113 : vector<17x32xf32>
    %115 = vector.extract_strided_slice %83 {offsets = [4, 0], sizes = [17, 32], strides = [1, 1]} : vector<22x32xf32> to vector<17x32xf32>
    %cst_75 = arith.constant dense<0.000000e+00> : vector<17x32xf32>
    %116 = tpu.matmul %115, %97, %cst_75 {dimension_numbers = #tpu.dot_dimension_numbers<[1], [0], [0], [1], [0, 0, 1, 1], [], []>} : vector<17x32xf32>, vector<32x32xf32>, vector<17x32xf32> -> vector<17x32xf32>
    %117 = arith.addf %114, %116 : vector<17x32xf32>
    %118 = vector.extract_strided_slice %83 {offsets = [5, 0], sizes = [17, 32], strides = [1, 1]} : vector<22x32xf32> to vector<17x32xf32>
    %cst_76 = arith.constant dense<0.000000e+00> : vector<17x32xf32>
    %119 = tpu.matmul %118, %99, %cst_76 {dimension_numbers = #tpu.dot_dimension_numbers<[1], [0], [0], [1], [0, 0, 1, 1], [], []>} : vector<17x32xf32>, vector<32x32xf32>, vector<17x32xf32> -> vector<17x32xf32>
    %120 = arith.addf %117, %119 : vector<17x32xf32>
    %121 = vector.broadcast %101 : vector<1x32xf32> to vector<17x32xf32>
    %122 = arith.addf %120, %121 : vector<17x32xf32>
    %cst_77 = arith.constant 0.000000e+00 : f32
    %123 = vector.broadcast %cst_77 : f32 to vector<17x32xf32>
    %124 = arith.cmpf oge, %122, %123 : vector<17x32xf32>
    %cst_78 = arith.constant 0.00999999977 : f32
    %125 = vector.broadcast %cst_78 : f32 to vector<17x32xf32>
    %126 = arith.mulf %125, %122 : vector<17x32xf32>
    %127 = arith.select %124, %122, %126 : vector<17x32xi1>, vector<17x32xf32>
    %cst_79 = arith.constant 0.000000e+00 : f32
    %128 = vector.broadcast %cst_79 : f32 to vector<17x32xf32>
    %129 = vector.extract_strided_slice %87 {offsets = [0, 0], sizes = [17, 32], strides = [1, 1]} : vector<22x32xf32> to vector<17x32xf32>
    %cst_80 = arith.constant dense<0.000000e+00> : vector<17x32xf32>
    %130 = tpu.matmul %129, %89, %cst_80 {dimension_numbers = #tpu.dot_dimension_numbers<[1], [0], [0], [1], [0, 0, 1, 1], [], []>} : vector<17x32xf32>, vector<32x32xf32>, vector<17x32xf32> -> vector<17x32xf32>
    %131 = arith.addf %128, %130 : vector<17x32xf32>
    %132 = vector.extract_strided_slice %87 {offsets = [1, 0], sizes = [17, 32], strides = [1, 1]} : vector<22x32xf32> to vector<17x32xf32>
    %cst_81 = arith.constant dense<0.000000e+00> : vector<17x32xf32>
    %133 = tpu.matmul %132, %91, %cst_81 {dimension_numbers = #tpu.dot_dimension_numbers<[1], [0], [0], [1], [0, 0, 1, 1], [], []>} : vector<17x32xf32>, vector<32x32xf32>, vector<17x32xf32> -> vector<17x32xf32>
    %134 = arith.addf %131, %133 : vector<17x32xf32>
    %135 = vector.extract_strided_slice %87 {offsets = [2, 0], sizes = [17, 32], strides = [1, 1]} : vector<22x32xf32> to vector<17x32xf32>
    %cst_82 = arith.constant dense<0.000000e+00> : vector<17x32xf32>
    %136 = tpu.matmul %135, %93, %cst_82 {dimension_numbers = #tpu.dot_dimension_numbers<[1], [0], [0], [1], [0, 0, 1, 1], [], []>} : vector<17x32xf32>, vector<32x32xf32>, vector<17x32xf32> -> vector<17x32xf32>
    %137 = arith.addf %134, %136 : vector<17x32xf32>
    %138 = vector.extract_strided_slice %87 {offsets = [3, 0], sizes = [17, 32], strides = [1, 1]} : vector<22x32xf32> to vector<17x32xf32>
    %cst_83 = arith.constant dense<0.000000e+00> : vector<17x32xf32>
    %139 = tpu.matmul %138, %95, %cst_83 {dimension_numbers = #tpu.dot_dimension_numbers<[1], [0], [0], [1], [0, 0, 1, 1], [], []>} : vector<17x32xf32>, vector<32x32xf32>, vector<17x32xf32> -> vector<17x32xf32>
    %140 = arith.addf %137, %139 : vector<17x32xf32>
    %141 = vector.extract_strided_slice %87 {offsets = [4, 0], sizes = [17, 32], strides = [1, 1]} : vector<22x32xf32> to vector<17x32xf32>
    %cst_84 = arith.constant dense<0.000000e+00> : vector<17x32xf32>
    %142 = tpu.matmul %141, %97, %cst_84 {dimension_numbers = #tpu.dot_dimension_numbers<[1], [0], [0], [1], [0, 0, 1, 1], [], []>} : vector<17x32xf32>, vector<32x32xf32>, vector<17x32xf32> -> vector<17x32xf32>
    %143 = arith.addf %140, %142 : vector<17x32xf32>
    %144 = vector.extract_strided_slice %87 {offsets = [5, 0], sizes = [17, 32], strides = [1, 1]} : vector<22x32xf32> to vector<17x32xf32>
    %cst_85 = arith.constant dense<0.000000e+00> : vector<17x32xf32>
    %145 = tpu.matmul %144, %99, %cst_85 {dimension_numbers = #tpu.dot_dimension_numbers<[1], [0], [0], [1], [0, 0, 1, 1], [], []>} : vector<17x32xf32>, vector<32x32xf32>, vector<17x32xf32> -> vector<17x32xf32>
    %146 = arith.addf %143, %145 : vector<17x32xf32>
    %147 = vector.broadcast %101 : vector<1x32xf32> to vector<17x32xf32>
    %148 = arith.addf %146, %147 : vector<17x32xf32>
    %cst_86 = arith.constant 0.000000e+00 : f32
    %149 = vector.broadcast %cst_86 : f32 to vector<17x32xf32>
    %150 = arith.cmpf oge, %148, %149 : vector<17x32xf32>
    %cst_87 = arith.constant 0.00999999977 : f32
    %151 = vector.broadcast %cst_87 : f32 to vector<17x32xf32>
    %152 = arith.mulf %151, %148 : vector<17x32xf32>
    %153 = arith.select %150, %148, %152 : vector<17x32xi1>, vector<17x32xf32>
    %cst_88 = arith.constant dense<0.000000e+00> : vector<32xf32>
    %154 = vector.multi_reduction <add>, %127, %cst_88 [0] : vector<17x32xf32> to vector<32xf32>
    %155 = vector.shape_cast %154 : vector<32xf32> to vector<1x32xf32>
    %cst_89 = arith.constant 0.000000e+00 : f32
    %156 = vector.broadcast %cst_89 : f32 to vector<1x32xf32>
    %157 = arith.addf %156, %155 : vector<1x32xf32>
    %cst_90 = arith.constant dense<0.000000e+00> : vector<32xf32>
    %158 = vector.multi_reduction <add>, %153, %cst_90 [0] : vector<17x32xf32> to vector<32xf32>
    %159 = vector.shape_cast %158 : vector<32xf32> to vector<1x32xf32>
    %160 = arith.addf %157, %159 : vector<1x32xf32>
    %cst_91 = arith.constant 3.400000e+01 : f32
    %161 = vector.broadcast %cst_91 : f32 to vector<1x32xf32>
    %162 = arith.divf %160, %161 : vector<1x32xf32>
    %163 = vector.broadcast %162 : vector<1x32xf32> to vector<17x32xf32>
    %164 = arith.subf %127, %163 : vector<17x32xf32>
    %165 = arith.mulf %164, %164 : vector<17x32xf32>
    %cst_92 = arith.constant dense<0.000000e+00> : vector<32xf32>
    %166 = vector.multi_reduction <add>, %165, %cst_92 [0] : vector<17x32xf32> to vector<32xf32>
    %167 = vector.shape_cast %166 : vector<32xf32> to vector<1x32xf32>
    %cst_93 = arith.constant 0.000000e+00 : f32
    %168 = vector.broadcast %cst_93 : f32 to vector<1x32xf32>
    %169 = arith.addf %168, %167 : vector<1x32xf32>
    %170 = vector.broadcast %162 : vector<1x32xf32> to vector<17x32xf32>
    %171 = arith.subf %153, %170 : vector<17x32xf32>
    %172 = arith.mulf %171, %171 : vector<17x32xf32>
    %cst_94 = arith.constant dense<0.000000e+00> : vector<32xf32>
    %173 = vector.multi_reduction <add>, %172, %cst_94 [0] : vector<17x32xf32> to vector<32xf32>
    %174 = vector.shape_cast %173 : vector<32xf32> to vector<1x32xf32>
    %175 = arith.addf %169, %174 : vector<1x32xf32>
    %cst_95 = arith.constant 3.400000e+01 : f32
    %176 = vector.broadcast %cst_95 : f32 to vector<1x32xf32>
    %177 = arith.divf %175, %176 : vector<1x32xf32>
    %c0_96 = arith.constant 0 : index
    %c0_97 = arith.constant 0 : index
    %c0_98 = arith.constant 0 : index
    %178 = vector.load %arg8[%c0_96, %c0_97, %c0_98] : memref<1x1x32xf32, #tpu.memory_space<vmem>>, vector<1x1x32xf32>
    %179 = vector.shape_cast %178 : vector<1x1x32xf32> to vector<1x32xf32>
    %cst_99 = arith.constant 9.99999974E-6 : f32
    %180 = vector.broadcast %cst_99 : f32 to vector<1x32xf32>
    %181 = arith.addf %177, %180 : vector<1x32xf32>
    %182 = math.rsqrt %181 : vector<1x32xf32>
    %183 = arith.mulf %179, %182 : vector<1x32xf32>
    %c0_100 = arith.constant 0 : index
    %c0_101 = arith.constant 0 : index
    %c0_102 = arith.constant 0 : index
    %184 = vector.load %arg9[%c0_100, %c0_101, %c0_102] : memref<1x1x32xf32, #tpu.memory_space<vmem>>, vector<1x1x32xf32>
    %185 = vector.shape_cast %184 : vector<1x1x32xf32> to vector<1x32xf32>
    %186 = arith.mulf %162, %183 : vector<1x32xf32>
    %187 = arith.subf %185, %186 : vector<1x32xf32>
    %188 = vector.broadcast %183 : vector<1x32xf32> to vector<17x32xf32>
    %189 = arith.mulf %127, %188 : vector<17x32xf32>
    %190 = vector.broadcast %187 : vector<1x32xf32> to vector<17x32xf32>
    %191 = arith.addf %189, %190 : vector<17x32xf32>
    %192 = vector.broadcast %183 : vector<1x32xf32> to vector<17x32xf32>
    %193 = arith.mulf %153, %192 : vector<17x32xf32>
    %194 = vector.broadcast %187 : vector<1x32xf32> to vector<17x32xf32>
    %195 = arith.addf %193, %194 : vector<17x32xf32>
    %c0_103 = arith.constant 0 : index
    %c0_104 = arith.constant 0 : index
    %c0_105 = arith.constant 0 : index
    %c0_106 = arith.constant 0 : index
    %196 = vector.load %arg10[%c0_103, %c0_104, %c0_105, %c0_106] : memref<1x9x32x32xf32, #tpu.memory_space<vmem>>, vector<1x1x32x32xf32>
    %197 = vector.shape_cast %196 : vector<1x1x32x32xf32> to vector<32x32xf32>
    %c0_107 = arith.constant 0 : index
    %c1_108 = arith.constant 1 : index
    %c0_109 = arith.constant 0 : index
    %c0_110 = arith.constant 0 : index
    %198 = vector.load %arg10[%c0_107, %c1_108, %c0_109, %c0_110] : memref<1x9x32x32xf32, #tpu.memory_space<vmem>>, vector<1x1x32x32xf32>
    %199 = vector.shape_cast %198 : vector<1x1x32x32xf32> to vector<32x32xf32>
    %c0_111 = arith.constant 0 : index
    %c2_112 = arith.constant 2 : index
    %c0_113 = arith.constant 0 : index
    %c0_114 = arith.constant 0 : index
    %200 = vector.load %arg10[%c0_111, %c2_112, %c0_113, %c0_114] : memref<1x9x32x32xf32, #tpu.memory_space<vmem>>, vector<1x1x32x32xf32>
    %201 = vector.shape_cast %200 : vector<1x1x32x32xf32> to vector<32x32xf32>
    %c0_115 = arith.constant 0 : index
    %c3_116 = arith.constant 3 : index
    %c0_117 = arith.constant 0 : index
    %c0_118 = arith.constant 0 : index
    %202 = vector.load %arg10[%c0_115, %c3_116, %c0_117, %c0_118] : memref<1x9x32x32xf32, #tpu.memory_space<vmem>>, vector<1x1x32x32xf32>
    %203 = vector.shape_cast %202 : vector<1x1x32x32xf32> to vector<32x32xf32>
    %c0_119 = arith.constant 0 : index
    %c4_120 = arith.constant 4 : index
    %c0_121 = arith.constant 0 : index
    %c0_122 = arith.constant 0 : index
    %204 = vector.load %arg10[%c0_119, %c4_120, %c0_121, %c0_122] : memref<1x9x32x32xf32, #tpu.memory_space<vmem>>, vector<1x1x32x32xf32>
    %205 = vector.shape_cast %204 : vector<1x1x32x32xf32> to vector<32x32xf32>
    %c0_123 = arith.constant 0 : index
    %c5_124 = arith.constant 5 : index
    %c0_125 = arith.constant 0 : index
    %c0_126 = arith.constant 0 : index
    %206 = vector.load %arg10[%c0_123, %c5_124, %c0_125, %c0_126] : memref<1x9x32x32xf32, #tpu.memory_space<vmem>>, vector<1x1x32x32xf32>
    %207 = vector.shape_cast %206 : vector<1x1x32x32xf32> to vector<32x32xf32>
    %c0_127 = arith.constant 0 : index
    %c6 = arith.constant 6 : index
    %c0_128 = arith.constant 0 : index
    %c0_129 = arith.constant 0 : index
    %208 = vector.load %arg10[%c0_127, %c6, %c0_128, %c0_129] : memref<1x9x32x32xf32, #tpu.memory_space<vmem>>, vector<1x1x32x32xf32>
    %209 = vector.shape_cast %208 : vector<1x1x32x32xf32> to vector<32x32xf32>
    %c0_130 = arith.constant 0 : index
    %c7 = arith.constant 7 : index
    %c0_131 = arith.constant 0 : index
    %c0_132 = arith.constant 0 : index
    %210 = vector.load %arg10[%c0_130, %c7, %c0_131, %c0_132] : memref<1x9x32x32xf32, #tpu.memory_space<vmem>>, vector<1x1x32x32xf32>
    %211 = vector.shape_cast %210 : vector<1x1x32x32xf32> to vector<32x32xf32>
    %c0_133 = arith.constant 0 : index
    %c8 = arith.constant 8 : index
    %c0_134 = arith.constant 0 : index
    %c0_135 = arith.constant 0 : index
    %212 = vector.load %arg10[%c0_133, %c8, %c0_134, %c0_135] : memref<1x9x32x32xf32, #tpu.memory_space<vmem>>, vector<1x1x32x32xf32>
    %213 = vector.shape_cast %212 : vector<1x1x32x32xf32> to vector<32x32xf32>
    %c0_136 = arith.constant 0 : index
    %c0_137 = arith.constant 0 : index
    %c0_138 = arith.constant 0 : index
    %214 = vector.load %arg11[%c0_136, %c0_137, %c0_138] : memref<1x1x32xf32, #tpu.memory_space<vmem>>, vector<1x1x32xf32>
    %215 = vector.shape_cast %214 : vector<1x1x32xf32> to vector<1x32xf32>
    %cst_139 = arith.constant 0.000000e+00 : f32
    %216 = vector.broadcast %cst_139 : f32 to vector<9x32xf32>
    %217 = vector.extract_strided_slice %191 {offsets = [0, 0], sizes = [9, 32], strides = [1, 1]} : vector<17x32xf32> to vector<9x32xf32>
    %cst_140 = arith.constant dense<0.000000e+00> : vector<9x32xf32>
    %218 = tpu.matmul %217, %197, %cst_140 {dimension_numbers = #tpu.dot_dimension_numbers<[1], [0], [0], [1], [0, 0, 1, 1], [], []>} : vector<9x32xf32>, vector<32x32xf32>, vector<9x32xf32> -> vector<9x32xf32>
    %219 = arith.addf %216, %218 : vector<9x32xf32>
    %220 = vector.extract_strided_slice %191 {offsets = [1, 0], sizes = [9, 32], strides = [1, 1]} : vector<17x32xf32> to vector<9x32xf32>
    %cst_141 = arith.constant dense<0.000000e+00> : vector<9x32xf32>
    %221 = tpu.matmul %220, %199, %cst_141 {dimension_numbers = #tpu.dot_dimension_numbers<[1], [0], [0], [1], [0, 0, 1, 1], [], []>} : vector<9x32xf32>, vector<32x32xf32>, vector<9x32xf32> -> vector<9x32xf32>
    %222 = arith.addf %219, %221 : vector<9x32xf32>
    %223 = vector.extract_strided_slice %191 {offsets = [2, 0], sizes = [9, 32], strides = [1, 1]} : vector<17x32xf32> to vector<9x32xf32>
    %cst_142 = arith.constant dense<0.000000e+00> : vector<9x32xf32>
    %224 = tpu.matmul %223, %201, %cst_142 {dimension_numbers = #tpu.dot_dimension_numbers<[1], [0], [0], [1], [0, 0, 1, 1], [], []>} : vector<9x32xf32>, vector<32x32xf32>, vector<9x32xf32> -> vector<9x32xf32>
    %225 = arith.addf %222, %224 : vector<9x32xf32>
    %226 = vector.extract_strided_slice %191 {offsets = [3, 0], sizes = [9, 32], strides = [1, 1]} : vector<17x32xf32> to vector<9x32xf32>
    %cst_143 = arith.constant dense<0.000000e+00> : vector<9x32xf32>
    %227 = tpu.matmul %226, %203, %cst_143 {dimension_numbers = #tpu.dot_dimension_numbers<[1], [0], [0], [1], [0, 0, 1, 1], [], []>} : vector<9x32xf32>, vector<32x32xf32>, vector<9x32xf32> -> vector<9x32xf32>
    %228 = arith.addf %225, %227 : vector<9x32xf32>
    %229 = vector.extract_strided_slice %191 {offsets = [4, 0], sizes = [9, 32], strides = [1, 1]} : vector<17x32xf32> to vector<9x32xf32>
    %cst_144 = arith.constant dense<0.000000e+00> : vector<9x32xf32>
    %230 = tpu.matmul %229, %205, %cst_144 {dimension_numbers = #tpu.dot_dimension_numbers<[1], [0], [0], [1], [0, 0, 1, 1], [], []>} : vector<9x32xf32>, vector<32x32xf32>, vector<9x32xf32> -> vector<9x32xf32>
    %231 = arith.addf %228, %230 : vector<9x32xf32>
    %232 = vector.extract_strided_slice %191 {offsets = [5, 0], sizes = [9, 32], strides = [1, 1]} : vector<17x32xf32> to vector<9x32xf32>
    %cst_145 = arith.constant dense<0.000000e+00> : vector<9x32xf32>
    %233 = tpu.matmul %232, %207, %cst_145 {dimension_numbers = #tpu.dot_dimension_numbers<[1], [0], [0], [1], [0, 0, 1, 1], [], []>} : vector<9x32xf32>, vector<32x32xf32>, vector<9x32xf32> -> vector<9x32xf32>
    %234 = arith.addf %231, %233 : vector<9x32xf32>
    %235 = vector.extract_strided_slice %191 {offsets = [6, 0], sizes = [9, 32], strides = [1, 1]} : vector<17x32xf32> to vector<9x32xf32>
    %cst_146 = arith.constant dense<0.000000e+00> : vector<9x32xf32>
    %236 = tpu.matmul %235, %209, %cst_146 {dimension_numbers = #tpu.dot_dimension_numbers<[1], [0], [0], [1], [0, 0, 1, 1], [], []>} : vector<9x32xf32>, vector<32x32xf32>, vector<9x32xf32> -> vector<9x32xf32>
    %237 = arith.addf %234, %236 : vector<9x32xf32>
    %238 = vector.extract_strided_slice %191 {offsets = [7, 0], sizes = [9, 32], strides = [1, 1]} : vector<17x32xf32> to vector<9x32xf32>
    %cst_147 = arith.constant dense<0.000000e+00> : vector<9x32xf32>
    %239 = tpu.matmul %238, %211, %cst_147 {dimension_numbers = #tpu.dot_dimension_numbers<[1], [0], [0], [1], [0, 0, 1, 1], [], []>} : vector<9x32xf32>, vector<32x32xf32>, vector<9x32xf32> -> vector<9x32xf32>
    %240 = arith.addf %237, %239 : vector<9x32xf32>
    %241 = vector.extract_strided_slice %191 {offsets = [8, 0], sizes = [9, 32], strides = [1, 1]} : vector<17x32xf32> to vector<9x32xf32>
    %cst_148 = arith.constant dense<0.000000e+00> : vector<9x32xf32>
    %242 = tpu.matmul %241, %213, %cst_148 {dimension_numbers = #tpu.dot_dimension_numbers<[1], [0], [0], [1], [0, 0, 1, 1], [], []>} : vector<9x32xf32>, vector<32x32xf32>, vector<9x32xf32> -> vector<9x32xf32>
    %243 = arith.addf %240, %242 : vector<9x32xf32>
    %244 = vector.broadcast %215 : vector<1x32xf32> to vector<9x32xf32>
    %245 = arith.addf %243, %244 : vector<9x32xf32>
    %cst_149 = arith.constant 0.000000e+00 : f32
    %246 = vector.broadcast %cst_149 : f32 to vector<9x32xf32>
    %247 = arith.cmpf oge, %245, %246 : vector<9x32xf32>
    %cst_150 = arith.constant 0.00999999977 : f32
    %248 = vector.broadcast %cst_150 : f32 to vector<9x32xf32>
    %249 = arith.mulf %248, %245 : vector<9x32xf32>
    %250 = arith.select %247, %245, %249 : vector<9x32xi1>, vector<9x32xf32>
    %cst_151 = arith.constant 0.000000e+00 : f32
    %251 = vector.broadcast %cst_151 : f32 to vector<9x32xf32>
    %252 = vector.extract_strided_slice %195 {offsets = [0, 0], sizes = [9, 32], strides = [1, 1]} : vector<17x32xf32> to vector<9x32xf32>
    %cst_152 = arith.constant dense<0.000000e+00> : vector<9x32xf32>
    %253 = tpu.matmul %252, %197, %cst_152 {dimension_numbers = #tpu.dot_dimension_numbers<[1], [0], [0], [1], [0, 0, 1, 1], [], []>} : vector<9x32xf32>, vector<32x32xf32>, vector<9x32xf32> -> vector<9x32xf32>
    %254 = arith.addf %251, %253 : vector<9x32xf32>
    %255 = vector.extract_strided_slice %195 {offsets = [1, 0], sizes = [9, 32], strides = [1, 1]} : vector<17x32xf32> to vector<9x32xf32>
    %cst_153 = arith.constant dense<0.000000e+00> : vector<9x32xf32>
    %256 = tpu.matmul %255, %199, %cst_153 {dimension_numbers = #tpu.dot_dimension_numbers<[1], [0], [0], [1], [0, 0, 1, 1], [], []>} : vector<9x32xf32>, vector<32x32xf32>, vector<9x32xf32> -> vector<9x32xf32>
    %257 = arith.addf %254, %256 : vector<9x32xf32>
    %258 = vector.extract_strided_slice %195 {offsets = [2, 0], sizes = [9, 32], strides = [1, 1]} : vector<17x32xf32> to vector<9x32xf32>
    %cst_154 = arith.constant dense<0.000000e+00> : vector<9x32xf32>
    %259 = tpu.matmul %258, %201, %cst_154 {dimension_numbers = #tpu.dot_dimension_numbers<[1], [0], [0], [1], [0, 0, 1, 1], [], []>} : vector<9x32xf32>, vector<32x32xf32>, vector<9x32xf32> -> vector<9x32xf32>
    %260 = arith.addf %257, %259 : vector<9x32xf32>
    %261 = vector.extract_strided_slice %195 {offsets = [3, 0], sizes = [9, 32], strides = [1, 1]} : vector<17x32xf32> to vector<9x32xf32>
    %cst_155 = arith.constant dense<0.000000e+00> : vector<9x32xf32>
    %262 = tpu.matmul %261, %203, %cst_155 {dimension_numbers = #tpu.dot_dimension_numbers<[1], [0], [0], [1], [0, 0, 1, 1], [], []>} : vector<9x32xf32>, vector<32x32xf32>, vector<9x32xf32> -> vector<9x32xf32>
    %263 = arith.addf %260, %262 : vector<9x32xf32>
    %264 = vector.extract_strided_slice %195 {offsets = [4, 0], sizes = [9, 32], strides = [1, 1]} : vector<17x32xf32> to vector<9x32xf32>
    %cst_156 = arith.constant dense<0.000000e+00> : vector<9x32xf32>
    %265 = tpu.matmul %264, %205, %cst_156 {dimension_numbers = #tpu.dot_dimension_numbers<[1], [0], [0], [1], [0, 0, 1, 1], [], []>} : vector<9x32xf32>, vector<32x32xf32>, vector<9x32xf32> -> vector<9x32xf32>
    %266 = arith.addf %263, %265 : vector<9x32xf32>
    %267 = vector.extract_strided_slice %195 {offsets = [5, 0], sizes = [9, 32], strides = [1, 1]} : vector<17x32xf32> to vector<9x32xf32>
    %cst_157 = arith.constant dense<0.000000e+00> : vector<9x32xf32>
    %268 = tpu.matmul %267, %207, %cst_157 {dimension_numbers = #tpu.dot_dimension_numbers<[1], [0], [0], [1], [0, 0, 1, 1], [], []>} : vector<9x32xf32>, vector<32x32xf32>, vector<9x32xf32> -> vector<9x32xf32>
    %269 = arith.addf %266, %268 : vector<9x32xf32>
    %270 = vector.extract_strided_slice %195 {offsets = [6, 0], sizes = [9, 32], strides = [1, 1]} : vector<17x32xf32> to vector<9x32xf32>
    %cst_158 = arith.constant dense<0.000000e+00> : vector<9x32xf32>
    %271 = tpu.matmul %270, %209, %cst_158 {dimension_numbers = #tpu.dot_dimension_numbers<[1], [0], [0], [1], [0, 0, 1, 1], [], []>} : vector<9x32xf32>, vector<32x32xf32>, vector<9x32xf32> -> vector<9x32xf32>
    %272 = arith.addf %269, %271 : vector<9x32xf32>
    %273 = vector.extract_strided_slice %195 {offsets = [7, 0], sizes = [9, 32], strides = [1, 1]} : vector<17x32xf32> to vector<9x32xf32>
    %cst_159 = arith.constant dense<0.000000e+00> : vector<9x32xf32>
    %274 = tpu.matmul %273, %211, %cst_159 {dimension_numbers = #tpu.dot_dimension_numbers<[1], [0], [0], [1], [0, 0, 1, 1], [], []>} : vector<9x32xf32>, vector<32x32xf32>, vector<9x32xf32> -> vector<9x32xf32>
    %275 = arith.addf %272, %274 : vector<9x32xf32>
    %276 = vector.extract_strided_slice %195 {offsets = [8, 0], sizes = [9, 32], strides = [1, 1]} : vector<17x32xf32> to vector<9x32xf32>
    %cst_160 = arith.constant dense<0.000000e+00> : vector<9x32xf32>
    %277 = tpu.matmul %276, %213, %cst_160 {dimension_numbers = #tpu.dot_dimension_numbers<[1], [0], [0], [1], [0, 0, 1, 1], [], []>} : vector<9x32xf32>, vector<32x32xf32>, vector<9x32xf32> -> vector<9x32xf32>
    %278 = arith.addf %275, %277 : vector<9x32xf32>
    %279 = vector.broadcast %215 : vector<1x32xf32> to vector<9x32xf32>
    %280 = arith.addf %278, %279 : vector<9x32xf32>
    %cst_161 = arith.constant 0.000000e+00 : f32
    %281 = vector.broadcast %cst_161 : f32 to vector<9x32xf32>
    %282 = arith.cmpf oge, %280, %281 : vector<9x32xf32>
    %cst_162 = arith.constant 0.00999999977 : f32
    %283 = vector.broadcast %cst_162 : f32 to vector<9x32xf32>
    %284 = arith.mulf %283, %280 : vector<9x32xf32>
    %285 = arith.select %282, %280, %284 : vector<9x32xi1>, vector<9x32xf32>
    %cst_163 = arith.constant dense<0.000000e+00> : vector<32xf32>
    %286 = vector.multi_reduction <add>, %250, %cst_163 [0] : vector<9x32xf32> to vector<32xf32>
    %287 = vector.shape_cast %286 : vector<32xf32> to vector<1x32xf32>
    %cst_164 = arith.constant 0.000000e+00 : f32
    %288 = vector.broadcast %cst_164 : f32 to vector<1x32xf32>
    %289 = arith.addf %288, %287 : vector<1x32xf32>
    %cst_165 = arith.constant dense<0.000000e+00> : vector<32xf32>
    %290 = vector.multi_reduction <add>, %285, %cst_165 [0] : vector<9x32xf32> to vector<32xf32>
    %291 = vector.shape_cast %290 : vector<32xf32> to vector<1x32xf32>
    %292 = arith.addf %289, %291 : vector<1x32xf32>
    %cst_166 = arith.constant 1.800000e+01 : f32
    %293 = vector.broadcast %cst_166 : f32 to vector<1x32xf32>
    %294 = arith.divf %292, %293 : vector<1x32xf32>
    %295 = vector.broadcast %294 : vector<1x32xf32> to vector<9x32xf32>
    %296 = arith.subf %250, %295 : vector<9x32xf32>
    %297 = arith.mulf %296, %296 : vector<9x32xf32>
    %cst_167 = arith.constant dense<0.000000e+00> : vector<32xf32>
    %298 = vector.multi_reduction <add>, %297, %cst_167 [0] : vector<9x32xf32> to vector<32xf32>
    %299 = vector.shape_cast %298 : vector<32xf32> to vector<1x32xf32>
    %cst_168 = arith.constant 0.000000e+00 : f32
    %300 = vector.broadcast %cst_168 : f32 to vector<1x32xf32>
    %301 = arith.addf %300, %299 : vector<1x32xf32>
    %302 = vector.broadcast %294 : vector<1x32xf32> to vector<9x32xf32>
    %303 = arith.subf %285, %302 : vector<9x32xf32>
    %304 = arith.mulf %303, %303 : vector<9x32xf32>
    %cst_169 = arith.constant dense<0.000000e+00> : vector<32xf32>
    %305 = vector.multi_reduction <add>, %304, %cst_169 [0] : vector<9x32xf32> to vector<32xf32>
    %306 = vector.shape_cast %305 : vector<32xf32> to vector<1x32xf32>
    %307 = arith.addf %301, %306 : vector<1x32xf32>
    %cst_170 = arith.constant 1.800000e+01 : f32
    %308 = vector.broadcast %cst_170 : f32 to vector<1x32xf32>
    %309 = arith.divf %307, %308 : vector<1x32xf32>
    %c0_171 = arith.constant 0 : index
    %c0_172 = arith.constant 0 : index
    %c0_173 = arith.constant 0 : index
    %310 = vector.load %arg12[%c0_171, %c0_172, %c0_173] : memref<1x1x32xf32, #tpu.memory_space<vmem>>, vector<1x1x32xf32>
    %311 = vector.shape_cast %310 : vector<1x1x32xf32> to vector<1x32xf32>
    %cst_174 = arith.constant 9.99999974E-6 : f32
    %312 = vector.broadcast %cst_174 : f32 to vector<1x32xf32>
    %313 = arith.addf %309, %312 : vector<1x32xf32>
    %314 = math.rsqrt %313 : vector<1x32xf32>
    %315 = arith.mulf %311, %314 : vector<1x32xf32>
    %c0_175 = arith.constant 0 : index
    %c0_176 = arith.constant 0 : index
    %c0_177 = arith.constant 0 : index
    %316 = vector.load %arg13[%c0_175, %c0_176, %c0_177] : memref<1x1x32xf32, #tpu.memory_space<vmem>>, vector<1x1x32xf32>
    %317 = vector.shape_cast %316 : vector<1x1x32xf32> to vector<1x32xf32>
    %318 = arith.mulf %294, %315 : vector<1x32xf32>
    %319 = arith.subf %317, %318 : vector<1x32xf32>
    %320 = vector.broadcast %315 : vector<1x32xf32> to vector<9x32xf32>
    %321 = arith.mulf %250, %320 : vector<9x32xf32>
    %322 = vector.broadcast %319 : vector<1x32xf32> to vector<9x32xf32>
    %323 = arith.addf %321, %322 : vector<9x32xf32>
    %324 = vector.broadcast %315 : vector<1x32xf32> to vector<9x32xf32>
    %325 = arith.mulf %285, %324 : vector<9x32xf32>
    %326 = vector.broadcast %319 : vector<1x32xf32> to vector<9x32xf32>
    %327 = arith.addf %325, %326 : vector<9x32xf32>
    %c0_178 = arith.constant 0 : index
    %c0_179 = arith.constant 0 : index
    %c0_180 = arith.constant 0 : index
    %c0_181 = arith.constant 0 : index
    %328 = vector.load %arg14[%c0_178, %c0_179, %c0_180, %c0_181] : memref<1x2x9x32xf32, #tpu.memory_space<vmem>>, vector<1x1x9x32xf32>
    %329 = vector.shape_cast %328 : vector<1x1x9x32xf32> to vector<9x32xf32>
    %330 = vector.shape_cast %323 : vector<9x32xf32> to vector<1x1x9x32xf32>
    tpu.vector_store %arg14[%c0_178, %c0_179, %c0_180, %c0_181], %330 {strides = array<i32>} : memref<1x2x9x32xf32, #tpu.memory_space<vmem>>, vector<1x1x9x32xf32>,
    %c0_182 = arith.constant 0 : index
    %c1_183 = arith.constant 1 : index
    %c0_184 = arith.constant 0 : index
    %c0_185 = arith.constant 0 : index
    %331 = vector.load %arg14[%c0_182, %c1_183, %c0_184, %c0_185] : memref<1x2x9x32xf32, #tpu.memory_space<vmem>>, vector<1x1x9x32xf32>
    %332 = vector.shape_cast %331 : vector<1x1x9x32xf32> to vector<9x32xf32>
    %333 = vector.shape_cast %327 : vector<9x32xf32> to vector<1x1x9x32xf32>
    tpu.vector_store %arg14[%c0_182, %c1_183, %c0_184, %c0_185], %333 {strides = array<i32>} : memref<1x2x9x32xf32, #tpu.memory_space<vmem>>, vector<1x1x9x32xf32>,
    return
  }
  func.func @transform_0(%arg0: i32) -> (i32, i32, i32, i32) {
    %c0_i32 = arith.constant 0 : i32
    %c0_i32_0 = arith.constant 0 : i32
    %c0_i32_1 = arith.constant 0 : i32
    %c0_i32_2 = arith.constant 0 : i32
    return %arg0, %c0_i32, %c0_i32_0, %c0_i32_1 : i32, i32, i32, i32
  }
  func.func @transform_1(%arg0: i32) -> (i32, i32, i32, i32) {
    %c0_i32 = arith.constant 0 : i32
    %c0_i32_0 = arith.constant 0 : i32
    %c0_i32_1 = arith.constant 0 : i32
    %c0_i32_2 = arith.constant 0 : i32
    return %arg0, %c0_i32, %c0_i32_0, %c0_i32_1 : i32, i32, i32, i32
  }
  func.func @transform_2(%arg0: i32) -> (i32, i32, i32) {
    %c0_i32 = arith.constant 0 : i32
    %c0_i32_0 = arith.constant 0 : i32
    %c0_i32_1 = arith.constant 0 : i32
    return %arg0, %c0_i32, %c0_i32_0 : i32, i32, i32
  }
  func.func @transform_3(%arg0: i32) -> (i32, i32, i32) {
    %c0_i32 = arith.constant 0 : i32
    %c0_i32_0 = arith.constant 0 : i32
    %c0_i32_1 = arith.constant 0 : i32
    return %arg0, %c0_i32, %c0_i32_0 : i32, i32, i32
  }
  func.func @transform_4(%arg0: i32) -> (i32, i32, i32) {
    %c0_i32 = arith.constant 0 : i32
    %c0_i32_0 = arith.constant 0 : i32
    %c0_i32_1 = arith.constant 0 : i32
    return %arg0, %c0_i32, %c0_i32_0 : i32, i32, i32
  }
  func.func @transform_5(%arg0: i32) -> (i32, i32, i32, i32) {
    %c0_i32 = arith.constant 0 : i32
    %c0_i32_0 = arith.constant 0 : i32
    %c0_i32_1 = arith.constant 0 : i32
    %c0_i32_2 = arith.constant 0 : i32
    return %arg0, %c0_i32, %c0_i32_0, %c0_i32_1 : i32, i32, i32, i32
  }
  func.func @transform_6(%arg0: i32) -> (i32, i32, i32) {
    %c0_i32 = arith.constant 0 : i32
    %c0_i32_0 = arith.constant 0 : i32
    %c0_i32_1 = arith.constant 0 : i32
    return %arg0, %c0_i32, %c0_i32_0 : i32, i32, i32
  }
  func.func @transform_7(%arg0: i32) -> (i32, i32, i32) {
    %c0_i32 = arith.constant 0 : i32
    %c0_i32_0 = arith.constant 0 : i32
    %c0_i32_1 = arith.constant 0 : i32
    return %arg0, %c0_i32, %c0_i32_0 : i32, i32, i32
  }
  func.func @transform_8(%arg0: i32) -> (i32, i32, i32) {
    %c0_i32 = arith.constant 0 : i32
    %c0_i32_0 = arith.constant 0 : i32
    %c0_i32_1 = arith.constant 0 : i32
    return %arg0, %c0_i32, %c0_i32_0 : i32, i32, i32
  }
  func.func @transform_9(%arg0: i32) -> (i32, i32, i32, i32) {
    %c0_i32 = arith.constant 0 : i32
    %c0_i32_0 = arith.constant 0 : i32
    %c0_i32_1 = arith.constant 0 : i32
    %c0_i32_2 = arith.constant 0 : i32
    return %arg0, %c0_i32, %c0_i32_0, %c0_i32_1 : i32, i32, i32, i32
  }
  func.func @transform_10(%arg0: i32) -> (i32, i32, i32) {
    %c0_i32 = arith.constant 0 : i32
    %c0_i32_0 = arith.constant 0 : i32
    %c0_i32_1 = arith.constant 0 : i32
    return %arg0, %c0_i32, %c0_i32_0 : i32, i32, i32
  }
  func.func @transform_11(%arg0: i32) -> (i32, i32, i32) {
    %c0_i32 = arith.constant 0 : i32
    %c0_i32_0 = arith.constant 0 : i32
    %c0_i32_1 = arith.constant 0 : i32
    return %arg0, %c0_i32, %c0_i32_0 : i32, i32, i32
  }
  func.func @transform_12(%arg0: i32) -> (i32, i32, i32) {
    %c0_i32 = arith.constant 0 : i32
    %c0_i32_0 = arith.constant 0 : i32
    %c0_i32_1 = arith.constant 0 : i32
    return %arg0, %c0_i32, %c0_i32_0 : i32, i32, i32
  }
  func.func @transform_13(%arg0: i32) -> (i32, i32, i32, i32) {
    %c0_i32 = arith.constant 0 : i32
    %c0_i32_0 = arith.constant 0 : i32
    %c0_i32_1 = arith.constant 0 : i32
    %c0_i32_2 = arith.constant 0 : i32
    return %arg0, %c0_i32, %c0_i32_0, %c0_i32_1 : i32, i32, i32, i32
  }
}

module attributes {stable_mosaic.version = 11 : i64} {
  func.func @_ban_decoder_kernel(%arg0: i32, %arg1: memref<2x9x32xf32, #tpu.memory_space<vmem>>, %arg2: memref<2x9x32xf32, #tpu.memory_space<vmem>>, %arg3: memref<32x96xf32, #tpu.memory_space<vmem>>, %arg4: memref<1x96xf32, #tpu.memory_space<vmem>>, %arg5: memref<32x96xf32, #tpu.memory_space<vmem>>, %arg6: memref<1x96xf32, #tpu.memory_space<vmem>>, %arg7: memref<1x96xf32, #tpu.memory_space<vmem>>, %arg8: memref<1x1xf32, #tpu.memory_space<vmem>>, %arg9: memref<96x32xf32, #tpu.memory_space<vmem>>, %arg10: memref<1x32xf32, #tpu.memory_space<vmem>>, %arg11: memref<1x32xf32, #tpu.memory_space<vmem>>, %arg12: memref<32x128xf32, #tpu.memory_space<vmem>>, %arg13: memref<1x128xf32, #tpu.memory_space<vmem>>, %arg14: memref<1x128xf32, #tpu.memory_space<vmem>>, %arg15: memref<1x128xf32, #tpu.memory_space<vmem>>, %arg16: memref<128x1xf32, #tpu.memory_space<vmem>>, %arg17: memref<1x1xf32, #tpu.memory_space<vmem>>, %arg18: memref<2x1xf32, #tpu.memory_space<vmem>>, %arg19: memref<2x96xf32, #tpu.memory_space<vmem>>) attributes {dimension_semantics = [#tpu.dimension_semantics<arbitrary>], iteration_bounds = array<i64: 1>, scalar_prefetch = 0 : i64, scratch_operands = 1 : i64, tpu.core_type = #tpu.core_type<tc>, window_params = [{pipeline_mode = #tpu.pipeline_mode<synchronous>, transform_indices = @transform_0, window_bounds = array<i64: 2, 9, 32>}, {pipeline_mode = #tpu.pipeline_mode<synchronous>, transform_indices = @transform_1, window_bounds = array<i64: 2, 9, 32>}, {pipeline_mode = #tpu.pipeline_mode<synchronous>, transform_indices = @transform_2, window_bounds = array<i64: 32, 96>}, {pipeline_mode = #tpu.pipeline_mode<synchronous>, transform_indices = @transform_3, window_bounds = array<i64: 1, 96>}, {pipeline_mode = #tpu.pipeline_mode<synchronous>, transform_indices = @transform_4, window_bounds = array<i64: 32, 96>}, {pipeline_mode = #tpu.pipeline_mode<synchronous>, transform_indices = @transform_5, window_bounds = array<i64: 1, 96>}, {pipeline_mode = #tpu.pipeline_mode<synchronous>, transform_indices = @transform_6, window_bounds = array<i64: 1, 96>}, {pipeline_mode = #tpu.pipeline_mode<synchronous>, transform_indices = @transform_7, window_bounds = array<i64: 1, 1>}, {pipeline_mode = #tpu.pipeline_mode<synchronous>, transform_indices = @transform_8, window_bounds = array<i64: 96, 32>}, {pipeline_mode = #tpu.pipeline_mode<synchronous>, transform_indices = @transform_9, window_bounds = array<i64: 1, 32>}, {pipeline_mode = #tpu.pipeline_mode<synchronous>, transform_indices = @transform_10, window_bounds = array<i64: 1, 32>}, {pipeline_mode = #tpu.pipeline_mode<synchronous>, transform_indices = @transform_11, window_bounds = array<i64: 32, 128>}, {pipeline_mode = #tpu.pipeline_mode<synchronous>, transform_indices = @transform_12, window_bounds = array<i64: 1, 128>}, {pipeline_mode = #tpu.pipeline_mode<synchronous>, transform_indices = @transform_13, window_bounds = array<i64: 1, 128>}, {pipeline_mode = #tpu.pipeline_mode<synchronous>, transform_indices = @transform_14, window_bounds = array<i64: 1, 128>}, {pipeline_mode = #tpu.pipeline_mode<synchronous>, transform_indices = @transform_15, window_bounds = array<i64: 128, 1>}, {pipeline_mode = #tpu.pipeline_mode<synchronous>, transform_indices = @transform_16, window_bounds = array<i64: 1, 1>}, {pipeline_mode = #tpu.pipeline_mode<synchronous>, transform_indices = @transform_17, window_bounds = array<i64: 2, 1>}]} {
    %c0 = arith.constant 0 : index
    %c0_0 = arith.constant 0 : index
    %0 = vector.load %arg3[%c0, %c0_0] : memref<32x96xf32, #tpu.memory_space<vmem>>, vector<32x96xf32>
    %c0_1 = arith.constant 0 : index
    %c0_2 = arith.constant 0 : index
    %1 = vector.load %arg4[%c0_1, %c0_2] : memref<1x96xf32, #tpu.memory_space<vmem>>, vector<1x96xf32>
    %c0_3 = arith.constant 0 : index
    %c0_4 = arith.constant 0 : index
    %2 = vector.load %arg5[%c0_3, %c0_4] : memref<32x96xf32, #tpu.memory_space<vmem>>, vector<32x96xf32>
    %c0_5 = arith.constant 0 : index
    %c0_6 = arith.constant 0 : index
    %3 = vector.load %arg6[%c0_5, %c0_6] : memref<1x96xf32, #tpu.memory_space<vmem>>, vector<1x96xf32>
    %c0_7 = arith.constant 0 : index
    %c0_8 = arith.constant 0 : index
    %4 = vector.load %arg7[%c0_7, %c0_8] : memref<1x96xf32, #tpu.memory_space<vmem>>, vector<1x96xf32>
    %c0_9 = arith.constant 0 : index
    %c0_10 = arith.constant 0 : index
    %5 = vector.load %arg8[%c0_9, %c0_10] : memref<1x1xf32, #tpu.memory_space<vmem>>, vector<1x1xf32>
    %c0_11 = arith.constant 0 : index
    %c0_12 = arith.constant 0 : index
    %c0_13 = arith.constant 0 : index
    %6 = vector.load %arg1[%c0_11, %c0_12, %c0_13] : memref<2x9x32xf32, #tpu.memory_space<vmem>>, vector<1x9x32xf32>
    %7 = vector.shape_cast %6 : vector<1x9x32xf32> to vector<9x32xf32>
    %cst = arith.constant dense<0.000000e+00> : vector<9x96xf32>
    %8 = tpu.matmul %7, %0, %cst {dimension_numbers = #tpu.dot_dimension_numbers<[1], [0], [0], [1], [0, 0, 1, 1], [], []>} : vector<9x32xf32>, vector<32x96xf32>, vector<9x96xf32> -> vector<9x96xf32>
    %9 = vector.broadcast %1 : vector<1x96xf32> to vector<9x96xf32>
    %10 = arith.addf %8, %9 : vector<9x96xf32>
    %cst_14 = arith.constant 0.000000e+00 : f32
    %11 = vector.broadcast %cst_14 : f32 to vector<9x96xf32>
    %12 = arith.maximumf %10, %11 : vector<9x96xf32>
    %c0_15 = arith.constant 0 : index
    %c0_16 = arith.constant 0 : index
    %c0_17 = arith.constant 0 : index
    %13 = vector.load %arg2[%c0_15, %c0_16, %c0_17] : memref<2x9x32xf32, #tpu.memory_space<vmem>>, vector<1x9x32xf32>
    %14 = vector.shape_cast %13 : vector<1x9x32xf32> to vector<9x32xf32>
    %cst_18 = arith.constant dense<0.000000e+00> : vector<9x96xf32>
    %15 = tpu.matmul %14, %2, %cst_18 {dimension_numbers = #tpu.dot_dimension_numbers<[1], [0], [0], [1], [0, 0, 1, 1], [], []>} : vector<9x32xf32>, vector<32x96xf32>, vector<9x96xf32> -> vector<9x96xf32>
    %16 = vector.broadcast %3 : vector<1x96xf32> to vector<9x96xf32>
    %17 = arith.addf %15, %16 : vector<9x96xf32>
    %cst_19 = arith.constant 0.000000e+00 : f32
    %18 = vector.broadcast %cst_19 : f32 to vector<9x96xf32>
    %19 = arith.maximumf %17, %18 : vector<9x96xf32>
    %20 = vector.broadcast %4 : vector<1x96xf32> to vector<9x96xf32>
    %21 = arith.mulf %12, %20 : vector<9x96xf32>
    %cst_20 = arith.constant dense<0.000000e+00> : vector<9x9xf32>
    %22 = tpu.matmul %21, %19, %cst_20 {dimension_numbers = #tpu.dot_dimension_numbers<[1], [1], [0], [0], [0, 0, 1, 0], [], []>} : vector<9x96xf32>, vector<9x96xf32>, vector<9x9xf32> -> vector<9x9xf32>
    %23 = vector.broadcast %5 : vector<1x1xf32> to vector<9x9xf32>
    %24 = arith.addf %22, %23 : vector<9x9xf32>
    %cst_21 = arith.constant dense<0.000000e+00> : vector<9x96xf32>
    %25 = tpu.matmul %24, %19, %cst_21 {dimension_numbers = #tpu.dot_dimension_numbers<[1], [0], [0], [1], [0, 0, 1, 1], [], []>} : vector<9x9xf32>, vector<9x96xf32>, vector<9x96xf32> -> vector<9x96xf32>
    %26 = arith.mulf %12, %25 : vector<9x96xf32>
    %cst_22 = arith.constant dense<0.000000e+00> : vector<96xf32>
    %27 = vector.multi_reduction <add>, %26, %cst_22 [0] : vector<9x96xf32> to vector<96xf32>
    %28 = vector.shape_cast %27 : vector<96xf32> to vector<1x96xf32>
    %c0_23 = arith.constant 0 : index
    %c0_24 = arith.constant 0 : index
    %29 = vector.load %arg19[%c0_23, %c0_24] : memref<2x96xf32, #tpu.memory_space<vmem>>, vector<1x96xf32>
    tpu.vector_store %arg19[%c0_23, %c0_24], %28 {strides = array<i32>} : memref<2x96xf32, #tpu.memory_space<vmem>>, vector<1x96xf32>,
    %c1 = arith.constant 1 : index
    %c0_25 = arith.constant 0 : index
    %c0_26 = arith.constant 0 : index
    %30 = vector.load %arg1[%c1, %c0_25, %c0_26] : memref<2x9x32xf32, #tpu.memory_space<vmem>>, vector<1x9x32xf32>
    %31 = vector.shape_cast %30 : vector<1x9x32xf32> to vector<9x32xf32>
    %cst_27 = arith.constant dense<0.000000e+00> : vector<9x96xf32>
    %32 = tpu.matmul %31, %0, %cst_27 {dimension_numbers = #tpu.dot_dimension_numbers<[1], [0], [0], [1], [0, 0, 1, 1], [], []>} : vector<9x32xf32>, vector<32x96xf32>, vector<9x96xf32> -> vector<9x96xf32>
    %33 = vector.broadcast %1 : vector<1x96xf32> to vector<9x96xf32>
    %34 = arith.addf %32, %33 : vector<9x96xf32>
    %cst_28 = arith.constant 0.000000e+00 : f32
    %35 = vector.broadcast %cst_28 : f32 to vector<9x96xf32>
    %36 = arith.maximumf %34, %35 : vector<9x96xf32>
    %c1_29 = arith.constant 1 : index
    %c0_30 = arith.constant 0 : index
    %c0_31 = arith.constant 0 : index
    %37 = vector.load %arg2[%c1_29, %c0_30, %c0_31] : memref<2x9x32xf32, #tpu.memory_space<vmem>>, vector<1x9x32xf32>
    %38 = vector.shape_cast %37 : vector<1x9x32xf32> to vector<9x32xf32>
    %cst_32 = arith.constant dense<0.000000e+00> : vector<9x96xf32>
    %39 = tpu.matmul %38, %2, %cst_32 {dimension_numbers = #tpu.dot_dimension_numbers<[1], [0], [0], [1], [0, 0, 1, 1], [], []>} : vector<9x32xf32>, vector<32x96xf32>, vector<9x96xf32> -> vector<9x96xf32>
    %40 = vector.broadcast %3 : vector<1x96xf32> to vector<9x96xf32>
    %41 = arith.addf %39, %40 : vector<9x96xf32>
    %cst_33 = arith.constant 0.000000e+00 : f32
    %42 = vector.broadcast %cst_33 : f32 to vector<9x96xf32>
    %43 = arith.maximumf %41, %42 : vector<9x96xf32>
    %44 = vector.broadcast %4 : vector<1x96xf32> to vector<9x96xf32>
    %45 = arith.mulf %36, %44 : vector<9x96xf32>
    %cst_34 = arith.constant dense<0.000000e+00> : vector<9x9xf32>
    %46 = tpu.matmul %45, %43, %cst_34 {dimension_numbers = #tpu.dot_dimension_numbers<[1], [1], [0], [0], [0, 0, 1, 0], [], []>} : vector<9x96xf32>, vector<9x96xf32>, vector<9x9xf32> -> vector<9x9xf32>
    %47 = vector.broadcast %5 : vector<1x1xf32> to vector<9x9xf32>
    %48 = arith.addf %46, %47 : vector<9x9xf32>
    %cst_35 = arith.constant dense<0.000000e+00> : vector<9x96xf32>
    %49 = tpu.matmul %48, %43, %cst_35 {dimension_numbers = #tpu.dot_dimension_numbers<[1], [0], [0], [1], [0, 0, 1, 1], [], []>} : vector<9x9xf32>, vector<9x96xf32>, vector<9x96xf32> -> vector<9x96xf32>
    %50 = arith.mulf %36, %49 : vector<9x96xf32>
    %cst_36 = arith.constant dense<0.000000e+00> : vector<96xf32>
    %51 = vector.multi_reduction <add>, %50, %cst_36 [0] : vector<9x96xf32> to vector<96xf32>
    %52 = vector.shape_cast %51 : vector<96xf32> to vector<1x96xf32>
    %c1_37 = arith.constant 1 : index
    %c0_38 = arith.constant 0 : index
    %53 = vector.load %arg19[%c1_37, %c0_38] : memref<2x96xf32, #tpu.memory_space<vmem>>, vector<1x96xf32>
    tpu.vector_store %arg19[%c1_37, %c0_38], %52 {strides = array<i32>} : memref<2x96xf32, #tpu.memory_space<vmem>>, vector<1x96xf32>,
    %c0_39 = arith.constant 0 : index
    %c0_40 = arith.constant 0 : index
    %54 = vector.load %arg19[%c0_39, %c0_40] : memref<2x96xf32, #tpu.memory_space<vmem>>, vector<2x96xf32>
    %c0_41 = arith.constant 0 : index
    %c0_42 = arith.constant 0 : index
    %55 = vector.load %arg9[%c0_41, %c0_42] : memref<96x32xf32, #tpu.memory_space<vmem>>, vector<96x32xf32>
    %cst_43 = arith.constant dense<0.000000e+00> : vector<2x32xf32>
    %56 = tpu.matmul %54, %55, %cst_43 {dimension_numbers = #tpu.dot_dimension_numbers<[1], [0], [0], [1], [0, 0, 1, 1], [], []>} : vector<2x96xf32>, vector<96x32xf32>, vector<2x32xf32> -> vector<2x32xf32>
    %c0_44 = arith.constant 0 : index
    %c0_45 = arith.constant 0 : index
    %57 = vector.load %arg10[%c0_44, %c0_45] : memref<1x32xf32, #tpu.memory_space<vmem>>, vector<1x32xf32>
    %c0_46 = arith.constant 0 : index
    %c0_47 = arith.constant 0 : index
    %58 = vector.load %arg11[%c0_46, %c0_47] : memref<1x32xf32, #tpu.memory_space<vmem>>, vector<1x32xf32>
    %cst_48 = arith.constant dense<0.000000e+00> : vector<32xf32>
    %59 = vector.multi_reduction <add>, %56, %cst_48 [0] : vector<2x32xf32> to vector<32xf32>
    %60 = vector.shape_cast %59 : vector<32xf32> to vector<1x32xf32>
    %cst_49 = arith.constant 2.000000e+00 : f32
    %61 = vector.broadcast %cst_49 : f32 to vector<1x32xf32>
    %62 = arith.divf %60, %61 : vector<1x32xf32>
    %63 = vector.broadcast %62 : vector<1x32xf32> to vector<2x32xf32>
    %64 = arith.subf %56, %63 : vector<2x32xf32>
    %65 = arith.mulf %64, %64 : vector<2x32xf32>
    %cst_50 = arith.constant dense<0.000000e+00> : vector<32xf32>
    %66 = vector.multi_reduction <add>, %65, %cst_50 [0] : vector<2x32xf32> to vector<32xf32>
    %67 = vector.shape_cast %66 : vector<32xf32> to vector<1x32xf32>
    %cst_51 = arith.constant 2.000000e+00 : f32
    %68 = vector.broadcast %cst_51 : f32 to vector<1x32xf32>
    %69 = arith.divf %67, %68 : vector<1x32xf32>
    %70 = vector.broadcast %62 : vector<1x32xf32> to vector<2x32xf32>
    %71 = arith.subf %56, %70 : vector<2x32xf32>
    %cst_52 = arith.constant 9.99999974E-6 : f32
    %72 = vector.broadcast %cst_52 : f32 to vector<1x32xf32>
    %73 = arith.addf %69, %72 : vector<1x32xf32>
    %74 = math.rsqrt %73 : vector<1x32xf32>
    %75 = vector.broadcast %74 : vector<1x32xf32> to vector<2x32xf32>
    %76 = arith.mulf %71, %75 : vector<2x32xf32>
    %77 = vector.broadcast %57 : vector<1x32xf32> to vector<2x32xf32>
    %78 = arith.mulf %76, %77 : vector<2x32xf32>
    %79 = vector.broadcast %58 : vector<1x32xf32> to vector<2x32xf32>
    %80 = arith.addf %78, %79 : vector<2x32xf32>
    %c0_53 = arith.constant 0 : index
    %c0_54 = arith.constant 0 : index
    %81 = vector.load %arg12[%c0_53, %c0_54] : memref<32x128xf32, #tpu.memory_space<vmem>>, vector<32x128xf32>
    %cst_55 = arith.constant dense<0.000000e+00> : vector<2x128xf32>
    %82 = tpu.matmul %80, %81, %cst_55 {dimension_numbers = #tpu.dot_dimension_numbers<[1], [0], [0], [1], [0, 0, 1, 1], [], []>} : vector<2x32xf32>, vector<32x128xf32>, vector<2x128xf32> -> vector<2x128xf32>
    %c0_56 = arith.constant 0 : index
    %c0_57 = arith.constant 0 : index
    %83 = vector.load %arg13[%c0_56, %c0_57] : memref<1x128xf32, #tpu.memory_space<vmem>>, vector<1x128xf32>
    %84 = vector.broadcast %83 : vector<1x128xf32> to vector<2x128xf32>
    %85 = arith.addf %82, %84 : vector<2x128xf32>
    %cst_58 = arith.constant 0.000000e+00 : f32
    %86 = vector.broadcast %cst_58 : f32 to vector<2x128xf32>
    %87 = arith.cmpf oge, %85, %86 : vector<2x128xf32>
    %cst_59 = arith.constant 0.00999999977 : f32
    %88 = vector.broadcast %cst_59 : f32 to vector<2x128xf32>
    %89 = arith.mulf %88, %85 : vector<2x128xf32>
    %90 = arith.select %87, %85, %89 : vector<2x128xi1>, vector<2x128xf32>
    %c0_60 = arith.constant 0 : index
    %c0_61 = arith.constant 0 : index
    %91 = vector.load %arg14[%c0_60, %c0_61] : memref<1x128xf32, #tpu.memory_space<vmem>>, vector<1x128xf32>
    %c0_62 = arith.constant 0 : index
    %c0_63 = arith.constant 0 : index
    %92 = vector.load %arg15[%c0_62, %c0_63] : memref<1x128xf32, #tpu.memory_space<vmem>>, vector<1x128xf32>
    %cst_64 = arith.constant dense<0.000000e+00> : vector<128xf32>
    %93 = vector.multi_reduction <add>, %90, %cst_64 [0] : vector<2x128xf32> to vector<128xf32>
    %94 = vector.shape_cast %93 : vector<128xf32> to vector<1x128xf32>
    %cst_65 = arith.constant 2.000000e+00 : f32
    %95 = vector.broadcast %cst_65 : f32 to vector<1x128xf32>
    %96 = arith.divf %94, %95 : vector<1x128xf32>
    %97 = vector.broadcast %96 : vector<1x128xf32> to vector<2x128xf32>
    %98 = arith.subf %90, %97 : vector<2x128xf32>
    %99 = arith.mulf %98, %98 : vector<2x128xf32>
    %cst_66 = arith.constant dense<0.000000e+00> : vector<128xf32>
    %100 = vector.multi_reduction <add>, %99, %cst_66 [0] : vector<2x128xf32> to vector<128xf32>
    %101 = vector.shape_cast %100 : vector<128xf32> to vector<1x128xf32>
    %cst_67 = arith.constant 2.000000e+00 : f32
    %102 = vector.broadcast %cst_67 : f32 to vector<1x128xf32>
    %103 = arith.divf %101, %102 : vector<1x128xf32>
    %104 = vector.broadcast %96 : vector<1x128xf32> to vector<2x128xf32>
    %105 = arith.subf %90, %104 : vector<2x128xf32>
    %cst_68 = arith.constant 9.99999974E-6 : f32
    %106 = vector.broadcast %cst_68 : f32 to vector<1x128xf32>
    %107 = arith.addf %103, %106 : vector<1x128xf32>
    %108 = math.rsqrt %107 : vector<1x128xf32>
    %109 = vector.broadcast %108 : vector<1x128xf32> to vector<2x128xf32>
    %110 = arith.mulf %105, %109 : vector<2x128xf32>
    %111 = vector.broadcast %91 : vector<1x128xf32> to vector<2x128xf32>
    %112 = arith.mulf %110, %111 : vector<2x128xf32>
    %113 = vector.broadcast %92 : vector<1x128xf32> to vector<2x128xf32>
    %114 = arith.addf %112, %113 : vector<2x128xf32>
    %c0_69 = arith.constant 0 : index
    %c0_70 = arith.constant 0 : index
    %115 = vector.load %arg16[%c0_69, %c0_70] : memref<128x1xf32, #tpu.memory_space<vmem>>, vector<128x1xf32>
    %cst_71 = arith.constant dense<0.000000e+00> : vector<2x1xf32>
    %116 = tpu.matmul %114, %115, %cst_71 {dimension_numbers = #tpu.dot_dimension_numbers<[1], [0], [0], [1], [0, 0, 1, 1], [], []>} : vector<2x128xf32>, vector<128x1xf32>, vector<2x1xf32> -> vector<2x1xf32>
    %c0_72 = arith.constant 0 : index
    %c0_73 = arith.constant 0 : index
    %117 = vector.load %arg17[%c0_72, %c0_73] : memref<1x1xf32, #tpu.memory_space<vmem>>, vector<1x1xf32>
    %118 = vector.broadcast %117 : vector<1x1xf32> to vector<2x1xf32>
    %119 = arith.addf %116, %118 : vector<2x1xf32>
    %c0_74 = arith.constant 0 : index
    %c0_75 = arith.constant 0 : index
    %120 = vector.load %arg18[%c0_74, %c0_75] : memref<2x1xf32, #tpu.memory_space<vmem>>, vector<2x1xf32>
    tpu.vector_store %arg18[%c0_74, %c0_75], %119 {strides = array<i32>} : memref<2x1xf32, #tpu.memory_space<vmem>>, vector<2x1xf32>,
    return
  }
  func.func @transform_0(%arg0: i32) -> (i32, i32, i32) {
    %c0_i32 = arith.constant 0 : i32
    %c0_i32_0 = arith.constant 0 : i32
    %c0_i32_1 = arith.constant 0 : i32
    %c0_i32_2 = arith.constant 0 : i32
    return %c0_i32, %c0_i32_0, %c0_i32_1 : i32, i32, i32
  }
  func.func @transform_1(%arg0: i32) -> (i32, i32, i32) {
    %c0_i32 = arith.constant 0 : i32
    %c0_i32_0 = arith.constant 0 : i32
    %c0_i32_1 = arith.constant 0 : i32
    %c0_i32_2 = arith.constant 0 : i32
    return %c0_i32, %c0_i32_0, %c0_i32_1 : i32, i32, i32
  }
  func.func @transform_2(%arg0: i32) -> (i32, i32) {
    %c0_i32 = arith.constant 0 : i32
    %c0_i32_0 = arith.constant 0 : i32
    %c0_i32_1 = arith.constant 0 : i32
    return %c0_i32, %c0_i32_0 : i32, i32
  }
  func.func @transform_3(%arg0: i32) -> (i32, i32) {
    %c0_i32 = arith.constant 0 : i32
    %c0_i32_0 = arith.constant 0 : i32
    %c0_i32_1 = arith.constant 0 : i32
    return %c0_i32, %c0_i32_0 : i32, i32
  }
  func.func @transform_4(%arg0: i32) -> (i32, i32) {
    %c0_i32 = arith.constant 0 : i32
    %c0_i32_0 = arith.constant 0 : i32
    %c0_i32_1 = arith.constant 0 : i32
    return %c0_i32, %c0_i32_0 : i32, i32
  }
  func.func @transform_5(%arg0: i32) -> (i32, i32) {
    %c0_i32 = arith.constant 0 : i32
    %c0_i32_0 = arith.constant 0 : i32
    %c0_i32_1 = arith.constant 0 : i32
    return %c0_i32, %c0_i32_0 : i32, i32
  }
  func.func @transform_6(%arg0: i32) -> (i32, i32) {
    %c0_i32 = arith.constant 0 : i32
    %c0_i32_0 = arith.constant 0 : i32
    %c0_i32_1 = arith.constant 0 : i32
    return %c0_i32, %c0_i32_0 : i32, i32
  }
  func.func @transform_7(%arg0: i32) -> (i32, i32) {
    %c0_i32 = arith.constant 0 : i32
    %c0_i32_0 = arith.constant 0 : i32
    %c0_i32_1 = arith.constant 0 : i32
    return %c0_i32, %c0_i32_0 : i32, i32
  }
  func.func @transform_8(%arg0: i32) -> (i32, i32) {
    %c0_i32 = arith.constant 0 : i32
    %c0_i32_0 = arith.constant 0 : i32
    %c0_i32_1 = arith.constant 0 : i32
    return %c0_i32, %c0_i32_0 : i32, i32
  }
  func.func @transform_9(%arg0: i32) -> (i32, i32) {
    %c0_i32 = arith.constant 0 : i32
    %c0_i32_0 = arith.constant 0 : i32
    %c0_i32_1 = arith.constant 0 : i32
    return %c0_i32, %c0_i32_0 : i32, i32
  }
  func.func @transform_10(%arg0: i32) -> (i32, i32) {
    %c0_i32 = arith.constant 0 : i32
    %c0_i32_0 = arith.constant 0 : i32
    %c0_i32_1 = arith.constant 0 : i32
    return %c0_i32, %c0_i32_0 : i32, i32
  }
  func.func @transform_11(%arg0: i32) -> (i32, i32) {
    %c0_i32 = arith.constant 0 : i32
    %c0_i32_0 = arith.constant 0 : i32
    %c0_i32_1 = arith.constant 0 : i32
    return %c0_i32, %c0_i32_0 : i32, i32
  }
  func.func @transform_12(%arg0: i32) -> (i32, i32) {
    %c0_i32 = arith.constant 0 : i32
    %c0_i32_0 = arith.constant 0 : i32
    %c0_i32_1 = arith.constant 0 : i32
    return %c0_i32, %c0_i32_0 : i32, i32
  }
  func.func @transform_13(%arg0: i32) -> (i32, i32) {
    %c0_i32 = arith.constant 0 : i32
    %c0_i32_0 = arith.constant 0 : i32
    %c0_i32_1 = arith.constant 0 : i32
    return %c0_i32, %c0_i32_0 : i32, i32
  }
  func.func @transform_14(%arg0: i32) -> (i32, i32) {
    %c0_i32 = arith.constant 0 : i32
    %c0_i32_0 = arith.constant 0 : i32
    %c0_i32_1 = arith.constant 0 : i32
    return %c0_i32, %c0_i32_0 : i32, i32
  }
  func.func @transform_15(%arg0: i32) -> (i32, i32) {
    %c0_i32 = arith.constant 0 : i32
    %c0_i32_0 = arith.constant 0 : i32
    %c0_i32_1 = arith.constant 0 : i32
    return %c0_i32, %c0_i32_0 : i32, i32
  }
  func.func @transform_16(%arg0: i32) -> (i32, i32) {
    %c0_i32 = arith.constant 0 : i32
    %c0_i32_0 = arith.constant 0 : i32
    %c0_i32_1 = arith.constant 0 : i32
    return %c0_i32, %c0_i32_0 : i32, i32
  }
  func.func @transform_17(%arg0: i32) -> (i32, i32) {
    %c0_i32 = arith.constant 0 : i32
    %c0_i32_0 = arith.constant 0 : i32
    %c0_i32_1 = arith.constant 0 : i32
    return %c0_i32, %c0_i32_0 : i32, i32
  }
}

</mosaic_0001>

<llo_original>
// kernel: squeeze.2
$region0: #{squeeze.2}
  %s0 = inlined_call_operand.vmem [shape: f32[1,2,32,9], index: 0, kind: input, shape index: {}]
  %s1 = inlined_call_operand.vmem [shape: f32[2,9,32], index: 1, kind: output, shape index: {}]
  %v2 = vld [vmem:[%s0] sm:$0x1]
  %s3 = scalar_lea.vmem %s0, 31
  %v4 = vld [vmem:[%s3] sm:$0x2]
  %vm5 = vcmask 1041409
  %v6 = vsel %vm5, %v4, %v2
  %vm7 = vcmask 72704
  %8 = vst.msk [vmem:[%s1] ss:$16 sm:$0x3] %vm7, %v6
  %s9 = scalar_lea.vmem %s0, 7
  %v10 = vld [vmem:[%s9] sm:$0x1]
  %s11 = scalar_lea.vmem %s0, 38
  %v12 = vld [vmem:[%s11] sm:$0x2]
  %vm13 = vcmask 1041409
  %v14 = vsel %vm13, %v12, %v10
  %15 = vrot.lane.b32.xlu0 %v14, 127
  %v16 = vpop.permute.xlu0 %15
  %vm17 = vcmask 64512
  %s18 = scalar_lea.vmem %s1, 2
  %19 = vst.msk [vmem:[%s18] ss:$16 sm:$0x3] %vm17, %v16
  %s20 = scalar_lea.vmem %s0, 14
  %v21 = vld [vmem:[%s20] sm:$0x1]
  %s22 = scalar_lea.vmem %s0, 45
  %v23 = vld [vmem:[%s22] sm:$0x2]
  %vm24 = vcmask 1041409
  %v25 = vsel %vm24, %v23, %v21
  %26 = vrot.lane.b32.xlu0 %v25, 126
  %v27 = vpop.permute.xlu0 %26
  %vm28 = vcmask 56320
  %s29 = scalar_lea.vmem %s1, 4
  %30 = vst.msk [vmem:[%s29] ss:$16 sm:$0x3] %vm28, %v27
  %s31 = scalar_lea.vmem %s0, 21
  %v32 = vld [vmem:[%s31] sm:$0x1]
  %s33 = scalar_lea.vmem %s0, 52
  %v34 = vld [vmem:[%s33] sm:$0x2]
  %vm35 = vcmask 1041409
  %v36 = vsel %vm35, %v34, %v32
  %37 = vrot.lane.b32.xlu0 %v36, 125
  %v38 = vpop.permute.xlu0 %37
  %vm39 = vcmask 48128
  %s40 = scalar_lea.vmem %s1, 6
  %41 = vst.msk [vmem:[%s40] ss:$16 sm:$0x3] %vm39, %v38
  %s42 = scalar_lea.vmem %s0, 28
  %v43 = vld [vmem:[%s42] sm:$0x1]
  %s44 = scalar_lea.vmem %s0, 59
  %v45 = vld [vmem:[%s44] sm:$0x2]
  %vm46 = vcmask 1041409
  %v47 = vsel %vm46, %v45, %v43
  %48 = vrot.lane.b32.xlu0 %v47, 124
  %v49 = vpop.permute.xlu0 %48
  %vm50 = vcmask 39936
  %s51 = scalar_lea.vmem %s1, 8
  %52 = vst.msk [vmem:[%s51] ss:$16 sm:$0x3] %vm50, %v49
  %s53 = scalar_lea.vmem %s0, 3
  %v54 = vld [vmem:[%s53] sm:$0x1]
  %s55 = scalar_lea.vmem %s0, 34
  %v56 = vld [vmem:[%s55] sm:$0x2]
  %vm57 = vcmask 1041409
  %v58 = vsel %vm57, %v56, %v54
  %59 = vrot.lane.b32.xlu0 %v58, 123
  %v60 = vpop.permute.xlu0 %59
  %vm61 = vcmask 31744
  %s62 = scalar_lea.vmem %s1, 1
  %63 = vst.msk [vmem:[%s62] ss:$16 sm:$0x3] %vm61, %v60
  %s64 = scalar_lea.vmem %s0, 10
  %v65 = vld [vmem:[%s64] sm:$0x1]
  %s66 = scalar_lea.vmem %s0, 41
  %v67 = vld [vmem:[%s66] sm:$0x2]
  %vm68 = vcmask 1041409
  %v69 = vsel %vm68, %v67, %v65
  %70 = vrot.lane.b32.xlu0 %v69, 122
  %v71 = vpop.permute.xlu0 %70
  %vm72 = vcmask 23552
  %s73 = scalar_lea.vmem %s1, 3
  %74 = vst.msk [vmem:[%s73] ss:$16 sm:$0x3] %vm72, %v71
  %s75 = scalar_lea.vmem %s0, 17
  %v76 = vld [vmem:[%s75] sm:$0x1]
  %s77 = scalar_lea.vmem %s0, 48
  %v78 = vld [vmem:[%s77] sm:$0x2]
  %vm79 = vcmask 1041409
  %v80 = vsel %vm79, %v78, %v76
  %81 = vrot.lane.b32.xlu0 %v80, 121
  %v82 = vpop.permute.xlu0 %81
  %vm83 = vcmask 15360
  %s84 = scalar_lea.vmem %s1, 5
  %85 = vst.msk [vmem:[%s84] ss:$16 sm:$0x3] %vm83, %v82
  %s86 = scalar_lea.vmem %s0, 24
  %v87 = vld [vmem:[%s86] sm:$0x1]
  %s88 = scalar_lea.vmem %s0, 55
  %v89 = vld [vmem:[%s88] sm:$0x2]
  %vm90 = vcmask 1041409
  %v91 = vsel %vm90, %v89, %v87
  %92 = vrot.lane.b32.xlu0 %v91, 120
  %v93 = vpop.permute.xlu0 %92
  %vm94 = vcmask 7168
  %s95 = scalar_lea.vmem %s1, 7
  %96 = vst.msk [vmem:[%s95] ss:$16 sm:$0x3] %vm94, %v93
  %s97 = scalar_lea.vmem %s0, 7
  %v98 = vld [vmem:[%s97] sm:$0x1]
  %s99 = scalar_lea.vmem %s0, 38
  %v100 = vld [vmem:[%s99] sm:$0x2]
  %vm101 = vcmask 1041409
  %v102 = vsel %vm101, %v100, %v98
  %103 = vrot.lane.b32.xlu0 %v102, 31
  %v104 = vpop.permute.xlu0 %103
  %vm105 = vcmask 261368
  %s106 = scalar_lea.vmem %s1, 1
  %107 = vst.msk [vmem:[%s106] ss:$16 sm:$0x3] %vm105, %v104
  %s108 = scalar_lea.vmem %s0, 14
  %v109 = vld [vmem:[%s108] sm:$0x1]
  %s110 = scalar_lea.vmem %s0, 45
  %v111 = vld [vmem:[%s110] sm:$0x2]
  %vm112 = vcmask 1041409
  %v113 = vsel %vm112, %v111, %v109
  %114 = vrot.lane.b32.xlu0 %v113, 30
  %v115 = vpop.permute.xlu0 %114
  %vm116 = vcmask 261360
  %s117 = scalar_lea.vmem %s1, 3
  %118 = vst.msk [vmem:[%s117] ss:$16 sm:$0x3] %vm116, %v115
  %s119 = scalar_lea.vmem %s0, 21
  %v120 = vld [vmem:[%s119] sm:$0x1]
  %s121 = scalar_lea.vmem %s0, 52
  %v122 = vld [vmem:[%s121] sm:$0x2]
  %vm123 = vcmask 1041409
  %v124 = vsel %vm123, %v122, %v120
  %125 = vrot.lane.b32.xlu0 %v124, 29
  %v126 = vpop.permute.xlu0 %125
  %vm127 = vcmask 261352
  %s128 = scalar_lea.vmem %s1, 5
  %129 = vst.msk [vmem:[%s128] ss:$16 sm:$0x3] %vm127, %v126
  %s130 = scalar_lea.vmem %s0, 28
  %v131 = vld [vmem:[%s130] sm:$0x1]
  %s132 = scalar_lea.vmem %s0, 59
  %v133 = vld [vmem:[%s132] sm:$0x2]
  %vm134 = vcmask 1041409
  %v135 = vsel %vm134, %v133, %v131
  %136 = vrot.lane.b32.xlu0 %v135, 28
  %v137 = vpop.permute.xlu0 %136
  %vm138 = vcmask 261344
  %s139 = scalar_lea.vmem %s1, 7
  %140 = vst.msk [vmem:[%s139] ss:$16 sm:$0x3] %vm138, %v137
  %s141 = scalar_lea.vmem %s0, 3
  %v142 = vld [vmem:[%s141] sm:$0x1]
  %s143 = scalar_lea.vmem %s0, 34
  %v144 = vld [vmem:[%s143] sm:$0x2]
  %vm145 = vcmask 1041409
  %v146 = vsel %vm145, %v144, %v142
  %147 = vrot.lane.b32.xlu0 %v146, 27
  %v148 = vpop.permute.xlu0 %147
  %vm149 = vcmask 261336
  %150 = vst.msk [vmem:[%s1] ss:$16 sm:$0x3] %vm149, %v148
  %s151 = scalar_lea.vmem %s0, 10
  %v152 = vld [vmem:[%s151] sm:$0x1]
  %s153 = scalar_lea.vmem %s0, 41
  %v154 = vld [vmem:[%s153] sm:$0x2]
  %vm155 = vcmask 1041409
  %v156 = vsel %vm155, %v154, %v152
  %157 = vrot.lane.b32.xlu0 %v156, 26
  %v158 = vpop.permute.xlu0 %157
  %vm159 = vcmask 261328
  %s160 = scalar_lea.vmem %s1, 2
  %161 = vst.msk [vmem:[%s160] ss:$16 sm:$0x3] %vm159, %v158
  %s162 = scalar_lea.vmem %s0, 17
  %v163 = vld [vmem:[%s162] sm:$0x1]
  %s164 = scalar_lea.vmem %s0, 48
  %v165 = vld [vmem:[%s164] sm:$0x2]
  %vm166 = vcmask 1041409
  %v167 = vsel %vm166, %v165, %v163
  %168 = vrot.lane.b32.xlu0 %v167, 25
  %v169 = vpop.permute.xlu0 %168
  %vm170 = vcmask 261320
  %s171 = scalar_lea.vmem %s1, 4
  %172 = vst.msk [vmem:[%s171] ss:$16 sm:$0x3] %vm170, %v169
  %s173 = scalar_lea.vmem %s0, 24
  %v174 = vld [vmem:[%s173] sm:$0x1]
  %s175 = scalar_lea.vmem %s0, 55
  %v176 = vld [vmem:[%s175] sm:$0x2]
  %vm177 = vcmask 1041409
  %v178 = vsel %vm177, %v176, %v174
  %179 = vrot.lane.b32.xlu0 %v178, 24
  %v180 = vpop.permute.xlu0 %179
  %vm181 = vcmask 261312
  %s182 = scalar_lea.vmem %s1, 6
  %183 = vst.msk [vmem:[%s182] ss:$16 sm:$0x3] %vm181, %v180
  %s184 = scalar_lea.vmem %s0, 31
  %v185 = vld [vmem:[%s184] sm:$0x1]
  %s186 = scalar_lea.vmem %s0, 62
  %v187 = vld [vmem:[%s186] sm:$0x2]
  %vm188 = vcmask 1041409
  %v189 = vsel %vm188, %v187, %v185
  %190 = vrot.lane.b32.xlu0 %v189, 23
  %v191 = vpop.permute.xlu0 %190
  %vm192 = vcmask 261304
  %s193 = scalar_lea.vmem %s1, 8
  %194 = vst.msk [vmem:[%s193] ss:$16 sm:$0x3] %vm192, %v191
  %s195 = scalar_lea.vmem %s0, 6
  %v196 = vld [vmem:[%s195] sm:$0x1]
  %s197 = scalar_lea.vmem %s0, 37
  %v198 = vld [vmem:[%s197] sm:$0x2]
  %vm199 = vcmask 1041409
  %v200 = vsel %vm199, %v198, %v196
  %201 = vrot.lane.b32.xlu0 %v200, 22
  %v202 = vpop.permute.xlu0 %201
  %vm203 = vcmask 253104
  %s204 = scalar_lea.vmem %s1, 1
  %205 = vst.msk [vmem:[%s204] ss:$16 sm:$0x3] %vm203, %v202
  %s206 = scalar_lea.vmem %s0, 13
  %v207 = vld [vmem:[%s206] sm:$0x1]
  %s208 = scalar_lea.vmem %s0, 44
  %v209 = vld [vmem:[%s208] sm:$0x2]
  %vm210 = vcmask 1041409
  %v211 = vsel %vm210, %v209, %v207
  %212 = vrot.lane.b32.xlu0 %v211, 21
  %v213 = vpop.permute.xlu0 %212
  %vm214 = vcmask 244904
  %s215 = scalar_lea.vmem %s1, 3
  %216 = vst.msk [vmem:[%s215] ss:$16 sm:$0x3] %vm214, %v213
  %s217 = scalar_lea.vmem %s0, 20
  %v218 = vld [vmem:[%s217] sm:$0x1]
  %s219 = scalar_lea.vmem %s0, 51
  %v220 = vld [vmem:[%s219] sm:$0x2]
  %vm221 = vcmask 1041409
  %v222 = vsel %vm221, %v220, %v218
  %223 = vrot.lane.b32.xlu0 %v222, 20
  %v224 = vpop.permute.xlu0 %223
  %vm225 = vcmask 236704
  %s226 = scalar_lea.vmem %s1, 5
  %227 = vst.msk [vmem:[%s226] ss:$16 sm:$0x3] %vm225, %v224
  %s228 = scalar_lea.vmem %s0, 27
  %v229 = vld [vmem:[%s228] sm:$0x1]
  %s230 = scalar_lea.vmem %s0, 58
  %v231 = vld [vmem:[%s230] sm:$0x2]
  %vm232 = vcmask 1041409
  %v233 = vsel %vm232, %v231, %v229
  %234 = vrot.lane.b32.xlu0 %v233, 19
  %v235 = vpop.permute.xlu0 %234
  %vm236 = vcmask 228504
  %s237 = scalar_lea.vmem %s1, 7
  %238 = vst.msk [vmem:[%s237] ss:$16 sm:$0x3] %vm236, %v235
  %s239 = scalar_lea.vmem %s0, 2
  %v240 = vld [vmem:[%s239] sm:$0x1]
  %s241 = scalar_lea.vmem %s0, 33
  %v242 = vld [vmem:[%s241] sm:$0x2]
  %vm243 = vcmask 1041409
  %v244 = vsel %vm243, %v242, %v240
  %245 = vrot.lane.b32.xlu0 %v244, 18
  %v246 = vpop.permute.xlu0 %245
  %vm247 = vcmask 220304
  %248 = vst.msk [vmem:[%s1] ss:$16 sm:$0x3] %vm247, %v246
  %s249 = scalar_lea.vmem %s0, 9
  %v250 = vld [vmem:[%s249] sm:$0x1]
  %s251 = scalar_lea.vmem %s0, 40
  %v252 = vld [vmem:[%s251] sm:$0x2]
  %vm253 = vcmask 1041409
  %v254 = vsel %vm253, %v252, %v250
  %255 = vrot.lane.b32.xlu0 %v254, 17
  %v256 = vpop.permute.xlu0 %255
  %vm257 = vcmask 212104
  %s258 = scalar_lea.vmem %s1, 2
  %259 = vst.msk [vmem:[%s258] ss:$16 sm:$0x3] %vm257, %v256
  %s260 = scalar_lea.vmem %s0, 16
  %v261 = vld [vmem:[%s260] sm:$0x1]
  %s262 = scalar_lea.vmem %s0, 47
  %v263 = vld [vmem:[%s262] sm:$0x2]
  %vm264 = vcmask 1041409
  %v265 = vsel %vm264, %v263, %v261
  %266 = vrot.lane.b32.xlu0 %v265, 16
  %v267 = vpop.permute.xlu0 %266
  %vm268 = vcmask 203904
  %s269 = scalar_lea.vmem %s1, 4
  %270 = vst.msk [vmem:[%s269] ss:$16 sm:$0x3] %vm268, %v267
  %s271 = scalar_lea.vmem %s0, 23
  %v272 = vld [vmem:[%s271] sm:$0x1]
  %s273 = scalar_lea.vmem %s0, 54
  %v274 = vld [vmem:[%s273] sm:$0x2]
  %vm275 = vcmask 1041409
  %v276 = vsel %vm275, %v274, %v272
  %277 = vrot.lane.b32.xlu0 %v276, 15
  %v278 = vpop.permute.xlu0 %277
  %vm279 = vcmask 195704
  %s280 = scalar_lea.vmem %s1, 6
  %281 = vst.msk [vmem:[%s280] ss:$16 sm:$0x3] %vm279, %v278
  %s282 = scalar_lea.vmem %s0, 30
  %v283 = vld [vmem:[%s282] sm:$0x1]
  %s284 = scalar_lea.vmem %s0, 61
  %v285 = vld [vmem:[%s284] sm:$0x2]
  %vm286 = vcmask 1041409
  %v287 = vsel %vm286, %v285, %v283
  %288 = vrot.lane.b32.xlu0 %v287, 14
  %v289 = vpop.permute.xlu0 %288
  %vm290 = vcmask 187504
  %s291 = scalar_lea.vmem %s1, 8
  %292 = vst.msk [vmem:[%s291] ss:$16 sm:$0x3] %vm290, %v289
  %s293 = scalar_lea.vmem %s0, 5
  %v294 = vld [vmem:[%s293] sm:$0x1]
  %s295 = scalar_lea.vmem %s0, 36
  %v296 = vld [vmem:[%s295] sm:$0x2]
  %vm297 = vcmask 1041409
  %v298 = vsel %vm297, %v296, %v294
  %299 = vrot.lane.b32.xlu0 %v298, 13
  %v300 = vpop.permute.xlu0 %299
  %vm301 = vcmask 179304
  %s302 = scalar_lea.vmem %s1, 1
  %303 = vst.msk [vmem:[%s302] ss:$16 sm:$0x3] %vm301, %v300
  %s304 = scalar_lea.vmem %s0, 12
  %v305 = vld [vmem:[%s304] sm:$0x1]
  %s306 = scalar_lea.vmem %s0, 43
  %v307 = vld [vmem:[%s306] sm:$0x2]
  %vm308 = vcmask 1041409
  %v309 = vsel %vm308, %v307, %v305
  %310 = vrot.lane.b32.xlu0 %v309, 12
  %v311 = vpop.permute.xlu0 %310
  %vm312 = vcmask 171104
  %s313 = scalar_lea.vmem %s1, 3
  %314 = vst.msk [vmem:[%s313] ss:$16 sm:$0x3] %vm312, %v311
  %s315 = scalar_lea.vmem %s0, 19
  %v316 = vld [vmem:[%s315] sm:$0x1]
  %s317 = scalar_lea.vmem %s0, 50
  %v318 = vld [vmem:[%s317] sm:$0x2]
  %vm319 = vcmask 1041409
  %v320 = vsel %vm319, %v318, %v316
  %321 = vrot.lane.b32.xlu0 %v320, 11
  %v322 = vpop.permute.xlu0 %321
  %vm323 = vcmask 162904
  %s324 = scalar_lea.vmem %s1, 5
  %325 = vst.msk [vmem:[%s324] ss:$16 sm:$0x3] %vm323, %v322
  %s326 = scalar_lea.vmem %s0, 26
  %v327 = vld [vmem:[%s326] sm:$0x1]
  %s328 = scalar_lea.vmem %s0, 57
  %v329 = vld [vmem:[%s328] sm:$0x2]
  %vm330 = vcmask 1041409
  %v331 = vsel %vm330, %v329, %v327
  %332 = vrot.lane.b32.xlu0 %v331, 10
  %v333 = vpop.permute.xlu0 %332
  %vm334 = vcmask 154704
  %s335 = scalar_lea.vmem %s1, 7
  %336 = vst.msk [vmem:[%s335] ss:$16 sm:$0x3] %vm334, %v333
  %s337 = scalar_lea.vmem %s0, 1
  %v338 = vld [vmem:[%s337] sm:$0x1]
  %s339 = scalar_lea.vmem %s0, 32
  %v340 = vld [vmem:[%s339] sm:$0x2]
  %vm341 = vcmask 1041409
  %v342 = vsel %vm341, %v340, %v338
  %343 = vrot.lane.b32.xlu0 %v342, 9
  %v344 = vpop.permute.xlu0 %343
  %vm345 = vcmask 146504
  %346 = vst.msk [vmem:[%s1] ss:$16 sm:$0x3] %vm345, %v344
  %s347 = scalar_lea.vmem %s0, 8
  %v348 = vld [vmem:[%s347] sm:$0x1]
  %s349 = scalar_lea.vmem %s0, 39
  %v350 = vld [vmem:[%s349] sm:$0x2]
  %vm351 = vcmask 1041409
  %v352 = vsel %vm351, %v350, %v348
  %353 = vrot.lane.b32.xlu0 %v352, 8
  %v354 = vpop.permute.xlu0 %353
  %vm355 = vcmask 138304
  %s356 = scalar_lea.vmem %s1, 2
  %357 = vst.msk [vmem:[%s356] ss:$16 sm:$0x3] %vm355, %v354
  %s358 = scalar_lea.vmem %s0, 15
  %v359 = vld [vmem:[%s358] sm:$0x1]
  %s360 = scalar_lea.vmem %s0, 46
  %v361 = vld [vmem:[%s360] sm:$0x2]
  %vm362 = vcmask 1041409
  %v363 = vsel %vm362, %v361, %v359
  %364 = vrot.lane.b32.xlu0 %v363, 7
  %v365 = vpop.permute.xlu0 %364
  %vm366 = vcmask 130104
  %s367 = scalar_lea.vmem %s1, 4
  %368 = vst.msk [vmem:[%s367] ss:$16 sm:$0x3] %vm366, %v365
  %s369 = scalar_lea.vmem %s0, 22
  %v370 = vld [vmem:[%s369] sm:$0x1]
  %s371 = scalar_lea.vmem %s0, 53
  %v372 = vld [vmem:[%s371] sm:$0x2]
  %vm373 = vcmask 1041409
  %v374 = vsel %vm373, %v372, %v370
  %375 = vrot.lane.b32.xlu0 %v374, 6
  %v376 = vpop.permute.xlu0 %375
  %vm377 = vcmask 121904
  %s378 = scalar_lea.vmem %s1, 6
  %379 = vst.msk [vmem:[%s378] ss:$16 sm:$0x3] %vm377, %v376
  %s380 = scalar_lea.vmem %s0, 29
  %v381 = vld [vmem:[%s380] sm:$0x1]
  %s382 = scalar_lea.vmem %s0, 60
  %v383 = vld [vmem:[%s382] sm:$0x2]
  %vm384 = vcmask 1041409
  %v385 = vsel %vm384, %v383, %v381
  %386 = vrot.lane.b32.xlu0 %v385, 5
  %v387 = vpop.permute.xlu0 %386
  %vm388 = vcmask 113704
  %s389 = scalar_lea.vmem %s1, 8
  %390 = vst.msk [vmem:[%s389] ss:$16 sm:$0x3] %vm388, %v387
  %s391 = scalar_lea.vmem %s0, 4
  %v392 = vld [vmem:[%s391] sm:$0x1]
  %s393 = scalar_lea.vmem %s0, 35
  %v394 = vld [vmem:[%s393] sm:$0x2]
  %vm395 = vcmask 1041409
  %v396 = vsel %vm395, %v394, %v392
  %397 = vrot.lane.b32.xlu0 %v396, 4
  %v398 = vpop.permute.xlu0 %397
  %vm399 = vcmask 105504
  %s400 = scalar_lea.vmem %s1, 1
  %401 = vst.msk [vmem:[%s400] ss:$16 sm:$0x3] %vm399, %v398
  %s402 = scalar_lea.vmem %s0, 11
  %v403 = vld [vmem:[%s402] sm:$0x1]
  %s404 = scalar_lea.vmem %s0, 42
  %v405 = vld [vmem:[%s404] sm:$0x2]
  %vm406 = vcmask 1041409
  %v407 = vsel %vm406, %v405, %v403
  %408 = vrot.lane.b32.xlu0 %v407, 3
  %v409 = vpop.permute.xlu0 %408
  %vm410 = vcmask 97304
  %s411 = scalar_lea.vmem %s1, 3
  %412 = vst.msk [vmem:[%s411] ss:$16 sm:$0x3] %vm410, %v409
  %s413 = scalar_lea.vmem %s0, 18
  %v414 = vld [vmem:[%s413] sm:$0x1]
  %s415 = scalar_lea.vmem %s0, 49
  %v416 = vld [vmem:[%s415] sm:$0x2]
  %vm417 = vcmask 1041409
  %v418 = vsel %vm417, %v416, %v414
  %419 = vrot.lane.b32.xlu0 %v418, 2
  %v420 = vpop.permute.xlu0 %419
  %vm421 = vcmask 89104
  %s422 = scalar_lea.vmem %s1, 5
  %423 = vst.msk [vmem:[%s422] ss:$16 sm:$0x3] %vm421, %v420
  %s424 = scalar_lea.vmem %s0, 25
  %v425 = vld [vmem:[%s424] sm:$0x1]
  %s426 = scalar_lea.vmem %s0, 56
  %v427 = vld [vmem:[%s426] sm:$0x2]
  %vm428 = vcmask 1041409
  %v429 = vsel %vm428, %v427, %v425
  %430 = vrot.lane.b32.xlu0 %v429, 1
  %v431 = vpop.permute.xlu0 %430
  %vm432 = vcmask 80904
  %s433 = scalar_lea.vmem %s1, 7
  %434 = vst.msk [vmem:[%s433] ss:$16 sm:$0x3] %vm432, %v431

// kernel: affinity_net_forward.3
$region0: #{affinity_net_forward.3}
  #allocation0 [shape = 'u32[]', space=smem, size = 0x4, offset = 0x4, fixed_abs, tag = 'smem constant byte address 0x4 - core index']
  #allocation1 [shape = 'u32[144,128]{1,0:T(1,128)}', space=vmem, size = 0x12000, scoped, tag = 'internal scratch']
  #allocation2 [shape = 'f32[2,96]{1,0:T(2,128)}', space=vmem, size = 0x400, scoped, tag = 'scratch operand']
  #allocation3 [shape = 'f32[1,1]{1,0:T(1,128)S(1)}', space=vmem, size = 0x200, scoped, tag = 'scoped memory for affinity_net_forward.3']
  #allocation4 [shape = 'f32[1,1]{1,0:T(1,128)S(1)}', space=vmem, size = 0x200, scoped, tag = 'scoped memory for affinity_net_forward.3']
  %s0 = inlined_call_operand.vmem [shape: f32[2,9,32], index: 0, kind: input, shape index: {}]
  %s1 = inlined_call_operand.vmem [shape: f32[2,9,32], index: 1, kind: input, shape index: {}]
  %s2 = inlined_call_operand.vmem [shape: f32[32,96], index: 2, kind: input, shape index: {}]
  %s3 = inlined_call_operand.vmem [shape: f32[1,96], index: 3, kind: input, shape index: {}]
  %s4 = inlined_call_operand.vmem [shape: f32[32,96], index: 4, kind: input, shape index: {}]
  %s5 = inlined_call_operand.vmem [shape: f32[1,96], index: 5, kind: input, shape index: {}]
  %s6 = inlined_call_operand.vmem [shape: f32[1,96], index: 6, kind: input, shape index: {}]
  %s7 = inlined_call_operand.<no memory space> [shape: f32[1,1], index: 7, kind: input, shape index: {}]
  %s8 = inlined_call_operand.vmem [shape: f32[96,32], index: 8, kind: input, shape index: {}]
  %s9 = inlined_call_operand.vmem [shape: f32[1,32], index: 9, kind: input, shape index: {}]
  %s10 = inlined_call_operand.vmem [shape: f32[1,32], index: 10, kind: input, shape index: {}]
  %s11 = inlined_call_operand.vmem [shape: f32[32,128], index: 11, kind: input, shape index: {}]
  %s12 = inlined_call_operand.vmem [shape: f32[1,128], index: 12, kind: input, shape index: {}]
  %s13 = inlined_call_operand.vmem [shape: f32[1,128], index: 13, kind: input, shape index: {}]
  %s14 = inlined_call_operand.vmem [shape: f32[1,128], index: 14, kind: input, shape index: {}]
  %s15 = inlined_call_operand.vmem [shape: f32[128,1], index: 15, kind: input, shape index: {}]
  %s16 = inlined_call_operand.<no memory space> [shape: f32[1,1], index: 16, kind: input, shape index: {}]
  %s17 = inlined_call_operand.vmem [shape: f32[2,1], index: 17, kind: output, shape index: {}]
  %s18 = sld [smem:[#allocation0]]
  $region78: #{affinity_net_forward.3} parent=0
    _
  %s20 = ssub.s32 1, %s18
  %s21 = scalar_select 0, %s20, %s18
  %v22 = vstv %s7
  %23 = vst [vmem:[#allocation3] sm:$0x1] %v22
  %v24 = vstv %s16
  %25 = vst [vmem:[#allocation4] sm:$0x1] %v24
  // Predicated region
  $region2: #{affinity_net_forward.3} parent=0 // pred_check
    _
  $region3: #{affinity_net_forward.3} parent=0 // pred_check_branch
    %27 = sbr.rel (0) target = $region5
  $region4: #{affinity_net_forward.3} parent=0 // pred_region
    _
  $region5: #{affinity_net_forward.3} parent=0 // pred_fallthru
    _
  // Predicated region
  $region6: #{affinity_net_forward.3} parent=0 // pred_check
    _
  $region7: #{affinity_net_forward.3} parent=0 // pred_check_branch
    %29 = sbr.rel (0) target = $region9
  $region8: #{affinity_net_forward.3} parent=0 // pred_region
    _
  $region9: #{affinity_net_forward.3} parent=0 // pred_fallthru
    _
  // Predicated region
  $region10: #{affinity_net_forward.3} parent=0 // pred_check
    _
  $region11: #{affinity_net_forward.3} parent=0 // pred_check_branch
    %31 = sbr.rel (0) target = $region13
  $region12: #{affinity_net_forward.3} parent=0 // pred_region
    _
  $region13: #{affinity_net_forward.3} parent=0 // pred_fallthru
    _
  // Predicated region
  $region14: #{affinity_net_forward.3} parent=0 // pred_check
    _
  $region15: #{affinity_net_forward.3} parent=0 // pred_check_branch
    %33 = sbr.rel (0) target = $region17
  $region16: #{affinity_net_forward.3} parent=0 // pred_region
    _
  $region17: #{affinity_net_forward.3} parent=0 // pred_fallthru
    _
  // Predicated region
  $region18: #{affinity_net_forward.3} parent=0 // pred_check
    _
  $region19: #{affinity_net_forward.3} parent=0 // pred_check_branch
    %35 = sbr.rel (0) target = $region21
  $region20: #{affinity_net_forward.3} parent=0 // pred_region
    _
  $region21: #{affinity_net_forward.3} parent=0 // pred_fallthru
    _
  // Predicated region
  $region22: #{affinity_net_forward.3} parent=0 // pred_check
    _
  $region23: #{affinity_net_forward.3} parent=0 // pred_check_branch
    %37 = sbr.rel (0) target = $region25
  $region24: #{affinity_net_forward.3} parent=0 // pred_region
    _
  $region25: #{affinity_net_forward.3} parent=0 // pred_fallthru
    _
  // Predicated region
  $region26: #{affinity_net_forward.3} parent=0 // pred_check
    _
  $region27: #{affinity_net_forward.3} parent=0 // pred_check_branch
    %39 = sbr.rel (0) target = $region29
  $region28: #{affinity_net_forward.3} parent=0 // pred_region
    _
  $region29: #{affinity_net_forward.3} parent=0 // pred_fallthru
    _
  // Predicated region
  $region30: #{affinity_net_forward.3} parent=0 // pred_check
    _
  $region31: #{affinity_net_forward.3} parent=0 // pred_check_branch
    %41 = sbr.rel (0) target = $region33
  $region32: #{affinity_net_forward.3} parent=0 // pred_region
    _
  $region33: #{affinity_net_forward.3} parent=0 // pred_fallthru
    _
  // Predicated region
  $region34: #{affinity_net_forward.3} parent=0 // pred_check
    _
  $region35: #{affinity_net_forward.3} parent=0 // pred_check_branch
    %43 = sbr.rel (0) target = $region37
  $region36: #{affinity_net_forward.3} parent=0 // pred_region
    _
  $region37: #{affinity_net_forward.3} parent=0 // pred_fallthru
    _
  // Predicated region
  $region38: #{affinity_net_forward.3} parent=0 // pred_check
    _
  $region39: #{affinity_net_forward.3} parent=0 // pred_check_branch
    %45 = sbr.rel (0) target = $region41
  $region40: #{affinity_net_forward.3} parent=0 // pred_region
    _
  $region41: #{affinity_net_forward.3} parent=0 // pred_fallthru
    _
  // Predicated region
  $region42: #{affinity_net_forward.3} parent=0 // pred_check
    _
  $region43: #{affinity_net_forward.3} parent=0 // pred_check_branch
    %47 = sbr.rel (0) target = $region45
  $region44: #{affinity_net_forward.3} parent=0 // pred_region
    _
  $region45: #{affinity_net_forward.3} parent=0 // pred_fallthru
    _
  // Predicated region
  $region46: #{affinity_net_forward.3} parent=0 // pred_check
    _
  $region47: #{affinity_net_forward.3} parent=0 // pred_check_branch
    %49 = sbr.rel (0) target = $region49
  $region48: #{affinity_net_forward.3} parent=0 // pred_region
    _
  $region49: #{affinity_net_forward.3} parent=0 // pred_fallthru
    _
  // Predicated region
  $region50: #{affinity_net_forward.3} parent=0 // pred_check
    _
  $region51: #{affinity_net_forward.3} parent=0 // pred_check_branch
    %51 = sbr.rel (0) target = $region53
  $region52: #{affinity_net_forward.3} parent=0 // pred_region
    _
  $region53: #{affinity_net_forward.3} parent=0 // pred_fallthru
    _
  // Predicated region
  $region54: #{affinity_net_forward.3} parent=0 // pred_check
    _
  $region55: #{affinity_net_forward.3} parent=0 // pred_check_branch
    %53 = sbr.rel (0) target = $region57
  $region56: #{affinity_net_forward.3} parent=0 // pred_region
    _
  $region57: #{affinity_net_forward.3} parent=0 // pred_fallthru
    _
  // Predicated region
  $region58: #{affinity_net_forward.3} parent=0 // pred_check
    _
  $region59: #{affinity_net_forward.3} parent=0 // pred_check_branch
    %55 = sbr.rel (0) target = $region61
  $region60: #{affinity_net_forward.3} parent=0 // pred_region
    _
  $region61: #{affinity_net_forward.3} parent=0 // pred_fallthru
    _
  // Predicated region
  $region62: #{affinity_net_forward.3} parent=0 // pred_check
    _
  $region63: #{affinity_net_forward.3} parent=0 // pred_check_branch
    %57 = sbr.rel (0) target = $region65
  $region64: #{affinity_net_forward.3} parent=0 // pred_region
    _
  $region65: #{affinity_net_forward.3} parent=0 // pred_fallthru
    _
  // Predicated region
  $region66: #{affinity_net_forward.3} parent=0 // pred_check
    _
  $region67: #{affinity_net_forward.3} parent=0 // pred_check_branch
    %59 = sbr.rel (0) target = $region69
  $region68: #{affinity_net_forward.3} parent=0 // pred_region
    _
  $region69: #{affinity_net_forward.3} parent=0 // pred_fallthru
    _
  %v60 = vld [vmem:[%s2] sm:$0xff]
  %v61 = vld [vmem:[%s2 + $0x8] sm:$0xff]
  %v62 = vld [vmem:[%s2 + $0x10] sm:$0xff]
  %v63 = vld [vmem:[%s2 + $0x18] sm:$0xff]
  %v64 = vld [vmem:[%s3] sm:$0x1]
  %v65 = vld [vmem:[%s4] sm:$0xff]
  %v66 = vld [vmem:[%s4 + $0x8] sm:$0xff]
  %v67 = vld [vmem:[%s4 + $0x10] sm:$0xff]
  %v68 = vld [vmem:[%s4 + $0x18] sm:$0xff]
  %v69 = vld [vmem:[%s5] sm:$0x1]
  %v70 = vld [vmem:[%s6] sm:$0x1]
  %v71 = vld [vmem:[#allocation3] sm:$0x1]
  %v72 = vld [vmem:[%s0] sm:$0xff]
  %v73 = vld [vmem:[%s0 + $0x8] sm:$0x1]
  %v75 = vlaneseq
  %v76 = vshrl.u32 %v75, 7
  %v77 = vsub.s32 0, %v76
  %v78 = vrot.slane %v64, %v77
  %vm80 = vcmask 261120
  %v82 = vsel %vm80, %v72, 0
  %v85 = vsel %vm80, %v73, 0
  %87 = vmatprep.subr.mxu0 0.0
  %88 = vmatpush1.msra.mxu0 %v60
  %89 = vmatprep.subr.mxu0 0.0
  %90 = vmatpush1.msra.mxu0 %v61
  %91 = vmatprep.subr.mxu0 0.0
  %92 = vmatpush1.msra.mxu0 %v62
  %93 = vmatprep.subr.mxu0 0.0
  %94 = vmatpush1.msra.mxu0 %v63
  %95 = vmatprep.subr.mxu0 0.0
  %96 = vmatpush1.msra.mxu0 0.0
  %97 = vmatprep.subr.mxu0 0.0
  %98 = vmatpush1.msra.mxu0 0.0
  %99 = vmatprep.subr.mxu0 0.0
  %100 = vmatpush1.msra.mxu0 0.0
  %101 = vmatprep.subr.mxu0 0.0
  %102 = vmatpush1.msra.mxu0 0.0
  %103 = vmatprep.subr.mxu0 0.0
  %104 = vmatpush1.msra.mxu0 0.0
  %105 = vmatprep.subr.mxu0 0.0
  %106 = vmatpush1.msra.mxu0 0.0
  %107 = vmatprep.subr.mxu0 0.0
  %108 = vmatpush1.msra.mxu0 0.0
  %109 = vmatprep.subr.mxu0 0.0
  %110 = vmatpush1.msra.mxu0 0.0
  %111 = vmatprep.subr.mxu0 0.0
  %112 = vmatpush1.msra.mxu0 0.0
  %113 = vmatprep.subr.mxu0 0.0
  %114 = vmatpush1.msra.mxu0 0.0
  %115 = vmatprep.subr.mxu0 0.0
  %116 = vmatpush1.msra.mxu0 0.0
  %117 = vmatprep.subr.mxu0 0.0
  %118 = vmatpush1.msra.mxu0 0.0
  %119 = vmatprep.subr.mxu0 0.0
  %120 = vmatpush1.msra.mxu0 0.0
  %121 = vmatprep.subr.mxu0 0.0
  %122 = vmatpush1.msra.mxu0 0.0
  %123 = vmatprep.subr.mxu0 0.0
  %124 = vmatpush1.msra.mxu0 0.0
  %125 = vmatprep.subr.mxu0 0.0
  %126 = vmatpush1.msra.mxu0 0.0
  %127 = vmatprep.subr.mxu0 0.0
  %128 = vmatpush1.msra.mxu0 0.0
  %129 = vmatprep.subr.mxu0 0.0
  %130 = vmatpush1.msra.mxu0 0.0
  %131 = vmatprep.subr.mxu0 0.0
  %132 = vmatpush1.msra.mxu0 0.0
  %133 = vmatprep.subr.mxu0 0.0
  %134 = vmatpush1.msra.mxu0 0.0
  %135 = vmatprep.subr.mxu0 0.0
  %136 = vmatpush1.msra.mxu0 0.0
  %137 = vmatprep.subr.mxu0 0.0
  %138 = vmatpush1.msra.mxu0 0.0
  %139 = vmatprep.subr.mxu0 0.0
  %140 = vmatpush1.msra.mxu0 0.0
  %141 = vmatprep.subr.mxu0 0.0
  %142 = vmatpush1.msra.mxu0 0.0
  %143 = vmatprep.subr.mxu0 0.0
  %144 = vmatpush1.msra.mxu0 0.0
  %145 = vmatprep.subr.mxu0 0.0
  %146 = vmatpush1.msra.mxu0 0.0
  %147 = vmatprep.subr.mxu0 0.0
  %148 = vmatpush1.msra.mxu0 0.0
  %149 = vmatprep.subr.mxu0 0.0
  %150 = vmatpush1.msra.mxu0 0.0
  %151 = vmatprep.mubr.f32.mxu0 0.0
  %152 = vmatmul.mubr.f32.gmra.mrb[0].mxu0 %v82
  %v153 = vpop.f32.mrb[0].mxu0
  %v154 = vadd.f32 %v78, %v153
  %v155 = vpop.f32.mrb[0].mxu0
  %156 = vmatprep.mubr.f32.mxu0 0.0
  %157 = vmatmul.mubr.f32.gmra.mrb[0].mxu0 %v85
  %v158 = vpop.f32.mrb[0].mxu0
  %v159 = vadd.f32 %v78, %v158
  %v160 = vpop.f32.mrb[0].mxu0
  %161 = vdwg.mxu0
  %v162 = vmax.f32 %v154, 0.0
  %v163 = vmax.f32 %v159, 0.0
  %v164 = vld [vmem:[%s1] sm:$0xff]
  %v165 = vld [vmem:[%s1 + $0x8] sm:$0x1]
  %v167 = vlaneseq
  %v168 = vshrl.u32 %v167, 7
  %v169 = vsub.s32 0, %v168
  %v170 = vrot.slane %v69, %v169
  %v173 = vsel %vm80, %v164, 0
  %v176 = vsel %vm80, %v165, 0
  %178 = vmatprep.subr.mxu0 0.0
  %179 = vmatpush1.msra.mxu0 %v65
  %180 = vmatprep.subr.mxu0 0.0
  %181 = vmatpush1.msra.mxu0 %v66
  %182 = vmatprep.subr.mxu0 0.0
  %183 = vmatpush1.msra.mxu0 %v67
  %184 = vmatprep.subr.mxu0 0.0
  %185 = vmatpush1.msra.mxu0 %v68
  %186 = vmatprep.subr.mxu0 0.0
  %187 = vmatpush1.msra.mxu0 0.0
  %188 = vmatprep.subr.mxu0 0.0
  %189 = vmatpush1.msra.mxu0 0.0
  %190 = vmatprep.subr.mxu0 0.0
  %191 = vmatpush1.msra.mxu0 0.0
  %192 = vmatprep.subr.mxu0 0.0
  %193 = vmatpush1.msra.mxu0 0.0
  %194 = vmatprep.subr.mxu0 0.0
  %195 = vmatpush1.msra.mxu0 0.0
  %196 = vmatprep.subr.mxu0 0.0
  %197 = vmatpush1.msra.mxu0 0.0
  %198 = vmatprep.subr.mxu0 0.0
  %199 = vmatpush1.msra.mxu0 0.0
  %200 = vmatprep.subr.mxu0 0.0
  %201 = vmatpush1.msra.mxu0 0.0
  %202 = vmatprep.subr.mxu0 0.0
  %203 = vmatpush1.msra.mxu0 0.0
  %204 = vmatprep.subr.mxu0 0.0
  %205 = vmatpush1.msra.mxu0 0.0
  %206 = vmatprep.subr.mxu0 0.0
  %207 = vmatpush1.msra.mxu0 0.0
  %208 = vmatprep.subr.mxu0 0.0
  %209 = vmatpush1.msra.mxu0 0.0
  %210 = vmatprep.subr.mxu0 0.0
  %211 = vmatpush1.msra.mxu0 0.0
  %212 = vmatprep.subr.mxu0 0.0
  %213 = vmatpush1.msra.mxu0 0.0
  %214 = vmatprep.subr.mxu0 0.0
  %215 = vmatpush1.msra.mxu0 0.0
  %216 = vmatprep.subr.mxu0 0.0
  %217 = vmatpush1.msra.mxu0 0.0
  %218 = vmatprep.subr.mxu0 0.0
  %219 = vmatpush1.msra.mxu0 0.0
  %220 = vmatprep.subr.mxu0 0.0
  %221 = vmatpush1.msra.mxu0 0.0
  %222 = vmatprep.subr.mxu0 0.0
  %223 = vmatpush1.msra.mxu0 0.0
  %224 = vmatprep.subr.mxu0 0.0
  %225 = vmatpush1.msra.mxu0 0.0
  %226 = vmatprep.subr.mxu0 0.0
  %227 = vmatpush1.msra.mxu0 0.0
  %228 = vmatprep.subr.mxu0 0.0
  %229 = vmatpush1.msra.mxu0 0.0
  %230 = vmatprep.subr.mxu0 0.0
  %231 = vmatpush1.msra.mxu0 0.0
  %232 = vmatprep.subr.mxu0 0.0
  %233 = vmatpush1.msra.mxu0 0.0
  %234 = vmatprep.subr.mxu0 0.0
  %235 = vmatpush1.msra.mxu0 0.0
  %236 = vmatprep.subr.mxu0 0.0
  %237 = vmatpush1.msra.mxu0 0.0
  %238 = vmatprep.subr.mxu0 0.0
  %239 = vmatpush1.msra.mxu0 0.0
  %240 = vmatprep.subr.mxu0 0.0
  %241 = vmatpush1.msra.mxu0 0.0
  %242 = vmatprep.mubr.f32.mxu0 0.0
  %243 = vmatmul.mubr.f32.gmra.mrb[0].mxu0 %v173
  %v244 = vpop.f32.mrb[0].mxu0
  %v245 = vadd.f32 %v170, %v244
  %v246 = vpop.f32.mrb[0].mxu0
  %247 = vmatprep.mubr.f32.mxu0 0.0
  %248 = vmatmul.mubr.f32.gmra.mrb[0].mxu0 %v176
  %v249 = vpop.f32.mrb[0].mxu0
  %v250 = vadd.f32 %v170, %v249
  %v251 = vpop.f32.mrb[0].mxu0
  %252 = vdwg.mxu0
  %v253 = vmax.f32 %v245, 0.0
  %v254 = vmax.f32 %v250, 0.0
  %v256 = vlaneseq
  %v257 = vshrl.u32 %v256, 7
  %v258 = vsub.s32 0, %v257
  %v259 = vrot.slane %v70, %v258
  %v261 = vmul.f32 %v162, %v259
  %v262 = vmul.f32 %v163, %v259
  %v264 = vlaneseq
  %v265 = vshrl.u32 %v264, 7
  %v266 = vsub.s32 0, %v265
  %v267 = vrot.slane %v71, %v266
  %268 = vset.pattern.permute.xlu0 0
  %269 = vperm.xlu0 %268, %v267
  %v270 = vpop.permute.xlu0 %269
  %vm272 = vcmask 785408
  %v274 = vsel %vm272, %v261, 0
  %v277 = vsel %vm272, %v262, 0
  %v280 = vsel %vm272, %v253, 0
  %v283 = vsel %vm272, %v254, 0
  %285 = vmatprep.subr.mxu0 0.0
  %286 = vmatpush1.xpose.msra.mxu0 %v280
  %287 = vmatprep.subr.mxu0 0.0
  %288 = vmatpush1.xpose.msra.mxu0 %v283
  %289 = vmatprep.subr.mxu0 0.0
  %290 = vmatpush1.xpose.msra.mxu0 0.0
  %291 = vmatprep.subr.mxu0 0.0
  %292 = vmatpush1.xpose.msra.mxu0 0.0
  %293 = vmatprep.subr.mxu0 0.0
  %294 = vmatpush1.xpose.msra.mxu0 0.0
  %295 = vmatprep.subr.mxu0 0.0
  %296 = vmatpush1.xpose.msra.mxu0 0.0
  %297 = vmatprep.subr.mxu0 0.0
  %298 = vmatpush1.xpose.msra.mxu0 0.0
  %299 = vmatprep.subr.mxu0 0.0
  %300 = vmatpush1.xpose.msra.mxu0 0.0
  %301 = vmatprep.subr.mxu0 0.0
  %302 = vmatpush1.xpose.msra.mxu0 0.0
  %303 = vmatprep.subr.mxu0 0.0
  %304 = vmatpush1.xpose.msra.mxu0 0.0
  %305 = vmatprep.subr.mxu0 0.0
  %306 = vmatpush1.xpose.msra.mxu0 0.0
  %307 = vmatprep.subr.mxu0 0.0
  %308 = vmatpush1.xpose.msra.mxu0 0.0
  %309 = vmatprep.subr.mxu0 0.0
  %310 = vmatpush1.xpose.msra.mxu0 0.0
  %311 = vmatprep.subr.mxu0 0.0
  %312 = vmatpush1.xpose.msra.mxu0 0.0
  %313 = vmatprep.subr.mxu0 0.0
  %314 = vmatpush1.xpose.msra.mxu0 0.0
  %315 = vmatprep.subr.mxu0 0.0
  %316 = vmatpush1.xpose.msra.mxu0 0.0
  %317 = vmatprep.subr.mxu0 0.0
  %318 = vmatpush1.xpose.msra.mxu0 0.0
  %319 = vmatprep.subr.mxu0 0.0
  %320 = vmatpush1.xpose.msra.mxu0 0.0
  %321 = vmatprep.subr.mxu0 0.0
  %322 = vmatpush1.xpose.msra.mxu0 0.0
  %323 = vmatprep.subr.mxu0 0.0
  %324 = vmatpush1.xpose.msra.mxu0 0.0
  %325 = vmatprep.subr.mxu0 0.0
  %326 = vmatpush1.xpose.msra.mxu0 0.0
  %327 = vmatprep.subr.mxu0 0.0
  %328 = vmatpush1.xpose.msra.mxu0 0.0
  %329 = vmatprep.subr.mxu0 0.0
  %330 = vmatpush1.xpose.msra.mxu0 0.0
  %331 = vmatprep.subr.mxu0 0.0
  %332 = vmatpush1.xpose.msra.mxu0 0.0
  %333 = vmatprep.subr.mxu0 0.0
  %334 = vmatpush1.xpose.msra.mxu0 0.0
  %335 = vmatprep.subr.mxu0 0.0
  %336 = vmatpush1.xpose.msra.mxu0 0.0
  %337 = vmatprep.subr.mxu0 0.0
  %338 = vmatpush1.xpose.msra.mxu0 0.0
  %339 = vmatprep.subr.mxu0 0.0
  %340 = vmatpush1.xpose.msra.mxu0 0.0
  %341 = vmatprep.subr.mxu0 0.0
  %342 = vmatpush1.xpose.msra.mxu0 0.0
  %343 = vmatprep.subr.mxu0 0.0
  %344 = vmatpush1.xpose.msra.mxu0 0.0
  %345 = vmatprep.subr.mxu0 0.0
  %346 = vmatpush1.xpose.msra.mxu0 0.0
  %347 = vmatprep.subr.mxu0 0.0
  %348 = vmatpush1.xpose.msra.mxu0 0.0
  %349 = vmatprep.mubr.f32.mxu0 0.0
  %350 = vmatmul.mubr.f32.gmra.mrb[0].mxu0 %v274
  %v351 = vpop.f32.mrb[0].mxu0
  %v352 = vadd.f32 %v270, %v351
  %v353 = vpop.f32.mrb[0].mxu0
  %354 = vmatprep.mubr.f32.mxu0 0.0
  %355 = vmatmul.mubr.f32.gmra.mrb[0].mxu0 %v277
  %v356 = vpop.f32.mrb[0].mxu0
  %v357 = vadd.f32 %v270, %v356
  %v358 = vpop.f32.mrb[0].mxu0
  %359 = vdwg.mxu0
  %vm360 = vcmask 72704
  %v362 = vsel %vm360, %v352, 0
  %v365 = vsel %vm360, %v357, 0
  %vm367 = vcmask 1040384
  %v368 = vsel %vm367, %v254, 0
  %370 = vmatprep.subr.mxu0 0.0
  %371 = vmatpush1.msra.mxu0 %v253
  %372 = vmatprep.subr.mxu0 0.0
  %373 = vmatpush1.msra.mxu0 %v368
  %374 = vmatprep.subr.mxu0 0.0
  %375 = vmatpush1.msra.mxu0 0.0
  %376 = vmatprep.subr.mxu0 0.0
  %377 = vmatpush1.msra.mxu0 0.0
  %378 = vmatprep.subr.mxu0 0.0
  %379 = vmatpush1.msra.mxu0 0.0
  %380 = vmatprep.subr.mxu0 0.0
  %381 = vmatpush1.msra.mxu0 0.0
  %382 = vmatprep.subr.mxu0 0.0
  %383 = vmatpush1.msra.mxu0 0.0
  %384 = vmatprep.subr.mxu0 0.0
  %385 = vmatpush1.msra.mxu0 0.0
  %386 = vmatprep.subr.mxu0 0.0
  %387 = vmatpush1.msra.mxu0 0.0
  %388 = vmatprep.subr.mxu0 0.0
  %389 = vmatpush1.msra.mxu0 0.0
  %390 = vmatprep.subr.mxu0 0.0
  %391 = vmatpush1.msra.mxu0 0.0
  %392 = vmatprep.subr.mxu0 0.0
  %393 = vmatpush1.msra.mxu0 0.0
  %394 = vmatprep.subr.mxu0 0.0
  %395 = vmatpush1.msra.mxu0 0.0
  %396 = vmatprep.subr.mxu0 0.0
  %397 = vmatpush1.msra.mxu0 0.0
  %398 = vmatprep.subr.mxu0 0.0
  %399 = vmatpush1.msra.mxu0 0.0
  %400 = vmatprep.subr.mxu0 0.0
  %401 = vmatpush1.msra.mxu0 0.0
  %402 = vmatprep.subr.mxu0 0.0
  %403 = vmatpush1.msra.mxu0 0.0
  %404 = vmatprep.subr.mxu0 0.0
  %405 = vmatpush1.msra.mxu0 0.0
  %406 = vmatprep.subr.mxu0 0.0
  %407 = vmatpush1.msra.mxu0 0.0
  %408 = vmatprep.subr.mxu0 0.0
  %409 = vmatpush1.msra.mxu0 0.0
  %410 = vmatprep.subr.mxu0 0.0
  %411 = vmatpush1.msra.mxu0 0.0
  %412 = vmatprep.subr.mxu0 0.0
  %413 = vmatpush1.msra.mxu0 0.0
  %414 = vmatprep.subr.mxu0 0.0
  %415 = vmatpush1.msra.mxu0 0.0
  %416 = vmatprep.subr.mxu0 0.0
  %417 = vmatpush1.msra.mxu0 0.0
  %418 = vmatprep.subr.mxu0 0.0
  %419 = vmatpush1.msra.mxu0 0.0
  %420 = vmatprep.subr.mxu0 0.0
  %421 = vmatpush1.msra.mxu0 0.0
  %422 = vmatprep.subr.mxu0 0.0
  %423 = vmatpush1.msra.mxu0 0.0
  %424 = vmatprep.subr.mxu0 0.0
  %425 = vmatpush1.msra.mxu0 0.0
  %426 = vmatprep.subr.mxu0 0.0
  %427 = vmatpush1.msra.mxu0 0.0
  %428 = vmatprep.subr.mxu0 0.0
  %429 = vmatpush1.msra.mxu0 0.0
  %430 = vmatprep.subr.mxu0 0.0
  %431 = vmatpush1.msra.mxu0 0.0
  %432 = vmatprep.subr.mxu0 0.0
  %433 = vmatpush1.msra.mxu0 0.0
  %434 = vmatprep.mubr.f32.mxu0 0.0
  %435 = vmatmul.mubr.f32.gmra.mrb[0].mxu0 %v362
  %v436 = vpop.f32.mrb[0].mxu0
  %v437 = vadd.f32 0.0, %v436
  %v438 = vpop.f32.mrb[0].mxu0
  %439 = vmatprep.mubr.f32.mxu0 0.0
  %440 = vmatmul.mubr.f32.gmra.mrb[0].mxu0 %v365
  %v441 = vpop.f32.mrb[0].mxu0
  %v442 = vadd.f32 0.0, %v441
  %v443 = vpop.f32.mrb[0].mxu0
  %444 = vdwg.mxu0
  %v445 = vmul.f32 %v162, %v437
  %v446 = vmul.f32 %v163, %v442
  %v447 = vsel %vm272, %v445, 0.0
  %vm448 = vcmask 778240
  %v449 = vsel %vm448, %v446, 0.0
  %v450 = vadd.f32 %v447, %v449
  %v451 = vrot.slane %v450, 4
  %v452 = vadd.f32 %v450, %v451
  %v453 = vrot.slane %v452, 2
  %v454 = vadd.f32 %v452, %v453
  %v455 = vrot.slane %v454, 1
  %v456 = vadd.f32 %v454, %v455
  %457 = vst.msk [vmem:[#allocation2] sm:$0x1] %vm448, %v456
  %s458 = scalar_lea.vmem %s0, 16
  %v459 = vld [vmem:[%s458] sm:$0xff]
  %v460 = vld [vmem:[%s458 + $0x8] sm:$0x1]
  %v462 = vsel %vm80, %v459, 0
  %v465 = vsel %vm80, %v460, 0
  %467 = vmatprep.subr.mxu0 0.0
  %468 = vmatpush1.msra.mxu0 %v60
  %469 = vmatprep.subr.mxu0 0.0
  %470 = vmatpush1.msra.mxu0 %v61
  %471 = vmatprep.subr.mxu0 0.0
  %472 = vmatpush1.msra.mxu0 %v62
  %473 = vmatprep.subr.mxu0 0.0
  %474 = vmatpush1.msra.mxu0 %v63
  %475 = vmatprep.subr.mxu0 0.0
  %476 = vmatpush1.msra.mxu0 0.0
  %477 = vmatprep.subr.mxu0 0.0
  %478 = vmatpush1.msra.mxu0 0.0
  %479 = vmatprep.subr.mxu0 0.0
  %480 = vmatpush1.msra.mxu0 0.0
  %481 = vmatprep.subr.mxu0 0.0
  %482 = vmatpush1.msra.mxu0 0.0
  %483 = vmatprep.subr.mxu0 0.0
  %484 = vmatpush1.msra.mxu0 0.0
  %485 = vmatprep.subr.mxu0 0.0
  %486 = vmatpush1.msra.mxu0 0.0
  %487 = vmatprep.subr.mxu0 0.0
  %488 = vmatpush1.msra.mxu0 0.0
  %489 = vmatprep.subr.mxu0 0.0
  %490 = vmatpush1.msra.mxu0 0.0
  %491 = vmatprep.subr.mxu0 0.0
  %492 = vmatpush1.msra.mxu0 0.0
  %493 = vmatprep.subr.mxu0 0.0
  %494 = vmatpush1.msra.mxu0 0.0
  %495 = vmatprep.subr.mxu0 0.0
  %496 = vmatpush1.msra.mxu0 0.0
  %497 = vmatprep.subr.mxu0 0.0
  %498 = vmatpush1.msra.mxu0 0.0
  %499 = vmatprep.subr.mxu0 0.0
  %500 = vmatpush1.msra.mxu0 0.0
  %501 = vmatprep.subr.mxu0 0.0
  %502 = vmatpush1.msra.mxu0 0.0
  %503 = vmatprep.subr.mxu0 0.0
  %504 = vmatpush1.msra.mxu0 0.0
  %505 = vmatprep.subr.mxu0 0.0
  %506 = vmatpush1.msra.mxu0 0.0
  %507 = vmatprep.subr.mxu0 0.0
  %508 = vmatpush1.msra.mxu0 0.0
  %509 = vmatprep.subr.mxu0 0.0
  %510 = vmatpush1.msra.mxu0 0.0
  %511 = vmatprep.subr.mxu0 0.0
  %512 = vmatpush1.msra.mxu0 0.0
  %513 = vmatprep.subr.mxu0 0.0
  %514 = vmatpush1.msra.mxu0 0.0
  %515 = vmatprep.subr.mxu0 0.0
  %516 = vmatpush1.msra.mxu0 0.0
  %517 = vmatprep.subr.mxu0 0.0
  %518 = vmatpush1.msra.mxu0 0.0
  %519 = vmatprep.subr.mxu0 0.0
  %520 = vmatpush1.msra.mxu0 0.0
  %521 = vmatprep.subr.mxu0 0.0
  %522 = vmatpush1.msra.mxu0 0.0
  %523 = vmatprep.subr.mxu0 0.0
  %524 = vmatpush1.msra.mxu0 0.0
  %525 = vmatprep.subr.mxu0 0.0
  %526 = vmatpush1.msra.mxu0 0.0
  %527 = vmatprep.subr.mxu0 0.0
  %528 = vmatpush1.msra.mxu0 0.0
  %529 = vmatprep.subr.mxu0 0.0
  %530 = vmatpush1.msra.mxu0 0.0
  %531 = vmatprep.mubr.f32.mxu0 0.0
  %532 = vmatmul.mubr.f32.gmra.mrb[0].mxu0 %v462
  %v533 = vpop.f32.mrb[0].mxu0
  %v534 = vadd.f32 %v78, %v533
  %v535 = vpop.f32.mrb[0].mxu0
  %536 = vmatprep.mubr.f32.mxu0 0.0
  %537 = vmatmul.mubr.f32.gmra.mrb[0].mxu0 %v465
  %v538 = vpop.f32.mrb[0].mxu0
  %v539 = vadd.f32 %v78, %v538
  %v540 = vpop.f32.mrb[0].mxu0
  %541 = vdwg.mxu0
  %v542 = vmax.f32 %v534, 0.0
  %v543 = vmax.f32 %v539, 0.0
  %s544 = scalar_lea.vmem %s1, 16
  %v545 = vld [vmem:[%s544] sm:$0xff]
  %v546 = vld [vmem:[%s544 + $0x8] sm:$0x1]
  %v548 = vsel %vm80, %v545, 0
  %v551 = vsel %vm80, %v546, 0
  %553 = vmatprep.subr.mxu0 0.0
  %554 = vmatpush1.msra.mxu0 %v65
  %555 = vmatprep.subr.mxu0 0.0
  %556 = vmatpush1.msra.mxu0 %v66
  %557 = vmatprep.subr.mxu0 0.0
  %558 = vmatpush1.msra.mxu0 %v67
  %559 = vmatprep.subr.mxu0 0.0
  %560 = vmatpush1.msra.mxu0 %v68
  %561 = vmatprep.subr.mxu0 0.0
  %562 = vmatpush1.msra.mxu0 0.0
  %563 = vmatprep.subr.mxu0 0.0
  %564 = vmatpush1.msra.mxu0 0.0
  %565 = vmatprep.subr.mxu0 0.0
  %566 = vmatpush1.msra.mxu0 0.0
  %567 = vmatprep.subr.mxu0 0.0
  %568 = vmatpush1.msra.mxu0 0.0
  %569 = vmatprep.subr.mxu0 0.0
  %570 = vmatpush1.msra.mxu0 0.0
  %571 = vmatprep.subr.mxu0 0.0
  %572 = vmatpush1.msra.mxu0 0.0
  %573 = vmatprep.subr.mxu0 0.0
  %574 = vmatpush1.msra.mxu0 0.0
  %575 = vmatprep.subr.mxu0 0.0
  %576 = vmatpush1.msra.mxu0 0.0
  %577 = vmatprep.subr.mxu0 0.0
  %578 = vmatpush1.msra.mxu0 0.0
  %579 = vmatprep.subr.mxu0 0.0
  %580 = vmatpush1.msra.mxu0 0.0
  %581 = vmatprep.subr.mxu0 0.0
  %582 = vmatpush1.msra.mxu0 0.0
  %583 = vmatprep.subr.mxu0 0.0
  %584 = vmatpush1.msra.mxu0 0.0
  %585 = vmatprep.subr.mxu0 0.0
  %586 = vmatpush1.msra.mxu0 0.0
  %587 = vmatprep.subr.mxu0 0.0
  %588 = vmatpush1.msra.mxu0 0.0
  %589 = vmatprep.subr.mxu0 0.0
  %590 = vmatpush1.msra.mxu0 0.0
  %591 = vmatprep.subr.mxu0 0.0
  %592 = vmatpush1.msra.mxu0 0.0
  %593 = vmatprep.subr.mxu0 0.0
  %594 = vmatpush1.msra.mxu0 0.0
  %595 = vmatprep.subr.mxu0 0.0
  %596 = vmatpush1.msra.mxu0 0.0
  %597 = vmatprep.subr.mxu0 0.0
  %598 = vmatpush1.msra.mxu0 0.0
  %599 = vmatprep.subr.mxu0 0.0
  %600 = vmatpush1.msra.mxu0 0.0
  %601 = vmatprep.subr.mxu0 0.0
  %602 = vmatpush1.msra.mxu0 0.0
  %603 = vmatprep.subr.mxu0 0.0
  %604 = vmatpush1.msra.mxu0 0.0
  %605 = vmatprep.subr.mxu0 0.0
  %606 = vmatpush1.msra.mxu0 0.0
  %607 = vmatprep.subr.mxu0 0.0
  %608 = vmatpush1.msra.mxu0 0.0
  %609 = vmatprep.subr.mxu0 0.0
  %610 = vmatpush1.msra.mxu0 0.0
  %611 = vmatprep.subr.mxu0 0.0
  %612 = vmatpush1.msra.mxu0 0.0
  %613 = vmatprep.subr.mxu0 0.0
  %614 = vmatpush1.msra.mxu0 0.0
  %615 = vmatprep.subr.mxu0 0.0
  %616 = vmatpush1.msra.mxu0 0.0
  %617 = vmatprep.mubr.f32.mxu0 0.0
  %618 = vmatmul.mubr.f32.gmra.mrb[0].mxu0 %v548
  %v619 = vpop.f32.mrb[0].mxu0
  %v620 = vadd.f32 %v170, %v619
  %v621 = vpop.f32.mrb[0].mxu0
  %622 = vmatprep.mubr.f32.mxu0 0.0
  %623 = vmatmul.mubr.f32.gmra.mrb[0].mxu0 %v551
  %v624 = vpop.f32.mrb[0].mxu0
  %v625 = vadd.f32 %v170, %v624
  %v626 = vpop.f32.mrb[0].mxu0
  %627 = vdwg.mxu0
  %v628 = vmax.f32 %v620, 0.0
  %v629 = vmax.f32 %v625, 0.0
  %v630 = vmul.f32 %v542, %v259
  %v631 = vmul.f32 %v543, %v259
  %v633 = vsel %vm272, %v630, 0
  %v636 = vsel %vm272, %v631, 0
  %v639 = vsel %vm272, %v628, 0
  %v642 = vsel %vm272, %v629, 0
  %644 = vmatprep.subr.mxu0 0.0
  %645 = vmatpush1.xpose.msra.mxu0 %v639
  %646 = vmatprep.subr.mxu0 0.0
  %647 = vmatpush1.xpose.msra.mxu0 %v642
  %648 = vmatprep.subr.mxu0 0.0
  %649 = vmatpush1.xpose.msra.mxu0 0.0
  %650 = vmatprep.subr.mxu0 0.0
  %651 = vmatpush1.xpose.msra.mxu0 0.0
  %652 = vmatprep.subr.mxu0 0.0
  %653 = vmatpush1.xpose.msra.mxu0 0.0
  %654 = vmatprep.subr.mxu0 0.0
  %655 = vmatpush1.xpose.msra.mxu0 0.0
  %656 = vmatprep.subr.mxu0 0.0
  %657 = vmatpush1.xpose.msra.mxu0 0.0
  %658 = vmatprep.subr.mxu0 0.0
  %659 = vmatpush1.xpose.msra.mxu0 0.0
  %660 = vmatprep.subr.mxu0 0.0
  %661 = vmatpush1.xpose.msra.mxu0 0.0
  %662 = vmatprep.subr.mxu0 0.0
  %663 = vmatpush1.xpose.msra.mxu0 0.0
  %664 = vmatprep.subr.mxu0 0.0
  %665 = vmatpush1.xpose.msra.mxu0 0.0
  %666 = vmatprep.subr.mxu0 0.0
  %667 = vmatpush1.xpose.msra.mxu0 0.0
  %668 = vmatprep.subr.mxu0 0.0
  %669 = vmatpush1.xpose.msra.mxu0 0.0
  %670 = vmatprep.subr.mxu0 0.0
  %671 = vmatpush1.xpose.msra.mxu0 0.0
  %672 = vmatprep.subr.mxu0 0.0
  %673 = vmatpush1.xpose.msra.mxu0 0.0
  %674 = vmatprep.subr.mxu0 0.0
  %675 = vmatpush1.xpose.msra.mxu0 0.0
  %676 = vmatprep.subr.mxu0 0.0
  %677 = vmatpush1.xpose.msra.mxu0 0.0
  %678 = vmatprep.subr.mxu0 0.0
  %679 = vmatpush1.xpose.msra.mxu0 0.0
  %680 = vmatprep.subr.mxu0 0.0
  %681 = vmatpush1.xpose.msra.mxu0 0.0
  %682 = vmatprep.subr.mxu0 0.0
  %683 = vmatpush1.xpose.msra.mxu0 0.0
  %684 = vmatprep.subr.mxu0 0.0
  %685 = vmatpush1.xpose.msra.mxu0 0.0
  %686 = vmatprep.subr.mxu0 0.0
  %687 = vmatpush1.xpose.msra.mxu0 0.0
  %688 = vmatprep.subr.mxu0 0.0
  %689 = vmatpush1.xpose.msra.mxu0 0.0
  %690 = vmatprep.subr.mxu0 0.0
  %691 = vmatpush1.xpose.msra.mxu0 0.0
  %692 = vmatprep.subr.mxu0 0.0
  %693 = vmatpush1.xpose.msra.mxu0 0.0
  %694 = vmatprep.subr.mxu0 0.0
  %695 = vmatpush1.xpose.msra.mxu0 0.0
  %696 = vmatprep.subr.mxu0 0.0
  %697 = vmatpush1.xpose.msra.mxu0 0.0
  %698 = vmatprep.subr.mxu0 0.0
  %699 = vmatpush1.xpose.msra.mxu0 0.0
  %700 = vmatprep.subr.mxu0 0.0
  %701 = vmatpush1.xpose.msra.mxu0 0.0
  %702 = vmatprep.subr.mxu0 0.0
  %703 = vmatpush1.xpose.msra.mxu0 0.0
  %704 = vmatprep.subr.mxu0 0.0
  %705 = vmatpush1.xpose.msra.mxu0 0.0
  %706 = vmatprep.subr.mxu0 0.0
  %707 = vmatpush1.xpose.msra.mxu0 0.0
  %708 = vmatprep.mubr.f32.mxu0 0.0
  %709 = vmatmul.mubr.f32.gmra.mrb[0].mxu0 %v633
  %v710 = vpop.f32.mrb[0].mxu0
  %v711 = vadd.f32 %v270, %v710
  %v712 = vpop.f32.mrb[0].mxu0
  %713 = vmatprep.mubr.f32.mxu0 0.0
  %714 = vmatmul.mubr.f32.gmra.mrb[0].mxu0 %v636
  %v715 = vpop.f32.mrb[0].mxu0
  %v716 = vadd.f32 %v270, %v715
  %v717 = vpop.f32.mrb[0].mxu0
  %718 = vdwg.mxu0
  %v720 = vsel %vm360, %v711, 0
  %v723 = vsel %vm360, %v716, 0
  %v725 = vsel %vm367, %v629, 0
  %727 = vmatprep.subr.mxu0 0.0
  %728 = vmatpush1.msra.mxu0 %v628
  %729 = vmatprep.subr.mxu0 0.0
  %730 = vmatpush1.msra.mxu0 %v725
  %731 = vmatprep.subr.mxu0 0.0
  %732 = vmatpush1.msra.mxu0 0.0
  %733 = vmatprep.subr.mxu0 0.0
  %734 = vmatpush1.msra.mxu0 0.0
  %735 = vmatprep.subr.mxu0 0.0
  %736 = vmatpush1.msra.mxu0 0.0
  %737 = vmatprep.subr.mxu0 0.0
  %738 = vmatpush1.msra.mxu0 0.0
  %739 = vmatprep.subr.mxu0 0.0
  %740 = vmatpush1.msra.mxu0 0.0
  %741 = vmatprep.subr.mxu0 0.0
  %742 = vmatpush1.msra.mxu0 0.0
  %743 = vmatprep.subr.mxu0 0.0
  %744 = vmatpush1.msra.mxu0 0.0
  %745 = vmatprep.subr.mxu0 0.0
  %746 = vmatpush1.msra.mxu0 0.0
  %747 = vmatprep.subr.mxu0 0.0
  %748 = vmatpush1.msra.mxu0 0.0
  %749 = vmatprep.subr.mxu0 0.0
  %750 = vmatpush1.msra.mxu0 0.0
  %751 = vmatprep.subr.mxu0 0.0
  %752 = vmatpush1.msra.mxu0 0.0
  %753 = vmatprep.subr.mxu0 0.0
  %754 = vmatpush1.msra.mxu0 0.0
  %755 = vmatprep.subr.mxu0 0.0
  %756 = vmatpush1.msra.mxu0 0.0
  %757 = vmatprep.subr.mxu0 0.0
  %758 = vmatpush1.msra.mxu0 0.0
  %759 = vmatprep.subr.mxu0 0.0
  %760 = vmatpush1.msra.mxu0 0.0
  %761 = vmatprep.subr.mxu0 0.0
  %762 = vmatpush1.msra.mxu0 0.0
  %763 = vmatprep.subr.mxu0 0.0
  %764 = vmatpush1.msra.mxu0 0.0
  %765 = vmatprep.subr.mxu0 0.0
  %766 = vmatpush1.msra.mxu0 0.0
  %767 = vmatprep.subr.mxu0 0.0
  %768 = vmatpush1.msra.mxu0 0.0
  %769 = vmatprep.subr.mxu0 0.0
  %770 = vmatpush1.msra.mxu0 0.0
  %771 = vmatprep.subr.mxu0 0.0
  %772 = vmatpush1.msra.mxu0 0.0
  %773 = vmatprep.subr.mxu0 0.0
  %774 = vmatpush1.msra.mxu0 0.0
  %775 = vmatprep.subr.mxu0 0.0
  %776 = vmatpush1.msra.mxu0 0.0
  %777 = vmatprep.subr.mxu0 0.0
  %778 = vmatpush1.msra.mxu0 0.0
  %779 = vmatprep.subr.mxu0 0.0
  %780 = vmatpush1.msra.mxu0 0.0
  %781 = vmatprep.subr.mxu0 0.0
  %782 = vmatpush1.msra.mxu0 0.0
  %783 = vmatprep.subr.mxu0 0.0
  %784 = vmatpush1.msra.mxu0 0.0
  %785 = vmatprep.subr.mxu0 0.0
  %786 = vmatpush1.msra.mxu0 0.0
  %787 = vmatprep.subr.mxu0 0.0
  %788 = vmatpush1.msra.mxu0 0.0
  %789 = vmatprep.subr.mxu0 0.0
  %790 = vmatpush1.msra.mxu0 0.0
  %791 = vmatprep.mubr.f32.mxu0 0.0
  %792 = vmatmul.mubr.f32.gmra.mrb[0].mxu0 %v720
  %v793 = vpop.f32.mrb[0].mxu0
  %v794 = vadd.f32 0.0, %v793
  %v795 = vpop.f32.mrb[0].mxu0
  %796 = vmatprep.mubr.f32.mxu0 0.0
  %797 = vmatmul.mubr.f32.gmra.mrb[0].mxu0 %v723
  %v798 = vpop.f32.mrb[0].mxu0
  %v799 = vadd.f32 0.0, %v798
  %v800 = vpop.f32.mrb[0].mxu0
  %801 = vdwg.mxu0
  %v802 = vmul.f32 %v542, %v794
  %v803 = vmul.f32 %v543, %v799
  %v804 = vsel %vm272, %v802, 0.0
  %v805 = vsel %vm448, %v803, 0.0
  %v806 = vadd.f32 %v804, %v805
  %v807 = vrot.slane %v806, 4
  %v808 = vadd.f32 %v806, %v807
  %v809 = vrot.slane %v808, 2
  %v810 = vadd.f32 %v808, %v809
  %v811 = vrot.slane %v810, 1
  %v812 = vadd.f32 %v810, %v811
  %813 = vst.msk [vmem:[#allocation2 + $0x1] sm:$0x1] %vm448, %v812
  %v814 = vld [vmem:[#allocation2] sm:$0x3]
  %v815 = vld [vmem:[%s8] sm:$0xff]
  %v816 = vld [vmem:[%s8 + $0x8] sm:$0xff]
  %v817 = vld [vmem:[%s8 + $0x10] sm:$0xff]
  %v818 = vld [vmem:[%s8 + $0x18] sm:$0xff]
  %v819 = vld [vmem:[%s8 + $0x20] sm:$0xff]
  %v820 = vld [vmem:[%s8 + $0x28] sm:$0xff]
  %v821 = vld [vmem:[%s8 + $0x30] sm:$0xff]
  %v822 = vld [vmem:[%s8 + $0x38] sm:$0xff]
  %v823 = vld [vmem:[%s8 + $0x40] sm:$0xff]
  %v824 = vld [vmem:[%s8 + $0x48] sm:$0xff]
  %v825 = vld [vmem:[%s8 + $0x50] sm:$0xff]
  %v826 = vld [vmem:[%s8 + $0x58] sm:$0xff]
  %v828 = vsel %vm272, %v814, 0
  %830 = vmatprep.subr.mxu0 0.0
  %831 = vmatpush1.msra.mxu0 %v815
  %832 = vmatprep.subr.mxu0 0.0
  %833 = vmatpush1.msra.mxu0 %v816
  %834 = vmatprep.subr.mxu0 0.0
  %835 = vmatpush1.msra.mxu0 %v817
  %836 = vmatprep.subr.mxu0 0.0
  %837 = vmatpush1.msra.mxu0 %v818
  %838 = vmatprep.subr.mxu0 0.0
  %839 = vmatpush1.msra.mxu0 %v819
  %840 = vmatprep.subr.mxu0 0.0
  %841 = vmatpush1.msra.mxu0 %v820
  %842 = vmatprep.subr.mxu0 0.0
  %843 = vmatpush1.msra.mxu0 %v821
  %844 = vmatprep.subr.mxu0 0.0
  %845 = vmatpush1.msra.mxu0 %v822
  %846 = vmatprep.subr.mxu0 0.0
  %847 = vmatpush1.msra.mxu0 %v823
  %848 = vmatprep.subr.mxu0 0.0
  %849 = vmatpush1.msra.mxu0 %v824
  %850 = vmatprep.subr.mxu0 0.0
  %851 = vmatpush1.msra.mxu0 %v825
  %852 = vmatprep.subr.mxu0 0.0
  %853 = vmatpush1.msra.mxu0 %v826
  %854 = vmatprep.subr.mxu0 0.0
  %855 = vmatpush1.msra.mxu0 0.0
  %856 = vmatprep.subr.mxu0 0.0
  %857 = vmatpush1.msra.mxu0 0.0
  %858 = vmatprep.subr.mxu0 0.0
  %859 = vmatpush1.msra.mxu0 0.0
  %860 = vmatprep.subr.mxu0 0.0
  %861 = vmatpush1.msra.mxu0 0.0
  %862 = vmatprep.subr.mxu0 0.0
  %863 = vmatpush1.msra.mxu0 0.0
  %864 = vmatprep.subr.mxu0 0.0
  %865 = vmatpush1.msra.mxu0 0.0
  %866 = vmatprep.subr.mxu0 0.0
  %867 = vmatpush1.msra.mxu0 0.0
  %868 = vmatprep.subr.mxu0 0.0
  %869 = vmatpush1.msra.mxu0 0.0
  %870 = vmatprep.subr.mxu0 0.0
  %871 = vmatpush1.msra.mxu0 0.0
  %872 = vmatprep.subr.mxu0 0.0
  %873 = vmatpush1.msra.mxu0 0.0
  %874 = vmatprep.subr.mxu0 0.0
  %875 = vmatpush1.msra.mxu0 0.0
  %876 = vmatprep.subr.mxu0 0.0
  %877 = vmatpush1.msra.mxu0 0.0
  %878 = vmatprep.subr.mxu0 0.0
  %879 = vmatpush1.msra.mxu0 0.0
  %880 = vmatprep.subr.mxu0 0.0
  %881 = vmatpush1.msra.mxu0 0.0
  %882 = vmatprep.subr.mxu0 0.0
  %883 = vmatpush1.msra.mxu0 0.0
  %884 = vmatprep.subr.mxu0 0.0
  %885 = vmatpush1.msra.mxu0 0.0
  %886 = vmatprep.subr.mxu0 0.0
  %887 = vmatpush1.msra.mxu0 0.0
  %888 = vmatprep.subr.mxu0 0.0
  %889 = vmatpush1.msra.mxu0 0.0
  %890 = vmatprep.subr.mxu0 0.0
  %891 = vmatpush1.msra.mxu0 0.0
  %892 = vmatprep.subr.mxu0 0.0
  %893 = vmatpush1.msra.mxu0 0.0
  %894 = vmatprep.mubr.f32.mxu0 0.0
  %895 = vmatmul.mubr.f32.gmra.mrb[0].mxu0 %v828
  %v896 = vpop.f32.mrb[0].mxu0
  %v897 = vadd.f32 0.0, %v896
  %v898 = vpop.f32.mrb[0].mxu0
  %899 = vdwg.mxu0
  %v900 = vld [vmem:[%s9] sm:$0x1]
  %v901 = vld [vmem:[%s10] sm:$0x1]
  %vm902 = vcmask 254976
  %v903 = vsel %vm902, %v897, 0.0
  %v904 = vrot.slane %v903, 4
  %v905 = vadd.f32 %v903, %v904
  %v906 = vrot.slane %v905, 2
  %v907 = vadd.f32 %v905, %v906
  %v908 = vrot.slane %v907, 1
  %v909 = vadd.f32 %v907, %v908
  %v910 = vrcp.pop 2.0
  %v911 = vmul.f32 %v909, %v910
  %v912 = vsub.f32 %v897, %v911
  %v913 = vmul.f32 %v912, %v912
  %v914 = vsel %vm902, %v913, 0.0
  %v915 = vrot.slane %v914, 4
  %v916 = vadd.f32 %v914, %v915
  %v917 = vrot.slane %v916, 2
  %v918 = vadd.f32 %v916, %v917
  %v919 = vrot.slane %v918, 1
  %v920 = vadd.f32 %v918, %v919
  %v921 = vmul.f32 %v920, %v910
  %v922 = vadd.f32 %v921, 1e-05
  %v923 = vrsqrt.pop %v922
  %v924 = vmul.f32 %v912, %v923
  %v926 = vlaneseq
  %v927 = vshrl.u32 %v926, 7
  %v928 = vsub.s32 0, %v927
  %v929 = vrot.slane %v900, %v928
  %v931 = vmul.f32 %v924, %v929
  %v933 = vlaneseq
  %v934 = vshrl.u32 %v933, 7
  %v935 = vsub.s32 0, %v934
  %v936 = vrot.slane %v901, %v935
  %v938 = vadd.f32 %v931, %v936
  %v939 = vld [vmem:[%s11] sm:$0xff]
  %v940 = vld [vmem:[%s11 + $0x8] sm:$0xff]
  %v941 = vld [vmem:[%s11 + $0x10] sm:$0xff]
  %v942 = vld [vmem:[%s11 + $0x18] sm:$0xff]
  %v943 = vld [vmem:[%s12] sm:$0x1]
  %v945 = vlaneseq
  %v946 = vshrl.u32 %v945, 7
  %v947 = vsub.s32 0, %v946
  %v948 = vrot.slane %v943, %v947
  %v951 = vsel %vm80, %v938, 0
  %953 = vmatprep.subr.mxu0 0.0
  %954 = vmatpush1.msra.mxu0 %v939
  %955 = vmatprep.subr.mxu0 0.0
  %956 = vmatpush1.msra.mxu0 %v940
  %957 = vmatprep.subr.mxu0 0.0
  %958 = vmatpush1.msra.mxu0 %v941
  %959 = vmatprep.subr.mxu0 0.0
  %960 = vmatpush1.msra.mxu0 %v942
  %961 = vmatprep.subr.mxu0 0.0
  %962 = vmatpush1.msra.mxu0 0.0
  %963 = vmatprep.subr.mxu0 0.0
  %964 = vmatpush1.msra.mxu0 0.0
  %965 = vmatprep.subr.mxu0 0.0
  %966 = vmatpush1.msra.mxu0 0.0
  %967 = vmatprep.subr.mxu0 0.0
  %968 = vmatpush1.msra.mxu0 0.0
  %969 = vmatprep.subr.mxu0 0.0
  %970 = vmatpush1.msra.mxu0 0.0
  %971 = vmatprep.subr.mxu0 0.0
  %972 = vmatpush1.msra.mxu0 0.0
  %973 = vmatprep.subr.mxu0 0.0
  %974 = vmatpush1.msra.mxu0 0.0
  %975 = vmatprep.subr.mxu0 0.0
  %976 = vmatpush1.msra.mxu0 0.0
  %977 = vmatprep.subr.mxu0 0.0
  %978 = vmatpush1.msra.mxu0 0.0
  %979 = vmatprep.subr.mxu0 0.0
  %980 = vmatpush1.msra.mxu0 0.0
  %981 = vmatprep.subr.mxu0 0.0
  %982 = vmatpush1.msra.mxu0 0.0
  %983 = vmatprep.subr.mxu0 0.0
  %984 = vmatpush1.msra.mxu0 0.0
  %985 = vmatprep.subr.mxu0 0.0
  %986 = vmatpush1.msra.mxu0 0.0
  %987 = vmatprep.subr.mxu0 0.0
  %988 = vmatpush1.msra.mxu0 0.0
  %989 = vmatprep.subr.mxu0 0.0
  %990 = vmatpush1.msra.mxu0 0.0
  %991 = vmatprep.subr.mxu0 0.0
  %992 = vmatpush1.msra.mxu0 0.0
  %993 = vmatprep.subr.mxu0 0.0
  %994 = vmatpush1.msra.mxu0 0.0
  %995 = vmatprep.subr.mxu0 0.0
  %996 = vmatpush1.msra.mxu0 0.0
  %997 = vmatprep.subr.mxu0 0.0
  %998 = vmatpush1.msra.mxu0 0.0
  %999 = vmatprep.subr.mxu0 0.0
  %1000 = vmatpush1.msra.mxu0 0.0
  %1001 = vmatprep.subr.mxu0 0.0
  %1002 = vmatpush1.msra.mxu0 0.0
  %1003 = vmatprep.subr.mxu0 0.0
  %1004 = vmatpush1.msra.mxu0 0.0
  %1005 = vmatprep.subr.mxu0 0.0
  %1006 = vmatpush1.msra.mxu0 0.0
  %1007 = vmatprep.subr.mxu0 0.0
  %1008 = vmatpush1.msra.mxu0 0.0
  %1009 = vmatprep.subr.mxu0 0.0
  %1010 = vmatpush1.msra.mxu0 0.0
  %1011 = vmatprep.subr.mxu0 0.0
  %1012 = vmatpush1.msra.mxu0 0.0
  %1013 = vmatprep.subr.mxu0 0.0
  %1014 = vmatpush1.msra.mxu0 0.0
  %1015 = vmatprep.subr.mxu0 0.0
  %1016 = vmatpush1.msra.mxu0 0.0
  %1017 = vmatprep.mubr.f32.mxu0 0.0
  %1018 = vmatmul.mubr.f32.gmra.mrb[0].mxu0 %v951
  %v1019 = vpop.f32.mrb[0].mxu0
  %v1020 = vadd.f32 %v948, %v1019
  %v1021 = vpop.f32.mrb[0].mxu0
  %1022 = vdwg.mxu0
  %vm1023 = vcmp.ge.f32.partialorder %v1020, 0.0
  %v1024 = vmul.f32 %v1020, 0.01
  %v1025 = vsel %vm1023, %v1020, %v1024
  %v1026 = vld [vmem:[%s13] sm:$0x1]
  %v1027 = vld [vmem:[%s14] sm:$0x1]
  %vm1028 = vcmask 1041408
  %v1029 = vsel %vm1028, %v1025, 0.0
  %v1030 = vrot.slane %v1029, 4
  %v1031 = vadd.f32 %v1029, %v1030
  %v1032 = vrot.slane %v1031, 2
  %v1033 = vadd.f32 %v1031, %v1032
  %v1034 = vrot.slane %v1033, 1
  %v1035 = vadd.f32 %v1033, %v1034
  %v1036 = vmul.f32 %v1035, %v910
  %v1037 = vsub.f32 %v1025, %v1036
  %v1038 = vmul.f32 %v1037, %v1037
  %v1039 = vsel %vm1028, %v1038, 0.0
  %v1040 = vrot.slane %v1039, 4
  %v1041 = vadd.f32 %v1039, %v1040
  %v1042 = vrot.slane %v1041, 2
  %v1043 = vadd.f32 %v1041, %v1042
  %v1044 = vrot.slane %v1043, 1
  %v1045 = vadd.f32 %v1043, %v1044
  %v1046 = vmul.f32 %v1045, %v910
  %v1047 = vadd.f32 %v1046, 1e-05
  %v1048 = vrsqrt.pop %v1047
  %v1049 = vmul.f32 %v1037, %v1048
  %v1051 = vlaneseq
  %v1052 = vshrl.u32 %v1051, 7
  %v1053 = vsub.s32 0, %v1052
  %v1054 = vrot.slane %v1026, %v1053
  %v1056 = vmul.f32 %v1049, %v1054
  %v1058 = vlaneseq
  %v1059 = vshrl.u32 %v1058, 7
  %v1060 = vsub.s32 0, %v1059
  %v1061 = vrot.slane %v1027, %v1060
  %v1063 = vadd.f32 %v1056, %v1061
  %v1064 = vld [vmem:[%s15] sm:$0xff]
  %v1065 = vld [vmem:[%s15 + $0x8] sm:$0xff]
  %v1066 = vld [vmem:[%s15 + $0x10] sm:$0xff]
  %v1067 = vld [vmem:[%s15 + $0x18] sm:$0xff]
  %v1068 = vld [vmem:[%s15 + $0x20] sm:$0xff]
  %v1069 = vld [vmem:[%s15 + $0x28] sm:$0xff]
  %v1070 = vld [vmem:[%s15 + $0x30] sm:$0xff]
  %v1071 = vld [vmem:[%s15 + $0x38] sm:$0xff]
  %v1072 = vld [vmem:[%s15 + $0x40] sm:$0xff]
  %v1073 = vld [vmem:[%s15 + $0x48] sm:$0xff]
  %v1074 = vld [vmem:[%s15 + $0x50] sm:$0xff]
  %v1075 = vld [vmem:[%s15 + $0x58] sm:$0xff]
  %v1076 = vld [vmem:[%s15 + $0x60] sm:$0xff]
  %v1077 = vld [vmem:[%s15 + $0x68] sm:$0xff]
  %v1078 = vld [vmem:[%s15 + $0x70] sm:$0xff]
  %v1079 = vld [vmem:[%s15 + $0x78] sm:$0xff]
  %v1080 = vld [vmem:[#allocation4] sm:$0x1]
  %v1082 = vlaneseq
  %v1083 = vshrl.u32 %v1082, 7
  %v1084 = vsub.s32 0, %v1083
  %v1085 = vrot.slane %v1080, %v1084
  %1087 = vmatprep.subr.mxu0 0.0
  %1088 = vmatpush1.msra.mxu0 %v1064
  %1089 = vmatprep.subr.mxu0 0.0
  %1090 = vmatpush1.msra.mxu0 %v1065
  %1091 = vmatprep.subr.mxu0 0.0
  %1092 = vmatpush1.msra.mxu0 %v1066
  %1093 = vmatprep.subr.mxu0 0.0
  %1094 = vmatpush1.msra.mxu0 %v1067
  %1095 = vmatprep.subr.mxu0 0.0
  %1096 = vmatpush1.msra.mxu0 %v1068
  %1097 = vmatprep.subr.mxu0 0.0
  %1098 = vmatpush1.msra.mxu0 %v1069
  %1099 = vmatprep.subr.mxu0 0.0
  %1100 = vmatpush1.msra.mxu0 %v1070
  %1101 = vmatprep.subr.mxu0 0.0
  %1102 = vmatpush1.msra.mxu0 %v1071
  %1103 = vmatprep.subr.mxu0 0.0
  %1104 = vmatpush1.msra.mxu0 %v1072
  %1105 = vmatprep.subr.mxu0 0.0
  %1106 = vmatpush1.msra.mxu0 %v1073
  %1107 = vmatprep.subr.mxu0 0.0
  %1108 = vmatpush1.msra.mxu0 %v1074
  %1109 = vmatprep.subr.mxu0 0.0
  %1110 = vmatpush1.msra.mxu0 %v1075
  %1111 = vmatprep.subr.mxu0 0.0
  %1112 = vmatpush1.msra.mxu0 %v1076
  %1113 = vmatprep.subr.mxu0 0.0
  %1114 = vmatpush1.msra.mxu0 %v1077
  %1115 = vmatprep.subr.mxu0 0.0
  %1116 = vmatpush1.msra.mxu0 %v1078
  %1117 = vmatprep.subr.mxu0 0.0
  %1118 = vmatpush1.msra.mxu0 %v1079
  %1119 = vmatprep.subr.mxu0 0.0
  %1120 = vmatpush1.msra.mxu0 0.0
  %1121 = vmatprep.subr.mxu0 0.0
  %1122 = vmatpush1.msra.mxu0 0.0
  %1123 = vmatprep.subr.mxu0 0.0
  %1124 = vmatpush1.msra.mxu0 0.0
  %1125 = vmatprep.subr.mxu0 0.0
  %1126 = vmatpush1.msra.mxu0 0.0
  %1127 = vmatprep.subr.mxu0 0.0
  %1128 = vmatpush1.msra.mxu0 0.0
  %1129 = vmatprep.subr.mxu0 0.0
  %1130 = vmatpush1.msra.mxu0 0.0
  %1131 = vmatprep.subr.mxu0 0.0
  %1132 = vmatpush1.msra.mxu0 0.0
  %1133 = vmatprep.subr.mxu0 0.0
  %1134 = vmatpush1.msra.mxu0 0.0
  %1135 = vmatprep.subr.mxu0 0.0
  %1136 = vmatpush1.msra.mxu0 0.0
  %1137 = vmatprep.subr.mxu0 0.0
  %1138 = vmatpush1.msra.mxu0 0.0
  %1139 = vmatprep.subr.mxu0 0.0
  %1140 = vmatpush1.msra.mxu0 0.0
  %1141 = vmatprep.subr.mxu0 0.0
  %1142 = vmatpush1.msra.mxu0 0.0
  %1143 = vmatprep.subr.mxu0 0.0
  %1144 = vmatpush1.msra.mxu0 0.0
  %1145 = vmatprep.subr.mxu0 0.0
  %1146 = vmatpush1.msra.mxu0 0.0
  %1147 = vmatprep.subr.mxu0 0.0
  %1148 = vmatpush1.msra.mxu0 0.0
  %1149 = vmatprep.subr.mxu0 0.0
  %1150 = vmatpush1.msra.mxu0 0.0
  %1151 = vmatprep.mubr.f32.mxu0 0.0
  %1152 = vmatmul.mubr.f32.gmra.mrb[0].mxu0 %v1063
  %v1153 = vpop.f32.mrb[0].mxu0
  %v1154 = vadd.f32 %v1085, %v1153
  %v1155 = vpop.f32.mrb[0].mxu0
  %1156 = vdwg.mxu0
  %vm1157 = vcmask 1024
  %1158 = vst.msk [vmem:[%s17] sm:$0x3] %vm1157, %v1154
  // Predicated region
  $region70: #{affinity_net_forward.3} parent=0 // pred_check
    _
  $region71: #{affinity_net_forward.3} parent=0 // pred_check_branch
    %1160 = sbr.rel (0) target = $region73
  $region72: #{affinity_net_forward.3} parent=0 // pred_region
    _
  $region73: #{affinity_net_forward.3} parent=0 // pred_fallthru
    _
  // Predicated region
  $region74: #{affinity_net_forward.3} parent=0 // pred_check
    _
  $region75: #{affinity_net_forward.3} parent=0 // pred_check_branch
    %1162 = sbr.rel (0) target = $region77
  $region76: #{affinity_net_forward.3} parent=0 // pred_region
    _
  $region77: #{affinity_net_forward.3} parent=0 // pred_fallthru
    _

// kernel: affinity_net_forward.2
$region0: #{affinity_net_forward.2}
  #allocation0 [shape = 'u32[]', space=smem, size = 0x4, offset = 0x4, fixed_abs, tag = 'smem constant byte address 0x4 - core index']
  #allocation1 [shape = 'u32[144,128]{1,0:T(1,128)}', space=vmem, size = 0x12000, scoped, tag = 'internal scratch']
  %s0 = inlined_call_operand.vmem [shape: f32[2,2,24,32], index: 0, kind: input, shape index: {}]
  %s1 = inlined_call_operand.vmem [shape: f32[2,3,32,32], index: 1, kind: input, shape index: {}]
  %s2 = inlined_call_operand.vmem [shape: f32[2,1,32], index: 2, kind: input, shape index: {}]
  %s3 = inlined_call_operand.vmem [shape: f32[2,1,32], index: 3, kind: input, shape index: {}]
  %s4 = inlined_call_operand.vmem [shape: f32[2,1,32], index: 4, kind: input, shape index: {}]
  %s5 = inlined_call_operand.hbm [shape: f32[2,6,32,32], index: 5, kind: input, shape index: {}]
  %s6 = inlined_call_operand.vmem [shape: f32[2,1,32], index: 6, kind: input, shape index: {}]
  %s7 = inlined_call_operand.vmem [shape: f32[2,1,32], index: 7, kind: input, shape index: {}]
  %s8 = inlined_call_operand.vmem [shape: f32[2,1,32], index: 8, kind: input, shape index: {}]
  %s9 = inlined_call_operand.hbm [shape: f32[2,9,32,32], index: 9, kind: input, shape index: {}]
  %s10 = inlined_call_operand.vmem [shape: f32[2,1,32], index: 10, kind: input, shape index: {}]
  %s11 = inlined_call_operand.vmem [shape: f32[2,1,32], index: 11, kind: input, shape index: {}]
  %s12 = inlined_call_operand.vmem [shape: f32[2,1,32], index: 12, kind: input, shape index: {}]
  %s13 = inlined_call_operand.vmem [shape: f32[2,2,9,32], index: 13, kind: output, shape index: {}]
  %s14 = sld [smem:[#allocation0]]
  $region93: #{affinity_net_forward.2} parent=0
    _
  %s16 = ssub.s32 1, %s14
  %s17 = scalar_select 0, %s16, %s14
  $region1: #{affinity_net_forward.2} parent=0
    #allocation2 [shape = 'u8[196608]{0}', space=vmem, size = 0x30000, scoped, tag = 'input window, operand 5']
    #allocation3 [shape = 's32[2]{0}', space=sflag, size = 0x8, scoped, tag = 'scoped memory for affinity_net_forward.2']
    #allocation4 [shape = 'u8[294912]{0}', space=vmem, size = 0x48000, scoped, tag = 'input window, operand 9']
    #allocation5 [shape = 's32[2]{0}', space=sflag, size = 0x8, scoped, tag = 'scoped memory for affinity_net_forward.2']
    %18 = vsyncpa [#allocation3], 0
    %s19 = scalar_lea.sflag [#allocation3], 1
    %20 = vsyncpa %s19, 0
    %21 = vsyncpa [#allocation5], 0
    %s22 = scalar_lea.sflag [#allocation5], 1
    %23 = vsyncpa %s22, 0
    loop: start=0, step=1, limit=4
    $region2: #{affinity_net_forward.2} parent=1 // loop_pre_header
      _
    $region3: #{affinity_net_forward.2} parent=1 // loop_header
      %s25 = sphi 0, %s29
      %p26 = scmp.ge.s32.totalorder %s25, 4
      %s35 = sphi 0, %s37
      %s38 = sphi 0, %s35
      %s39 = sphi 0, %s38
      %s55 = sphi 0, %s39
      %s61 = sphi 0, %s63
      %s64 = sphi 0, %s61
      %s65 = sphi 0, %s64
      %s81 = sphi 0, %s65
      %s87 = sphi 0, %s89
      %s90 = sphi 0, %s87
      %s91 = sphi 0, %s90
      %s107 = sphi 0, %s91
      %s113 = sphi 0, %s115
      %s116 = sphi 0, %s113
      %s117 = sphi 0, %s116
      %s133 = sphi 0, %s117
      %s139 = sphi 0, %s141
      %s142 = sphi 0, %s139
      %s143 = sphi 0, %s142
      %s159 = sphi 0, %s143
      %s165 = sphi 0, %s167
      %s168 = sphi 0, %s165
      %s169 = sphi 0, %s168
      %s185 = sphi 0, %s169
      %s191 = sphi 0, %s193
      %s194 = sphi 0, %s191
      %s195 = sphi 0, %s194
      %s211 = sphi 0, %s195
      %s217 = sphi 0, %s219
      %s220 = sphi 0, %s217
      %s221 = sphi 0, %s220
      %s237 = sphi 0, %s221
      %s243 = sphi 0, %s245
      %s246 = sphi 0, %s243
      %s247 = sphi 0, %s246
      %s263 = sphi 0, %s247
      %s269 = sphi 0, %s271
      %s272 = sphi 0, %s269
      %s273 = sphi 0, %s272
      %s289 = sphi 0, %s273
      %s295 = sphi 0, %s297
      %s298 = sphi 0, %s295
      %s299 = sphi 0, %s298
      %s315 = sphi 0, %s299
      %s321 = sphi 0, %s323
      %s324 = sphi 0, %s321
      %s325 = sphi 0, %s324
      %s341 = sphi 0, %s325
      %s347 = sphi 0, %s349
      %s350 = sphi 0, %s347
      %s351 = sphi 0, %s350
      %s367 = sphi 0, %s351
      %s373 = sphi 0, %s375
      %s376 = sphi 0, %s373
      %s377 = sphi 0, %s376
      %s393 = sphi 0, %s377
    $region4: #{affinity_net_forward.2} parent=1 // loop_header_branch
      %28 = sbr.rel (%p26) target = $region8
    $region5: #{affinity_net_forward.2} parent=1 // loop_body
      %s30 = ssub.s32 %s25, 1
      %s31 = ssub.s32 %s25, 2
      %s32 = sadd.s32 %s25, 1
      %s33 = ssub.s32 %s25, %s32
      %p34 = scmp.eq.s32.totalorder %s33, 0
      %s36 = sadd.s32 %s35, 1
      %s37 = scalar_select %p34, %s35, %s36
      %p40 = pneg %p34
      %p41 = scmp.eq.s32.totalorder %s25, 1
      %p42 = por %p40, %p41
      %p43 = scmp.ne.s32.totalorder %s35, %s38
      %p44 = scmp.eq.s32.totalorder %s25, 0
      %p45 = por %p43, %p44
      %p46 = scmp.ne.s32.totalorder %s35, %s38
      %p47 = scmp.eq.s32.totalorder %s30, 1
      %p48 = por %p46, %p47
      %p49 = scmp.ne.s32.totalorder %s38, %s39
      %p50 = scmp.eq.s32.totalorder %s30, 0
      %p51 = por %p49, %p50
      %p52 = scmp.ne.s32.totalorder %s38, %s39
      %p53 = scmp.eq.s32.totalorder %s31, 1
      %p54 = por %p52, %p53
      %p56 = scmp.ne.s32.totalorder %s39, %s55
      %p57 = scmp.eq.s32.totalorder %s31, 0
      %p58 = por %p56, %p57
      %s59 = ssub.s32 %s25, %s32
      %p60 = scmp.eq.s32.totalorder %s59, 0
      %s62 = sadd.s32 %s61, 1
      %s63 = scalar_select %p60, %s61, %s62
      %p66 = pneg %p60
      %p67 = scmp.eq.s32.totalorder %s25, 1
      %p68 = por %p66, %p67
      %p69 = scmp.ne.s32.totalorder %s61, %s64
      %p70 = scmp.eq.s32.totalorder %s25, 0
      %p71 = por %p69, %p70
      %p72 = scmp.ne.s32.totalorder %s61, %s64
      %p73 = scmp.eq.s32.totalorder %s30, 1
      %p74 = por %p72, %p73
      %p75 = scmp.ne.s32.totalorder %s64, %s65
      %p76 = scmp.eq.s32.totalorder %s30, 0
      %p77 = por %p75, %p76
      %p78 = scmp.ne.s32.totalorder %s64, %s65
      %p79 = scmp.eq.s32.totalorder %s31, 1
      %p80 = por %p78, %p79
      %p82 = scmp.ne.s32.totalorder %s65, %s81
      %p83 = scmp.eq.s32.totalorder %s31, 0
      %p84 = por %p82, %p83
      %s85 = ssub.s32 %s25, %s32
      %p86 = scmp.eq.s32.totalorder %s85, 0
      %s88 = sadd.s32 %s87, 1
      %s89 = scalar_select %p86, %s87, %s88
      %p92 = pneg %p86
      %p93 = scmp.eq.s32.totalorder %s25, 1
      %p94 = por %p92, %p93
      %p95 = scmp.ne.s32.totalorder %s87, %s90
      %p96 = scmp.eq.s32.totalorder %s25, 0
      %p97 = por %p95, %p96
      %p98 = scmp.ne.s32.totalorder %s87, %s90
      %p99 = scmp.eq.s32.totalorder %s30, 1
      %p100 = por %p98, %p99
      %p101 = scmp.ne.s32.totalorder %s90, %s91
      %p102 = scmp.eq.s32.totalorder %s30, 0
      %p103 = por %p101, %p102
      %p104 = scmp.ne.s32.totalorder %s90, %s91
      %p105 = scmp.eq.s32.totalorder %s31, 1
      %p106 = por %p104, %p105
      %p108 = scmp.ne.s32.totalorder %s91, %s107
      %p109 = scmp.eq.s32.totalorder %s31, 0
      %p110 = por %p108, %p109
      %s111 = ssub.s32 %s25, %s32
      %p112 = scmp.eq.s32.totalorder %s111, 0
      %s114 = sadd.s32 %s113, 1
      %s115 = scalar_select %p112, %s113, %s114
      %p118 = pneg %p112
      %p119 = scmp.eq.s32.totalorder %s25, 1
      %p120 = por %p118, %p119
      %p121 = scmp.ne.s32.totalorder %s113, %s116
      %p122 = scmp.eq.s32.totalorder %s25, 0
      %p123 = por %p121, %p122
      %p124 = scmp.ne.s32.totalorder %s113, %s116
      %p125 = scmp.eq.s32.totalorder %s30, 1
      %p126 = por %p124, %p125
      %p127 = scmp.ne.s32.totalorder %s116, %s117
      %p128 = scmp.eq.s32.totalorder %s30, 0
      %p129 = por %p127, %p128
      %p130 = scmp.ne.s32.totalorder %s116, %s117
      %p131 = scmp.eq.s32.totalorder %s31, 1
      %p132 = por %p130, %p131
      %p134 = scmp.ne.s32.totalorder %s117, %s133
      %p135 = scmp.eq.s32.totalorder %s31, 0
      %p136 = por %p134, %p135
      %s137 = ssub.s32 %s25, %s32
      %p138 = scmp.eq.s32.totalorder %s137, 0
      %s140 = sadd.s32 %s139, 1
      %s141 = scalar_select %p138, %s139, %s140
      %p144 = pneg %p138
      %p145 = scmp.eq.s32.totalorder %s25, 1
      %p146 = por %p144, %p145
      %p147 = scmp.ne.s32.totalorder %s139, %s142
      %p148 = scmp.eq.s32.totalorder %s25, 0
      %p149 = por %p147, %p148
      %p150 = scmp.ne.s32.totalorder %s139, %s142
      %p151 = scmp.eq.s32.totalorder %s30, 1
      %p152 = por %p150, %p151
      %p153 = scmp.ne.s32.totalorder %s142, %s143
      %p154 = scmp.eq.s32.totalorder %s30, 0
      %p155 = por %p153, %p154
      %p156 = scmp.ne.s32.totalorder %s142, %s143
      %p157 = scmp.eq.s32.totalorder %s31, 1
      %p158 = por %p156, %p157
      %p160 = scmp.ne.s32.totalorder %s143, %s159
      %p161 = scmp.eq.s32.totalorder %s31, 0
      %p162 = por %p160, %p161
      %s163 = ssub.s32 %s25, %s32
      %p164 = scmp.eq.s32.totalorder %s163, 0
      %s166 = sadd.s32 %s165, 1
      %s167 = scalar_select %p164, %s165, %s166
      %p170 = pneg %p164
      %p171 = scmp.eq.s32.totalorder %s25, 1
      %p172 = por %p170, %p171
      %p173 = scmp.ne.s32.totalorder %s165, %s168
      %p174 = scmp.eq.s32.totalorder %s25, 0
      %p175 = por %p173, %p174
      %p176 = scmp.ne.s32.totalorder %s165, %s168
      %p177 = scmp.eq.s32.totalorder %s30, 1
      %p178 = por %p176, %p177
      %p179 = scmp.ne.s32.totalorder %s168, %s169
      %p180 = scmp.eq.s32.totalorder %s30, 0
      %p181 = por %p179, %p180
      %p182 = scmp.ne.s32.totalorder %s168, %s169
      %p183 = scmp.eq.s32.totalorder %s31, 1
      %p184 = por %p182, %p183
      %p186 = scmp.ne.s32.totalorder %s169, %s185
      %p187 = scmp.eq.s32.totalorder %s31, 0
      %p188 = por %p186, %p187
      %s189 = ssub.s32 %s25, %s32
      %p190 = scmp.eq.s32.totalorder %s189, 0
      %s192 = sadd.s32 %s191, 1
      %s193 = scalar_select %p190, %s191, %s192
      %p196 = pneg %p190
      %p197 = scmp.eq.s32.totalorder %s25, 1
      %p198 = por %p196, %p197
      %p199 = scmp.ne.s32.totalorder %s191, %s194
      %p200 = scmp.eq.s32.totalorder %s25, 0
      %p201 = por %p199, %p200
      %p202 = scmp.ne.s32.totalorder %s191, %s194
      %p203 = scmp.eq.s32.totalorder %s30, 1
      %p204 = por %p202, %p203
      %p205 = scmp.ne.s32.totalorder %s194, %s195
      %p206 = scmp.eq.s32.totalorder %s30, 0
      %p207 = por %p205, %p206
      %p208 = scmp.ne.s32.totalorder %s194, %s195
      %p209 = scmp.eq.s32.totalorder %s31, 1
      %p210 = por %p208, %p209
      %p212 = scmp.ne.s32.totalorder %s195, %s211
      %p213 = scmp.eq.s32.totalorder %s31, 0
      %p214 = por %p212, %p213
      %s215 = ssub.s32 %s25, %s32
      %p216 = scmp.eq.s32.totalorder %s215, 0
      %s218 = sadd.s32 %s217, 1
      %s219 = scalar_select %p216, %s217, %s218
      %p222 = pneg %p216
      %p223 = scmp.eq.s32.totalorder %s25, 1
      %p224 = por %p222, %p223
      %p225 = scmp.ne.s32.totalorder %s217, %s220
      %p226 = scmp.eq.s32.totalorder %s25, 0
      %p227 = por %p225, %p226
      %p228 = scmp.ne.s32.totalorder %s217, %s220
      %p229 = scmp.eq.s32.totalorder %s30, 1
      %p230 = por %p228, %p229
      %p231 = scmp.ne.s32.totalorder %s220, %s221
      %p232 = scmp.eq.s32.totalorder %s30, 0
      %p233 = por %p231, %p232
      %p234 = scmp.ne.s32.totalorder %s220, %s221
      %p235 = scmp.eq.s32.totalorder %s31, 1
      %p236 = por %p234, %p235
      %p238 = scmp.ne.s32.totalorder %s221, %s237
      %p239 = scmp.eq.s32.totalorder %s31, 0
      %p240 = por %p238, %p239
      %s241 = ssub.s32 %s25, %s32
      %p242 = scmp.eq.s32.totalorder %s241, 0
      %s244 = sadd.s32 %s243, 1
      %s245 = scalar_select %p242, %s243, %s244
      %p248 = pneg %p242
      %p249 = scmp.eq.s32.totalorder %s25, 1
      %p250 = por %p248, %p249
      %p251 = scmp.ne.s32.totalorder %s243, %s246
      %p252 = scmp.eq.s32.totalorder %s25, 0
      %p253 = por %p251, %p252
      %p254 = scmp.ne.s32.totalorder %s243, %s246
      %p255 = scmp.eq.s32.totalorder %s30, 1
      %p256 = por %p254, %p255
      %p257 = scmp.ne.s32.totalorder %s246, %s247
      %p258 = scmp.eq.s32.totalorder %s30, 0
      %p259 = por %p257, %p258
      %p260 = scmp.ne.s32.totalorder %s246, %s247
      %p261 = scmp.eq.s32.totalorder %s31, 1
      %p262 = por %p260, %p261
      %p264 = scmp.ne.s32.totalorder %s247, %s263
      %p265 = scmp.eq.s32.totalorder %s31, 0
      %p266 = por %p264, %p265
      %s267 = ssub.s32 %s25, %s32
      %p268 = scmp.eq.s32.totalorder %s267, 0
      %s270 = sadd.s32 %s269, 1
      %s271 = scalar_select %p268, %s269, %s270
      %p274 = pneg %p268
      %p275 = scmp.eq.s32.totalorder %s25, 1
      %p276 = por %p274, %p275
      %p277 = scmp.ne.s32.totalorder %s269, %s272
      %p278 = scmp.eq.s32.totalorder %s25, 0
      %p279 = por %p277, %p278
      %p280 = scmp.ne.s32.totalorder %s269, %s272
      %p281 = scmp.eq.s32.totalorder %s30, 1
      %p282 = por %p280, %p281
      %p283 = scmp.ne.s32.totalorder %s272, %s273
      %p284 = scmp.eq.s32.totalorder %s30, 0
      %p285 = por %p283, %p284
      %p286 = scmp.ne.s32.totalorder %s272, %s273
      %p287 = scmp.eq.s32.totalorder %s31, 1
      %p288 = por %p286, %p287
      %p290 = scmp.ne.s32.totalorder %s273, %s289
      %p291 = scmp.eq.s32.totalorder %s31, 0
      %p292 = por %p290, %p291
      %s293 = ssub.s32 %s25, %s32
      %p294 = scmp.eq.s32.totalorder %s293, 0
      %s296 = sadd.s32 %s295, 1
      %s297 = scalar_select %p294, %s295, %s296
      %p300 = pneg %p294
      %p301 = scmp.eq.s32.totalorder %s25, 1
      %p302 = por %p300, %p301
      %p303 = scmp.ne.s32.totalorder %s295, %s298
      %p304 = scmp.eq.s32.totalorder %s25, 0
      %p305 = por %p303, %p304
      %p306 = scmp.ne.s32.totalorder %s295, %s298
      %p307 = scmp.eq.s32.totalorder %s30, 1
      %p308 = por %p306, %p307
      %p309 = scmp.ne.s32.totalorder %s298, %s299
      %p310 = scmp.eq.s32.totalorder %s30, 0
      %p311 = por %p309, %p310
      %p312 = scmp.ne.s32.totalorder %s298, %s299
      %p313 = scmp.eq.s32.totalorder %s31, 1
      %p314 = por %p312, %p313
      %p316 = scmp.ne.s32.totalorder %s299, %s315
      %p317 = scmp.eq.s32.totalorder %s31, 0
      %p318 = por %p316, %p317
      %s319 = ssub.s32 %s25, %s32
      %p320 = scmp.eq.s32.totalorder %s319, 0
      %s322 = sadd.s32 %s321, 1
      %s323 = scalar_select %p320, %s321, %s322
      %p326 = pneg %p320
      %p327 = scmp.eq.s32.totalorder %s25, 1
      %p328 = por %p326, %p327
      %p329 = scmp.ne.s32.totalorder %s321, %s324
      %p330 = scmp.eq.s32.totalorder %s25, 0
      %p331 = por %p329, %p330
      %p332 = scmp.ne.s32.totalorder %s321, %s324
      %p333 = scmp.eq.s32.totalorder %s30, 1
      %p334 = por %p332, %p333
      %p335 = scmp.ne.s32.totalorder %s324, %s325
      %p336 = scmp.eq.s32.totalorder %s30, 0
      %p337 = por %p335, %p336
      %p338 = scmp.ne.s32.totalorder %s324, %s325
      %p339 = scmp.eq.s32.totalorder %s31, 1
      %p340 = por %p338, %p339
      %p342 = scmp.ne.s32.totalorder %s325, %s341
      %p343 = scmp.eq.s32.totalorder %s31, 0
      %p344 = por %p342, %p343
      %s345 = ssub.s32 %s25, %s32
      %p346 = scmp.eq.s32.totalorder %s345, 0
      %s348 = sadd.s32 %s347, 1
      %s349 = scalar_select %p346, %s347, %s348
      %p352 = pneg %p346
      %p353 = scmp.eq.s32.totalorder %s25, 1
      %p354 = por %p352, %p353
      %p355 = scmp.ne.s32.totalorder %s347, %s350
      %p356 = scmp.eq.s32.totalorder %s25, 0
      %p357 = por %p355, %p356
      %p358 = scmp.ne.s32.totalorder %s347, %s350
      %p359 = scmp.eq.s32.totalorder %s30, 1
      %p360 = por %p358, %p359
      %p361 = scmp.ne.s32.totalorder %s350, %s351
      %p362 = scmp.eq.s32.totalorder %s30, 0
      %p363 = por %p361, %p362
      %p364 = scmp.ne.s32.totalorder %s350, %s351
      %p365 = scmp.eq.s32.totalorder %s31, 1
      %p366 = por %p364, %p365
      %p368 = scmp.ne.s32.totalorder %s351, %s367
      %p369 = scmp.eq.s32.totalorder %s31, 0
      %p370 = por %p368, %p369
      %s371 = ssub.s32 %s25, %s32
      %p372 = scmp.eq.s32.totalorder %s371, 0
      %s374 = sadd.s32 %s373, 1
      %s375 = scalar_select %p372, %s373, %s374
      %p378 = pneg %p372
      %p379 = scmp.eq.s32.totalorder %s25, 1
      %p380 = por %p378, %p379
      %p381 = scmp.ne.s32.totalorder %s373, %s376
      %p382 = scmp.eq.s32.totalorder %s25, 0
      %p383 = por %p381, %p382
      %p384 = scmp.ne.s32.totalorder %s373, %s376
      %p385 = scmp.eq.s32.totalorder %s30, 1
      %p386 = por %p384, %p385
      %p387 = scmp.ne.s32.totalorder %s376, %s377
      %p388 = scmp.eq.s32.totalorder %s30, 0
      %p389 = por %p387, %p388
      %p390 = scmp.ne.s32.totalorder %s376, %s377
      %p391 = scmp.eq.s32.totalorder %s31, 1
      %p392 = por %p390, %p391
      %p394 = scmp.ne.s32.totalorder %s377, %s393
      %p395 = scmp.eq.s32.totalorder %s31, 0
      %p396 = por %p394, %p395
      %p397 = scmp.le.s32.totalorder 1, %s25
      %p398 = scmp.lt.s32.totalorder %s25, 3
      %p399 = pnand %p397, %p398
      %p400 = pneg %p399
      // Predicated region
      $region9: #{affinity_net_forward.2} parent=5 // pred_check
        _
      $region10: #{affinity_net_forward.2} parent=5 // pred_check_branch
        %402 = sbr.rel (%p399) target = $region12
      $region11: #{affinity_net_forward.2} parent=5 // pred_region
        %s403 = ssub.s32 %s25, 1
      $region12: #{affinity_net_forward.2} parent=5 // pred_fallthru
        _
      %p404 = scmp.lt.s32.totalorder %s25, 2
      // Predicated region
      $region13: #{affinity_net_forward.2} parent=5 // pred_check
        %p405 = pneg %p404
      $region14: #{affinity_net_forward.2} parent=5 // pred_check_branch
        %407 = sbr.rel (%p405) target = $region16
      $region15: #{affinity_net_forward.2} parent=5 // pred_region
        // Predicated region
        $region17: #{affinity_net_forward.2} parent=15 // pred_check
          %p408 = pneg %p45
        $region18: #{affinity_net_forward.2} parent=15 // pred_check_branch
          %410 = sbr.rel (%p408) target = $region20
        $region19: #{affinity_net_forward.2} parent=15 // pred_region
          %p411 = scmp.lt.s32.totalorder %s25, 1
          %s412 = scalar_select %p411, %s25, 1
          %s413 = smul.addr %s412, 6
          %s414 = smul.addr %s413, 8
          %s415 = scalar_lea.vmem %s0, %s414
        $region20: #{affinity_net_forward.2} parent=15 // pred_fallthru
          _
        // Predicated region
        $region21: #{affinity_net_forward.2} parent=15 // pred_check
          %p416 = pneg %p71
        $region22: #{affinity_net_forward.2} parent=15 // pred_check_branch
          %418 = sbr.rel (%p416) target = $region24
        $region23: #{affinity_net_forward.2} parent=15 // pred_region
          %p419 = scmp.lt.s32.totalorder %s25, 1
          %s420 = scalar_select %p419, %s25, 1
          %s421 = smul.addr %s420, 12
          %s422 = smul.addr %s421, 8
          %s423 = scalar_lea.vmem %s1, %s422
        $region24: #{affinity_net_forward.2} parent=15 // pred_fallthru
          _
        // Predicated region
        $region25: #{affinity_net_forward.2} parent=15 // pred_check
          %p424 = pneg %p97
        $region26: #{affinity_net_forward.2} parent=15 // pred_check_branch
          %426 = sbr.rel (%p424) target = $region28
        $region27: #{affinity_net_forward.2} parent=15 // pred_region
          %p427 = scmp.lt.s32.totalorder %s25, 1
          %s428 = scalar_select %p427, %s25, 1
          %s429 = scalar_lea.vmem %s2, %s428
        $region28: #{affinity_net_forward.2} parent=15 // pred_fallthru
          _
        // Predicated region
        $region29: #{affinity_net_forward.2} parent=15 // pred_check
          %p430 = pneg %p123
        $region30: #{affinity_net_forward.2} parent=15 // pred_check_branch
          %432 = sbr.rel (%p430) target = $region32
        $region31: #{affinity_net_forward.2} parent=15 // pred_region
          %p433 = scmp.lt.s32.totalorder %s25, 1
          %s434 = scalar_select %p433, %s25, 1
          %s435 = scalar_lea.vmem %s3, %s434
        $region32: #{affinity_net_forward.2} parent=15 // pred_fallthru
          _
        // Predicated region
        $region33: #{affinity_net_forward.2} parent=15 // pred_check
          %p436 = pneg %p149
        $region34: #{affinity_net_forward.2} parent=15 // pred_check_branch
          %438 = sbr.rel (%p436) target = $region36
        $region35: #{affinity_net_forward.2} parent=15 // pred_region
          %p439 = scmp.lt.s32.totalorder %s25, 1
          %s440 = scalar_select %p439, %s25, 1
          %s441 = scalar_lea.vmem %s4, %s440
        $region36: #{affinity_net_forward.2} parent=15 // pred_fallthru
          _
        // Predicated region
        $region37: #{affinity_net_forward.2} parent=15 // pred_check
          %p442 = pneg %p175
        $region38: #{affinity_net_forward.2} parent=15 // pred_check_branch
          %444 = sbr.rel (%p442) target = $region40
        $region39: #{affinity_net_forward.2} parent=15 // pred_region
          %s445 = sand.u32 %s165, 1
          %s446 = scalar_lea.sflag [#allocation3], %s445
          %s447 = sand.u32 %s165, 1
          %s448 = smul.addr %s447, 192
          %s449 = scalar_lea.vmem [#allocation2], %s448
          %s451 = ssub.s32 3072, 3072
          %452 = vsyncadd %s446, %s451
          %s453 = smul.addr %s25, 24
          %s454 = smul.addr %s453, 128
          %s455 = scalar_lea.hbm %s5, %s454
          %s456 = sshll.u32 %s449, 4
          %s457 = int_to_ptr.vmem [resolvable:$true] %s456
          %462 = dma.hbm_to_vmem [thread:$0]  %s455, 3072, %s457, %s446, 128, 128, 8
        $region40: #{affinity_net_forward.2} parent=15 // pred_fallthru
          _
        // Predicated region
        $region41: #{affinity_net_forward.2} parent=15 // pred_check
          %p463 = pneg %p201
        $region42: #{affinity_net_forward.2} parent=15 // pred_check_branch
          %465 = sbr.rel (%p463) target = $region44
        $region43: #{affinity_net_forward.2} parent=15 // pred_region
          %p466 = scmp.lt.s32.totalorder %s25, 1
          %s467 = scalar_select %p466, %s25, 1
          %s468 = scalar_lea.vmem %s6, %s467
        $region44: #{affinity_net_forward.2} parent=15 // pred_fallthru
          _
        // Predicated region
        $region45: #{affinity_net_forward.2} parent=15 // pred_check
          %p469 = pneg %p227
        $region46: #{affinity_net_forward.2} parent=15 // pred_check_branch
          %471 = sbr.rel (%p469) target = $region48
        $region47: #{affinity_net_forward.2} parent=15 // pred_region
          %p472 = scmp.lt.s32.totalorder %s25, 1
          %s473 = scalar_select %p472, %s25, 1
          %s474 = scalar_lea.vmem %s7, %s473
        $region48: #{affinity_net_forward.2} parent=15 // pred_fallthru
          _
        // Predicated region
        $region49: #{affinity_net_forward.2} parent=15 // pred_check
          %p475 = pneg %p253
        $region50: #{affinity_net_forward.2} parent=15 // pred_check_branch
          %477 = sbr.rel (%p475) target = $region52
        $region51: #{affinity_net_forward.2} parent=15 // pred_region
          %p478 = scmp.lt.s32.totalorder %s25, 1
          %s479 = scalar_select %p478, %s25, 1
          %s480 = scalar_lea.vmem %s8, %s479
        $region52: #{affinity_net_forward.2} parent=15 // pred_fallthru
          _
        // Predicated region
        $region53: #{affinity_net_forward.2} parent=15 // pred_check
          %p481 = pneg %p279
        $region54: #{affinity_net_forward.2} parent=15 // pred_check_branch
          %483 = sbr.rel (%p481) target = $region56
        $region55: #{affinity_net_forward.2} parent=15 // pred_region
          %s484 = sand.u32 %s269, 1
          %s485 = scalar_lea.sflag [#allocation5], %s484
          %s486 = sand.u32 %s269, 1
          %s487 = smul.addr %s486, 288
          %s488 = scalar_lea.vmem [#allocation4], %s487
          %s490 = ssub.s32 4608, 4608
          %491 = vsyncadd %s485, %s490
          %s492 = smul.addr %s25, 36
          %s493 = smul.addr %s492, 128
          %s494 = scalar_lea.hbm %s9, %s493
          %s495 = sshll.u32 %s488, 4
          %s496 = int_to_ptr.vmem [resolvable:$true] %s495
          %501 = dma.hbm_to_vmem [thread:$0]  %s494, 4608, %s496, %s485, 128, 128, 8
        $region56: #{affinity_net_forward.2} parent=15 // pred_fallthru
          _
        // Predicated region
        $region57: #{affinity_net_forward.2} parent=15 // pred_check
          %p502 = pneg %p305
        $region58: #{affinity_net_forward.2} parent=15 // pred_check_branch
          %504 = sbr.rel (%p502) target = $region60
        $region59: #{affinity_net_forward.2} parent=15 // pred_region
          %p505 = scmp.lt.s32.totalorder %s25, 1
          %s506 = scalar_select %p505, %s25, 1
          %s507 = scalar_lea.vmem %s10, %s506
        $region60: #{affinity_net_forward.2} parent=15 // pred_fallthru
          _
        // Predicated region
        $region61: #{affinity_net_forward.2} parent=15 // pred_check
          %p508 = pneg %p331
        $region62: #{affinity_net_forward.2} parent=15 // pred_check_branch
          %510 = sbr.rel (%p508) target = $region64
        $region63: #{affinity_net_forward.2} parent=15 // pred_region
          %p511 = scmp.lt.s32.totalorder %s25, 1
          %s512 = scalar_select %p511, %s25, 1
          %s513 = scalar_lea.vmem %s11, %s512
        $region64: #{affinity_net_forward.2} parent=15 // pred_fallthru
          _
        // Predicated region
        $region65: #{affinity_net_forward.2} parent=15 // pred_check
          %p514 = pneg %p357
        $region66: #{affinity_net_forward.2} parent=15 // pred_check_branch
          %516 = sbr.rel (%p514) target = $region68
        $region67: #{affinity_net_forward.2} parent=15 // pred_region
          %p517 = scmp.lt.s32.totalorder %s25, 1
          %s518 = scalar_select %p517, %s25, 1
          %s519 = scalar_lea.vmem %s12, %s518
        $region68: #{affinity_net_forward.2} parent=15 // pred_fallthru
          _
      $region16: #{affinity_net_forward.2} parent=5 // pred_fallthru
        _
      %p520 = scmp.le.s32.totalorder 1, %s25
      %p521 = scmp.lt.s32.totalorder %s25, 3
      %p522 = pnand %p520, %p521
      %p523 = pneg %p522
      // Predicated region
      $region69: #{affinity_net_forward.2} parent=5 // pred_check
        _
      $region70: #{affinity_net_forward.2} parent=5 // pred_check_branch
        %525 = sbr.rel (%p522) target = $region72
      $region71: #{affinity_net_forward.2} parent=5 // pred_region
        %s526 = ssub.s32 %s25, 1
        %s527 = sand.u32 %s168, 1
        %s528 = scalar_lea.sflag [#allocation3], %s527
        %s529 = sand.u32 %s168, 1
        %s530 = smul.addr %s529, 192
        %s531 = scalar_lea.vmem [#allocation2], %s530
        // Predicated region
        $region73: #{affinity_net_forward.2} parent=71 // pred_check
          %p532 = pneg %p181
        $region74: #{affinity_net_forward.2} parent=71 // pred_check_branch
          %534 = sbr.rel (%p532) target = $region76
        $region75: #{affinity_net_forward.2} parent=71 // pred_region
          %535 = dma.done %s528, 3072
        $region76: #{affinity_net_forward.2} parent=71 // pred_fallthru
          _
        %s536 = sand.u32 %s272, 1
        %s537 = scalar_lea.sflag [#allocation5], %s536
        %s538 = sand.u32 %s272, 1
        %s539 = smul.addr %s538, 288
        %s540 = scalar_lea.vmem [#allocation4], %s539
        // Predicated region
        $region77: #{affinity_net_forward.2} parent=71 // pred_check
          %p541 = pneg %p285
        $region78: #{affinity_net_forward.2} parent=71 // pred_check_branch
          %543 = sbr.rel (%p541) target = $region80
        $region79: #{affinity_net_forward.2} parent=71 // pred_region
          %544 = dma.done %s537, 4608
        $region80: #{affinity_net_forward.2} parent=71 // pred_fallthru
          _
        %p545 = scmp.lt.s32.totalorder %s30, 1
        %s546 = scalar_select %p545, %s30, 1
        %s547 = smul.addr %s546, 6
        %s548 = smul.addr %s547, 8
        %s549 = scalar_lea.vmem %s0, %s548
        %p550 = pneg %p51
        %p551 = pneg %p48
        %p552 = scmp.lt.s32.totalorder %s30, 1
        %s553 = scalar_select %p552, %s30, 1
        %s554 = smul.addr %s553, 12
        %s555 = smul.addr %s554, 8
        %s556 = scalar_lea.vmem %s1, %s555
        %p557 = pneg %p77
        %p558 = pneg %p74
        %p559 = scmp.lt.s32.totalorder %s30, 1
        %s560 = scalar_select %p559, %s30, 1
        %s561 = scalar_lea.vmem %s2, %s560
        %p562 = pneg %p103
        %p563 = pneg %p100
        %p564 = scmp.lt.s32.totalorder %s30, 1
        %s565 = scalar_select %p564, %s30, 1
        %s566 = scalar_lea.vmem %s3, %s565
        %p567 = pneg %p129
        %p568 = pneg %p126
        %p569 = scmp.lt.s32.totalorder %s30, 1
        %s570 = scalar_select %p569, %s30, 1
        %s571 = scalar_lea.vmem %s4, %s570
        %p572 = pneg %p155
        %p573 = pneg %p152
        %s574 = sand.u32 %s168, 1
        %s575 = scalar_lea.sflag [#allocation3], %s574
        %s576 = sand.u32 %s168, 1
        %s577 = smul.addr %s576, 192
        %s578 = scalar_lea.vmem [#allocation2], %s577
        %p579 = pneg %p181
        %p580 = pneg %p178
        %p581 = scmp.lt.s32.totalorder %s30, 1
        %s582 = scalar_select %p581, %s30, 1
        %s583 = scalar_lea.vmem %s6, %s582
        %p584 = pneg %p207
        %p585 = pneg %p204
        %p586 = scmp.lt.s32.totalorder %s30, 1
        %s587 = scalar_select %p586, %s30, 1
        %s588 = scalar_lea.vmem %s7, %s587
        %p589 = pneg %p233
        %p590 = pneg %p230
        %p591 = scmp.lt.s32.totalorder %s30, 1
        %s592 = scalar_select %p591, %s30, 1
        %s593 = scalar_lea.vmem %s8, %s592
        %p594 = pneg %p259
        %p595 = pneg %p256
        %s596 = sand.u32 %s272, 1
        %s597 = scalar_lea.sflag [#allocation5], %s596
        %s598 = sand.u32 %s272, 1
        %s599 = smul.addr %s598, 288
        %s600 = scalar_lea.vmem [#allocation4], %s599
        %p601 = pneg %p285
        %p602 = pneg %p282
        %p603 = scmp.lt.s32.totalorder %s30, 1
        %s604 = scalar_select %p603, %s30, 1
        %s605 = scalar_lea.vmem %s10, %s604
        %p606 = pneg %p311
        %p607 = pneg %p308
        %p608 = scmp.lt.s32.totalorder %s30, 1
        %s609 = scalar_select %p608, %s30, 1
        %s610 = scalar_lea.vmem %s11, %s609
        %p611 = pneg %p337
        %p612 = pneg %p334
        %p613 = scmp.lt.s32.totalorder %s30, 1
        %s614 = scalar_select %p613, %s30, 1
        %s615 = scalar_lea.vmem %s12, %s614
        %p616 = pneg %p363
        %p617 = pneg %p360
        %p618 = pneg %p389
        %p619 = pneg %p386
        %p620 = scmp.lt.s32.totalorder %s30, 1
        %s621 = scalar_select %p620, %s30, 1
        %s622 = smul.addr %s621, 4
        %s623 = smul.addr %s622, 8
        %s624 = scalar_lea.vmem %s13, %s623
        %p625 = scmp.lt.s32.totalorder %s30, 1
        %s626 = scalar_select %p625, %s30, 1
        %s627 = smul.addr %s626, 6
        %s628 = smul.addr %s627, 8
        %s629 = scalar_lea.vmem %s0, %s628
        %p630 = scmp.lt.s32.totalorder %s30, 1
        %s631 = scalar_select %p630, %s30, 1
        %s632 = smul.addr %s631, 12
        %s633 = smul.addr %s632, 8
        %s634 = scalar_lea.vmem %s1, %s633
        %p635 = scmp.lt.s32.totalorder %s30, 1
        %s636 = scalar_select %p635, %s30, 1
        %s637 = scalar_lea.vmem %s2, %s636
        %p638 = scmp.lt.s32.totalorder %s30, 1
        %s639 = scalar_select %p638, %s30, 1
        %s640 = scalar_lea.vmem %s3, %s639
        %p641 = scmp.lt.s32.totalorder %s30, 1
        %s642 = scalar_select %p641, %s30, 1
        %s643 = scalar_lea.vmem %s4, %s642
        %p644 = scmp.lt.s32.totalorder %s30, 1
        %s645 = scalar_select %p644, %s30, 1
        %s646 = scalar_lea.vmem %s6, %s645
        %p647 = scmp.lt.s32.totalorder %s30, 1
        %s648 = scalar_select %p647, %s30, 1
        %s649 = scalar_lea.vmem %s7, %s648
        %p650 = scmp.lt.s32.totalorder %s30, 1
        %s651 = scalar_select %p650, %s30, 1
        %s652 = scalar_lea.vmem %s8, %s651
        %p653 = scmp.lt.s32.totalorder %s30, 1
        %s654 = scalar_select %p653, %s30, 1
        %s655 = scalar_lea.vmem %s10, %s654
        %p656 = scmp.lt.s32.totalorder %s30, 1
        %s657 = scalar_select %p656, %s30, 1
        %s658 = scalar_lea.vmem %s11, %s657
        %p659 = scmp.lt.s32.totalorder %s30, 1
        %s660 = scalar_select %p659, %s30, 1
        %s661 = scalar_lea.vmem %s12, %s660
        %p662 = scmp.lt.s32.totalorder %s30, 1
        %s663 = scalar_select %p662, %s30, 1
        %s664 = smul.addr %s663, 4
        %s665 = smul.addr %s664, 8
        %s666 = scalar_lea.vmem %s13, %s665
        %v667 = vld [vmem:[%s629] sm:$0xff]
        %v668 = vld [vmem:[%s629 + $0x8] sm:$0xff]
        %v669 = vld [vmem:[%s629 + $0x10] sm:$0xff]
        %s670 = scalar_lea.vmem %s629, 24
        %v671 = vld [vmem:[%s670] sm:$0xff]
        %v672 = vld [vmem:[%s670 + $0x8] sm:$0xff]
        %v673 = vld [vmem:[%s670 + $0x10] sm:$0xff]
        %v674 = vld [vmem:[%s634] sm:$0xff]
        %v675 = vld [vmem:[%s634 + $0x8] sm:$0xff]
        %v676 = vld [vmem:[%s634 + $0x10] sm:$0xff]
        %v677 = vld [vmem:[%s634 + $0x18] sm:$0xff]
        %s678 = scalar_lea.vmem %s634, 32
        %v679 = vld [vmem:[%s678] sm:$0xff]
        %v680 = vld [vmem:[%s678 + $0x8] sm:$0xff]
        %v681 = vld [vmem:[%s678 + $0x10] sm:$0xff]
        %v682 = vld [vmem:[%s678 + $0x18] sm:$0xff]
        %s683 = scalar_lea.vmem %s634, 64
        %v684 = vld [vmem:[%s683] sm:$0xff]
        %v685 = vld [vmem:[%s683 + $0x8] sm:$0xff]
        %v686 = vld [vmem:[%s683 + $0x10] sm:$0xff]
        %v687 = vld [vmem:[%s683 + $0x18] sm:$0xff]
        %v688 = vld [vmem:[%s637] sm:$0x1]
        %vm692 = vcmask 1046528
        %v693 = vrot.slane %v667, 1
        %v694 = vrot.slane %v668, 1
        %v695 = vsel %vm692, %v693, %v694
        %v696 = vrot.slane %v669, 1
        %v697 = vsel %vm692, %v694, %v696
        %vm698 = vcmask 261120
        %v699 = vsel %vm698, %v695, 0
        %v701 = vsel %vm698, %v697, 0
        %v703 = vsel %vm698, %v696, 0
        %705 = vmatprep.subr.mxu0 0.0
        %706 = vmatpush1.msra.mxu0 %v679
        %707 = vmatprep.subr.mxu0 0.0
        %708 = vmatpush1.msra.mxu0 %v680
        %709 = vmatprep.subr.mxu0 0.0
        %710 = vmatpush1.msra.mxu0 %v681
        %711 = vmatprep.subr.mxu0 0.0
        %712 = vmatpush1.msra.mxu0 %v682
        %713 = vmatprep.subr.mxu0 0.0
        %714 = vmatpush1.msra.mxu0 0.0
        %715 = vmatprep.subr.mxu0 0.0
        %716 = vmatpush1.msra.mxu0 0.0
        %717 = vmatprep.subr.mxu0 0.0
        %718 = vmatpush1.msra.mxu0 0.0
        %719 = vmatprep.subr.mxu0 0.0
        %720 = vmatpush1.msra.mxu0 0.0
        %721 = vmatprep.subr.mxu0 0.0
        %722 = vmatpush1.msra.mxu0 0.0
        %723 = vmatprep.subr.mxu0 0.0
        %724 = vmatpush1.msra.mxu0 0.0
        %725 = vmatprep.subr.mxu0 0.0
        %726 = vmatpush1.msra.mxu0 0.0
        %727 = vmatprep.subr.mxu0 0.0
        %728 = vmatpush1.msra.mxu0 0.0
        %729 = vmatprep.subr.mxu0 0.0
        %730 = vmatpush1.msra.mxu0 0.0
        %731 = vmatprep.subr.mxu0 0.0
        %732 = vmatpush1.msra.mxu0 0.0
        %733 = vmatprep.subr.mxu0 0.0
        %734 = vmatpush1.msra.mxu0 0.0
        %735 = vmatprep.subr.mxu0 0.0
        %736 = vmatpush1.msra.mxu0 0.0
        %737 = vmatprep.subr.mxu0 0.0
        %738 = vmatpush1.msra.mxu0 0.0
        %739 = vmatprep.subr.mxu0 0.0
        %740 = vmatpush1.msra.mxu0 0.0
        %741 = vmatprep.subr.mxu0 0.0
        %742 = vmatpush1.msra.mxu0 0.0
        %743 = vmatprep.subr.mxu0 0.0
        %744 = vmatpush1.msra.mxu0 0.0
        %745 = vmatprep.subr.mxu0 0.0
        %746 = vmatpush1.msra.mxu0 0.0
        %747 = vmatprep.subr.mxu0 0.0
        %748 = vmatpush1.msra.mxu0 0.0
        %749 = vmatprep.subr.mxu0 0.0
        %750 = vmatpush1.msra.mxu0 0.0
        %751 = vmatprep.subr.mxu0 0.0
        %752 = vmatpush1.msra.mxu0 0.0
        %753 = vmatprep.subr.mxu0 0.0
        %754 = vmatpush1.msra.mxu0 0.0
        %755 = vmatprep.subr.mxu0 0.0
        %756 = vmatpush1.msra.mxu0 0.0
        %757 = vmatprep.subr.mxu0 0.0
        %758 = vmatpush1.msra.mxu0 0.0
        %759 = vmatprep.subr.mxu0 0.0
        %760 = vmatpush1.msra.mxu0 0.0
        %761 = vmatprep.subr.mxu0 0.0
        %762 = vmatpush1.msra.mxu0 0.0
        %763 = vmatprep.subr.mxu0 0.0
        %764 = vmatpush1.msra.mxu0 0.0
        %765 = vmatprep.subr.mxu0 0.0
        %766 = vmatpush1.msra.mxu0 0.0
        %767 = vmatprep.subr.mxu0 0.0
        %768 = vmatpush1.msra.mxu0 0.0
        %769 = vmatprep.mubr.f32.mxu0 0.0
        %770 = vmatmul.mubr.f32.gmra.mrb[0].mxu0 %v699
        %v771 = vpop.f32.mrb[0].mxu0
        %v772 = vadd.f32 0.0, %v771
        %v773 = vpop.f32.mrb[0].mxu0
        %774 = vmatprep.mubr.f32.mxu0 0.0
        %775 = vmatmul.mubr.f32.gmra.mrb[0].mxu0 %v701
        %v776 = vpop.f32.mrb[0].mxu0
        %v777 = vadd.f32 0.0, %v776
        %v778 = vpop.f32.mrb[0].mxu0
        %779 = vmatprep.mubr.f32.mxu0 0.0
        %780 = vmatmul.mubr.f32.gmra.mrb[0].mxu0 %v703
        %v781 = vpop.f32.mrb[0].mxu0
        %v782 = vadd.f32 0.0, %v781
        %v783 = vpop.f32.mrb[0].mxu0
        %784 = vdwg.mxu0
        %v785 = vsel %vm698, %v667, 0
        %v787 = vsel %vm698, %v668, 0
        %v789 = vsel %vm698, %v669, 0
        %791 = vmatprep.subr.mxu0 0.0
        %792 = vmatpush1.msra.mxu0 %v674
        %793 = vmatprep.subr.mxu0 0.0
        %794 = vmatpush1.msra.mxu0 %v675
        %795 = vmatprep.subr.mxu0 0.0
        %796 = vmatpush1.msra.mxu0 %v676
        %797 = vmatprep.subr.mxu0 0.0
        %798 = vmatpush1.msra.mxu0 %v677
        %799 = vmatprep.subr.mxu0 0.0
        %800 = vmatpush1.msra.mxu0 0.0
        %801 = vmatprep.subr.mxu0 0.0
        %802 = vmatpush1.msra.mxu0 0.0
        %803 = vmatprep.subr.mxu0 0.0
        %804 = vmatpush1.msra.mxu0 0.0
        %805 = vmatprep.subr.mxu0 0.0
        %806 = vmatpush1.msra.mxu0 0.0
        %807 = vmatprep.subr.mxu0 0.0
        %808 = vmatpush1.msra.mxu0 0.0
        %809 = vmatprep.subr.mxu0 0.0
        %810 = vmatpush1.msra.mxu0 0.0
        %811 = vmatprep.subr.mxu0 0.0
        %812 = vmatpush1.msra.mxu0 0.0
        %813 = vmatprep.subr.mxu0 0.0
        %814 = vmatpush1.msra.mxu0 0.0
        %815 = vmatprep.subr.mxu0 0.0
        %816 = vmatpush1.msra.mxu0 0.0
        %817 = vmatprep.subr.mxu0 0.0
        %818 = vmatpush1.msra.mxu0 0.0
        %819 = vmatprep.subr.mxu0 0.0
        %820 = vmatpush1.msra.mxu0 0.0
        %821 = vmatprep.subr.mxu0 0.0
        %822 = vmatpush1.msra.mxu0 0.0
        %823 = vmatprep.subr.mxu0 0.0
        %824 = vmatpush1.msra.mxu0 0.0
        %825 = vmatprep.subr.mxu0 0.0
        %826 = vmatpush1.msra.mxu0 0.0
        %827 = vmatprep.subr.mxu0 0.0
        %828 = vmatpush1.msra.mxu0 0.0
        %829 = vmatprep.subr.mxu0 0.0
        %830 = vmatpush1.msra.mxu0 0.0
        %831 = vmatprep.subr.mxu0 0.0
        %832 = vmatpush1.msra.mxu0 0.0
        %833 = vmatprep.subr.mxu0 0.0
        %834 = vmatpush1.msra.mxu0 0.0
        %835 = vmatprep.subr.mxu0 0.0
        %836 = vmatpush1.msra.mxu0 0.0
        %837 = vmatprep.subr.mxu0 0.0
        %838 = vmatpush1.msra.mxu0 0.0
        %839 = vmatprep.subr.mxu0 0.0
        %840 = vmatpush1.msra.mxu0 0.0
        %841 = vmatprep.subr.mxu0 0.0
        %842 = vmatpush1.msra.mxu0 0.0
        %843 = vmatprep.subr.mxu0 0.0
        %844 = vmatpush1.msra.mxu0 0.0
        %845 = vmatprep.subr.mxu0 0.0
        %846 = vmatpush1.msra.mxu0 0.0
        %847 = vmatprep.subr.mxu0 0.0
        %848 = vmatpush1.msra.mxu0 0.0
        %849 = vmatprep.subr.mxu0 0.0
        %850 = vmatpush1.msra.mxu0 0.0
        %851 = vmatprep.subr.mxu0 0.0
        %852 = vmatpush1.msra.mxu0 0.0
        %853 = vmatprep.subr.mxu0 0.0
        %854 = vmatpush1.msra.mxu0 0.0
        %855 = vmatprep.mubr.f32.mxu0 0.0
        %856 = vmatmul.mubr.f32.gmra.mrb[0].mxu0 %v785
        %v857 = vpop.f32.mrb[0].mxu0
        %v858 = vadd.f32 %v772, %v857
        %v859 = vpop.f32.mrb[0].mxu0
        %860 = vmatprep.mubr.f32.mxu0 0.0
        %861 = vmatmul.mubr.f32.gmra.mrb[0].mxu0 %v787
        %v862 = vpop.f32.mrb[0].mxu0
        %v863 = vadd.f32 %v777, %v862
        %v864 = vpop.f32.mrb[0].mxu0
        %865 = vmatprep.mubr.f32.mxu0 0.0
        %866 = vmatmul.mubr.f32.gmra.mrb[0].mxu0 %v789
        %v867 = vpop.f32.mrb[0].mxu0
        %v868 = vadd.f32 %v782, %v867
        %v869 = vpop.f32.mrb[0].mxu0
        %870 = vdwg.mxu0
        %vm871 = vcmask 1045504
        %v872 = vrot.slane %v667, 2
        %v873 = vrot.slane %v668, 2
        %v874 = vsel %vm871, %v872, %v873
        %v875 = vrot.slane %v669, 2
        %v876 = vsel %vm871, %v873, %v875
        %v877 = vsel %vm698, %v874, 0
        %v879 = vsel %vm698, %v876, 0
        %v881 = vsel %vm698, %v875, 0
        %883 = vmatprep.subr.mxu0 0.0
        %884 = vmatpush1.msra.mxu0 %v684
        %885 = vmatprep.subr.mxu0 0.0
        %886 = vmatpush1.msra.mxu0 %v685
        %887 = vmatprep.subr.mxu0 0.0
        %888 = vmatpush1.msra.mxu0 %v686
        %889 = vmatprep.subr.mxu0 0.0
        %890 = vmatpush1.msra.mxu0 %v687
        %891 = vmatprep.subr.mxu0 0.0
        %892 = vmatpush1.msra.mxu0 0.0
        %893 = vmatprep.subr.mxu0 0.0
        %894 = vmatpush1.msra.mxu0 0.0
        %895 = vmatprep.subr.mxu0 0.0
        %896 = vmatpush1.msra.mxu0 0.0
        %897 = vmatprep.subr.mxu0 0.0
        %898 = vmatpush1.msra.mxu0 0.0
        %899 = vmatprep.subr.mxu0 0.0
        %900 = vmatpush1.msra.mxu0 0.0
        %901 = vmatprep.subr.mxu0 0.0
        %902 = vmatpush1.msra.mxu0 0.0
        %903 = vmatprep.subr.mxu0 0.0
        %904 = vmatpush1.msra.mxu0 0.0
        %905 = vmatprep.subr.mxu0 0.0
        %906 = vmatpush1.msra.mxu0 0.0
        %907 = vmatprep.subr.mxu0 0.0
        %908 = vmatpush1.msra.mxu0 0.0
        %909 = vmatprep.subr.mxu0 0.0
        %910 = vmatpush1.msra.mxu0 0.0
        %911 = vmatprep.subr.mxu0 0.0
        %912 = vmatpush1.msra.mxu0 0.0
        %913 = vmatprep.subr.mxu0 0.0
        %914 = vmatpush1.msra.mxu0 0.0
        %915 = vmatprep.subr.mxu0 0.0
        %916 = vmatpush1.msra.mxu0 0.0
        %917 = vmatprep.subr.mxu0 0.0
        %918 = vmatpush1.msra.mxu0 0.0
        %919 = vmatprep.subr.mxu0 0.0
        %920 = vmatpush1.msra.mxu0 0.0
        %921 = vmatprep.subr.mxu0 0.0
        %922 = vmatpush1.msra.mxu0 0.0
        %923 = vmatprep.subr.mxu0 0.0
        %924 = vmatpush1.msra.mxu0 0.0
        %925 = vmatprep.subr.mxu0 0.0
        %926 = vmatpush1.msra.mxu0 0.0
        %927 = vmatprep.subr.mxu0 0.0
        %928 = vmatpush1.msra.mxu0 0.0
        %929 = vmatprep.subr.mxu0 0.0
        %930 = vmatpush1.msra.mxu0 0.0
        %931 = vmatprep.subr.mxu0 0.0
        %932 = vmatpush1.msra.mxu0 0.0
        %933 = vmatprep.subr.mxu0 0.0
        %934 = vmatpush1.msra.mxu0 0.0
        %935 = vmatprep.subr.mxu0 0.0
        %936 = vmatpush1.msra.mxu0 0.0
        %937 = vmatprep.subr.mxu0 0.0
        %938 = vmatpush1.msra.mxu0 0.0
        %939 = vmatprep.subr.mxu0 0.0
        %940 = vmatpush1.msra.mxu0 0.0
        %941 = vmatprep.subr.mxu0 0.0
        %942 = vmatpush1.msra.mxu0 0.0
        %943 = vmatprep.subr.mxu0 0.0
        %944 = vmatpush1.msra.mxu0 0.0
        %945 = vmatprep.subr.mxu0 0.0
        %946 = vmatpush1.msra.mxu0 0.0
        %947 = vmatprep.mubr.f32.mxu0 0.0
        %948 = vmatmul.mubr.f32.gmra.mrb[0].mxu0 %v877
        %v949 = vpop.f32.mrb[0].mxu0
        %v950 = vadd.f32 0.0, %v949
        %v951 = vpop.f32.mrb[0].mxu0
        %952 = vmatprep.mubr.f32.mxu0 0.0
        %953 = vmatmul.mubr.f32.gmra.mrb[0].mxu0 %v879
        %v954 = vpop.f32.mrb[0].mxu0
        %v955 = vadd.f32 0.0, %v954
        %v956 = vpop.f32.mrb[0].mxu0
        %957 = vmatprep.mubr.f32.mxu0 0.0
        %958 = vmatmul.mubr.f32.gmra.mrb[0].mxu0 %v881
        %v959 = vpop.f32.mrb[0].mxu0
        %v960 = vadd.f32 0.0, %v959
        %v961 = vpop.f32.mrb[0].mxu0
        %962 = vdwg.mxu0
        %v963 = vadd.f32 %v858, %v950
        %v964 = vadd.f32 %v863, %v955
        %v965 = vadd.f32 %v868, %v960
        %v967 = vlaneseq
        %v968 = vshrl.u32 %v967, 7
        %v969 = vsub.s32 0, %v968
        %v970 = vrot.slane %v688, %v969
        %v972 = vadd.f32 %v963, %v970
        %v973 = vadd.f32 %v964, %v970
        %v974 = vadd.f32 %v965, %v970
        %vm975 = vcmp.ge.f32.partialorder %v972, 0.0
        %vm976 = vcmp.ge.f32.partialorder %v973, 0.0
        %vm977 = vcmp.ge.f32.partialorder %v974, 0.0
        %v978 = vmul.f32 %v972, 0.01
        %v979 = vmul.f32 %v973, 0.01
        %v980 = vmul.f32 %v974, 0.01
        %v981 = vsel %vm975, %v972, %v978
        %v982 = vsel %vm976, %v973, %v979
        %v983 = vsel %vm977, %v974, %v980
        %v987 = vrot.slane %v671, 1
        %v988 = vrot.slane %v672, 1
        %v989 = vsel %vm692, %v987, %v988
        %v990 = vrot.slane %v673, 1
        %v991 = vsel %vm692, %v988, %v990
        %v992 = vsel %vm698, %v989, 0
        %v994 = vsel %vm698, %v991, 0
        %v996 = vsel %vm698, %v990, 0
        %998 = vmatprep.subr.mxu0 0.0
        %999 = vmatpush1.msra.mxu0 %v679
        %1000 = vmatprep.subr.mxu0 0.0
        %1001 = vmatpush1.msra.mxu0 %v680
        %1002 = vmatprep.subr.mxu0 0.0
        %1003 = vmatpush1.msra.mxu0 %v681
        %1004 = vmatprep.subr.mxu0 0.0
        %1005 = vmatpush1.msra.mxu0 %v682
        %1006 = vmatprep.subr.mxu0 0.0
        %1007 = vmatpush1.msra.mxu0 0.0
        %1008 = vmatprep.subr.mxu0 0.0
        %1009 = vmatpush1.msra.mxu0 0.0
        %1010 = vmatprep.subr.mxu0 0.0
        %1011 = vmatpush1.msra.mxu0 0.0
        %1012 = vmatprep.subr.mxu0 0.0
        %1013 = vmatpush1.msra.mxu0 0.0
        %1014 = vmatprep.subr.mxu0 0.0
        %1015 = vmatpush1.msra.mxu0 0.0
        %1016 = vmatprep.subr.mxu0 0.0
        %1017 = vmatpush1.msra.mxu0 0.0
        %1018 = vmatprep.subr.mxu0 0.0
        %1019 = vmatpush1.msra.mxu0 0.0
        %1020 = vmatprep.subr.mxu0 0.0
        %1021 = vmatpush1.msra.mxu0 0.0
        %1022 = vmatprep.subr.mxu0 0.0
        %1023 = vmatpush1.msra.mxu0 0.0
        %1024 = vmatprep.subr.mxu0 0.0
        %1025 = vmatpush1.msra.mxu0 0.0
        %1026 = vmatprep.subr.mxu0 0.0
        %1027 = vmatpush1.msra.mxu0 0.0
        %1028 = vmatprep.subr.mxu0 0.0
        %1029 = vmatpush1.msra.mxu0 0.0
        %1030 = vmatprep.subr.mxu0 0.0
        %1031 = vmatpush1.msra.mxu0 0.0
        %1032 = vmatprep.subr.mxu0 0.0
        %1033 = vmatpush1.msra.mxu0 0.0
        %1034 = vmatprep.subr.mxu0 0.0
        %1035 = vmatpush1.msra.mxu0 0.0
        %1036 = vmatprep.subr.mxu0 0.0
        %1037 = vmatpush1.msra.mxu0 0.0
        %1038 = vmatprep.subr.mxu0 0.0
        %1039 = vmatpush1.msra.mxu0 0.0
        %1040 = vmatprep.subr.mxu0 0.0
        %1041 = vmatpush1.msra.mxu0 0.0
        %1042 = vmatprep.subr.mxu0 0.0
        %1043 = vmatpush1.msra.mxu0 0.0
        %1044 = vmatprep.subr.mxu0 0.0
        %1045 = vmatpush1.msra.mxu0 0.0
        %1046 = vmatprep.subr.mxu0 0.0
        %1047 = vmatpush1.msra.mxu0 0.0
        %1048 = vmatprep.subr.mxu0 0.0
        %1049 = vmatpush1.msra.mxu0 0.0
        %1050 = vmatprep.subr.mxu0 0.0
        %1051 = vmatpush1.msra.mxu0 0.0
        %1052 = vmatprep.subr.mxu0 0.0
        %1053 = vmatpush1.msra.mxu0 0.0
        %1054 = vmatprep.subr.mxu0 0.0
        %1055 = vmatpush1.msra.mxu0 0.0
        %1056 = vmatprep.subr.mxu0 0.0
        %1057 = vmatpush1.msra.mxu0 0.0
        %1058 = vmatprep.subr.mxu0 0.0
        %1059 = vmatpush1.msra.mxu0 0.0
        %1060 = vmatprep.subr.mxu0 0.0
        %1061 = vmatpush1.msra.mxu0 0.0
        %1062 = vmatprep.mubr.f32.mxu0 0.0
        %1063 = vmatmul.mubr.f32.gmra.mrb[0].mxu0 %v992
        %v1064 = vpop.f32.mrb[0].mxu0
        %v1065 = vadd.f32 0.0, %v1064
        %v1066 = vpop.f32.mrb[0].mxu0
        %1067 = vmatprep.mubr.f32.mxu0 0.0
        %1068 = vmatmul.mubr.f32.gmra.mrb[0].mxu0 %v994
        %v1069 = vpop.f32.mrb[0].mxu0
        %v1070 = vadd.f32 0.0, %v1069
        %v1071 = vpop.f32.mrb[0].mxu0
        %1072 = vmatprep.mubr.f32.mxu0 0.0
        %1073 = vmatmul.mubr.f32.gmra.mrb[0].mxu0 %v996
        %v1074 = vpop.f32.mrb[0].mxu0
        %v1075 = vadd.f32 0.0, %v1074
        %v1076 = vpop.f32.mrb[0].mxu0
        %1077 = vdwg.mxu0
        %v1078 = vsel %vm698, %v671, 0
        %v1080 = vsel %vm698, %v672, 0
        %v1082 = vsel %vm698, %v673, 0
        %1084 = vmatprep.subr.mxu0 0.0
        %1085 = vmatpush1.msra.mxu0 %v674
        %1086 = vmatprep.subr.mxu0 0.0
        %1087 = vmatpush1.msra.mxu0 %v675
        %1088 = vmatprep.subr.mxu0 0.0
        %1089 = vmatpush1.msra.mxu0 %v676
        %1090 = vmatprep.subr.mxu0 0.0
        %1091 = vmatpush1.msra.mxu0 %v677
        %1092 = vmatprep.subr.mxu0 0.0
        %1093 = vmatpush1.msra.mxu0 0.0
        %1094 = vmatprep.subr.mxu0 0.0
        %1095 = vmatpush1.msra.mxu0 0.0
        %1096 = vmatprep.subr.mxu0 0.0
        %1097 = vmatpush1.msra.mxu0 0.0
        %1098 = vmatprep.subr.mxu0 0.0
        %1099 = vmatpush1.msra.mxu0 0.0
        %1100 = vmatprep.subr.mxu0 0.0
        %1101 = vmatpush1.msra.mxu0 0.0
        %1102 = vmatprep.subr.mxu0 0.0
        %1103 = vmatpush1.msra.mxu0 0.0
        %1104 = vmatprep.subr.mxu0 0.0
        %1105 = vmatpush1.msra.mxu0 0.0
        %1106 = vmatprep.subr.mxu0 0.0
        %1107 = vmatpush1.msra.mxu0 0.0
        %1108 = vmatprep.subr.mxu0 0.0
        %1109 = vmatpush1.msra.mxu0 0.0
        %1110 = vmatprep.subr.mxu0 0.0
        %1111 = vmatpush1.msra.mxu0 0.0
        %1112 = vmatprep.subr.mxu0 0.0
        %1113 = vmatpush1.msra.mxu0 0.0
        %1114 = vmatprep.subr.mxu0 0.0
        %1115 = vmatpush1.msra.mxu0 0.0
        %1116 = vmatprep.subr.mxu0 0.0
        %1117 = vmatpush1.msra.mxu0 0.0
        %1118 = vmatprep.subr.mxu0 0.0
        %1119 = vmatpush1.msra.mxu0 0.0
        %1120 = vmatprep.subr.mxu0 0.0
        %1121 = vmatpush1.msra.mxu0 0.0
        %1122 = vmatprep.subr.mxu0 0.0
        %1123 = vmatpush1.msra.mxu0 0.0
        %1124 = vmatprep.subr.mxu0 0.0
        %1125 = vmatpush1.msra.mxu0 0.0
        %1126 = vmatprep.subr.mxu0 0.0
        %1127 = vmatpush1.msra.mxu0 0.0
        %1128 = vmatprep.subr.mxu0 0.0
        %1129 = vmatpush1.msra.mxu0 0.0
        %1130 = vmatprep.subr.mxu0 0.0
        %1131 = vmatpush1.msra.mxu0 0.0
        %1132 = vmatprep.subr.mxu0 0.0
        %1133 = vmatpush1.msra.mxu0 0.0
        %1134 = vmatprep.subr.mxu0 0.0
        %1135 = vmatpush1.msra.mxu0 0.0
        %1136 = vmatprep.subr.mxu0 0.0
        %1137 = vmatpush1.msra.mxu0 0.0
        %1138 = vmatprep.subr.mxu0 0.0
        %1139 = vmatpush1.msra.mxu0 0.0
        %1140 = vmatprep.subr.mxu0 0.0
        %1141 = vmatpush1.msra.mxu0 0.0
        %1142 = vmatprep.subr.mxu0 0.0
        %1143 = vmatpush1.msra.mxu0 0.0
        %1144 = vmatprep.subr.mxu0 0.0
        %1145 = vmatpush1.msra.mxu0 0.0
        %1146 = vmatprep.subr.mxu0 0.0
        %1147 = vmatpush1.msra.mxu0 0.0
        %1148 = vmatprep.mubr.f32.mxu0 0.0
        %1149 = vmatmul.mubr.f32.gmra.mrb[0].mxu0 %v1078
        %v1150 = vpop.f32.mrb[0].mxu0
        %v1151 = vadd.f32 %v1065, %v1150
        %v1152 = vpop.f32.mrb[0].mxu0
        %1153 = vmatprep.mubr.f32.mxu0 0.0
        %1154 = vmatmul.mubr.f32.gmra.mrb[0].mxu0 %v1080
        %v1155 = vpop.f32.mrb[0].mxu0
        %v1156 = vadd.f32 %v1070, %v1155
        %v1157 = vpop.f32.mrb[0].mxu0
        %1158 = vmatprep.mubr.f32.mxu0 0.0
        %1159 = vmatmul.mubr.f32.gmra.mrb[0].mxu0 %v1082
        %v1160 = vpop.f32.mrb[0].mxu0
        %v1161 = vadd.f32 %v1075, %v1160
        %v1162 = vpop.f32.mrb[0].mxu0
        %1163 = vdwg.mxu0
        %v1164 = vrot.slane %v671, 2
        %v1165 = vrot.slane %v672, 2
        %v1166 = vsel %vm871, %v1164, %v1165
        %v1167 = vrot.slane %v673, 2
        %v1168 = vsel %vm871, %v1165, %v1167
        %v1169 = vsel %vm698, %v1166, 0
        %v1171 = vsel %vm698, %v1168, 0
        %v1173 = vsel %vm698, %v1167, 0
        %1175 = vmatprep.subr.mxu0 0.0
        %1176 = vmatpush1.msra.mxu0 %v684
        %1177 = vmatprep.subr.mxu0 0.0
        %1178 = vmatpush1.msra.mxu0 %v685
        %1179 = vmatprep.subr.mxu0 0.0
        %1180 = vmatpush1.msra.mxu0 %v686
        %1181 = vmatprep.subr.mxu0 0.0
        %1182 = vmatpush1.msra.mxu0 %v687
        %1183 = vmatprep.subr.mxu0 0.0
        %1184 = vmatpush1.msra.mxu0 0.0
        %1185 = vmatprep.subr.mxu0 0.0
        %1186 = vmatpush1.msra.mxu0 0.0
        %1187 = vmatprep.subr.mxu0 0.0
        %1188 = vmatpush1.msra.mxu0 0.0
        %1189 = vmatprep.subr.mxu0 0.0
        %1190 = vmatpush1.msra.mxu0 0.0
        %1191 = vmatprep.subr.mxu0 0.0
        %1192 = vmatpush1.msra.mxu0 0.0
        %1193 = vmatprep.subr.mxu0 0.0
        %1194 = vmatpush1.msra.mxu0 0.0
        %1195 = vmatprep.subr.mxu0 0.0
        %1196 = vmatpush1.msra.mxu0 0.0
        %1197 = vmatprep.subr.mxu0 0.0
        %1198 = vmatpush1.msra.mxu0 0.0
        %1199 = vmatprep.subr.mxu0 0.0
        %1200 = vmatpush1.msra.mxu0 0.0
        %1201 = vmatprep.subr.mxu0 0.0
        %1202 = vmatpush1.msra.mxu0 0.0
        %1203 = vmatprep.subr.mxu0 0.0
        %1204 = vmatpush1.msra.mxu0 0.0
        %1205 = vmatprep.subr.mxu0 0.0
        %1206 = vmatpush1.msra.mxu0 0.0
        %1207 = vmatprep.subr.mxu0 0.0
        %1208 = vmatpush1.msra.mxu0 0.0
        %1209 = vmatprep.subr.mxu0 0.0
        %1210 = vmatpush1.msra.mxu0 0.0
        %1211 = vmatprep.subr.mxu0 0.0
        %1212 = vmatpush1.msra.mxu0 0.0
        %1213 = vmatprep.subr.mxu0 0.0
        %1214 = vmatpush1.msra.mxu0 0.0
        %1215 = vmatprep.subr.mxu0 0.0
        %1216 = vmatpush1.msra.mxu0 0.0
        %1217 = vmatprep.subr.mxu0 0.0
        %1218 = vmatpush1.msra.mxu0 0.0
        %1219 = vmatprep.subr.mxu0 0.0
        %1220 = vmatpush1.msra.mxu0 0.0
        %1221 = vmatprep.subr.mxu0 0.0
        %1222 = vmatpush1.msra.mxu0 0.0
        %1223 = vmatprep.subr.mxu0 0.0
        %1224 = vmatpush1.msra.mxu0 0.0
        %1225 = vmatprep.subr.mxu0 0.0
        %1226 = vmatpush1.msra.mxu0 0.0
        %1227 = vmatprep.subr.mxu0 0.0
        %1228 = vmatpush1.msra.mxu0 0.0
        %1229 = vmatprep.subr.mxu0 0.0
        %1230 = vmatpush1.msra.mxu0 0.0
        %1231 = vmatprep.subr.mxu0 0.0
        %1232 = vmatpush1.msra.mxu0 0.0
        %1233 = vmatprep.subr.mxu0 0.0
        %1234 = vmatpush1.msra.mxu0 0.0
        %1235 = vmatprep.subr.mxu0 0.0
        %1236 = vmatpush1.msra.mxu0 0.0
        %1237 = vmatprep.subr.mxu0 0.0
        %1238 = vmatpush1.msra.mxu0 0.0
        %1239 = vmatprep.mubr.f32.mxu0 0.0
        %1240 = vmatmul.mubr.f32.gmra.mrb[0].mxu0 %v1169
        %v1241 = vpop.f32.mrb[0].mxu0
        %v1242 = vadd.f32 0.0, %v1241
        %v1243 = vpop.f32.mrb[0].mxu0
        %1244 = vmatprep.mubr.f32.mxu0 0.0
        %1245 = vmatmul.mubr.f32.gmra.mrb[0].mxu0 %v1171
        %v1246 = vpop.f32.mrb[0].mxu0
        %v1247 = vadd.f32 0.0, %v1246
        %v1248 = vpop.f32.mrb[0].mxu0
        %1249 = vmatprep.mubr.f32.mxu0 0.0
        %1250 = vmatmul.mubr.f32.gmra.mrb[0].mxu0 %v1173
        %v1251 = vpop.f32.mrb[0].mxu0
        %v1252 = vadd.f32 0.0, %v1251
        %v1253 = vpop.f32.mrb[0].mxu0
        %1254 = vdwg.mxu0
        %v1255 = vadd.f32 %v1151, %v1242
        %v1256 = vadd.f32 %v1156, %v1247
        %v1257 = vadd.f32 %v1161, %v1252
        %v1258 = vadd.f32 %v1255, %v970
        %v1259 = vadd.f32 %v1256, %v970
        %v1260 = vadd.f32 %v1257, %v970
        %vm1261 = vcmp.ge.f32.partialorder %v1258, 0.0
        %vm1262 = vcmp.ge.f32.partialorder %v1259, 0.0
        %vm1263 = vcmp.ge.f32.partialorder %v1260, 0.0
        %v1264 = vmul.f32 %v1258, 0.01
        %v1265 = vmul.f32 %v1259, 0.01
        %v1266 = vmul.f32 %v1260, 0.01
        %v1267 = vsel %vm1261, %v1258, %v1264
        %v1268 = vsel %vm1262, %v1259, %v1265
        %v1269 = vsel %vm1263, %v1260, %v1266
        %v1270 = vsel %vm698, %v981, 0.0
        %v1271 = vsel %vm698, %v982, 0.0
        %v1272 = vadd.f32 %v1270, %v1271
        %vm1273 = vcmask 259072
        %v1274 = vsel %vm1273, %v983, 0.0
        %v1275 = vadd.f32 %v1272, %v1274
        %v1276 = vrot.slane %v1275, 4
        %v1277 = vadd.f32 %v1275, %v1276
        %v1278 = vrot.slane %v1277, 2
        %v1279 = vadd.f32 %v1277, %v1278
        %v1280 = vrot.slane %v1279, 1
        %v1281 = vadd.f32 %v1279, %v1280
        %v1282 = vadd.f32 %v1281, 0.0
        %v1283 = vsel %vm698, %v1267, 0.0
        %v1284 = vsel %vm698, %v1268, 0.0
        %v1285 = vadd.f32 %v1283, %v1284
        %v1286 = vsel %vm1273, %v1269, 0.0
        %v1287 = vadd.f32 %v1285, %v1286
        %v1288 = vrot.slane %v1287, 4
        %v1289 = vadd.f32 %v1287, %v1288
        %v1290 = vrot.slane %v1289, 2
        %v1291 = vadd.f32 %v1289, %v1290
        %v1292 = vrot.slane %v1291, 1
        %v1293 = vadd.f32 %v1291, %v1292
        %v1294 = vadd.f32 %v1282, %v1293
        %v1295 = vrcp.pop 44.0
        %v1296 = vmul.f32 %v1294, %v1295
        %v1297 = vsub.f32 %v981, %v1296
        %v1298 = vsub.f32 %v982, %v1296
        %v1299 = vsub.f32 %v983, %v1296
        %v1300 = vmul.f32 %v1297, %v1297
        %v1301 = vmul.f32 %v1298, %v1298
        %v1302 = vmul.f32 %v1299, %v1299
        %v1303 = vsel %vm698, %v1300, 0.0
        %v1304 = vsel %vm698, %v1301, 0.0
        %v1305 = vadd.f32 %v1303, %v1304
        %v1306 = vsel %vm1273, %v1302, 0.0
        %v1307 = vadd.f32 %v1305, %v1306
        %v1308 = vrot.slane %v1307, 4
        %v1309 = vadd.f32 %v1307, %v1308
        %v1310 = vrot.slane %v1309, 2
        %v1311 = vadd.f32 %v1309, %v1310
        %v1312 = vrot.slane %v1311, 1
        %v1313 = vadd.f32 %v1311, %v1312
        %v1314 = vadd.f32 %v1313, 0.0
        %v1315 = vsub.f32 %v1267, %v1296
        %v1316 = vsub.f32 %v1268, %v1296
        %v1317 = vsub.f32 %v1269, %v1296
        %v1318 = vmul.f32 %v1315, %v1315
        %v1319 = vmul.f32 %v1316, %v1316
        %v1320 = vmul.f32 %v1317, %v1317
        %v1321 = vsel %vm698, %v1318, 0.0
        %v1322 = vsel %vm698, %v1319, 0.0
        %v1323 = vadd.f32 %v1321, %v1322
        %v1324 = vsel %vm1273, %v1320, 0.0
        %v1325 = vadd.f32 %v1323, %v1324
        %v1326 = vrot.slane %v1325, 4
        %v1327 = vadd.f32 %v1325, %v1326
        %v1328 = vrot.slane %v1327, 2
        %v1329 = vadd.f32 %v1327, %v1328
        %v1330 = vrot.slane %v1329, 1
        %v1331 = vadd.f32 %v1329, %v1330
        %v1332 = vadd.f32 %v1314, %v1331
        %v1333 = vmul.f32 %v1332, %v1295
        %v1334 = vld [vmem:[%s640] sm:$0x1]
        %v1335 = vadd.f32 %v1333, 1e-05
        %v1336 = vrsqrt.pop %v1335
        %v1337 = vmul.f32 %v1334, %v1336
        %v1338 = vld [vmem:[%s643] sm:$0x1]
        %v1339 = vmul.f32 %v1296, %v1337
        %v1340 = vsub.f32 %v1338, %v1339
        %v1342 = vlaneseq
        %v1343 = vshrl.u32 %v1342, 7
        %v1344 = vsub.s32 0, %v1343
        %v1345 = vrot.slane %v1337, %v1344
        %v1347 = vmul.f32 %v981, %v1345
        %v1348 = vmul.f32 %v982, %v1345
        %v1349 = vmul.f32 %v983, %v1345
        %v1351 = vlaneseq
        %v1352 = vshrl.u32 %v1351, 7
        %v1353 = vsub.s32 0, %v1352
        %v1354 = vrot.slane %v1340, %v1353
        %v1356 = vadd.f32 %v1347, %v1354
        %v1357 = vadd.f32 %v1348, %v1354
        %v1358 = vadd.f32 %v1349, %v1354
        %v1359 = vmul.f32 %v1267, %v1345
        %v1360 = vmul.f32 %v1268, %v1345
        %v1361 = vmul.f32 %v1269, %v1345
        %v1362 = vadd.f32 %v1359, %v1354
        %v1363 = vadd.f32 %v1360, %v1354
        %v1364 = vadd.f32 %v1361, %v1354
        %v1365 = vld [vmem:[%s531] sm:$0xff]
        %v1366 = vld [vmem:[%s531 + $0x8] sm:$0xff]
        %v1367 = vld [vmem:[%s531 + $0x10] sm:$0xff]
        %v1368 = vld [vmem:[%s531 + $0x18] sm:$0xff]
        %s1369 = scalar_lea.vmem %s531, 32 [#allocation2]
        %v1370 = vld [vmem:[%s1369] sm:$0xff]
        %v1371 = vld [vmem:[%s1369 + $0x8] sm:$0xff]
        %v1372 = vld [vmem:[%s1369 + $0x10] sm:$0xff]
        %v1373 = vld [vmem:[%s1369 + $0x18] sm:$0xff]
        %s1374 = scalar_lea.vmem %s531, 64 [#allocation2]
        %v1375 = vld [vmem:[%s1374] sm:$0xff]
        %v1376 = vld [vmem:[%s1374 + $0x8] sm:$0xff]
        %v1377 = vld [vmem:[%s1374 + $0x10] sm:$0xff]
        %v1378 = vld [vmem:[%s1374 + $0x18] sm:$0xff]
        %s1379 = scalar_lea.vmem %s531, 96 [#allocation2]
        %v1380 = vld [vmem:[%s1379] sm:$0xff]
        %v1381 = vld [vmem:[%s1379 + $0x8] sm:$0xff]
        %v1382 = vld [vmem:[%s1379 + $0x10] sm:$0xff]
        %v1383 = vld [vmem:[%s1379 + $0x18] sm:$0xff]
        %s1384 = scalar_lea.vmem %s531, 128 [#allocation2]
        %v1385 = vld [vmem:[%s1384] sm:$0xff]
        %v1386 = vld [vmem:[%s1384 + $0x8] sm:$0xff]
        %v1387 = vld [vmem:[%s1384 + $0x10] sm:$0xff]
        %v1388 = vld [vmem:[%s1384 + $0x18] sm:$0xff]
        %s1389 = scalar_lea.vmem %s531, 160 [#allocation2]
        %v1390 = vld [vmem:[%s1389] sm:$0xff]
        %v1391 = vld [vmem:[%s1389 + $0x8] sm:$0xff]
        %v1392 = vld [vmem:[%s1389 + $0x10] sm:$0xff]
        %v1393 = vld [vmem:[%s1389 + $0x18] sm:$0xff]
        %v1394 = vld [vmem:[%s646] sm:$0x1]
        %v1398 = vrot.slane %v1356, 1
        %v1399 = vrot.slane %v1357, 1
        %v1400 = vsel %vm692, %v1398, %v1399
        %v1401 = vrot.slane %v1358, 1
        %v1402 = vsel %vm692, %v1399, %v1401
        %v1403 = vsel %vm698, %v1400, 0
        %v1405 = vsel %vm698, %v1402, 0
        %v1407 = vsel %vm698, %v1401, 0
        %1409 = vmatprep.subr.mxu0 0.0
        %1410 = vmatpush1.msra.mxu0 %v1370
        %1411 = vmatprep.subr.mxu0 0.0
        %1412 = vmatpush1.msra.mxu0 %v1371
        %1413 = vmatprep.subr.mxu0 0.0
        %1414 = vmatpush1.msra.mxu0 %v1372
        %1415 = vmatprep.subr.mxu0 0.0
        %1416 = vmatpush1.msra.mxu0 %v1373
        %1417 = vmatprep.subr.mxu0 0.0
        %1418 = vmatpush1.msra.mxu0 0.0
        %1419 = vmatprep.subr.mxu0 0.0
        %1420 = vmatpush1.msra.mxu0 0.0
        %1421 = vmatprep.subr.mxu0 0.0
        %1422 = vmatpush1.msra.mxu0 0.0
        %1423 = vmatprep.subr.mxu0 0.0
        %1424 = vmatpush1.msra.mxu0 0.0
        %1425 = vmatprep.subr.mxu0 0.0
        %1426 = vmatpush1.msra.mxu0 0.0
        %1427 = vmatprep.subr.mxu0 0.0
        %1428 = vmatpush1.msra.mxu0 0.0
        %1429 = vmatprep.subr.mxu0 0.0
        %1430 = vmatpush1.msra.mxu0 0.0
        %1431 = vmatprep.subr.mxu0 0.0
        %1432 = vmatpush1.msra.mxu0 0.0
        %1433 = vmatprep.subr.mxu0 0.0
        %1434 = vmatpush1.msra.mxu0 0.0
        %1435 = vmatprep.subr.mxu0 0.0
        %1436 = vmatpush1.msra.mxu0 0.0
        %1437 = vmatprep.subr.mxu0 0.0
        %1438 = vmatpush1.msra.mxu0 0.0
        %1439 = vmatprep.subr.mxu0 0.0
        %1440 = vmatpush1.msra.mxu0 0.0
        %1441 = vmatprep.subr.mxu0 0.0
        %1442 = vmatpush1.msra.mxu0 0.0
        %1443 = vmatprep.subr.mxu0 0.0
        %1444 = vmatpush1.msra.mxu0 0.0
        %1445 = vmatprep.subr.mxu0 0.0
        %1446 = vmatpush1.msra.mxu0 0.0
        %1447 = vmatprep.subr.mxu0 0.0
        %1448 = vmatpush1.msra.mxu0 0.0
        %1449 = vmatprep.subr.mxu0 0.0
        %1450 = vmatpush1.msra.mxu0 0.0
        %1451 = vmatprep.subr.mxu0 0.0
        %1452 = vmatpush1.msra.mxu0 0.0
        %1453 = vmatprep.subr.mxu0 0.0
        %1454 = vmatpush1.msra.mxu0 0.0
        %1455 = vmatprep.subr.mxu0 0.0
        %1456 = vmatpush1.msra.mxu0 0.0
        %1457 = vmatprep.subr.mxu0 0.0
        %1458 = vmatpush1.msra.mxu0 0.0
        %1459 = vmatprep.subr.mxu0 0.0
        %1460 = vmatpush1.msra.mxu0 0.0
        %1461 = vmatprep.subr.mxu0 0.0
        %1462 = vmatpush1.msra.mxu0 0.0
        %1463 = vmatprep.subr.mxu0 0.0
        %1464 = vmatpush1.msra.mxu0 0.0
        %1465 = vmatprep.subr.mxu0 0.0
        %1466 = vmatpush1.msra.mxu0 0.0
        %1467 = vmatprep.subr.mxu0 0.0
        %1468 = vmatpush1.msra.mxu0 0.0
        %1469 = vmatprep.subr.mxu0 0.0
        %1470 = vmatpush1.msra.mxu0 0.0
        %1471 = vmatprep.subr.mxu0 0.0
        %1472 = vmatpush1.msra.mxu0 0.0
        %1473 = vmatprep.mubr.f32.mxu0 0.0
        %1474 = vmatmul.mubr.f32.gmra.mrb[0].mxu0 %v1403
        %v1475 = vpop.f32.mrb[0].mxu0
        %v1476 = vadd.f32 0.0, %v1475
        %v1477 = vpop.f32.mrb[0].mxu0
        %1478 = vmatprep.mubr.f32.mxu0 0.0
        %1479 = vmatmul.mubr.f32.gmra.mrb[0].mxu0 %v1405
        %v1480 = vpop.f32.mrb[0].mxu0
        %v1481 = vadd.f32 0.0, %v1480
        %v1482 = vpop.f32.mrb[0].mxu0
        %1483 = vmatprep.mubr.f32.mxu0 0.0
        %1484 = vmatmul.mubr.f32.gmra.mrb[0].mxu0 %v1407
        %v1485 = vpop.f32.mrb[0].mxu0
        %v1486 = vadd.f32 0.0, %v1485
        %v1487 = vpop.f32.mrb[0].mxu0
        %1488 = vdwg.mxu0
        %v1489 = vsel %vm698, %v1356, 0
        %v1491 = vsel %vm698, %v1357, 0
        %v1493 = vsel %vm698, %v1358, 0
        %1495 = vmatprep.subr.mxu0 0.0
        %1496 = vmatpush1.msra.mxu0 %v1365
        %1497 = vmatprep.subr.mxu0 0.0
        %1498 = vmatpush1.msra.mxu0 %v1366
        %1499 = vmatprep.subr.mxu0 0.0
        %1500 = vmatpush1.msra.mxu0 %v1367
        %1501 = vmatprep.subr.mxu0 0.0
        %1502 = vmatpush1.msra.mxu0 %v1368
        %1503 = vmatprep.subr.mxu0 0.0
        %1504 = vmatpush1.msra.mxu0 0.0
        %1505 = vmatprep.subr.mxu0 0.0
        %1506 = vmatpush1.msra.mxu0 0.0
        %1507 = vmatprep.subr.mxu0 0.0
        %1508 = vmatpush1.msra.mxu0 0.0
        %1509 = vmatprep.subr.mxu0 0.0
        %1510 = vmatpush1.msra.mxu0 0.0
        %1511 = vmatprep.subr.mxu0 0.0
        %1512 = vmatpush1.msra.mxu0 0.0
        %1513 = vmatprep.subr.mxu0 0.0
        %1514 = vmatpush1.msra.mxu0 0.0
        %1515 = vmatprep.subr.mxu0 0.0
        %1516 = vmatpush1.msra.mxu0 0.0
        %1517 = vmatprep.subr.mxu0 0.0
        %1518 = vmatpush1.msra.mxu0 0.0
        %1519 = vmatprep.subr.mxu0 0.0
        %1520 = vmatpush1.msra.mxu0 0.0
        %1521 = vmatprep.subr.mxu0 0.0
        %1522 = vmatpush1.msra.mxu0 0.0
        %1523 = vmatprep.subr.mxu0 0.0
        %1524 = vmatpush1.msra.mxu0 0.0
        %1525 = vmatprep.subr.mxu0 0.0
        %1526 = vmatpush1.msra.mxu0 0.0
        %1527 = vmatprep.subr.mxu0 0.0
        %1528 = vmatpush1.msra.mxu0 0.0
        %1529 = vmatprep.subr.mxu0 0.0
        %1530 = vmatpush1.msra.mxu0 0.0
        %1531 = vmatprep.subr.mxu0 0.0
        %1532 = vmatpush1.msra.mxu0 0.0
        %1533 = vmatprep.subr.mxu0 0.0
        %1534 = vmatpush1.msra.mxu0 0.0
        %1535 = vmatprep.subr.mxu0 0.0
        %1536 = vmatpush1.msra.mxu0 0.0
        %1537 = vmatprep.subr.mxu0 0.0
        %1538 = vmatpush1.msra.mxu0 0.0
        %1539 = vmatprep.subr.mxu0 0.0
        %1540 = vmatpush1.msra.mxu0 0.0
        %1541 = vmatprep.subr.mxu0 0.0
        %1542 = vmatpush1.msra.mxu0 0.0
        %1543 = vmatprep.subr.mxu0 0.0
        %1544 = vmatpush1.msra.mxu0 0.0
        %1545 = vmatprep.subr.mxu0 0.0
        %1546 = vmatpush1.msra.mxu0 0.0
        %1547 = vmatprep.subr.mxu0 0.0
        %1548 = vmatpush1.msra.mxu0 0.0
        %1549 = vmatprep.subr.mxu0 0.0
        %1550 = vmatpush1.msra.mxu0 0.0
        %1551 = vmatprep.subr.mxu0 0.0
        %1552 = vmatpush1.msra.mxu0 0.0
        %1553 = vmatprep.subr.mxu0 0.0
        %1554 = vmatpush1.msra.mxu0 0.0
        %1555 = vmatprep.subr.mxu0 0.0
        %1556 = vmatpush1.msra.mxu0 0.0
        %1557 = vmatprep.subr.mxu0 0.0
        %1558 = vmatpush1.msra.mxu0 0.0
        %1559 = vmatprep.mubr.f32.mxu0 0.0
        %1560 = vmatmul.mubr.f32.gmra.mrb[0].mxu0 %v1489
        %v1561 = vpop.f32.mrb[0].mxu0
        %v1562 = vadd.f32 %v1476, %v1561
        %v1563 = vpop.f32.mrb[0].mxu0
        %1564 = vmatprep.mubr.f32.mxu0 0.0
        %1565 = vmatmul.mubr.f32.gmra.mrb[0].mxu0 %v1491
        %v1566 = vpop.f32.mrb[0].mxu0
        %v1567 = vadd.f32 %v1481, %v1566
        %v1568 = vpop.f32.mrb[0].mxu0
        %1569 = vmatprep.mubr.f32.mxu0 0.0
        %1570 = vmatmul.mubr.f32.gmra.mrb[0].mxu0 %v1493
        %v1571 = vpop.f32.mrb[0].mxu0
        %v1572 = vadd.f32 %v1486, %v1571
        %v1573 = vpop.f32.mrb[0].mxu0
        %1574 = vdwg.mxu0
        %v1575 = vrot.slane %v1356, 2
        %v1576 = vrot.slane %v1357, 2
        %v1577 = vsel %vm871, %v1575, %v1576
        %v1578 = vrot.slane %v1358, 2
        %v1579 = vsel %vm871, %v1576, %v1578
        %v1580 = vsel %vm698, %v1577, 0
        %v1582 = vsel %vm698, %v1579, 0
        %v1584 = vsel %vm698, %v1578, 0
        %1586 = vmatprep.subr.mxu0 0.0
        %1587 = vmatpush1.msra.mxu0 %v1375
        %1588 = vmatprep.subr.mxu0 0.0
        %1589 = vmatpush1.msra.mxu0 %v1376
        %1590 = vmatprep.subr.mxu0 0.0
        %1591 = vmatpush1.msra.mxu0 %v1377
        %1592 = vmatprep.subr.mxu0 0.0
        %1593 = vmatpush1.msra.mxu0 %v1378
        %1594 = vmatprep.subr.mxu0 0.0
        %1595 = vmatpush1.msra.mxu0 0.0
        %1596 = vmatprep.subr.mxu0 0.0
        %1597 = vmatpush1.msra.mxu0 0.0
        %1598 = vmatprep.subr.mxu0 0.0
        %1599 = vmatpush1.msra.mxu0 0.0
        %1600 = vmatprep.subr.mxu0 0.0
        %1601 = vmatpush1.msra.mxu0 0.0
        %1602 = vmatprep.subr.mxu0 0.0
        %1603 = vmatpush1.msra.mxu0 0.0
        %1604 = vmatprep.subr.mxu0 0.0
        %1605 = vmatpush1.msra.mxu0 0.0
        %1606 = vmatprep.subr.mxu0 0.0
        %1607 = vmatpush1.msra.mxu0 0.0
        %1608 = vmatprep.subr.mxu0 0.0
        %1609 = vmatpush1.msra.mxu0 0.0
        %1610 = vmatprep.subr.mxu0 0.0
        %1611 = vmatpush1.msra.mxu0 0.0
        %1612 = vmatprep.subr.mxu0 0.0
        %1613 = vmatpush1.msra.mxu0 0.0
        %1614 = vmatprep.subr.mxu0 0.0
        %1615 = vmatpush1.msra.mxu0 0.0
        %1616 = vmatprep.subr.mxu0 0.0
        %1617 = vmatpush1.msra.mxu0 0.0
        %1618 = vmatprep.subr.mxu0 0.0
        %1619 = vmatpush1.msra.mxu0 0.0
        %1620 = vmatprep.subr.mxu0 0.0
        %1621 = vmatpush1.msra.mxu0 0.0
        %1622 = vmatprep.subr.mxu0 0.0
        %1623 = vmatpush1.msra.mxu0 0.0
        %1624 = vmatprep.subr.mxu0 0.0
        %1625 = vmatpush1.msra.mxu0 0.0
        %1626 = vmatprep.subr.mxu0 0.0
        %1627 = vmatpush1.msra.mxu0 0.0
        %1628 = vmatprep.subr.mxu0 0.0
        %1629 = vmatpush1.msra.mxu0 0.0
        %1630 = vmatprep.subr.mxu0 0.0
        %1631 = vmatpush1.msra.mxu0 0.0
        %1632 = vmatprep.subr.mxu0 0.0
        %1633 = vmatpush1.msra.mxu0 0.0
        %1634 = vmatprep.subr.mxu0 0.0
        %1635 = vmatpush1.msra.mxu0 0.0
        %1636 = vmatprep.subr.mxu0 0.0
        %1637 = vmatpush1.msra.mxu0 0.0
        %1638 = vmatprep.subr.mxu0 0.0
        %1639 = vmatpush1.msra.mxu0 0.0
        %1640 = vmatprep.subr.mxu0 0.0
        %1641 = vmatpush1.msra.mxu0 0.0
        %1642 = vmatprep.subr.mxu0 0.0
        %1643 = vmatpush1.msra.mxu0 0.0
        %1644 = vmatprep.subr.mxu0 0.0
        %1645 = vmatpush1.msra.mxu0 0.0
        %1646 = vmatprep.subr.mxu0 0.0
        %1647 = vmatpush1.msra.mxu0 0.0
        %1648 = vmatprep.subr.mxu0 0.0
        %1649 = vmatpush1.msra.mxu0 0.0
        %1650 = vmatprep.mubr.f32.mxu0 0.0
        %1651 = vmatmul.mubr.f32.gmra.mrb[0].mxu0 %v1580
        %v1652 = vpop.f32.mrb[0].mxu0
        %v1653 = vadd.f32 0.0, %v1652
        %v1654 = vpop.f32.mrb[0].mxu0
        %1655 = vmatprep.mubr.f32.mxu0 0.0
        %1656 = vmatmul.mubr.f32.gmra.mrb[0].mxu0 %v1582
        %v1657 = vpop.f32.mrb[0].mxu0
        %v1658 = vadd.f32 0.0, %v1657
        %v1659 = vpop.f32.mrb[0].mxu0
        %1660 = vmatprep.mubr.f32.mxu0 0.0
        %1661 = vmatmul.mubr.f32.gmra.mrb[0].mxu0 %v1584
        %v1662 = vpop.f32.mrb[0].mxu0
        %v1663 = vadd.f32 0.0, %v1662
        %v1664 = vpop.f32.mrb[0].mxu0
        %1665 = vdwg.mxu0
        %v1666 = vadd.f32 %v1562, %v1653
        %v1667 = vadd.f32 %v1567, %v1658
        %v1668 = vadd.f32 %v1572, %v1663
        %vm1669 = vcmask 1044480
        %v1670 = vrot.slane %v1356, 3
        %v1671 = vrot.slane %v1357, 3
        %v1672 = vsel %vm1669, %v1670, %v1671
        %v1673 = vrot.slane %v1358, 3
        %v1674 = vsel %vm1669, %v1671, %v1673
        %v1675 = vsel %vm698, %v1672, 0
        %v1677 = vsel %vm698, %v1674, 0
        %v1679 = vsel %vm698, %v1673, 0
        %1681 = vmatprep.subr.mxu0 0.0
        %1682 = vmatpush1.msra.mxu0 %v1380
        %1683 = vmatprep.subr.mxu0 0.0
        %1684 = vmatpush1.msra.mxu0 %v1381
        %1685 = vmatprep.subr.mxu0 0.0
        %1686 = vmatpush1.msra.mxu0 %v1382
        %1687 = vmatprep.subr.mxu0 0.0
        %1688 = vmatpush1.msra.mxu0 %v1383
        %1689 = vmatprep.subr.mxu0 0.0
        %1690 = vmatpush1.msra.mxu0 0.0
        %1691 = vmatprep.subr.mxu0 0.0
        %1692 = vmatpush1.msra.mxu0 0.0
        %1693 = vmatprep.subr.mxu0 0.0
        %1694 = vmatpush1.msra.mxu0 0.0
        %1695 = vmatprep.subr.mxu0 0.0
        %1696 = vmatpush1.msra.mxu0 0.0
        %1697 = vmatprep.subr.mxu0 0.0
        %1698 = vmatpush1.msra.mxu0 0.0
        %1699 = vmatprep.subr.mxu0 0.0
        %1700 = vmatpush1.msra.mxu0 0.0
        %1701 = vmatprep.subr.mxu0 0.0
        %1702 = vmatpush1.msra.mxu0 0.0
        %1703 = vmatprep.subr.mxu0 0.0
        %1704 = vmatpush1.msra.mxu0 0.0
        %1705 = vmatprep.subr.mxu0 0.0
        %1706 = vmatpush1.msra.mxu0 0.0
        %1707 = vmatprep.subr.mxu0 0.0
        %1708 = vmatpush1.msra.mxu0 0.0
        %1709 = vmatprep.subr.mxu0 0.0
        %1710 = vmatpush1.msra.mxu0 0.0
        %1711 = vmatprep.subr.mxu0 0.0
        %1712 = vmatpush1.msra.mxu0 0.0
        %1713 = vmatprep.subr.mxu0 0.0
        %1714 = vmatpush1.msra.mxu0 0.0
        %1715 = vmatprep.subr.mxu0 0.0
        %1716 = vmatpush1.msra.mxu0 0.0
        %1717 = vmatprep.subr.mxu0 0.0
        %1718 = vmatpush1.msra.mxu0 0.0
        %1719 = vmatprep.subr.mxu0 0.0
        %1720 = vmatpush1.msra.mxu0 0.0
        %1721 = vmatprep.subr.mxu0 0.0
        %1722 = vmatpush1.msra.mxu0 0.0
        %1723 = vmatprep.subr.mxu0 0.0
        %1724 = vmatpush1.msra.mxu0 0.0
        %1725 = vmatprep.subr.mxu0 0.0
        %1726 = vmatpush1.msra.mxu0 0.0
        %1727 = vmatprep.subr.mxu0 0.0
        %1728 = vmatpush1.msra.mxu0 0.0
        %1729 = vmatprep.subr.mxu0 0.0
        %1730 = vmatpush1.msra.mxu0 0.0
        %1731 = vmatprep.subr.mxu0 0.0
        %1732 = vmatpush1.msra.mxu0 0.0
        %1733 = vmatprep.subr.mxu0 0.0
        %1734 = vmatpush1.msra.mxu0 0.0
        %1735 = vmatprep.subr.mxu0 0.0
        %1736 = vmatpush1.msra.mxu0 0.0
        %1737 = vmatprep.subr.mxu0 0.0
        %1738 = vmatpush1.msra.mxu0 0.0
        %1739 = vmatprep.subr.mxu0 0.0
        %1740 = vmatpush1.msra.mxu0 0.0
        %1741 = vmatprep.subr.mxu0 0.0
        %1742 = vmatpush1.msra.mxu0 0.0
        %1743 = vmatprep.subr.mxu0 0.0
        %1744 = vmatpush1.msra.mxu0 0.0
        %1745 = vmatprep.mubr.f32.mxu0 0.0
        %1746 = vmatmul.mubr.f32.gmra.mrb[0].mxu0 %v1675
        %v1747 = vpop.f32.mrb[0].mxu0
        %v1748 = vadd.f32 0.0, %v1747
        %v1749 = vpop.f32.mrb[0].mxu0
        %1750 = vmatprep.mubr.f32.mxu0 0.0
        %1751 = vmatmul.mubr.f32.gmra.mrb[0].mxu0 %v1677
        %v1752 = vpop.f32.mrb[0].mxu0
        %v1753 = vadd.f32 0.0, %v1752
        %v1754 = vpop.f32.mrb[0].mxu0
        %1755 = vmatprep.mubr.f32.mxu0 0.0
        %1756 = vmatmul.mubr.f32.gmra.mrb[0].mxu0 %v1679
        %v1757 = vpop.f32.mrb[0].mxu0
        %v1758 = vadd.f32 0.0, %v1757
        %v1759 = vpop.f32.mrb[0].mxu0
        %1760 = vdwg.mxu0
        %v1761 = vadd.f32 %v1666, %v1748
        %v1762 = vadd.f32 %v1667, %v1753
        %v1763 = vadd.f32 %v1668, %v1758
        %vm1764 = vcmask 1043456
        %v1765 = vrot.slane %v1356, 4
        %v1766 = vrot.slane %v1357, 4
        %v1767 = vsel %vm1764, %v1765, %v1766
        %v1768 = vrot.slane %v1358, 4
        %v1769 = vsel %vm1764, %v1766, %v1768
        %v1770 = vsel %vm698, %v1767, 0
        %v1772 = vsel %vm698, %v1769, 0
        %v1774 = vsel %vm698, %v1768, 0
        %1776 = vmatprep.subr.mxu0 0.0
        %1777 = vmatpush1.msra.mxu0 %v1385
        %1778 = vmatprep.subr.mxu0 0.0
        %1779 = vmatpush1.msra.mxu0 %v1386
        %1780 = vmatprep.subr.mxu0 0.0
        %1781 = vmatpush1.msra.mxu0 %v1387
        %1782 = vmatprep.subr.mxu0 0.0
        %1783 = vmatpush1.msra.mxu0 %v1388
        %1784 = vmatprep.subr.mxu0 0.0
        %1785 = vmatpush1.msra.mxu0 0.0
        %1786 = vmatprep.subr.mxu0 0.0
        %1787 = vmatpush1.msra.mxu0 0.0
        %1788 = vmatprep.subr.mxu0 0.0
        %1789 = vmatpush1.msra.mxu0 0.0
        %1790 = vmatprep.subr.mxu0 0.0
        %1791 = vmatpush1.msra.mxu0 0.0
        %1792 = vmatprep.subr.mxu0 0.0
        %1793 = vmatpush1.msra.mxu0 0.0
        %1794 = vmatprep.subr.mxu0 0.0
        %1795 = vmatpush1.msra.mxu0 0.0
        %1796 = vmatprep.subr.mxu0 0.0
        %1797 = vmatpush1.msra.mxu0 0.0
        %1798 = vmatprep.subr.mxu0 0.0
        %1799 = vmatpush1.msra.mxu0 0.0
        %1800 = vmatprep.subr.mxu0 0.0
        %1801 = vmatpush1.msra.mxu0 0.0
        %1802 = vmatprep.subr.mxu0 0.0
        %1803 = vmatpush1.msra.mxu0 0.0
        %1804 = vmatprep.subr.mxu0 0.0
        %1805 = vmatpush1.msra.mxu0 0.0
        %1806 = vmatprep.subr.mxu0 0.0
        %1807 = vmatpush1.msra.mxu0 0.0
        %1808 = vmatprep.subr.mxu0 0.0
        %1809 = vmatpush1.msra.mxu0 0.0
        %1810 = vmatprep.subr.mxu0 0.0
        %1811 = vmatpush1.msra.mxu0 0.0
        %1812 = vmatprep.subr.mxu0 0.0
        %1813 = vmatpush1.msra.mxu0 0.0
        %1814 = vmatprep.subr.mxu0 0.0
        %1815 = vmatpush1.msra.mxu0 0.0
        %1816 = vmatprep.subr.mxu0 0.0
        %1817 = vmatpush1.msra.mxu0 0.0
        %1818 = vmatprep.subr.mxu0 0.0
        %1819 = vmatpush1.msra.mxu0 0.0
        %1820 = vmatprep.subr.mxu0 0.0
        %1821 = vmatpush1.msra.mxu0 0.0
        %1822 = vmatprep.subr.mxu0 0.0
        %1823 = vmatpush1.msra.mxu0 0.0
        %1824 = vmatprep.subr.mxu0 0.0
        %1825 = vmatpush1.msra.mxu0 0.0
        %1826 = vmatprep.subr.mxu0 0.0
        %1827 = vmatpush1.msra.mxu0 0.0
        %1828 = vmatprep.subr.mxu0 0.0
        %1829 = vmatpush1.msra.mxu0 0.0
        %1830 = vmatprep.subr.mxu0 0.0
        %1831 = vmatpush1.msra.mxu0 0.0
        %1832 = vmatprep.subr.mxu0 0.0
        %1833 = vmatpush1.msra.mxu0 0.0
        %1834 = vmatprep.subr.mxu0 0.0
        %1835 = vmatpush1.msra.mxu0 0.0
        %1836 = vmatprep.subr.mxu0 0.0
        %1837 = vmatpush1.msra.mxu0 0.0
        %1838 = vmatprep.subr.mxu0 0.0
        %1839 = vmatpush1.msra.mxu0 0.0
        %1840 = vmatprep.mubr.f32.mxu0 0.0
        %1841 = vmatmul.mubr.f32.gmra.mrb[0].mxu0 %v1770
        %v1842 = vpop.f32.mrb[0].mxu0
        %v1843 = vadd.f32 0.0, %v1842
        %v1844 = vpop.f32.mrb[0].mxu0
        %1845 = vmatprep.mubr.f32.mxu0 0.0
        %1846 = vmatmul.mubr.f32.gmra.mrb[0].mxu0 %v1772
        %v1847 = vpop.f32.mrb[0].mxu0
        %v1848 = vadd.f32 0.0, %v1847
        %v1849 = vpop.f32.mrb[0].mxu0
        %1850 = vmatprep.mubr.f32.mxu0 0.0
        %1851 = vmatmul.mubr.f32.gmra.mrb[0].mxu0 %v1774
        %v1852 = vpop.f32.mrb[0].mxu0
        %v1853 = vadd.f32 0.0, %v1852
        %v1854 = vpop.f32.mrb[0].mxu0
        %1855 = vdwg.mxu0
        %v1856 = vadd.f32 %v1761, %v1843
        %v1857 = vadd.f32 %v1762, %v1848
        %v1858 = vadd.f32 %v1763, %v1853
        %vm1859 = vcmask 1042432
        %v1860 = vrot.slane %v1356, 5
        %v1861 = vrot.slane %v1357, 5
        %v1862 = vsel %vm1859, %v1860, %v1861
        %v1863 = vrot.slane %v1358, 5
        %v1864 = vsel %vm1859, %v1861, %v1863
        %v1865 = vsel %vm698, %v1862, 0
        %v1867 = vsel %vm698, %v1864, 0
        %v1869 = vsel %vm698, %v1863, 0
        %1871 = vmatprep.subr.mxu0 0.0
        %1872 = vmatpush1.msra.mxu0 %v1390
        %1873 = vmatprep.subr.mxu0 0.0
        %1874 = vmatpush1.msra.mxu0 %v1391
        %1875 = vmatprep.subr.mxu0 0.0
        %1876 = vmatpush1.msra.mxu0 %v1392
        %1877 = vmatprep.subr.mxu0 0.0
        %1878 = vmatpush1.msra.mxu0 %v1393
        %1879 = vmatprep.subr.mxu0 0.0
        %1880 = vmatpush1.msra.mxu0 0.0
        %1881 = vmatprep.subr.mxu0 0.0
        %1882 = vmatpush1.msra.mxu0 0.0
        %1883 = vmatprep.subr.mxu0 0.0
        %1884 = vmatpush1.msra.mxu0 0.0
        %1885 = vmatprep.subr.mxu0 0.0
        %1886 = vmatpush1.msra.mxu0 0.0
        %1887 = vmatprep.subr.mxu0 0.0
        %1888 = vmatpush1.msra.mxu0 0.0
        %1889 = vmatprep.subr.mxu0 0.0
        %1890 = vmatpush1.msra.mxu0 0.0
        %1891 = vmatprep.subr.mxu0 0.0
        %1892 = vmatpush1.msra.mxu0 0.0
        %1893 = vmatprep.subr.mxu0 0.0
        %1894 = vmatpush1.msra.mxu0 0.0
        %1895 = vmatprep.subr.mxu0 0.0
        %1896 = vmatpush1.msra.mxu0 0.0
        %1897 = vmatprep.subr.mxu0 0.0
        %1898 = vmatpush1.msra.mxu0 0.0
        %1899 = vmatprep.subr.mxu0 0.0
        %1900 = vmatpush1.msra.mxu0 0.0
        %1901 = vmatprep.subr.mxu0 0.0
        %1902 = vmatpush1.msra.mxu0 0.0
        %1903 = vmatprep.subr.mxu0 0.0
        %1904 = vmatpush1.msra.mxu0 0.0
        %1905 = vmatprep.subr.mxu0 0.0
        %1906 = vmatpush1.msra.mxu0 0.0
        %1907 = vmatprep.subr.mxu0 0.0
        %1908 = vmatpush1.msra.mxu0 0.0
        %1909 = vmatprep.subr.mxu0 0.0
        %1910 = vmatpush1.msra.mxu0 0.0
        %1911 = vmatprep.subr.mxu0 0.0
        %1912 = vmatpush1.msra.mxu0 0.0
        %1913 = vmatprep.subr.mxu0 0.0
        %1914 = vmatpush1.msra.mxu0 0.0
        %1915 = vmatprep.subr.mxu0 0.0
        %1916 = vmatpush1.msra.mxu0 0.0
        %1917 = vmatprep.subr.mxu0 0.0
        %1918 = vmatpush1.msra.mxu0 0.0
        %1919 = vmatprep.subr.mxu0 0.0
        %1920 = vmatpush1.msra.mxu0 0.0
        %1921 = vmatprep.subr.mxu0 0.0
        %1922 = vmatpush1.msra.mxu0 0.0
        %1923 = vmatprep.subr.mxu0 0.0
        %1924 = vmatpush1.msra.mxu0 0.0
        %1925 = vmatprep.subr.mxu0 0.0
        %1926 = vmatpush1.msra.mxu0 0.0
        %1927 = vmatprep.subr.mxu0 0.0
        %1928 = vmatpush1.msra.mxu0 0.0
        %1929 = vmatprep.subr.mxu0 0.0
        %1930 = vmatpush1.msra.mxu0 0.0
        %1931 = vmatprep.subr.mxu0 0.0
        %1932 = vmatpush1.msra.mxu0 0.0
        %1933 = vmatprep.subr.mxu0 0.0
        %1934 = vmatpush1.msra.mxu0 0.0
        %1935 = vmatprep.mubr.f32.mxu0 0.0
        %1936 = vmatmul.mubr.f32.gmra.mrb[0].mxu0 %v1865
        %v1937 = vpop.f32.mrb[0].mxu0
        %v1938 = vadd.f32 0.0, %v1937
        %v1939 = vpop.f32.mrb[0].mxu0
        %1940 = vmatprep.mubr.f32.mxu0 0.0
        %1941 = vmatmul.mubr.f32.gmra.mrb[0].mxu0 %v1867
        %v1942 = vpop.f32.mrb[0].mxu0
        %v1943 = vadd.f32 0.0, %v1942
        %v1944 = vpop.f32.mrb[0].mxu0
        %1945 = vmatprep.mubr.f32.mxu0 0.0
        %1946 = vmatmul.mubr.f32.gmra.mrb[0].mxu0 %v1869
        %v1947 = vpop.f32.mrb[0].mxu0
        %v1948 = vadd.f32 0.0, %v1947
        %v1949 = vpop.f32.mrb[0].mxu0
        %1950 = vdwg.mxu0
        %v1951 = vadd.f32 %v1856, %v1938
        %v1952 = vadd.f32 %v1857, %v1943
        %v1953 = vadd.f32 %v1858, %v1948
        %v1955 = vlaneseq
        %v1956 = vshrl.u32 %v1955, 7
        %v1957 = vsub.s32 0, %v1956
        %v1958 = vrot.slane %v1394, %v1957
        %v1960 = vadd.f32 %v1951, %v1958
        %v1961 = vadd.f32 %v1952, %v1958
        %v1962 = vadd.f32 %v1953, %v1958
        %vm1963 = vcmp.ge.f32.partialorder %v1960, 0.0
        %vm1964 = vcmp.ge.f32.partialorder %v1961, 0.0
        %vm1965 = vcmp.ge.f32.partialorder %v1962, 0.0
        %v1966 = vmul.f32 %v1960, 0.01
        %v1967 = vmul.f32 %v1961, 0.01
        %v1968 = vmul.f32 %v1962, 0.01
        %v1969 = vsel %vm1963, %v1960, %v1966
        %v1970 = vsel %vm1964, %v1961, %v1967
        %v1971 = vsel %vm1965, %v1962, %v1968
        %v1975 = vrot.slane %v1362, 1
        %v1976 = vrot.slane %v1363, 1
        %v1977 = vsel %vm692, %v1975, %v1976
        %v1978 = vrot.slane %v1364, 1
        %v1979 = vsel %vm692, %v1976, %v1978
        %v1980 = vsel %vm698, %v1977, 0
        %v1982 = vsel %vm698, %v1979, 0
        %v1984 = vsel %vm698, %v1978, 0
        %1986 = vmatprep.subr.mxu0 0.0
        %1987 = vmatpush1.msra.mxu0 %v1370
        %1988 = vmatprep.subr.mxu0 0.0
        %1989 = vmatpush1.msra.mxu0 %v1371
        %1990 = vmatprep.subr.mxu0 0.0
        %1991 = vmatpush1.msra.mxu0 %v1372
        %1992 = vmatprep.subr.mxu0 0.0
        %1993 = vmatpush1.msra.mxu0 %v1373
        %1994 = vmatprep.subr.mxu0 0.0
        %1995 = vmatpush1.msra.mxu0 0.0
        %1996 = vmatprep.subr.mxu0 0.0
        %1997 = vmatpush1.msra.mxu0 0.0
        %1998 = vmatprep.subr.mxu0 0.0
        %1999 = vmatpush1.msra.mxu0 0.0
        %2000 = vmatprep.subr.mxu0 0.0
        %2001 = vmatpush1.msra.mxu0 0.0
        %2002 = vmatprep.subr.mxu0 0.0
        %2003 = vmatpush1.msra.mxu0 0.0
        %2004 = vmatprep.subr.mxu0 0.0
        %2005 = vmatpush1.msra.mxu0 0.0
        %2006 = vmatprep.subr.mxu0 0.0
        %2007 = vmatpush1.msra.mxu0 0.0
        %2008 = vmatprep.subr.mxu0 0.0
        %2009 = vmatpush1.msra.mxu0 0.0
        %2010 = vmatprep.subr.mxu0 0.0
        %2011 = vmatpush1.msra.mxu0 0.0
        %2012 = vmatprep.subr.mxu0 0.0
        %2013 = vmatpush1.msra.mxu0 0.0
        %2014 = vmatprep.subr.mxu0 0.0
        %2015 = vmatpush1.msra.mxu0 0.0
        %2016 = vmatprep.subr.mxu0 0.0
        %2017 = vmatpush1.msra.mxu0 0.0
        %2018 = vmatprep.subr.mxu0 0.0
        %2019 = vmatpush1.msra.mxu0 0.0
        %2020 = vmatprep.subr.mxu0 0.0
        %2021 = vmatpush1.msra.mxu0 0.0
        %2022 = vmatprep.subr.mxu0 0.0
        %2023 = vmatpush1.msra.mxu0 0.0
        %2024 = vmatprep.subr.mxu0 0.0
        %2025 = vmatpush1.msra.mxu0 0.0
        %2026 = vmatprep.subr.mxu0 0.0
        %2027 = vmatpush1.msra.mxu0 0.0
        %2028 = vmatprep.subr.mxu0 0.0
        %2029 = vmatpush1.msra.mxu0 0.0
        %2030 = vmatprep.subr.mxu0 0.0
        %2031 = vmatpush1.msra.mxu0 0.0
        %2032 = vmatprep.subr.mxu0 0.0
        %2033 = vmatpush1.msra.mxu0 0.0
        %2034 = vmatprep.subr.mxu0 0.0
        %2035 = vmatpush1.msra.mxu0 0.0
        %2036 = vmatprep.subr.mxu0 0.0
        %2037 = vmatpush1.msra.mxu0 0.0
        %2038 = vmatprep.subr.mxu0 0.0
        %2039 = vmatpush1.msra.mxu0 0.0
        %2040 = vmatprep.subr.mxu0 0.0
        %2041 = vmatpush1.msra.mxu0 0.0
        %2042 = vmatprep.subr.mxu0 0.0
        %2043 = vmatpush1.msra.mxu0 0.0
        %2044 = vmatprep.subr.mxu0 0.0
        %2045 = vmatpush1.msra.mxu0 0.0
        %2046 = vmatprep.subr.mxu0 0.0
        %2047 = vmatpush1.msra.mxu0 0.0
        %2048 = vmatprep.subr.mxu0 0.0
        %2049 = vmatpush1.msra.mxu0 0.0
        %2050 = vmatprep.mubr.f32.mxu0 0.0
        %2051 = vmatmul.mubr.f32.gmra.mrb[0].mxu0 %v1980
        %v2052 = vpop.f32.mrb[0].mxu0
        %v2053 = vadd.f32 0.0, %v2052
        %v2054 = vpop.f32.mrb[0].mxu0
        %2055 = vmatprep.mubr.f32.mxu0 0.0
        %2056 = vmatmul.mubr.f32.gmra.mrb[0].mxu0 %v1982
        %v2057 = vpop.f32.mrb[0].mxu0
        %v2058 = vadd.f32 0.0, %v2057
        %v2059 = vpop.f32.mrb[0].mxu0
        %2060 = vmatprep.mubr.f32.mxu0 0.0
        %2061 = vmatmul.mubr.f32.gmra.mrb[0].mxu0 %v1984
        %v2062 = vpop.f32.mrb[0].mxu0
        %v2063 = vadd.f32 0.0, %v2062
        %v2064 = vpop.f32.mrb[0].mxu0
        %2065 = vdwg.mxu0
        %v2066 = vsel %vm698, %v1362, 0
        %v2068 = vsel %vm698, %v1363, 0
        %v2070 = vsel %vm698, %v1364, 0
        %2072 = vmatprep.subr.mxu0 0.0
        %2073 = vmatpush1.msra.mxu0 %v1365
        %2074 = vmatprep.subr.mxu0 0.0
        %2075 = vmatpush1.msra.mxu0 %v1366
        %2076 = vmatprep.subr.mxu0 0.0
        %2077 = vmatpush1.msra.mxu0 %v1367
        %2078 = vmatprep.subr.mxu0 0.0
        %2079 = vmatpush1.msra.mxu0 %v1368
        %2080 = vmatprep.subr.mxu0 0.0
        %2081 = vmatpush1.msra.mxu0 0.0
        %2082 = vmatprep.subr.mxu0 0.0
        %2083 = vmatpush1.msra.mxu0 0.0
        %2084 = vmatprep.subr.mxu0 0.0
        %2085 = vmatpush1.msra.mxu0 0.0
        %2086 = vmatprep.subr.mxu0 0.0
        %2087 = vmatpush1.msra.mxu0 0.0
        %2088 = vmatprep.subr.mxu0 0.0
        %2089 = vmatpush1.msra.mxu0 0.0
        %2090 = vmatprep.subr.mxu0 0.0
        %2091 = vmatpush1.msra.mxu0 0.0
        %2092 = vmatprep.subr.mxu0 0.0
        %2093 = vmatpush1.msra.mxu0 0.0
        %2094 = vmatprep.subr.mxu0 0.0
        %2095 = vmatpush1.msra.mxu0 0.0
        %2096 = vmatprep.subr.mxu0 0.0
        %2097 = vmatpush1.msra.mxu0 0.0
        %2098 = vmatprep.subr.mxu0 0.0
        %2099 = vmatpush1.msra.mxu0 0.0
        %2100 = vmatprep.subr.mxu0 0.0
        %2101 = vmatpush1.msra.mxu0 0.0
        %2102 = vmatprep.subr.mxu0 0.0
        %2103 = vmatpush1.msra.mxu0 0.0
        %2104 = vmatprep.subr.mxu0 0.0
        %2105 = vmatpush1.msra.mxu0 0.0
        %2106 = vmatprep.subr.mxu0 0.0
        %2107 = vmatpush1.msra.mxu0 0.0
        %2108 = vmatprep.subr.mxu0 0.0
        %2109 = vmatpush1.msra.mxu0 0.0
        %2110 = vmatprep.subr.mxu0 0.0
        %2111 = vmatpush1.msra.mxu0 0.0
        %2112 = vmatprep.subr.mxu0 0.0
        %2113 = vmatpush1.msra.mxu0 0.0
        %2114 = vmatprep.subr.mxu0 0.0
        %2115 = vmatpush1.msra.mxu0 0.0
        %2116 = vmatprep.subr.mxu0 0.0
        %2117 = vmatpush1.msra.mxu0 0.0
        %2118 = vmatprep.subr.mxu0 0.0
        %2119 = vmatpush1.msra.mxu0 0.0
        %2120 = vmatprep.subr.mxu0 0.0
        %2121 = vmatpush1.msra.mxu0 0.0
        %2122 = vmatprep.subr.mxu0 0.0
        %2123 = vmatpush1.msra.mxu0 0.0
        %2124 = vmatprep.subr.mxu0 0.0
        %2125 = vmatpush1.msra.mxu0 0.0
        %2126 = vmatprep.subr.mxu0 0.0
        %2127 = vmatpush1.msra.mxu0 0.0
        %2128 = vmatprep.subr.mxu0 0.0
        %2129 = vmatpush1.msra.mxu0 0.0
        %2130 = vmatprep.subr.mxu0 0.0
        %2131 = vmatpush1.msra.mxu0 0.0
        %2132 = vmatprep.subr.mxu0 0.0
        %2133 = vmatpush1.msra.mxu0 0.0
        %2134 = vmatprep.subr.mxu0 0.0
        %2135 = vmatpush1.msra.mxu0 0.0
        %2136 = vmatprep.mubr.f32.mxu0 0.0
        %2137 = vmatmul.mubr.f32.gmra.mrb[0].mxu0 %v2066
        %v2138 = vpop.f32.mrb[0].mxu0
        %v2139 = vadd.f32 %v2053, %v2138
        %v2140 = vpop.f32.mrb[0].mxu0
        %2141 = vmatprep.mubr.f32.mxu0 0.0
        %2142 = vmatmul.mubr.f32.gmra.mrb[0].mxu0 %v2068
        %v2143 = vpop.f32.mrb[0].mxu0
        %v2144 = vadd.f32 %v2058, %v2143
        %v2145 = vpop.f32.mrb[0].mxu0
        %2146 = vmatprep.mubr.f32.mxu0 0.0
        %2147 = vmatmul.mubr.f32.gmra.mrb[0].mxu0 %v2070
        %v2148 = vpop.f32.mrb[0].mxu0
        %v2149 = vadd.f32 %v2063, %v2148
        %v2150 = vpop.f32.mrb[0].mxu0
        %2151 = vdwg.mxu0
        %v2152 = vrot.slane %v1362, 2
        %v2153 = vrot.slane %v1363, 2
        %v2154 = vsel %vm871, %v2152, %v2153
        %v2155 = vrot.slane %v1364, 2
        %v2156 = vsel %vm871, %v2153, %v2155
        %v2157 = vsel %vm698, %v2154, 0
        %v2159 = vsel %vm698, %v2156, 0
        %v2161 = vsel %vm698, %v2155, 0
        %2163 = vmatprep.subr.mxu0 0.0
        %2164 = vmatpush1.msra.mxu0 %v1375
        %2165 = vmatprep.subr.mxu0 0.0
        %2166 = vmatpush1.msra.mxu0 %v1376
        %2167 = vmatprep.subr.mxu0 0.0
        %2168 = vmatpush1.msra.mxu0 %v1377
        %2169 = vmatprep.subr.mxu0 0.0
        %2170 = vmatpush1.msra.mxu0 %v1378
        %2171 = vmatprep.subr.mxu0 0.0
        %2172 = vmatpush1.msra.mxu0 0.0
        %2173 = vmatprep.subr.mxu0 0.0
        %2174 = vmatpush1.msra.mxu0 0.0
        %2175 = vmatprep.subr.mxu0 0.0
        %2176 = vmatpush1.msra.mxu0 0.0
        %2177 = vmatprep.subr.mxu0 0.0
        %2178 = vmatpush1.msra.mxu0 0.0
        %2179 = vmatprep.subr.mxu0 0.0
        %2180 = vmatpush1.msra.mxu0 0.0
        %2181 = vmatprep.subr.mxu0 0.0
        %2182 = vmatpush1.msra.mxu0 0.0
        %2183 = vmatprep.subr.mxu0 0.0
        %2184 = vmatpush1.msra.mxu0 0.0
        %2185 = vmatprep.subr.mxu0 0.0
        %2186 = vmatpush1.msra.mxu0 0.0
        %2187 = vmatprep.subr.mxu0 0.0
        %2188 = vmatpush1.msra.mxu0 0.0
        %2189 = vmatprep.subr.mxu0 0.0
        %2190 = vmatpush1.msra.mxu0 0.0
        %2191 = vmatprep.subr.mxu0 0.0
        %2192 = vmatpush1.msra.mxu0 0.0
        %2193 = vmatprep.subr.mxu0 0.0
        %2194 = vmatpush1.msra.mxu0 0.0
        %2195 = vmatprep.subr.mxu0 0.0
        %2196 = vmatpush1.msra.mxu0 0.0
        %2197 = vmatprep.subr.mxu0 0.0
        %2198 = vmatpush1.msra.mxu0 0.0
        %2199 = vmatprep.subr.mxu0 0.0
        %2200 = vmatpush1.msra.mxu0 0.0
        %2201 = vmatprep.subr.mxu0 0.0
        %2202 = vmatpush1.msra.mxu0 0.0
        %2203 = vmatprep.subr.mxu0 0.0
        %2204 = vmatpush1.msra.mxu0 0.0
        %2205 = vmatprep.subr.mxu0 0.0
        %2206 = vmatpush1.msra.mxu0 0.0
        %2207 = vmatprep.subr.mxu0 0.0
        %2208 = vmatpush1.msra.mxu0 0.0
        %2209 = vmatprep.subr.mxu0 0.0
        %2210 = vmatpush1.msra.mxu0 0.0
        %2211 = vmatprep.subr.mxu0 0.0
        %2212 = vmatpush1.msra.mxu0 0.0
        %2213 = vmatprep.subr.mxu0 0.0
        %2214 = vmatpush1.msra.mxu0 0.0
        %2215 = vmatprep.subr.mxu0 0.0
        %2216 = vmatpush1.msra.mxu0 0.0
        %2217 = vmatprep.subr.mxu0 0.0
        %2218 = vmatpush1.msra.mxu0 0.0
        %2219 = vmatprep.subr.mxu0 0.0
        %2220 = vmatpush1.msra.mxu0 0.0
        %2221 = vmatprep.subr.mxu0 0.0
        %2222 = vmatpush1.msra.mxu0 0.0
        %2223 = vmatprep.subr.mxu0 0.0
        %2224 = vmatpush1.msra.mxu0 0.0
        %2225 = vmatprep.subr.mxu0 0.0
        %2226 = vmatpush1.msra.mxu0 0.0
        %2227 = vmatprep.mubr.f32.mxu0 0.0
        %2228 = vmatmul.mubr.f32.gmra.mrb[0].mxu0 %v2157
        %v2229 = vpop.f32.mrb[0].mxu0
        %v2230 = vadd.f32 0.0, %v2229
        %v2231 = vpop.f32.mrb[0].mxu0
        %2232 = vmatprep.mubr.f32.mxu0 0.0
        %2233 = vmatmul.mubr.f32.gmra.mrb[0].mxu0 %v2159
        %v2234 = vpop.f32.mrb[0].mxu0
        %v2235 = vadd.f32 0.0, %v2234
        %v2236 = vpop.f32.mrb[0].mxu0
        %2237 = vmatprep.mubr.f32.mxu0 0.0
        %2238 = vmatmul.mubr.f32.gmra.mrb[0].mxu0 %v2161
        %v2239 = vpop.f32.mrb[0].mxu0
        %v2240 = vadd.f32 0.0, %v2239
        %v2241 = vpop.f32.mrb[0].mxu0
        %2242 = vdwg.mxu0
        %v2243 = vadd.f32 %v2139, %v2230
        %v2244 = vadd.f32 %v2144, %v2235
        %v2245 = vadd.f32 %v2149, %v2240
        %v2246 = vrot.slane %v1362, 3
        %v2247 = vrot.slane %v1363, 3
        %v2248 = vsel %vm1669, %v2246, %v2247
        %v2249 = vrot.slane %v1364, 3
        %v2250 = vsel %vm1669, %v2247, %v2249
        %v2251 = vsel %vm698, %v2248, 0
        %v2253 = vsel %vm698, %v2250, 0
        %v2255 = vsel %vm698, %v2249, 0
        %2257 = vmatprep.subr.mxu0 0.0
        %2258 = vmatpush1.msra.mxu0 %v1380
        %2259 = vmatprep.subr.mxu0 0.0
        %2260 = vmatpush1.msra.mxu0 %v1381
        %2261 = vmatprep.subr.mxu0 0.0
        %2262 = vmatpush1.msra.mxu0 %v1382
        %2263 = vmatprep.subr.mxu0 0.0
        %2264 = vmatpush1.msra.mxu0 %v1383
        %2265 = vmatprep.subr.mxu0 0.0
        %2266 = vmatpush1.msra.mxu0 0.0
        %2267 = vmatprep.subr.mxu0 0.0
        %2268 = vmatpush1.msra.mxu0 0.0
        %2269 = vmatprep.subr.mxu0 0.0
        %2270 = vmatpush1.msra.mxu0 0.0
        %2271 = vmatprep.subr.mxu0 0.0
        %2272 = vmatpush1.msra.mxu0 0.0
        %2273 = vmatprep.subr.mxu0 0.0
        %2274 = vmatpush1.msra.mxu0 0.0
        %2275 = vmatprep.subr.mxu0 0.0
        %2276 = vmatpush1.msra.mxu0 0.0
        %2277 = vmatprep.subr.mxu0 0.0
        %2278 = vmatpush1.msra.mxu0 0.0
        %2279 = vmatprep.subr.mxu0 0.0
        %2280 = vmatpush1.msra.mxu0 0.0
        %2281 = vmatprep.subr.mxu0 0.0
        %2282 = vmatpush1.msra.mxu0 0.0
        %2283 = vmatprep.subr.mxu0 0.0
        %2284 = vmatpush1.msra.mxu0 0.0
        %2285 = vmatprep.subr.mxu0 0.0
        %2286 = vmatpush1.msra.mxu0 0.0
        %2287 = vmatprep.subr.mxu0 0.0
        %2288 = vmatpush1.msra.mxu0 0.0
        %2289 = vmatprep.subr.mxu0 0.0
        %2290 = vmatpush1.msra.mxu0 0.0
        %2291 = vmatprep.subr.mxu0 0.0
        %2292 = vmatpush1.msra.mxu0 0.0
        %2293 = vmatprep.subr.mxu0 0.0
        %2294 = vmatpush1.msra.mxu0 0.0
        %2295 = vmatprep.subr.mxu0 0.0
        %2296 = vmatpush1.msra.mxu0 0.0
        %2297 = vmatprep.subr.mxu0 0.0
        %2298 = vmatpush1.msra.mxu0 0.0
        %2299 = vmatprep.subr.mxu0 0.0
        %2300 = vmatpush1.msra.mxu0 0.0
        %2301 = vmatprep.subr.mxu0 0.0
        %2302 = vmatpush1.msra.mxu0 0.0
        %2303 = vmatprep.subr.mxu0 0.0
        %2304 = vmatpush1.msra.mxu0 0.0
        %2305 = vmatprep.subr.mxu0 0.0
        %2306 = vmatpush1.msra.mxu0 0.0
        %2307 = vmatprep.subr.mxu0 0.0
        %2308 = vmatpush1.msra.mxu0 0.0
        %2309 = vmatprep.subr.mxu0 0.0
        %2310 = vmatpush1.msra.mxu0 0.0
        %2311 = vmatprep.subr.mxu0 0.0
        %2312 = vmatpush1.msra.mxu0 0.0
        %2313 = vmatprep.subr.mxu0 0.0
        %2314 = vmatpush1.msra.mxu0 0.0
        %2315 = vmatprep.subr.mxu0 0.0
        %2316 = vmatpush1.msra.mxu0 0.0
        %2317 = vmatprep.subr.mxu0 0.0
        %2318 = vmatpush1.msra.mxu0 0.0
        %2319 = vmatprep.subr.mxu0 0.0
        %2320 = vmatpush1.msra.mxu0 0.0
        %2321 = vmatprep.mubr.f32.mxu0 0.0
        %2322 = vmatmul.mubr.f32.gmra.mrb[0].mxu0 %v2251
        %v2323 = vpop.f32.mrb[0].mxu0
        %v2324 = vadd.f32 0.0, %v2323
        %v2325 = vpop.f32.mrb[0].mxu0
        %2326 = vmatprep.mubr.f32.mxu0 0.0
        %2327 = vmatmul.mubr.f32.gmra.mrb[0].mxu0 %v2253
        %v2328 = vpop.f32.mrb[0].mxu0
        %v2329 = vadd.f32 0.0, %v2328
        %v2330 = vpop.f32.mrb[0].mxu0
        %2331 = vmatprep.mubr.f32.mxu0 0.0
        %2332 = vmatmul.mubr.f32.gmra.mrb[0].mxu0 %v2255
        %v2333 = vpop.f32.mrb[0].mxu0
        %v2334 = vadd.f32 0.0, %v2333
        %v2335 = vpop.f32.mrb[0].mxu0
        %2336 = vdwg.mxu0
        %v2337 = vadd.f32 %v2243, %v2324
        %v2338 = vadd.f32 %v2244, %v2329
        %v2339 = vadd.f32 %v2245, %v2334
        %v2340 = vrot.slane %v1362, 4
        %v2341 = vrot.slane %v1363, 4
        %v2342 = vsel %vm1764, %v2340, %v2341
        %v2343 = vrot.slane %v1364, 4
        %v2344 = vsel %vm1764, %v2341, %v2343
        %v2345 = vsel %vm698, %v2342, 0
        %v2347 = vsel %vm698, %v2344, 0
        %v2349 = vsel %vm698, %v2343, 0
        %2351 = vmatprep.subr.mxu0 0.0
        %2352 = vmatpush1.msra.mxu0 %v1385
        %2353 = vmatprep.subr.mxu0 0.0
        %2354 = vmatpush1.msra.mxu0 %v1386
        %2355 = vmatprep.subr.mxu0 0.0
        %2356 = vmatpush1.msra.mxu0 %v1387
        %2357 = vmatprep.subr.mxu0 0.0
        %2358 = vmatpush1.msra.mxu0 %v1388
        %2359 = vmatprep.subr.mxu0 0.0
        %2360 = vmatpush1.msra.mxu0 0.0
        %2361 = vmatprep.subr.mxu0 0.0
        %2362 = vmatpush1.msra.mxu0 0.0
        %2363 = vmatprep.subr.mxu0 0.0
        %2364 = vmatpush1.msra.mxu0 0.0
        %2365 = vmatprep.subr.mxu0 0.0
        %2366 = vmatpush1.msra.mxu0 0.0
        %2367 = vmatprep.subr.mxu0 0.0
        %2368 = vmatpush1.msra.mxu0 0.0
        %2369 = vmatprep.subr.mxu0 0.0
        %2370 = vmatpush1.msra.mxu0 0.0
        %2371 = vmatprep.subr.mxu0 0.0
        %2372 = vmatpush1.msra.mxu0 0.0
        %2373 = vmatprep.subr.mxu0 0.0
        %2374 = vmatpush1.msra.mxu0 0.0
        %2375 = vmatprep.subr.mxu0 0.0
        %2376 = vmatpush1.msra.mxu0 0.0
        %2377 = vmatprep.subr.mxu0 0.0
        %2378 = vmatpush1.msra.mxu0 0.0
        %2379 = vmatprep.subr.mxu0 0.0
        %2380 = vmatpush1.msra.mxu0 0.0
        %2381 = vmatprep.subr.mxu0 0.0
        %2382 = vmatpush1.msra.mxu0 0.0
        %2383 = vmatprep.subr.mxu0 0.0
        %2384 = vmatpush1.msra.mxu0 0.0
        %2385 = vmatprep.subr.mxu0 0.0
        %2386 = vmatpush1.msra.mxu0 0.0
        %2387 = vmatprep.subr.mxu0 0.0
        %2388 = vmatpush1.msra.mxu0 0.0
        %2389 = vmatprep.subr.mxu0 0.0
        %2390 = vmatpush1.msra.mxu0 0.0
        %2391 = vmatprep.subr.mxu0 0.0
        %2392 = vmatpush1.msra.mxu0 0.0
        %2393 = vmatprep.subr.mxu0 0.0
        %2394 = vmatpush1.msra.mxu0 0.0
        %2395 = vmatprep.subr.mxu0 0.0
        %2396 = vmatpush1.msra.mxu0 0.0
        %2397 = vmatprep.subr.mxu0 0.0
        %2398 = vmatpush1.msra.mxu0 0.0
        %2399 = vmatprep.subr.mxu0 0.0
        %2400 = vmatpush1.msra.mxu0 0.0
        %2401 = vmatprep.subr.mxu0 0.0
        %2402 = vmatpush1.msra.mxu0 0.0
        %2403 = vmatprep.subr.mxu0 0.0
        %2404 = vmatpush1.msra.mxu0 0.0
        %2405 = vmatprep.subr.mxu0 0.0
        %2406 = vmatpush1.msra.mxu0 0.0
        %2407 = vmatprep.subr.mxu0 0.0
        %2408 = vmatpush1.msra.mxu0 0.0
        %2409 = vmatprep.subr.mxu0 0.0
        %2410 = vmatpush1.msra.mxu0 0.0
        %2411 = vmatprep.subr.mxu0 0.0
        %2412 = vmatpush1.msra.mxu0 0.0
        %2413 = vmatprep.subr.mxu0 0.0
        %2414 = vmatpush1.msra.mxu0 0.0
        %2415 = vmatprep.mubr.f32.mxu0 0.0
        %2416 = vmatmul.mubr.f32.gmra.mrb[0].mxu0 %v2345
        %v2417 = vpop.f32.mrb[0].mxu0
        %v2418 = vadd.f32 0.0, %v2417
        %v2419 = vpop.f32.mrb[0].mxu0
        %2420 = vmatprep.mubr.f32.mxu0 0.0
        %2421 = vmatmul.mubr.f32.gmra.mrb[0].mxu0 %v2347
        %v2422 = vpop.f32.mrb[0].mxu0
        %v2423 = vadd.f32 0.0, %v2422
        %v2424 = vpop.f32.mrb[0].mxu0
        %2425 = vmatprep.mubr.f32.mxu0 0.0
        %2426 = vmatmul.mubr.f32.gmra.mrb[0].mxu0 %v2349
        %v2427 = vpop.f32.mrb[0].mxu0
        %v2428 = vadd.f32 0.0, %v2427
        %v2429 = vpop.f32.mrb[0].mxu0
        %2430 = vdwg.mxu0
        %v2431 = vadd.f32 %v2337, %v2418
        %v2432 = vadd.f32 %v2338, %v2423
        %v2433 = vadd.f32 %v2339, %v2428
        %v2434 = vrot.slane %v1362, 5
        %v2435 = vrot.slane %v1363, 5
        %v2436 = vsel %vm1859, %v2434, %v2435
        %v2437 = vrot.slane %v1364, 5
        %v2438 = vsel %vm1859, %v2435, %v2437
        %v2439 = vsel %vm698, %v2436, 0
        %v2441 = vsel %vm698, %v2438, 0
        %v2443 = vsel %vm698, %v2437, 0
        %2445 = vmatprep.subr.mxu0 0.0
        %2446 = vmatpush1.msra.mxu0 %v1390
        %2447 = vmatprep.subr.mxu0 0.0
        %2448 = vmatpush1.msra.mxu0 %v1391
        %2449 = vmatprep.subr.mxu0 0.0
        %2450 = vmatpush1.msra.mxu0 %v1392
        %2451 = vmatprep.subr.mxu0 0.0
        %2452 = vmatpush1.msra.mxu0 %v1393
        %2453 = vmatprep.subr.mxu0 0.0
        %2454 = vmatpush1.msra.mxu0 0.0
        %2455 = vmatprep.subr.mxu0 0.0
        %2456 = vmatpush1.msra.mxu0 0.0
        %2457 = vmatprep.subr.mxu0 0.0
        %2458 = vmatpush1.msra.mxu0 0.0
        %2459 = vmatprep.subr.mxu0 0.0
        %2460 = vmatpush1.msra.mxu0 0.0
        %2461 = vmatprep.subr.mxu0 0.0
        %2462 = vmatpush1.msra.mxu0 0.0
        %2463 = vmatprep.subr.mxu0 0.0
        %2464 = vmatpush1.msra.mxu0 0.0
        %2465 = vmatprep.subr.mxu0 0.0
        %2466 = vmatpush1.msra.mxu0 0.0
        %2467 = vmatprep.subr.mxu0 0.0
        %2468 = vmatpush1.msra.mxu0 0.0
        %2469 = vmatprep.subr.mxu0 0.0
        %2470 = vmatpush1.msra.mxu0 0.0
        %2471 = vmatprep.subr.mxu0 0.0
        %2472 = vmatpush1.msra.mxu0 0.0
        %2473 = vmatprep.subr.mxu0 0.0
        %2474 = vmatpush1.msra.mxu0 0.0
        %2475 = vmatprep.subr.mxu0 0.0
        %2476 = vmatpush1.msra.mxu0 0.0
        %2477 = vmatprep.subr.mxu0 0.0
        %2478 = vmatpush1.msra.mxu0 0.0
        %2479 = vmatprep.subr.mxu0 0.0
        %2480 = vmatpush1.msra.mxu0 0.0
        %2481 = vmatprep.subr.mxu0 0.0
        %2482 = vmatpush1.msra.mxu0 0.0
        %2483 = vmatprep.subr.mxu0 0.0
        %2484 = vmatpush1.msra.mxu0 0.0
        %2485 = vmatprep.subr.mxu0 0.0
        %2486 = vmatpush1.msra.mxu0 0.0
        %2487 = vmatprep.subr.mxu0 0.0
        %2488 = vmatpush1.msra.mxu0 0.0
        %2489 = vmatprep.subr.mxu0 0.0
        %2490 = vmatpush1.msra.mxu0 0.0
        %2491 = vmatprep.subr.mxu0 0.0
        %2492 = vmatpush1.msra.mxu0 0.0
        %2493 = vmatprep.subr.mxu0 0.0
        %2494 = vmatpush1.msra.mxu0 0.0
        %2495 = vmatprep.subr.mxu0 0.0
        %2496 = vmatpush1.msra.mxu0 0.0
        %2497 = vmatprep.subr.mxu0 0.0
        %2498 = vmatpush1.msra.mxu0 0.0
        %2499 = vmatprep.subr.mxu0 0.0
        %2500 = vmatpush1.msra.mxu0 0.0
        %2501 = vmatprep.subr.mxu0 0.0
        %2502 = vmatpush1.msra.mxu0 0.0
        %2503 = vmatprep.subr.mxu0 0.0
        %2504 = vmatpush1.msra.mxu0 0.0
        %2505 = vmatprep.subr.mxu0 0.0
        %2506 = vmatpush1.msra.mxu0 0.0
        %2507 = vmatprep.subr.mxu0 0.0
        %2508 = vmatpush1.msra.mxu0 0.0
        %2509 = vmatprep.mubr.f32.mxu0 0.0
        %2510 = vmatmul.mubr.f32.gmra.mrb[0].mxu0 %v2439
        %v2511 = vpop.f32.mrb[0].mxu0
        %v2512 = vadd.f32 0.0, %v2511
        %v2513 = vpop.f32.mrb[0].mxu0
        %2514 = vmatprep.mubr.f32.mxu0 0.0
        %2515 = vmatmul.mubr.f32.gmra.mrb[0].mxu0 %v2441
        %v2516 = vpop.f32.mrb[0].mxu0
        %v2517 = vadd.f32 0.0, %v2516
        %v2518 = vpop.f32.mrb[0].mxu0
        %2519 = vmatprep.mubr.f32.mxu0 0.0
        %2520 = vmatmul.mubr.f32.gmra.mrb[0].mxu0 %v2443
        %v2521 = vpop.f32.mrb[0].mxu0
        %v2522 = vadd.f32 0.0, %v2521
        %v2523 = vpop.f32.mrb[0].mxu0
        %2524 = vdwg.mxu0
        %v2525 = vadd.f32 %v2431, %v2512
        %v2526 = vadd.f32 %v2432, %v2517
        %v2527 = vadd.f32 %v2433, %v2522
        %v2528 = vadd.f32 %v2525, %v1958
        %v2529 = vadd.f32 %v2526, %v1958
        %v2530 = vadd.f32 %v2527, %v1958
        %vm2531 = vcmp.ge.f32.partialorder %v2528, 0.0
        %vm2532 = vcmp.ge.f32.partialorder %v2529, 0.0
        %vm2533 = vcmp.ge.f32.partialorder %v2530, 0.0
        %v2534 = vmul.f32 %v2528, 0.01
        %v2535 = vmul.f32 %v2529, 0.01
        %v2536 = vmul.f32 %v2530, 0.01
        %v2537 = vsel %vm2531, %v2528, %v2534
        %v2538 = vsel %vm2532, %v2529, %v2535
        %v2539 = vsel %vm2533, %v2530, %v2536
        %v2540 = vsel %vm698, %v1969, 0.0
        %v2541 = vsel %vm698, %v1970, 0.0
        %v2542 = vadd.f32 %v2540, %v2541
        %vm2543 = vcmask 253952
        %v2544 = vsel %vm2543, %v1971, 0.0
        %v2545 = vadd.f32 %v2542, %v2544
        %v2546 = vrot.slane %v2545, 4
        %v2547 = vadd.f32 %v2545, %v2546
        %v2548 = vrot.slane %v2547, 2
        %v2549 = vadd.f32 %v2547, %v2548
        %v2550 = vrot.slane %v2549, 1
        %v2551 = vadd.f32 %v2549, %v2550
        %v2552 = vadd.f32 %v2551, 0.0
        %v2553 = vsel %vm698, %v2537, 0.0
        %v2554 = vsel %vm698, %v2538, 0.0
        %v2555 = vadd.f32 %v2553, %v2554
        %v2556 = vsel %vm2543, %v2539, 0.0
        %v2557 = vadd.f32 %v2555, %v2556
        %v2558 = vrot.slane %v2557, 4
        %v2559 = vadd.f32 %v2557, %v2558
        %v2560 = vrot.slane %v2559, 2
        %v2561 = vadd.f32 %v2559, %v2560
        %v2562 = vrot.slane %v2561, 1
        %v2563 = vadd.f32 %v2561, %v2562
        %v2564 = vadd.f32 %v2552, %v2563
        %v2565 = vrcp.pop 34.0
        %v2566 = vmul.f32 %v2564, %v2565
        %v2567 = vsub.f32 %v1969, %v2566
        %v2568 = vsub.f32 %v1970, %v2566
        %v2569 = vsub.f32 %v1971, %v2566
        %v2570 = vmul.f32 %v2567, %v2567
        %v2571 = vmul.f32 %v2568, %v2568
        %v2572 = vmul.f32 %v2569, %v2569
        %v2573 = vsel %vm698, %v2570, 0.0
        %v2574 = vsel %vm698, %v2571, 0.0
        %v2575 = vadd.f32 %v2573, %v2574
        %v2576 = vsel %vm2543, %v2572, 0.0
        %v2577 = vadd.f32 %v2575, %v2576
        %v2578 = vrot.slane %v2577, 4
        %v2579 = vadd.f32 %v2577, %v2578
        %v2580 = vrot.slane %v2579, 2
        %v2581 = vadd.f32 %v2579, %v2580
        %v2582 = vrot.slane %v2581, 1
        %v2583 = vadd.f32 %v2581, %v2582
        %v2584 = vadd.f32 %v2583, 0.0
        %v2585 = vsub.f32 %v2537, %v2566
        %v2586 = vsub.f32 %v2538, %v2566
        %v2587 = vsub.f32 %v2539, %v2566
        %v2588 = vmul.f32 %v2585, %v2585
        %v2589 = vmul.f32 %v2586, %v2586
        %v2590 = vmul.f32 %v2587, %v2587
        %v2591 = vsel %vm698, %v2588, 0.0
        %v2592 = vsel %vm698, %v2589, 0.0
        %v2593 = vadd.f32 %v2591, %v2592
        %v2594 = vsel %vm2543, %v2590, 0.0
        %v2595 = vadd.f32 %v2593, %v2594
        %v2596 = vrot.slane %v2595, 4
        %v2597 = vadd.f32 %v2595, %v2596
        %v2598 = vrot.slane %v2597, 2
        %v2599 = vadd.f32 %v2597, %v2598
        %v2600 = vrot.slane %v2599, 1
        %v2601 = vadd.f32 %v2599, %v2600
        %v2602 = vadd.f32 %v2584, %v2601
        %v2603 = vmul.f32 %v2602, %v2565
        %v2604 = vld [vmem:[%s649] sm:$0x1]
        %v2605 = vadd.f32 %v2603, 1e-05
        %v2606 = vrsqrt.pop %v2605
        %v2607 = vmul.f32 %v2604, %v2606
        %v2608 = vld [vmem:[%s652] sm:$0x1]
        %v2609 = vmul.f32 %v2566, %v2607
        %v2610 = vsub.f32 %v2608, %v2609
        %v2612 = vlaneseq
        %v2613 = vshrl.u32 %v2612, 7
        %v2614 = vsub.s32 0, %v2613
        %v2615 = vrot.slane %v2607, %v2614
        %v2617 = vmul.f32 %v1969, %v2615
        %v2618 = vmul.f32 %v1970, %v2615
        %v2619 = vmul.f32 %v1971, %v2615
        %v2621 = vlaneseq
        %v2622 = vshrl.u32 %v2621, 7
        %v2623 = vsub.s32 0, %v2622
        %v2624 = vrot.slane %v2610, %v2623
        %v2626 = vadd.f32 %v2617, %v2624
        %v2627 = vadd.f32 %v2618, %v2624
        %v2628 = vadd.f32 %v2619, %v2624
        %v2629 = vmul.f32 %v2537, %v2615
        %v2630 = vmul.f32 %v2538, %v2615
        %v2631 = vmul.f32 %v2539, %v2615
        %v2632 = vadd.f32 %v2629, %v2624
        %v2633 = vadd.f32 %v2630, %v2624
        %v2634 = vadd.f32 %v2631, %v2624
        %v2635 = vld [vmem:[%s540] sm:$0xff]
        %v2636 = vld [vmem:[%s540 + $0x8] sm:$0xff]
        %v2637 = vld [vmem:[%s540 + $0x10] sm:$0xff]
        %v2638 = vld [vmem:[%s540 + $0x18] sm:$0xff]
        %s2639 = scalar_lea.vmem %s540, 32 [#allocation4]
        %v2640 = vld [vmem:[%s2639] sm:$0xff]
        %v2641 = vld [vmem:[%s2639 + $0x8] sm:$0xff]
        %v2642 = vld [vmem:[%s2639 + $0x10] sm:$0xff]
        %v2643 = vld [vmem:[%s2639 + $0x18] sm:$0xff]
        %s2644 = scalar_lea.vmem %s540, 64 [#allocation4]
        %v2645 = vld [vmem:[%s2644] sm:$0xff]
        %v2646 = vld [vmem:[%s2644 + $0x8] sm:$0xff]
        %v2647 = vld [vmem:[%s2644 + $0x10] sm:$0xff]
        %v2648 = vld [vmem:[%s2644 + $0x18] sm:$0xff]
        %s2649 = scalar_lea.vmem %s540, 96 [#allocation4]
        %v2650 = vld [vmem:[%s2649] sm:$0xff]
        %v2651 = vld [vmem:[%s2649 + $0x8] sm:$0xff]
        %v2652 = vld [vmem:[%s2649 + $0x10] sm:$0xff]
        %v2653 = vld [vmem:[%s2649 + $0x18] sm:$0xff]
        %s2654 = scalar_lea.vmem %s540, 128 [#allocation4]
        %v2655 = vld [vmem:[%s2654] sm:$0xff]
        %v2656 = vld [vmem:[%s2654 + $0x8] sm:$0xff]
        %v2657 = vld [vmem:[%s2654 + $0x10] sm:$0xff]
        %v2658 = vld [vmem:[%s2654 + $0x18] sm:$0xff]
        %s2659 = scalar_lea.vmem %s540, 160 [#allocation4]
        %v2660 = vld [vmem:[%s2659] sm:$0xff]
        %v2661 = vld [vmem:[%s2659 + $0x8] sm:$0xff]
        %v2662 = vld [vmem:[%s2659 + $0x10] sm:$0xff]
        %v2663 = vld [vmem:[%s2659 + $0x18] sm:$0xff]
        %s2664 = scalar_lea.vmem %s540, 192 [#allocation4]
        %v2665 = vld [vmem:[%s2664] sm:$0xff]
        %v2666 = vld [vmem:[%s2664 + $0x8] sm:$0xff]
        %v2667 = vld [vmem:[%s2664 + $0x10] sm:$0xff]
        %v2668 = vld [vmem:[%s2664 + $0x18] sm:$0xff]
        %s2669 = scalar_lea.vmem %s540, 224 [#allocation4]
        %v2670 = vld [vmem:[%s2669] sm:$0xff]
        %v2671 = vld [vmem:[%s2669 + $0x8] sm:$0xff]
        %v2672 = vld [vmem:[%s2669 + $0x10] sm:$0xff]
        %v2673 = vld [vmem:[%s2669 + $0x18] sm:$0xff]
        %s2674 = scalar_lea.vmem %s540, 256 [#allocation4]
        %v2675 = vld [vmem:[%s2674] sm:$0xff]
        %v2676 = vld [vmem:[%s2674 + $0x8] sm:$0xff]
        %v2677 = vld [vmem:[%s2674 + $0x10] sm:$0xff]
        %v2678 = vld [vmem:[%s2674 + $0x18] sm:$0xff]
        %v2679 = vld [vmem:[%s655] sm:$0x1]
        %v2682 = vrot.slane %v2626, 1
        %v2683 = vrot.slane %v2627, 1
        %v2684 = vsel %vm692, %v2682, %v2683
        %v2685 = vsel %vm698, %v2684, 0
        %v2687 = vsel %vm698, %v2683, 0
        %2689 = vmatprep.subr.mxu0 0.0
        %2690 = vmatpush1.msra.mxu0 %v2640
        %2691 = vmatprep.subr.mxu0 0.0
        %2692 = vmatpush1.msra.mxu0 %v2641
        %2693 = vmatprep.subr.mxu0 0.0
        %2694 = vmatpush1.msra.mxu0 %v2642
        %2695 = vmatprep.subr.mxu0 0.0
        %2696 = vmatpush1.msra.mxu0 %v2643
        %2697 = vmatprep.subr.mxu0 0.0
        %2698 = vmatpush1.msra.mxu0 0.0
        %2699 = vmatprep.subr.mxu0 0.0
        %2700 = vmatpush1.msra.mxu0 0.0
        %2701 = vmatprep.subr.mxu0 0.0
        %2702 = vmatpush1.msra.mxu0 0.0
        %2703 = vmatprep.subr.mxu0 0.0
        %2704 = vmatpush1.msra.mxu0 0.0
        %2705 = vmatprep.subr.mxu0 0.0
        %2706 = vmatpush1.msra.mxu0 0.0
        %2707 = vmatprep.subr.mxu0 0.0
        %2708 = vmatpush1.msra.mxu0 0.0
        %2709 = vmatprep.subr.mxu0 0.0
        %2710 = vmatpush1.msra.mxu0 0.0
        %2711 = vmatprep.subr.mxu0 0.0
        %2712 = vmatpush1.msra.mxu0 0.0
        %2713 = vmatprep.subr.mxu0 0.0
        %2714 = vmatpush1.msra.mxu0 0.0
        %2715 = vmatprep.subr.mxu0 0.0
        %2716 = vmatpush1.msra.mxu0 0.0
        %2717 = vmatprep.subr.mxu0 0.0
        %2718 = vmatpush1.msra.mxu0 0.0
        %2719 = vmatprep.subr.mxu0 0.0
        %2720 = vmatpush1.msra.mxu0 0.0
        %2721 = vmatprep.subr.mxu0 0.0
        %2722 = vmatpush1.msra.mxu0 0.0
        %2723 = vmatprep.subr.mxu0 0.0
        %2724 = vmatpush1.msra.mxu0 0.0
        %2725 = vmatprep.subr.mxu0 0.0
        %2726 = vmatpush1.msra.mxu0 0.0
        %2727 = vmatprep.subr.mxu0 0.0
        %2728 = vmatpush1.msra.mxu0 0.0
        %2729 = vmatprep.subr.mxu0 0.0
        %2730 = vmatpush1.msra.mxu0 0.0
        %2731 = vmatprep.subr.mxu0 0.0
        %2732 = vmatpush1.msra.mxu0 0.0
        %2733 = vmatprep.subr.mxu0 0.0
        %2734 = vmatpush1.msra.mxu0 0.0
        %2735 = vmatprep.subr.mxu0 0.0
        %2736 = vmatpush1.msra.mxu0 0.0
        %2737 = vmatprep.subr.mxu0 0.0
        %2738 = vmatpush1.msra.mxu0 0.0
        %2739 = vmatprep.subr.mxu0 0.0
        %2740 = vmatpush1.msra.mxu0 0.0
        %2741 = vmatprep.subr.mxu0 0.0
        %2742 = vmatpush1.msra.mxu0 0.0
        %2743 = vmatprep.subr.mxu0 0.0
        %2744 = vmatpush1.msra.mxu0 0.0
        %2745 = vmatprep.subr.mxu0 0.0
        %2746 = vmatpush1.msra.mxu0 0.0
        %2747 = vmatprep.subr.mxu0 0.0
        %2748 = vmatpush1.msra.mxu0 0.0
        %2749 = vmatprep.subr.mxu0 0.0
        %2750 = vmatpush1.msra.mxu0 0.0
        %2751 = vmatprep.subr.mxu0 0.0
        %2752 = vmatpush1.msra.mxu0 0.0
        %2753 = vmatprep.mubr.f32.mxu0 0.0
        %2754 = vmatmul.mubr.f32.gmra.mrb[0].mxu0 %v2685
        %v2755 = vpop.f32.mrb[0].mxu0
        %v2756 = vadd.f32 0.0, %v2755
        %v2757 = vpop.f32.mrb[0].mxu0
        %2758 = vmatprep.mubr.f32.mxu0 0.0
        %2759 = vmatmul.mubr.f32.gmra.mrb[0].mxu0 %v2687
        %v2760 = vpop.f32.mrb[0].mxu0
        %v2761 = vadd.f32 0.0, %v2760
        %v2762 = vpop.f32.mrb[0].mxu0
        %2763 = vdwg.mxu0
        %v2764 = vsel %vm698, %v2626, 0
        %v2766 = vsel %vm698, %v2627, 0
        %2768 = vmatprep.subr.mxu0 0.0
        %2769 = vmatpush1.msra.mxu0 %v2635
        %2770 = vmatprep.subr.mxu0 0.0
        %2771 = vmatpush1.msra.mxu0 %v2636
        %2772 = vmatprep.subr.mxu0 0.0
        %2773 = vmatpush1.msra.mxu0 %v2637
        %2774 = vmatprep.subr.mxu0 0.0
        %2775 = vmatpush1.msra.mxu0 %v2638
        %2776 = vmatprep.subr.mxu0 0.0
        %2777 = vmatpush1.msra.mxu0 0.0
        %2778 = vmatprep.subr.mxu0 0.0
        %2779 = vmatpush1.msra.mxu0 0.0
        %2780 = vmatprep.subr.mxu0 0.0
        %2781 = vmatpush1.msra.mxu0 0.0
        %2782 = vmatprep.subr.mxu0 0.0
        %2783 = vmatpush1.msra.mxu0 0.0
        %2784 = vmatprep.subr.mxu0 0.0
        %2785 = vmatpush1.msra.mxu0 0.0
        %2786 = vmatprep.subr.mxu0 0.0
        %2787 = vmatpush1.msra.mxu0 0.0
        %2788 = vmatprep.subr.mxu0 0.0
        %2789 = vmatpush1.msra.mxu0 0.0
        %2790 = vmatprep.subr.mxu0 0.0
        %2791 = vmatpush1.msra.mxu0 0.0
        %2792 = vmatprep.subr.mxu0 0.0
        %2793 = vmatpush1.msra.mxu0 0.0
        %2794 = vmatprep.subr.mxu0 0.0
        %2795 = vmatpush1.msra.mxu0 0.0
        %2796 = vmatprep.subr.mxu0 0.0
        %2797 = vmatpush1.msra.mxu0 0.0
        %2798 = vmatprep.subr.mxu0 0.0
        %2799 = vmatpush1.msra.mxu0 0.0
        %2800 = vmatprep.subr.mxu0 0.0
        %2801 = vmatpush1.msra.mxu0 0.0
        %2802 = vmatprep.subr.mxu0 0.0
        %2803 = vmatpush1.msra.mxu0 0.0
        %2804 = vmatprep.subr.mxu0 0.0
        %2805 = vmatpush1.msra.mxu0 0.0
        %2806 = vmatprep.subr.mxu0 0.0
        %2807 = vmatpush1.msra.mxu0 0.0
        %2808 = vmatprep.subr.mxu0 0.0
        %2809 = vmatpush1.msra.mxu0 0.0
        %2810 = vmatprep.subr.mxu0 0.0
        %2811 = vmatpush1.msra.mxu0 0.0
        %2812 = vmatprep.subr.mxu0 0.0
        %2813 = vmatpush1.msra.mxu0 0.0
        %2814 = vmatprep.subr.mxu0 0.0
        %2815 = vmatpush1.msra.mxu0 0.0
        %2816 = vmatprep.subr.mxu0 0.0
        %2817 = vmatpush1.msra.mxu0 0.0
        %2818 = vmatprep.subr.mxu0 0.0
        %2819 = vmatpush1.msra.mxu0 0.0
        %2820 = vmatprep.subr.mxu0 0.0
        %2821 = vmatpush1.msra.mxu0 0.0
        %2822 = vmatprep.subr.mxu0 0.0
        %2823 = vmatpush1.msra.mxu0 0.0
        %2824 = vmatprep.subr.mxu0 0.0
        %2825 = vmatpush1.msra.mxu0 0.0
        %2826 = vmatprep.subr.mxu0 0.0
        %2827 = vmatpush1.msra.mxu0 0.0
        %2828 = vmatprep.subr.mxu0 0.0
        %2829 = vmatpush1.msra.mxu0 0.0
        %2830 = vmatprep.subr.mxu0 0.0
        %2831 = vmatpush1.msra.mxu0 0.0
        %2832 = vmatprep.mubr.f32.mxu0 0.0
        %2833 = vmatmul.mubr.f32.gmra.mrb[0].mxu0 %v2764
        %v2834 = vpop.f32.mrb[0].mxu0
        %v2835 = vadd.f32 %v2756, %v2834
        %v2836 = vpop.f32.mrb[0].mxu0
        %2837 = vmatprep.mubr.f32.mxu0 0.0
        %2838 = vmatmul.mubr.f32.gmra.mrb[0].mxu0 %v2766
        %v2839 = vpop.f32.mrb[0].mxu0
        %v2840 = vadd.f32 %v2761, %v2839
        %v2841 = vpop.f32.mrb[0].mxu0
        %2842 = vdwg.mxu0
        %v2843 = vrot.slane %v2626, 2
        %v2844 = vrot.slane %v2627, 2
        %v2845 = vsel %vm871, %v2843, %v2844
        %v2846 = vsel %vm698, %v2845, 0
        %v2848 = vsel %vm698, %v2844, 0
        %2850 = vmatprep.subr.mxu0 0.0
        %2851 = vmatpush1.msra.mxu0 %v2645
        %2852 = vmatprep.subr.mxu0 0.0
        %2853 = vmatpush1.msra.mxu0 %v2646
        %2854 = vmatprep.subr.mxu0 0.0
        %2855 = vmatpush1.msra.mxu0 %v2647
        %2856 = vmatprep.subr.mxu0 0.0
        %2857 = vmatpush1.msra.mxu0 %v2648
        %2858 = vmatprep.subr.mxu0 0.0
        %2859 = vmatpush1.msra.mxu0 0.0
        %2860 = vmatprep.subr.mxu0 0.0
        %2861 = vmatpush1.msra.mxu0 0.0
        %2862 = vmatprep.subr.mxu0 0.0
        %2863 = vmatpush1.msra.mxu0 0.0
        %2864 = vmatprep.subr.mxu0 0.0
        %2865 = vmatpush1.msra.mxu0 0.0
        %2866 = vmatprep.subr.mxu0 0.0
        %2867 = vmatpush1.msra.mxu0 0.0
        %2868 = vmatprep.subr.mxu0 0.0
        %2869 = vmatpush1.msra.mxu0 0.0
        %2870 = vmatprep.subr.mxu0 0.0
        %2871 = vmatpush1.msra.mxu0 0.0
        %2872 = vmatprep.subr.mxu0 0.0
        %2873 = vmatpush1.msra.mxu0 0.0
        %2874 = vmatprep.subr.mxu0 0.0
        %2875 = vmatpush1.msra.mxu0 0.0
        %2876 = vmatprep.subr.mxu0 0.0
        %2877 = vmatpush1.msra.mxu0 0.0
        %2878 = vmatprep.subr.mxu0 0.0
        %2879 = vmatpush1.msra.mxu0 0.0
        %2880 = vmatprep.subr.mxu0 0.0
        %2881 = vmatpush1.msra.mxu0 0.0
        %2882 = vmatprep.subr.mxu0 0.0
        %2883 = vmatpush1.msra.mxu0 0.0
        %2884 = vmatprep.subr.mxu0 0.0
        %2885 = vmatpush1.msra.mxu0 0.0
        %2886 = vmatprep.subr.mxu0 0.0
        %2887 = vmatpush1.msra.mxu0 0.0
        %2888 = vmatprep.subr.mxu0 0.0
        %2889 = vmatpush1.msra.mxu0 0.0
        %2890 = vmatprep.subr.mxu0 0.0
        %2891 = vmatpush1.msra.mxu0 0.0
        %2892 = vmatprep.subr.mxu0 0.0
        %2893 = vmatpush1.msra.mxu0 0.0
        %2894 = vmatprep.subr.mxu0 0.0
        %2895 = vmatpush1.msra.mxu0 0.0
        %2896 = vmatprep.subr.mxu0 0.0
        %2897 = vmatpush1.msra.mxu0 0.0
        %2898 = vmatprep.subr.mxu0 0.0
        %2899 = vmatpush1.msra.mxu0 0.0
        %2900 = vmatprep.subr.mxu0 0.0
        %2901 = vmatpush1.msra.mxu0 0.0
        %2902 = vmatprep.subr.mxu0 0.0
        %2903 = vmatpush1.msra.mxu0 0.0
        %2904 = vmatprep.subr.mxu0 0.0
        %2905 = vmatpush1.msra.mxu0 0.0
        %2906 = vmatprep.subr.mxu0 0.0
        %2907 = vmatpush1.msra.mxu0 0.0
        %2908 = vmatprep.subr.mxu0 0.0
        %2909 = vmatpush1.msra.mxu0 0.0
        %2910 = vmatprep.subr.mxu0 0.0
        %2911 = vmatpush1.msra.mxu0 0.0
        %2912 = vmatprep.subr.mxu0 0.0
        %2913 = vmatpush1.msra.mxu0 0.0
        %2914 = vmatprep.mubr.f32.mxu0 0.0
        %2915 = vmatmul.mubr.f32.gmra.mrb[0].mxu0 %v2846
        %v2916 = vpop.f32.mrb[0].mxu0
        %v2917 = vadd.f32 0.0, %v2916
        %v2918 = vpop.f32.mrb[0].mxu0
        %2919 = vmatprep.mubr.f32.mxu0 0.0
        %2920 = vmatmul.mubr.f32.gmra.mrb[0].mxu0 %v2848
        %v2921 = vpop.f32.mrb[0].mxu0
        %v2922 = vadd.f32 0.0, %v2921
        %v2923 = vpop.f32.mrb[0].mxu0
        %2924 = vdwg.mxu0
        %v2925 = vadd.f32 %v2835, %v2917
        %v2926 = vadd.f32 %v2840, %v2922
        %v2927 = vrot.slane %v2626, 3
        %v2928 = vrot.slane %v2627, 3
        %v2929 = vsel %vm1669, %v2927, %v2928
        %v2930 = vsel %vm698, %v2929, 0
        %v2932 = vsel %vm698, %v2928, 0
        %2934 = vmatprep.subr.mxu0 0.0
        %2935 = vmatpush1.msra.mxu0 %v2650
        %2936 = vmatprep.subr.mxu0 0.0
        %2937 = vmatpush1.msra.mxu0 %v2651
        %2938 = vmatprep.subr.mxu0 0.0
        %2939 = vmatpush1.msra.mxu0 %v2652
        %2940 = vmatprep.subr.mxu0 0.0
        %2941 = vmatpush1.msra.mxu0 %v2653
        %2942 = vmatprep.subr.mxu0 0.0
        %2943 = vmatpush1.msra.mxu0 0.0
        %2944 = vmatprep.subr.mxu0 0.0
        %2945 = vmatpush1.msra.mxu0 0.0
        %2946 = vmatprep.subr.mxu0 0.0
        %2947 = vmatpush1.msra.mxu0 0.0
        %2948 = vmatprep.subr.mxu0 0.0
        %2949 = vmatpush1.msra.mxu0 0.0
        %2950 = vmatprep.subr.mxu0 0.0
        %2951 = vmatpush1.msra.mxu0 0.0
        %2952 = vmatprep.subr.mxu0 0.0
        %2953 = vmatpush1.msra.mxu0 0.0
        %2954 = vmatprep.subr.mxu0 0.0
        %2955 = vmatpush1.msra.mxu0 0.0
        %2956 = vmatprep.subr.mxu0 0.0
        %2957 = vmatpush1.msra.mxu0 0.0
        %2958 = vmatprep.subr.mxu0 0.0
        %2959 = vmatpush1.msra.mxu0 0.0
        %2960 = vmatprep.subr.mxu0 0.0
        %2961 = vmatpush1.msra.mxu0 0.0
        %2962 = vmatprep.subr.mxu0 0.0
        %2963 = vmatpush1.msra.mxu0 0.0
        %2964 = vmatprep.subr.mxu0 0.0
        %2965 = vmatpush1.msra.mxu0 0.0
        %2966 = vmatprep.subr.mxu0 0.0
        %2967 = vmatpush1.msra.mxu0 0.0
        %2968 = vmatprep.subr.mxu0 0.0
        %2969 = vmatpush1.msra.mxu0 0.0
        %2970 = vmatprep.subr.mxu0 0.0
        %2971 = vmatpush1.msra.mxu0 0.0
        %2972 = vmatprep.subr.mxu0 0.0
        %2973 = vmatpush1.msra.mxu0 0.0
        %2974 = vmatprep.subr.mxu0 0.0
        %2975 = vmatpush1.msra.mxu0 0.0
        %2976 = vmatprep.subr.mxu0 0.0
        %2977 = vmatpush1.msra.mxu0 0.0
        %2978 = vmatprep.subr.mxu0 0.0
        %2979 = vmatpush1.msra.mxu0 0.0
        %2980 = vmatprep.subr.mxu0 0.0
        %2981 = vmatpush1.msra.mxu0 0.0
        %2982 = vmatprep.subr.mxu0 0.0
        %2983 = vmatpush1.msra.mxu0 0.0
        %2984 = vmatprep.subr.mxu0 0.0
        %2985 = vmatpush1.msra.mxu0 0.0
        %2986 = vmatprep.subr.mxu0 0.0
        %2987 = vmatpush1.msra.mxu0 0.0
        %2988 = vmatprep.subr.mxu0 0.0
        %2989 = vmatpush1.msra.mxu0 0.0
        %2990 = vmatprep.subr.mxu0 0.0
        %2991 = vmatpush1.msra.mxu0 0.0
        %2992 = vmatprep.subr.mxu0 0.0
        %2993 = vmatpush1.msra.mxu0 0.0
        %2994 = vmatprep.subr.mxu0 0.0
        %2995 = vmatpush1.msra.mxu0 0.0
        %2996 = vmatprep.subr.mxu0 0.0
        %2997 = vmatpush1.msra.mxu0 0.0
        %2998 = vmatprep.mubr.f32.mxu0 0.0
        %2999 = vmatmul.mubr.f32.gmra.mrb[0].mxu0 %v2930
        %v3000 = vpop.f32.mrb[0].mxu0
        %v3001 = vadd.f32 0.0, %v3000
        %v3002 = vpop.f32.mrb[0].mxu0
        %3003 = vmatprep.mubr.f32.mxu0 0.0
        %3004 = vmatmul.mubr.f32.gmra.mrb[0].mxu0 %v2932
        %v3005 = vpop.f32.mrb[0].mxu0
        %v3006 = vadd.f32 0.0, %v3005
        %v3007 = vpop.f32.mrb[0].mxu0
        %3008 = vdwg.mxu0
        %v3009 = vadd.f32 %v2925, %v3001
        %v3010 = vadd.f32 %v2926, %v3006
        %v3011 = vrot.slane %v2626, 4
        %v3012 = vrot.slane %v2627, 4
        %v3013 = vsel %vm1764, %v3011, %v3012
        %v3014 = vsel %vm698, %v3013, 0
        %v3016 = vsel %vm698, %v3012, 0
        %3018 = vmatprep.subr.mxu0 0.0
        %3019 = vmatpush1.msra.mxu0 %v2655
        %3020 = vmatprep.subr.mxu0 0.0
        %3021 = vmatpush1.msra.mxu0 %v2656
        %3022 = vmatprep.subr.mxu0 0.0
        %3023 = vmatpush1.msra.mxu0 %v2657
        %3024 = vmatprep.subr.mxu0 0.0
        %3025 = vmatpush1.msra.mxu0 %v2658
        %3026 = vmatprep.subr.mxu0 0.0
        %3027 = vmatpush1.msra.mxu0 0.0
        %3028 = vmatprep.subr.mxu0 0.0
        %3029 = vmatpush1.msra.mxu0 0.0
        %3030 = vmatprep.subr.mxu0 0.0
        %3031 = vmatpush1.msra.mxu0 0.0
        %3032 = vmatprep.subr.mxu0 0.0
        %3033 = vmatpush1.msra.mxu0 0.0
        %3034 = vmatprep.subr.mxu0 0.0
        %3035 = vmatpush1.msra.mxu0 0.0
        %3036 = vmatprep.subr.mxu0 0.0
        %3037 = vmatpush1.msra.mxu0 0.0
        %3038 = vmatprep.subr.mxu0 0.0
        %3039 = vmatpush1.msra.mxu0 0.0
        %3040 = vmatprep.subr.mxu0 0.0
        %3041 = vmatpush1.msra.mxu0 0.0
        %3042 = vmatprep.subr.mxu0 0.0
        %3043 = vmatpush1.msra.mxu0 0.0
        %3044 = vmatprep.subr.mxu0 0.0
        %3045 = vmatpush1.msra.mxu0 0.0
        %3046 = vmatprep.subr.mxu0 0.0
        %3047 = vmatpush1.msra.mxu0 0.0
        %3048 = vmatprep.subr.mxu0 0.0
        %3049 = vmatpush1.msra.mxu0 0.0
        %3050 = vmatprep.subr.mxu0 0.0
        %3051 = vmatpush1.msra.mxu0 0.0
        %3052 = vmatprep.subr.mxu0 0.0
        %3053 = vmatpush1.msra.mxu0 0.0
        %3054 = vmatprep.subr.mxu0 0.0
        %3055 = vmatpush1.msra.mxu0 0.0
        %3056 = vmatprep.subr.mxu0 0.0
        %3057 = vmatpush1.msra.mxu0 0.0
        %3058 = vmatprep.subr.mxu0 0.0
        %3059 = vmatpush1.msra.mxu0 0.0
        %3060 = vmatprep.subr.mxu0 0.0
        %3061 = vmatpush1.msra.mxu0 0.0
        %3062 = vmatprep.subr.mxu0 0.0
        %3063 = vmatpush1.msra.mxu0 0.0
        %3064 = vmatprep.subr.mxu0 0.0
        %3065 = vmatpush1.msra.mxu0 0.0
        %3066 = vmatprep.subr.mxu0 0.0
        %3067 = vmatpush1.msra.mxu0 0.0
        %3068 = vmatprep.subr.mxu0 0.0
        %3069 = vmatpush1.msra.mxu0 0.0
        %3070 = vmatprep.subr.mxu0 0.0
        %3071 = vmatpush1.msra.mxu0 0.0
        %3072 = vmatprep.subr.mxu0 0.0
        %3073 = vmatpush1.msra.mxu0 0.0
        %3074 = vmatprep.subr.mxu0 0.0
        %3075 = vmatpush1.msra.mxu0 0.0
        %3076 = vmatprep.subr.mxu0 0.0
        %3077 = vmatpush1.msra.mxu0 0.0
        %3078 = vmatprep.subr.mxu0 0.0
        %3079 = vmatpush1.msra.mxu0 0.0
        %3080 = vmatprep.subr.mxu0 0.0
        %3081 = vmatpush1.msra.mxu0 0.0
        %3082 = vmatprep.mubr.f32.mxu0 0.0
        %3083 = vmatmul.mubr.f32.gmra.mrb[0].mxu0 %v3014
        %v3084 = vpop.f32.mrb[0].mxu0
        %v3085 = vadd.f32 0.0, %v3084
        %v3086 = vpop.f32.mrb[0].mxu0
        %3087 = vmatprep.mubr.f32.mxu0 0.0
        %3088 = vmatmul.mubr.f32.gmra.mrb[0].mxu0 %v3016
        %v3089 = vpop.f32.mrb[0].mxu0
        %v3090 = vadd.f32 0.0, %v3089
        %v3091 = vpop.f32.mrb[0].mxu0
        %3092 = vdwg.mxu0
        %v3093 = vadd.f32 %v3009, %v3085
        %v3094 = vadd.f32 %v3010, %v3090
        %v3095 = vrot.slane %v2626, 5
        %v3096 = vrot.slane %v2627, 5
        %v3097 = vsel %vm1859, %v3095, %v3096
        %v3098 = vsel %vm698, %v3097, 0
        %v3100 = vsel %vm698, %v3096, 0
        %3102 = vmatprep.subr.mxu0 0.0
        %3103 = vmatpush1.msra.mxu0 %v2660
        %3104 = vmatprep.subr.mxu0 0.0
        %3105 = vmatpush1.msra.mxu0 %v2661
        %3106 = vmatprep.subr.mxu0 0.0
        %3107 = vmatpush1.msra.mxu0 %v2662
        %3108 = vmatprep.subr.mxu0 0.0
        %3109 = vmatpush1.msra.mxu0 %v2663
        %3110 = vmatprep.subr.mxu0 0.0
        %3111 = vmatpush1.msra.mxu0 0.0
        %3112 = vmatprep.subr.mxu0 0.0
        %3113 = vmatpush1.msra.mxu0 0.0
        %3114 = vmatprep.subr.mxu0 0.0
        %3115 = vmatpush1.msra.mxu0 0.0
        %3116 = vmatprep.subr.mxu0 0.0
        %3117 = vmatpush1.msra.mxu0 0.0
        %3118 = vmatprep.subr.mxu0 0.0
        %3119 = vmatpush1.msra.mxu0 0.0
        %3120 = vmatprep.subr.mxu0 0.0
        %3121 = vmatpush1.msra.mxu0 0.0
        %3122 = vmatprep.subr.mxu0 0.0
        %3123 = vmatpush1.msra.mxu0 0.0
        %3124 = vmatprep.subr.mxu0 0.0
        %3125 = vmatpush1.msra.mxu0 0.0
        %3126 = vmatprep.subr.mxu0 0.0
        %3127 = vmatpush1.msra.mxu0 0.0
        %3128 = vmatprep.subr.mxu0 0.0
        %3129 = vmatpush1.msra.mxu0 0.0
        %3130 = vmatprep.subr.mxu0 0.0
        %3131 = vmatpush1.msra.mxu0 0.0
        %3132 = vmatprep.subr.mxu0 0.0
        %3133 = vmatpush1.msra.mxu0 0.0
        %3134 = vmatprep.subr.mxu0 0.0
        %3135 = vmatpush1.msra.mxu0 0.0
        %3136 = vmatprep.subr.mxu0 0.0
        %3137 = vmatpush1.msra.mxu0 0.0
        %3138 = vmatprep.subr.mxu0 0.0
        %3139 = vmatpush1.msra.mxu0 0.0
        %3140 = vmatprep.subr.mxu0 0.0
        %3141 = vmatpush1.msra.mxu0 0.0
        %3142 = vmatprep.subr.mxu0 0.0
        %3143 = vmatpush1.msra.mxu0 0.0
        %3144 = vmatprep.subr.mxu0 0.0
        %3145 = vmatpush1.msra.mxu0 0.0
        %3146 = vmatprep.subr.mxu0 0.0
        %3147 = vmatpush1.msra.mxu0 0.0
        %3148 = vmatprep.subr.mxu0 0.0
        %3149 = vmatpush1.msra.mxu0 0.0
        %3150 = vmatprep.subr.mxu0 0.0
        %3151 = vmatpush1.msra.mxu0 0.0
        %3152 = vmatprep.subr.mxu0 0.0
        %3153 = vmatpush1.msra.mxu0 0.0
        %3154 = vmatprep.subr.mxu0 0.0
        %3155 = vmatpush1.msra.mxu0 0.0
        %3156 = vmatprep.subr.mxu0 0.0
        %3157 = vmatpush1.msra.mxu0 0.0
        %3158 = vmatprep.subr.mxu0 0.0
        %3159 = vmatpush1.msra.mxu0 0.0
        %3160 = vmatprep.subr.mxu0 0.0
        %3161 = vmatpush1.msra.mxu0 0.0
        %3162 = vmatprep.subr.mxu0 0.0
        %3163 = vmatpush1.msra.mxu0 0.0
        %3164 = vmatprep.subr.mxu0 0.0
        %3165 = vmatpush1.msra.mxu0 0.0
        %3166 = vmatprep.mubr.f32.mxu0 0.0
        %3167 = vmatmul.mubr.f32.gmra.mrb[0].mxu0 %v3098
        %v3168 = vpop.f32.mrb[0].mxu0
        %v3169 = vadd.f32 0.0, %v3168
        %v3170 = vpop.f32.mrb[0].mxu0
        %3171 = vmatprep.mubr.f32.mxu0 0.0
        %3172 = vmatmul.mubr.f32.gmra.mrb[0].mxu0 %v3100
        %v3173 = vpop.f32.mrb[0].mxu0
        %v3174 = vadd.f32 0.0, %v3173
        %v3175 = vpop.f32.mrb[0].mxu0
        %3176 = vdwg.mxu0
        %v3177 = vadd.f32 %v3093, %v3169
        %v3178 = vadd.f32 %v3094, %v3174
        %vm3179 = vcmask 1041408
        %v3180 = vrot.slane %v2626, 6
        %v3181 = vrot.slane %v2627, 6
        %v3182 = vsel %vm3179, %v3180, %v3181
        %v3183 = vsel %vm698, %v3182, 0
        %v3185 = vsel %vm698, %v3181, 0
        %3187 = vmatprep.subr.mxu0 0.0
        %3188 = vmatpush1.msra.mxu0 %v2665
        %3189 = vmatprep.subr.mxu0 0.0
        %3190 = vmatpush1.msra.mxu0 %v2666
        %3191 = vmatprep.subr.mxu0 0.0
        %3192 = vmatpush1.msra.mxu0 %v2667
        %3193 = vmatprep.subr.mxu0 0.0
        %3194 = vmatpush1.msra.mxu0 %v2668
        %3195 = vmatprep.subr.mxu0 0.0
        %3196 = vmatpush1.msra.mxu0 0.0
        %3197 = vmatprep.subr.mxu0 0.0
        %3198 = vmatpush1.msra.mxu0 0.0
        %3199 = vmatprep.subr.mxu0 0.0
        %3200 = vmatpush1.msra.mxu0 0.0
        %3201 = vmatprep.subr.mxu0 0.0
        %3202 = vmatpush1.msra.mxu0 0.0
        %3203 = vmatprep.subr.mxu0 0.0
        %3204 = vmatpush1.msra.mxu0 0.0
        %3205 = vmatprep.subr.mxu0 0.0
        %3206 = vmatpush1.msra.mxu0 0.0
        %3207 = vmatprep.subr.mxu0 0.0
        %3208 = vmatpush1.msra.mxu0 0.0
        %3209 = vmatprep.subr.mxu0 0.0
        %3210 = vmatpush1.msra.mxu0 0.0
        %3211 = vmatprep.subr.mxu0 0.0
        %3212 = vmatpush1.msra.mxu0 0.0
        %3213 = vmatprep.subr.mxu0 0.0
        %3214 = vmatpush1.msra.mxu0 0.0
        %3215 = vmatprep.subr.mxu0 0.0
        %3216 = vmatpush1.msra.mxu0 0.0
        %3217 = vmatprep.subr.mxu0 0.0
        %3218 = vmatpush1.msra.mxu0 0.0
        %3219 = vmatprep.subr.mxu0 0.0
        %3220 = vmatpush1.msra.mxu0 0.0
        %3221 = vmatprep.subr.mxu0 0.0
        %3222 = vmatpush1.msra.mxu0 0.0
        %3223 = vmatprep.subr.mxu0 0.0
        %3224 = vmatpush1.msra.mxu0 0.0
        %3225 = vmatprep.subr.mxu0 0.0
        %3226 = vmatpush1.msra.mxu0 0.0
        %3227 = vmatprep.subr.mxu0 0.0
        %3228 = vmatpush1.msra.mxu0 0.0
        %3229 = vmatprep.subr.mxu0 0.0
        %3230 = vmatpush1.msra.mxu0 0.0
        %3231 = vmatprep.subr.mxu0 0.0
        %3232 = vmatpush1.msra.mxu0 0.0
        %3233 = vmatprep.subr.mxu0 0.0
        %3234 = vmatpush1.msra.mxu0 0.0
        %3235 = vmatprep.subr.mxu0 0.0
        %3236 = vmatpush1.msra.mxu0 0.0
        %3237 = vmatprep.subr.mxu0 0.0
        %3238 = vmatpush1.msra.mxu0 0.0
        %3239 = vmatprep.subr.mxu0 0.0
        %3240 = vmatpush1.msra.mxu0 0.0
        %3241 = vmatprep.subr.mxu0 0.0
        %3242 = vmatpush1.msra.mxu0 0.0
        %3243 = vmatprep.subr.mxu0 0.0
        %3244 = vmatpush1.msra.mxu0 0.0
        %3245 = vmatprep.subr.mxu0 0.0
        %3246 = vmatpush1.msra.mxu0 0.0
        %3247 = vmatprep.subr.mxu0 0.0
        %3248 = vmatpush1.msra.mxu0 0.0
        %3249 = vmatprep.subr.mxu0 0.0
        %3250 = vmatpush1.msra.mxu0 0.0
        %3251 = vmatprep.mubr.f32.mxu0 0.0
        %3252 = vmatmul.mubr.f32.gmra.mrb[0].mxu0 %v3183
        %v3253 = vpop.f32.mrb[0].mxu0
        %v3254 = vadd.f32 0.0, %v3253
        %v3255 = vpop.f32.mrb[0].mxu0
        %3256 = vmatprep.mubr.f32.mxu0 0.0
        %3257 = vmatmul.mubr.f32.gmra.mrb[0].mxu0 %v3185
        %v3258 = vpop.f32.mrb[0].mxu0
        %v3259 = vadd.f32 0.0, %v3258
        %v3260 = vpop.f32.mrb[0].mxu0
        %3261 = vdwg.mxu0
        %v3262 = vadd.f32 %v3177, %v3254
        %v3263 = vadd.f32 %v3178, %v3259
        %vm3264 = vcmask 1040384
        %v3265 = vrot.slane %v2626, 7
        %v3266 = vrot.slane %v2627, 7
        %v3267 = vsel %vm3264, %v3265, %v3266
        %v3268 = vsel %vm698, %v3267, 0
        %v3270 = vsel %vm698, %v3266, 0
        %3272 = vmatprep.subr.mxu0 0.0
        %3273 = vmatpush1.msra.mxu0 %v2670
        %3274 = vmatprep.subr.mxu0 0.0
        %3275 = vmatpush1.msra.mxu0 %v2671
        %3276 = vmatprep.subr.mxu0 0.0
        %3277 = vmatpush1.msra.mxu0 %v2672
        %3278 = vmatprep.subr.mxu0 0.0
        %3279 = vmatpush1.msra.mxu0 %v2673
        %3280 = vmatprep.subr.mxu0 0.0
        %3281 = vmatpush1.msra.mxu0 0.0
        %3282 = vmatprep.subr.mxu0 0.0
        %3283 = vmatpush1.msra.mxu0 0.0
        %3284 = vmatprep.subr.mxu0 0.0
        %3285 = vmatpush1.msra.mxu0 0.0
        %3286 = vmatprep.subr.mxu0 0.0
        %3287 = vmatpush1.msra.mxu0 0.0
        %3288 = vmatprep.subr.mxu0 0.0
        %3289 = vmatpush1.msra.mxu0 0.0
        %3290 = vmatprep.subr.mxu0 0.0
        %3291 = vmatpush1.msra.mxu0 0.0
        %3292 = vmatprep.subr.mxu0 0.0
        %3293 = vmatpush1.msra.mxu0 0.0
        %3294 = vmatprep.subr.mxu0 0.0
        %3295 = vmatpush1.msra.mxu0 0.0
        %3296 = vmatprep.subr.mxu0 0.0
        %3297 = vmatpush1.msra.mxu0 0.0
        %3298 = vmatprep.subr.mxu0 0.0
        %3299 = vmatpush1.msra.mxu0 0.0
        %3300 = vmatprep.subr.mxu0 0.0
        %3301 = vmatpush1.msra.mxu0 0.0
        %3302 = vmatprep.subr.mxu0 0.0
        %3303 = vmatpush1.msra.mxu0 0.0
        %3304 = vmatprep.subr.mxu0 0.0
        %3305 = vmatpush1.msra.mxu0 0.0
        %3306 = vmatprep.subr.mxu0 0.0
        %3307 = vmatpush1.msra.mxu0 0.0
        %3308 = vmatprep.subr.mxu0 0.0
        %3309 = vmatpush1.msra.mxu0 0.0
        %3310 = vmatprep.subr.mxu0 0.0
        %3311 = vmatpush1.msra.mxu0 0.0
        %3312 = vmatprep.subr.mxu0 0.0
        %3313 = vmatpush1.msra.mxu0 0.0
        %3314 = vmatprep.subr.mxu0 0.0
        %3315 = vmatpush1.msra.mxu0 0.0
        %3316 = vmatprep.subr.mxu0 0.0
        %3317 = vmatpush1.msra.mxu0 0.0
        %3318 = vmatprep.subr.mxu0 0.0
        %3319 = vmatpush1.msra.mxu0 0.0
        %3320 = vmatprep.subr.mxu0 0.0
        %3321 = vmatpush1.msra.mxu0 0.0
        %3322 = vmatprep.subr.mxu0 0.0
        %3323 = vmatpush1.msra.mxu0 0.0
        %3324 = vmatprep.subr.mxu0 0.0
        %3325 = vmatpush1.msra.mxu0 0.0
        %3326 = vmatprep.subr.mxu0 0.0
        %3327 = vmatpush1.msra.mxu0 0.0
        %3328 = vmatprep.subr.mxu0 0.0
        %3329 = vmatpush1.msra.mxu0 0.0
        %3330 = vmatprep.subr.mxu0 0.0
        %3331 = vmatpush1.msra.mxu0 0.0
        %3332 = vmatprep.subr.mxu0 0.0
        %3333 = vmatpush1.msra.mxu0 0.0
        %3334 = vmatprep.subr.mxu0 0.0
        %3335 = vmatpush1.msra.mxu0 0.0
        %3336 = vmatprep.mubr.f32.mxu0 0.0
        %3337 = vmatmul.mubr.f32.gmra.mrb[0].mxu0 %v3268
        %v3338 = vpop.f32.mrb[0].mxu0
        %v3339 = vadd.f32 0.0, %v3338
        %v3340 = vpop.f32.mrb[0].mxu0
        %3341 = vmatprep.mubr.f32.mxu0 0.0
        %3342 = vmatmul.mubr.f32.gmra.mrb[0].mxu0 %v3270
        %v3343 = vpop.f32.mrb[0].mxu0
        %v3344 = vadd.f32 0.0, %v3343
        %v3345 = vpop.f32.mrb[0].mxu0
        %3346 = vdwg.mxu0
        %v3347 = vadd.f32 %v3262, %v3339
        %v3348 = vadd.f32 %v3263, %v3344
        %v3350 = vsel %vm698, %v2628, 0
        %3352 = vmatprep.subr.mxu0 0.0
        %3353 = vmatpush1.msra.mxu0 %v2675
        %3354 = vmatprep.subr.mxu0 0.0
        %3355 = vmatpush1.msra.mxu0 %v2676
        %3356 = vmatprep.subr.mxu0 0.0
        %3357 = vmatpush1.msra.mxu0 %v2677
        %3358 = vmatprep.subr.mxu0 0.0
        %3359 = vmatpush1.msra.mxu0 %v2678
        %3360 = vmatprep.subr.mxu0 0.0
        %3361 = vmatpush1.msra.mxu0 0.0
        %3362 = vmatprep.subr.mxu0 0.0
        %3363 = vmatpush1.msra.mxu0 0.0
        %3364 = vmatprep.subr.mxu0 0.0
        %3365 = vmatpush1.msra.mxu0 0.0
        %3366 = vmatprep.subr.mxu0 0.0
        %3367 = vmatpush1.msra.mxu0 0.0
        %3368 = vmatprep.subr.mxu0 0.0
        %3369 = vmatpush1.msra.mxu0 0.0
        %3370 = vmatprep.subr.mxu0 0.0
        %3371 = vmatpush1.msra.mxu0 0.0
        %3372 = vmatprep.subr.mxu0 0.0
        %3373 = vmatpush1.msra.mxu0 0.0
        %3374 = vmatprep.subr.mxu0 0.0
        %3375 = vmatpush1.msra.mxu0 0.0
        %3376 = vmatprep.subr.mxu0 0.0
        %3377 = vmatpush1.msra.mxu0 0.0
        %3378 = vmatprep.subr.mxu0 0.0
        %3379 = vmatpush1.msra.mxu0 0.0
        %3380 = vmatprep.subr.mxu0 0.0
        %3381 = vmatpush1.msra.mxu0 0.0
        %3382 = vmatprep.subr.mxu0 0.0
        %3383 = vmatpush1.msra.mxu0 0.0
        %3384 = vmatprep.subr.mxu0 0.0
        %3385 = vmatpush1.msra.mxu0 0.0
        %3386 = vmatprep.subr.mxu0 0.0
        %3387 = vmatpush1.msra.mxu0 0.0
        %3388 = vmatprep.subr.mxu0 0.0
        %3389 = vmatpush1.msra.mxu0 0.0
        %3390 = vmatprep.subr.mxu0 0.0
        %3391 = vmatpush1.msra.mxu0 0.0
        %3392 = vmatprep.subr.mxu0 0.0
        %3393 = vmatpush1.msra.mxu0 0.0
        %3394 = vmatprep.subr.mxu0 0.0
        %3395 = vmatpush1.msra.mxu0 0.0
        %3396 = vmatprep.subr.mxu0 0.0
        %3397 = vmatpush1.msra.mxu0 0.0
        %3398 = vmatprep.subr.mxu0 0.0
        %3399 = vmatpush1.msra.mxu0 0.0
        %3400 = vmatprep.subr.mxu0 0.0
        %3401 = vmatpush1.msra.mxu0 0.0
        %3402 = vmatprep.subr.mxu0 0.0
        %3403 = vmatpush1.msra.mxu0 0.0
        %3404 = vmatprep.subr.mxu0 0.0
        %3405 = vmatpush1.msra.mxu0 0.0
        %3406 = vmatprep.subr.mxu0 0.0
        %3407 = vmatpush1.msra.mxu0 0.0
        %3408 = vmatprep.subr.mxu0 0.0
        %3409 = vmatpush1.msra.mxu0 0.0
        %3410 = vmatprep.subr.mxu0 0.0
        %3411 = vmatpush1.msra.mxu0 0.0
        %3412 = vmatprep.subr.mxu0 0.0
        %3413 = vmatpush1.msra.mxu0 0.0
        %3414 = vmatprep.subr.mxu0 0.0
        %3415 = vmatpush1.msra.mxu0 0.0
        %3416 = vmatprep.mubr.f32.mxu0 0.0
        %3417 = vmatmul.mubr.f32.gmra.mrb[0].mxu0 %v2766
        %v3418 = vpop.f32.mrb[0].mxu0
        %v3419 = vadd.f32 0.0, %v3418
        %v3420 = vpop.f32.mrb[0].mxu0
        %3421 = vmatprep.mubr.f32.mxu0 0.0
        %3422 = vmatmul.mubr.f32.gmra.mrb[0].mxu0 %v3350
        %v3423 = vpop.f32.mrb[0].mxu0
        %v3424 = vadd.f32 0.0, %v3423
        %v3425 = vpop.f32.mrb[0].mxu0
        %3426 = vdwg.mxu0
        %v3427 = vadd.f32 %v3347, %v3419
        %v3428 = vadd.f32 %v3348, %v3424
        %v3430 = vlaneseq
        %v3431 = vshrl.u32 %v3430, 7
        %v3432 = vsub.s32 0, %v3431
        %v3433 = vrot.slane %v2679, %v3432
        %v3435 = vadd.f32 %v3427, %v3433
        %v3436 = vadd.f32 %v3428, %v3433
        %vm3437 = vcmp.ge.f32.partialorder %v3435, 0.0
        %vm3438 = vcmp.ge.f32.partialorder %v3436, 0.0
        %v3439 = vmul.f32 %v3435, 0.01
        %v3440 = vmul.f32 %v3436, 0.01
        %v3441 = vsel %vm3437, %v3435, %v3439
        %v3442 = vsel %vm3438, %v3436, %v3440
        %v3445 = vrot.slane %v2632, 1
        %v3446 = vrot.slane %v2633, 1
        %v3447 = vsel %vm692, %v3445, %v3446
        %v3448 = vsel %vm698, %v3447, 0
        %v3450 = vsel %vm698, %v3446, 0
        %3452 = vmatprep.subr.mxu0 0.0
        %3453 = vmatpush1.msra.mxu0 %v2640
        %3454 = vmatprep.subr.mxu0 0.0
        %3455 = vmatpush1.msra.mxu0 %v2641
        %3456 = vmatprep.subr.mxu0 0.0
        %3457 = vmatpush1.msra.mxu0 %v2642
        %3458 = vmatprep.subr.mxu0 0.0
        %3459 = vmatpush1.msra.mxu0 %v2643
        %3460 = vmatprep.subr.mxu0 0.0
        %3461 = vmatpush1.msra.mxu0 0.0
        %3462 = vmatprep.subr.mxu0 0.0
        %3463 = vmatpush1.msra.mxu0 0.0
        %3464 = vmatprep.subr.mxu0 0.0
        %3465 = vmatpush1.msra.mxu0 0.0
        %3466 = vmatprep.subr.mxu0 0.0
        %3467 = vmatpush1.msra.mxu0 0.0
        %3468 = vmatprep.subr.mxu0 0.0
        %3469 = vmatpush1.msra.mxu0 0.0
        %3470 = vmatprep.subr.mxu0 0.0
        %3471 = vmatpush1.msra.mxu0 0.0
        %3472 = vmatprep.subr.mxu0 0.0
        %3473 = vmatpush1.msra.mxu0 0.0
        %3474 = vmatprep.subr.mxu0 0.0
        %3475 = vmatpush1.msra.mxu0 0.0
        %3476 = vmatprep.subr.mxu0 0.0
        %3477 = vmatpush1.msra.mxu0 0.0
        %3478 = vmatprep.subr.mxu0 0.0
        %3479 = vmatpush1.msra.mxu0 0.0
        %3480 = vmatprep.subr.mxu0 0.0
        %3481 = vmatpush1.msra.mxu0 0.0
        %3482 = vmatprep.subr.mxu0 0.0
        %3483 = vmatpush1.msra.mxu0 0.0
        %3484 = vmatprep.subr.mxu0 0.0
        %3485 = vmatpush1.msra.mxu0 0.0
        %3486 = vmatprep.subr.mxu0 0.0
        %3487 = vmatpush1.msra.mxu0 0.0
        %3488 = vmatprep.subr.mxu0 0.0
        %3489 = vmatpush1.msra.mxu0 0.0
        %3490 = vmatprep.subr.mxu0 0.0
        %3491 = vmatpush1.msra.mxu0 0.0
        %3492 = vmatprep.subr.mxu0 0.0
        %3493 = vmatpush1.msra.mxu0 0.0
        %3494 = vmatprep.subr.mxu0 0.0
        %3495 = vmatpush1.msra.mxu0 0.0
        %3496 = vmatprep.subr.mxu0 0.0
        %3497 = vmatpush1.msra.mxu0 0.0
        %3498 = vmatprep.subr.mxu0 0.0
        %3499 = vmatpush1.msra.mxu0 0.0
        %3500 = vmatprep.subr.mxu0 0.0
        %3501 = vmatpush1.msra.mxu0 0.0
        %3502 = vmatprep.subr.mxu0 0.0
        %3503 = vmatpush1.msra.mxu0 0.0
        %3504 = vmatprep.subr.mxu0 0.0
        %3505 = vmatpush1.msra.mxu0 0.0
        %3506 = vmatprep.subr.mxu0 0.0
        %3507 = vmatpush1.msra.mxu0 0.0
        %3508 = vmatprep.subr.mxu0 0.0
        %3509 = vmatpush1.msra.mxu0 0.0
        %3510 = vmatprep.subr.mxu0 0.0
        %3511 = vmatpush1.msra.mxu0 0.0
        %3512 = vmatprep.subr.mxu0 0.0
        %3513 = vmatpush1.msra.mxu0 0.0
        %3514 = vmatprep.subr.mxu0 0.0
        %3515 = vmatpush1.msra.mxu0 0.0
        %3516 = vmatprep.mubr.f32.mxu0 0.0
        %3517 = vmatmul.mubr.f32.gmra.mrb[0].mxu0 %v3448
        %v3518 = vpop.f32.mrb[0].mxu0
        %v3519 = vadd.f32 0.0, %v3518
        %v3520 = vpop.f32.mrb[0].mxu0
        %3521 = vmatprep.mubr.f32.mxu0 0.0
        %3522 = vmatmul.mubr.f32.gmra.mrb[0].mxu0 %v3450
        %v3523 = vpop.f32.mrb[0].mxu0
        %v3524 = vadd.f32 0.0, %v3523
        %v3525 = vpop.f32.mrb[0].mxu0
        %3526 = vdwg.mxu0
        %v3527 = vsel %vm698, %v2632, 0
        %v3529 = vsel %vm698, %v2633, 0
        %3531 = vmatprep.subr.mxu0 0.0
        %3532 = vmatpush1.msra.mxu0 %v2635
        %3533 = vmatprep.subr.mxu0 0.0
        %3534 = vmatpush1.msra.mxu0 %v2636
        %3535 = vmatprep.subr.mxu0 0.0
        %3536 = vmatpush1.msra.mxu0 %v2637
        %3537 = vmatprep.subr.mxu0 0.0
        %3538 = vmatpush1.msra.mxu0 %v2638
        %3539 = vmatprep.subr.mxu0 0.0
        %3540 = vmatpush1.msra.mxu0 0.0
        %3541 = vmatprep.subr.mxu0 0.0
        %3542 = vmatpush1.msra.mxu0 0.0
        %3543 = vmatprep.subr.mxu0 0.0
        %3544 = vmatpush1.msra.mxu0 0.0
        %3545 = vmatprep.subr.mxu0 0.0
        %3546 = vmatpush1.msra.mxu0 0.0
        %3547 = vmatprep.subr.mxu0 0.0
        %3548 = vmatpush1.msra.mxu0 0.0
        %3549 = vmatprep.subr.mxu0 0.0
        %3550 = vmatpush1.msra.mxu0 0.0
        %3551 = vmatprep.subr.mxu0 0.0
        %3552 = vmatpush1.msra.mxu0 0.0
        %3553 = vmatprep.subr.mxu0 0.0
        %3554 = vmatpush1.msra.mxu0 0.0
        %3555 = vmatprep.subr.mxu0 0.0
        %3556 = vmatpush1.msra.mxu0 0.0
        %3557 = vmatprep.subr.mxu0 0.0
        %3558 = vmatpush1.msra.mxu0 0.0
        %3559 = vmatprep.subr.mxu0 0.0
        %3560 = vmatpush1.msra.mxu0 0.0
        %3561 = vmatprep.subr.mxu0 0.0
        %3562 = vmatpush1.msra.mxu0 0.0
        %3563 = vmatprep.subr.mxu0 0.0
        %3564 = vmatpush1.msra.mxu0 0.0
        %3565 = vmatprep.subr.mxu0 0.0
        %3566 = vmatpush1.msra.mxu0 0.0
        %3567 = vmatprep.subr.mxu0 0.0
        %3568 = vmatpush1.msra.mxu0 0.0
        %3569 = vmatprep.subr.mxu0 0.0
        %3570 = vmatpush1.msra.mxu0 0.0
        %3571 = vmatprep.subr.mxu0 0.0
        %3572 = vmatpush1.msra.mxu0 0.0
        %3573 = vmatprep.subr.mxu0 0.0
        %3574 = vmatpush1.msra.mxu0 0.0
        %3575 = vmatprep.subr.mxu0 0.0
        %3576 = vmatpush1.msra.mxu0 0.0
        %3577 = vmatprep.subr.mxu0 0.0
        %3578 = vmatpush1.msra.mxu0 0.0
        %3579 = vmatprep.subr.mxu0 0.0
        %3580 = vmatpush1.msra.mxu0 0.0
        %3581 = vmatprep.subr.mxu0 0.0
        %3582 = vmatpush1.msra.mxu0 0.0
        %3583 = vmatprep.subr.mxu0 0.0
        %3584 = vmatpush1.msra.mxu0 0.0
        %3585 = vmatprep.subr.mxu0 0.0
        %3586 = vmatpush1.msra.mxu0 0.0
        %3587 = vmatprep.subr.mxu0 0.0
        %3588 = vmatpush1.msra.mxu0 0.0
        %3589 = vmatprep.subr.mxu0 0.0
        %3590 = vmatpush1.msra.mxu0 0.0
        %3591 = vmatprep.subr.mxu0 0.0
        %3592 = vmatpush1.msra.mxu0 0.0
        %3593 = vmatprep.subr.mxu0 0.0
        %3594 = vmatpush1.msra.mxu0 0.0
        %3595 = vmatprep.mubr.f32.mxu0 0.0
        %3596 = vmatmul.mubr.f32.gmra.mrb[0].mxu0 %v3527
        %v3597 = vpop.f32.mrb[0].mxu0
        %v3598 = vadd.f32 %v3519, %v3597
        %v3599 = vpop.f32.mrb[0].mxu0
        %3600 = vmatprep.mubr.f32.mxu0 0.0
        %3601 = vmatmul.mubr.f32.gmra.mrb[0].mxu0 %v3529
        %v3602 = vpop.f32.mrb[0].mxu0
        %v3603 = vadd.f32 %v3524, %v3602
        %v3604 = vpop.f32.mrb[0].mxu0
        %3605 = vdwg.mxu0
        %v3606 = vrot.slane %v2632, 2
        %v3607 = vrot.slane %v2633, 2
        %v3608 = vsel %vm871, %v3606, %v3607
        %v3609 = vsel %vm698, %v3608, 0
        %v3611 = vsel %vm698, %v3607, 0
        %3613 = vmatprep.subr.mxu0 0.0
        %3614 = vmatpush1.msra.mxu0 %v2645
        %3615 = vmatprep.subr.mxu0 0.0
        %3616 = vmatpush1.msra.mxu0 %v2646
        %3617 = vmatprep.subr.mxu0 0.0
        %3618 = vmatpush1.msra.mxu0 %v2647
        %3619 = vmatprep.subr.mxu0 0.0
        %3620 = vmatpush1.msra.mxu0 %v2648
        %3621 = vmatprep.subr.mxu0 0.0
        %3622 = vmatpush1.msra.mxu0 0.0
        %3623 = vmatprep.subr.mxu0 0.0
        %3624 = vmatpush1.msra.mxu0 0.0
        %3625 = vmatprep.subr.mxu0 0.0
        %3626 = vmatpush1.msra.mxu0 0.0
        %3627 = vmatprep.subr.mxu0 0.0
        %3628 = vmatpush1.msra.mxu0 0.0
        %3629 = vmatprep.subr.mxu0 0.0
        %3630 = vmatpush1.msra.mxu0 0.0
        %3631 = vmatprep.subr.mxu0 0.0
        %3632 = vmatpush1.msra.mxu0 0.0
        %3633 = vmatprep.subr.mxu0 0.0
        %3634 = vmatpush1.msra.mxu0 0.0
        %3635 = vmatprep.subr.mxu0 0.0
        %3636 = vmatpush1.msra.mxu0 0.0
        %3637 = vmatprep.subr.mxu0 0.0
        %3638 = vmatpush1.msra.mxu0 0.0
        %3639 = vmatprep.subr.mxu0 0.0
        %3640 = vmatpush1.msra.mxu0 0.0
        %3641 = vmatprep.subr.mxu0 0.0
        %3642 = vmatpush1.msra.mxu0 0.0
        %3643 = vmatprep.subr.mxu0 0.0
        %3644 = vmatpush1.msra.mxu0 0.0
        %3645 = vmatprep.subr.mxu0 0.0
        %3646 = vmatpush1.msra.mxu0 0.0
        %3647 = vmatprep.subr.mxu0 0.0
        %3648 = vmatpush1.msra.mxu0 0.0
        %3649 = vmatprep.subr.mxu0 0.0
        %3650 = vmatpush1.msra.mxu0 0.0
        %3651 = vmatprep.subr.mxu0 0.0
        %3652 = vmatpush1.msra.mxu0 0.0
        %3653 = vmatprep.subr.mxu0 0.0
        %3654 = vmatpush1.msra.mxu0 0.0
        %3655 = vmatprep.subr.mxu0 0.0
        %3656 = vmatpush1.msra.mxu0 0.0
        %3657 = vmatprep.subr.mxu0 0.0
        %3658 = vmatpush1.msra.mxu0 0.0
        %3659 = vmatprep.subr.mxu0 0.0
        %3660 = vmatpush1.msra.mxu0 0.0
        %3661 = vmatprep.subr.mxu0 0.0
        %3662 = vmatpush1.msra.mxu0 0.0
        %3663 = vmatprep.subr.mxu0 0.0
        %3664 = vmatpush1.msra.mxu0 0.0
        %3665 = vmatprep.subr.mxu0 0.0
        %3666 = vmatpush1.msra.mxu0 0.0
        %3667 = vmatprep.subr.mxu0 0.0
        %3668 = vmatpush1.msra.mxu0 0.0
        %3669 = vmatprep.subr.mxu0 0.0
        %3670 = vmatpush1.msra.mxu0 0.0
        %3671 = vmatprep.subr.mxu0 0.0
        %3672 = vmatpush1.msra.mxu0 0.0
        %3673 = vmatprep.subr.mxu0 0.0
        %3674 = vmatpush1.msra.mxu0 0.0
        %3675 = vmatprep.subr.mxu0 0.0
        %3676 = vmatpush1.msra.mxu0 0.0
        %3677 = vmatprep.mubr.f32.mxu0 0.0
        %3678 = vmatmul.mubr.f32.gmra.mrb[0].mxu0 %v3609
        %v3679 = vpop.f32.mrb[0].mxu0
        %v3680 = vadd.f32 0.0, %v3679
        %v3681 = vpop.f32.mrb[0].mxu0
        %3682 = vmatprep.mubr.f32.mxu0 0.0
        %3683 = vmatmul.mubr.f32.gmra.mrb[0].mxu0 %v3611
        %v3684 = vpop.f32.mrb[0].mxu0
        %v3685 = vadd.f32 0.0, %v3684
        %v3686 = vpop.f32.mrb[0].mxu0
        %3687 = vdwg.mxu0
        %v3688 = vadd.f32 %v3598, %v3680
        %v3689 = vadd.f32 %v3603, %v3685
        %v3690 = vrot.slane %v2632, 3
        %v3691 = vrot.slane %v2633, 3
        %v3692 = vsel %vm1669, %v3690, %v3691
        %v3693 = vsel %vm698, %v3692, 0
        %v3695 = vsel %vm698, %v3691, 0
        %3697 = vmatprep.subr.mxu0 0.0
        %3698 = vmatpush1.msra.mxu0 %v2650
        %3699 = vmatprep.subr.mxu0 0.0
        %3700 = vmatpush1.msra.mxu0 %v2651
        %3701 = vmatprep.subr.mxu0 0.0
        %3702 = vmatpush1.msra.mxu0 %v2652
        %3703 = vmatprep.subr.mxu0 0.0
        %3704 = vmatpush1.msra.mxu0 %v2653
        %3705 = vmatprep.subr.mxu0 0.0
        %3706 = vmatpush1.msra.mxu0 0.0
        %3707 = vmatprep.subr.mxu0 0.0
        %3708 = vmatpush1.msra.mxu0 0.0
        %3709 = vmatprep.subr.mxu0 0.0
        %3710 = vmatpush1.msra.mxu0 0.0
        %3711 = vmatprep.subr.mxu0 0.0
        %3712 = vmatpush1.msra.mxu0 0.0
        %3713 = vmatprep.subr.mxu0 0.0
        %3714 = vmatpush1.msra.mxu0 0.0
        %3715 = vmatprep.subr.mxu0 0.0
        %3716 = vmatpush1.msra.mxu0 0.0
        %3717 = vmatprep.subr.mxu0 0.0
        %3718 = vmatpush1.msra.mxu0 0.0
        %3719 = vmatprep.subr.mxu0 0.0
        %3720 = vmatpush1.msra.mxu0 0.0
        %3721 = vmatprep.subr.mxu0 0.0
        %3722 = vmatpush1.msra.mxu0 0.0
        %3723 = vmatprep.subr.mxu0 0.0
        %3724 = vmatpush1.msra.mxu0 0.0
        %3725 = vmatprep.subr.mxu0 0.0
        %3726 = vmatpush1.msra.mxu0 0.0
        %3727 = vmatprep.subr.mxu0 0.0
        %3728 = vmatpush1.msra.mxu0 0.0
        %3729 = vmatprep.subr.mxu0 0.0
        %3730 = vmatpush1.msra.mxu0 0.0
        %3731 = vmatprep.subr.mxu0 0.0
        %3732 = vmatpush1.msra.mxu0 0.0
        %3733 = vmatprep.subr.mxu0 0.0
        %3734 = vmatpush1.msra.mxu0 0.0
        %3735 = vmatprep.subr.mxu0 0.0
        %3736 = vmatpush1.msra.mxu0 0.0
        %3737 = vmatprep.subr.mxu0 0.0
        %3738 = vmatpush1.msra.mxu0 0.0
        %3739 = vmatprep.subr.mxu0 0.0
        %3740 = vmatpush1.msra.mxu0 0.0
        %3741 = vmatprep.subr.mxu0 0.0
        %3742 = vmatpush1.msra.mxu0 0.0
        %3743 = vmatprep.subr.mxu0 0.0
        %3744 = vmatpush1.msra.mxu0 0.0
        %3745 = vmatprep.subr.mxu0 0.0
        %3746 = vmatpush1.msra.mxu0 0.0
        %3747 = vmatprep.subr.mxu0 0.0
        %3748 = vmatpush1.msra.mxu0 0.0
        %3749 = vmatprep.subr.mxu0 0.0
        %3750 = vmatpush1.msra.mxu0 0.0
        %3751 = vmatprep.subr.mxu0 0.0
        %3752 = vmatpush1.msra.mxu0 0.0
        %3753 = vmatprep.subr.mxu0 0.0
        %3754 = vmatpush1.msra.mxu0 0.0
        %3755 = vmatprep.subr.mxu0 0.0
        %3756 = vmatpush1.msra.mxu0 0.0
        %3757 = vmatprep.subr.mxu0 0.0
        %3758 = vmatpush1.msra.mxu0 0.0
        %3759 = vmatprep.subr.mxu0 0.0
        %3760 = vmatpush1.msra.mxu0 0.0
        %3761 = vmatprep.mubr.f32.mxu0 0.0
        %3762 = vmatmul.mubr.f32.gmra.mrb[0].mxu0 %v3693
        %v3763 = vpop.f32.mrb[0].mxu0
        %v3764 = vadd.f32 0.0, %v3763
        %v3765 = vpop.f32.mrb[0].mxu0
        %3766 = vmatprep.mubr.f32.mxu0 0.0
        %3767 = vmatmul.mubr.f32.gmra.mrb[0].mxu0 %v3695
        %v3768 = vpop.f32.mrb[0].mxu0
        %v3769 = vadd.f32 0.0, %v3768
        %v3770 = vpop.f32.mrb[0].mxu0
        %3771 = vdwg.mxu0
        %v3772 = vadd.f32 %v3688, %v3764
        %v3773 = vadd.f32 %v3689, %v3769
        %v3774 = vrot.slane %v2632, 4
        %v3775 = vrot.slane %v2633, 4
        %v3776 = vsel %vm1764, %v3774, %v3775
        %v3777 = vsel %vm698, %v3776, 0
        %v3779 = vsel %vm698, %v3775, 0
        %3781 = vmatprep.subr.mxu0 0.0
        %3782 = vmatpush1.msra.mxu0 %v2655
        %3783 = vmatprep.subr.mxu0 0.0
        %3784 = vmatpush1.msra.mxu0 %v2656
        %3785 = vmatprep.subr.mxu0 0.0
        %3786 = vmatpush1.msra.mxu0 %v2657
        %3787 = vmatprep.subr.mxu0 0.0
        %3788 = vmatpush1.msra.mxu0 %v2658
        %3789 = vmatprep.subr.mxu0 0.0
        %3790 = vmatpush1.msra.mxu0 0.0
        %3791 = vmatprep.subr.mxu0 0.0
        %3792 = vmatpush1.msra.mxu0 0.0
        %3793 = vmatprep.subr.mxu0 0.0
        %3794 = vmatpush1.msra.mxu0 0.0
        %3795 = vmatprep.subr.mxu0 0.0
        %3796 = vmatpush1.msra.mxu0 0.0
        %3797 = vmatprep.subr.mxu0 0.0
        %3798 = vmatpush1.msra.mxu0 0.0
        %3799 = vmatprep.subr.mxu0 0.0
        %3800 = vmatpush1.msra.mxu0 0.0
        %3801 = vmatprep.subr.mxu0 0.0
        %3802 = vmatpush1.msra.mxu0 0.0
        %3803 = vmatprep.subr.mxu0 0.0
        %3804 = vmatpush1.msra.mxu0 0.0
        %3805 = vmatprep.subr.mxu0 0.0
        %3806 = vmatpush1.msra.mxu0 0.0
        %3807 = vmatprep.subr.mxu0 0.0
        %3808 = vmatpush1.msra.mxu0 0.0
        %3809 = vmatprep.subr.mxu0 0.0
        %3810 = vmatpush1.msra.mxu0 0.0
        %3811 = vmatprep.subr.mxu0 0.0
        %3812 = vmatpush1.msra.mxu0 0.0
        %3813 = vmatprep.subr.mxu0 0.0
        %3814 = vmatpush1.msra.mxu0 0.0
        %3815 = vmatprep.subr.mxu0 0.0
        %3816 = vmatpush1.msra.mxu0 0.0
        %3817 = vmatprep.subr.mxu0 0.0
        %3818 = vmatpush1.msra.mxu0 0.0
        %3819 = vmatprep.subr.mxu0 0.0
        %3820 = vmatpush1.msra.mxu0 0.0
        %3821 = vmatprep.subr.mxu0 0.0
        %3822 = vmatpush1.msra.mxu0 0.0
        %3823 = vmatprep.subr.mxu0 0.0
        %3824 = vmatpush1.msra.mxu0 0.0
        %3825 = vmatprep.subr.mxu0 0.0
        %3826 = vmatpush1.msra.mxu0 0.0
        %3827 = vmatprep.subr.mxu0 0.0
        %3828 = vmatpush1.msra.mxu0 0.0
        %3829 = vmatprep.subr.mxu0 0.0
        %3830 = vmatpush1.msra.mxu0 0.0
        %3831 = vmatprep.subr.mxu0 0.0
        %3832 = vmatpush1.msra.mxu0 0.0
        %3833 = vmatprep.subr.mxu0 0.0
        %3834 = vmatpush1.msra.mxu0 0.0
        %3835 = vmatprep.subr.mxu0 0.0
        %3836 = vmatpush1.msra.mxu0 0.0
        %3837 = vmatprep.subr.mxu0 0.0
        %3838 = vmatpush1.msra.mxu0 0.0
        %3839 = vmatprep.subr.mxu0 0.0
        %3840 = vmatpush1.msra.mxu0 0.0
        %3841 = vmatprep.subr.mxu0 0.0
        %3842 = vmatpush1.msra.mxu0 0.0
        %3843 = vmatprep.subr.mxu0 0.0
        %3844 = vmatpush1.msra.mxu0 0.0
        %3845 = vmatprep.mubr.f32.mxu0 0.0
        %3846 = vmatmul.mubr.f32.gmra.mrb[0].mxu0 %v3777
        %v3847 = vpop.f32.mrb[0].mxu0
        %v3848 = vadd.f32 0.0, %v3847
        %v3849 = vpop.f32.mrb[0].mxu0
        %3850 = vmatprep.mubr.f32.mxu0 0.0
        %3851 = vmatmul.mubr.f32.gmra.mrb[0].mxu0 %v3779
        %v3852 = vpop.f32.mrb[0].mxu0
        %v3853 = vadd.f32 0.0, %v3852
        %v3854 = vpop.f32.mrb[0].mxu0
        %3855 = vdwg.mxu0
        %v3856 = vadd.f32 %v3772, %v3848
        %v3857 = vadd.f32 %v3773, %v3853
        %v3858 = vrot.slane %v2632, 5
        %v3859 = vrot.slane %v2633, 5
        %v3860 = vsel %vm1859, %v3858, %v3859
        %v3861 = vsel %vm698, %v3860, 0
        %v3863 = vsel %vm698, %v3859, 0
        %3865 = vmatprep.subr.mxu0 0.0
        %3866 = vmatpush1.msra.mxu0 %v2660
        %3867 = vmatprep.subr.mxu0 0.0
        %3868 = vmatpush1.msra.mxu0 %v2661
        %3869 = vmatprep.subr.mxu0 0.0
        %3870 = vmatpush1.msra.mxu0 %v2662
        %3871 = vmatprep.subr.mxu0 0.0
        %3872 = vmatpush1.msra.mxu0 %v2663
        %3873 = vmatprep.subr.mxu0 0.0
        %3874 = vmatpush1.msra.mxu0 0.0
        %3875 = vmatprep.subr.mxu0 0.0
        %3876 = vmatpush1.msra.mxu0 0.0
        %3877 = vmatprep.subr.mxu0 0.0
        %3878 = vmatpush1.msra.mxu0 0.0
        %3879 = vmatprep.subr.mxu0 0.0
        %3880 = vmatpush1.msra.mxu0 0.0
        %3881 = vmatprep.subr.mxu0 0.0
        %3882 = vmatpush1.msra.mxu0 0.0
        %3883 = vmatprep.subr.mxu0 0.0
        %3884 = vmatpush1.msra.mxu0 0.0
        %3885 = vmatprep.subr.mxu0 0.0
        %3886 = vmatpush1.msra.mxu0 0.0
        %3887 = vmatprep.subr.mxu0 0.0
        %3888 = vmatpush1.msra.mxu0 0.0
        %3889 = vmatprep.subr.mxu0 0.0
        %3890 = vmatpush1.msra.mxu0 0.0
        %3891 = vmatprep.subr.mxu0 0.0
        %3892 = vmatpush1.msra.mxu0 0.0
        %3893 = vmatprep.subr.mxu0 0.0
        %3894 = vmatpush1.msra.mxu0 0.0
        %3895 = vmatprep.subr.mxu0 0.0
        %3896 = vmatpush1.msra.mxu0 0.0
        %3897 = vmatprep.subr.mxu0 0.0
        %3898 = vmatpush1.msra.mxu0 0.0
        %3899 = vmatprep.subr.mxu0 0.0
        %3900 = vmatpush1.msra.mxu0 0.0
        %3901 = vmatprep.subr.mxu0 0.0
        %3902 = vmatpush1.msra.mxu0 0.0
        %3903 = vmatprep.subr.mxu0 0.0
        %3904 = vmatpush1.msra.mxu0 0.0
        %3905 = vmatprep.subr.mxu0 0.0
        %3906 = vmatpush1.msra.mxu0 0.0
        %3907 = vmatprep.subr.mxu0 0.0
        %3908 = vmatpush1.msra.mxu0 0.0
        %3909 = vmatprep.subr.mxu0 0.0
        %3910 = vmatpush1.msra.mxu0 0.0
        %3911 = vmatprep.subr.mxu0 0.0
        %3912 = vmatpush1.msra.mxu0 0.0
        %3913 = vmatprep.subr.mxu0 0.0
        %3914 = vmatpush1.msra.mxu0 0.0
        %3915 = vmatprep.subr.mxu0 0.0
        %3916 = vmatpush1.msra.mxu0 0.0
        %3917 = vmatprep.subr.mxu0 0.0
        %3918 = vmatpush1.msra.mxu0 0.0
        %3919 = vmatprep.subr.mxu0 0.0
        %3920 = vmatpush1.msra.mxu0 0.0
        %3921 = vmatprep.subr.mxu0 0.0
        %3922 = vmatpush1.msra.mxu0 0.0
        %3923 = vmatprep.subr.mxu0 0.0
        %3924 = vmatpush1.msra.mxu0 0.0
        %3925 = vmatprep.subr.mxu0 0.0
        %3926 = vmatpush1.msra.mxu0 0.0
        %3927 = vmatprep.subr.mxu0 0.0
        %3928 = vmatpush1.msra.mxu0 0.0
        %3929 = vmatprep.mubr.f32.mxu0 0.0
        %3930 = vmatmul.mubr.f32.gmra.mrb[0].mxu0 %v3861
        %v3931 = vpop.f32.mrb[0].mxu0
        %v3932 = vadd.f32 0.0, %v3931
        %v3933 = vpop.f32.mrb[0].mxu0
        %3934 = vmatprep.mubr.f32.mxu0 0.0
        %3935 = vmatmul.mubr.f32.gmra.mrb[0].mxu0 %v3863
        %v3936 = vpop.f32.mrb[0].mxu0
        %v3937 = vadd.f32 0.0, %v3936
        %v3938 = vpop.f32.mrb[0].mxu0
        %3939 = vdwg.mxu0
        %v3940 = vadd.f32 %v3856, %v3932
        %v3941 = vadd.f32 %v3857, %v3937
        %v3942 = vrot.slane %v2632, 6
        %v3943 = vrot.slane %v2633, 6
        %v3944 = vsel %vm3179, %v3942, %v3943
        %v3945 = vsel %vm698, %v3944, 0
        %v3947 = vsel %vm698, %v3943, 0
        %3949 = vmatprep.subr.mxu0 0.0
        %3950 = vmatpush1.msra.mxu0 %v2665
        %3951 = vmatprep.subr.mxu0 0.0
        %3952 = vmatpush1.msra.mxu0 %v2666
        %3953 = vmatprep.subr.mxu0 0.0
        %3954 = vmatpush1.msra.mxu0 %v2667
        %3955 = vmatprep.subr.mxu0 0.0
        %3956 = vmatpush1.msra.mxu0 %v2668
        %3957 = vmatprep.subr.mxu0 0.0
        %3958 = vmatpush1.msra.mxu0 0.0
        %3959 = vmatprep.subr.mxu0 0.0
        %3960 = vmatpush1.msra.mxu0 0.0
        %3961 = vmatprep.subr.mxu0 0.0
        %3962 = vmatpush1.msra.mxu0 0.0
        %3963 = vmatprep.subr.mxu0 0.0
        %3964 = vmatpush1.msra.mxu0 0.0
        %3965 = vmatprep.subr.mxu0 0.0
        %3966 = vmatpush1.msra.mxu0 0.0
        %3967 = vmatprep.subr.mxu0 0.0
        %3968 = vmatpush1.msra.mxu0 0.0
        %3969 = vmatprep.subr.mxu0 0.0
        %3970 = vmatpush1.msra.mxu0 0.0
        %3971 = vmatprep.subr.mxu0 0.0
        %3972 = vmatpush1.msra.mxu0 0.0
        %3973 = vmatprep.subr.mxu0 0.0
        %3974 = vmatpush1.msra.mxu0 0.0
        %3975 = vmatprep.subr.mxu0 0.0
        %3976 = vmatpush1.msra.mxu0 0.0
        %3977 = vmatprep.subr.mxu0 0.0
        %3978 = vmatpush1.msra.mxu0 0.0
        %3979 = vmatprep.subr.mxu0 0.0
        %3980 = vmatpush1.msra.mxu0 0.0
        %3981 = vmatprep.subr.mxu0 0.0
        %3982 = vmatpush1.msra.mxu0 0.0
        %3983 = vmatprep.subr.mxu0 0.0
        %3984 = vmatpush1.msra.mxu0 0.0
        %3985 = vmatprep.subr.mxu0 0.0
        %3986 = vmatpush1.msra.mxu0 0.0
        %3987 = vmatprep.subr.mxu0 0.0
        %3988 = vmatpush1.msra.mxu0 0.0
        %3989 = vmatprep.subr.mxu0 0.0
        %3990 = vmatpush1.msra.mxu0 0.0
        %3991 = vmatprep.subr.mxu0 0.0
        %3992 = vmatpush1.msra.mxu0 0.0
        %3993 = vmatprep.subr.mxu0 0.0
        %3994 = vmatpush1.msra.mxu0 0.0
        %3995 = vmatprep.subr.mxu0 0.0
        %3996 = vmatpush1.msra.mxu0 0.0
        %3997 = vmatprep.subr.mxu0 0.0
        %3998 = vmatpush1.msra.mxu0 0.0
        %3999 = vmatprep.subr.mxu0 0.0
        %4000 = vmatpush1.msra.mxu0 0.0
        %4001 = vmatprep.subr.mxu0 0.0
        %4002 = vmatpush1.msra.mxu0 0.0
        %4003 = vmatprep.subr.mxu0 0.0
        %4004 = vmatpush1.msra.mxu0 0.0
        %4005 = vmatprep.subr.mxu0 0.0
        %4006 = vmatpush1.msra.mxu0 0.0
        %4007 = vmatprep.subr.mxu0 0.0
        %4008 = vmatpush1.msra.mxu0 0.0
        %4009 = vmatprep.subr.mxu0 0.0
        %4010 = vmatpush1.msra.mxu0 0.0
        %4011 = vmatprep.subr.mxu0 0.0
        %4012 = vmatpush1.msra.mxu0 0.0
        %4013 = vmatprep.mubr.f32.mxu0 0.0
        %4014 = vmatmul.mubr.f32.gmra.mrb[0].mxu0 %v3945
        %v4015 = vpop.f32.mrb[0].mxu0
        %v4016 = vadd.f32 0.0, %v4015
        %v4017 = vpop.f32.mrb[0].mxu0
        %4018 = vmatprep.mubr.f32.mxu0 0.0
        %4019 = vmatmul.mubr.f32.gmra.mrb[0].mxu0 %v3947
        %v4020 = vpop.f32.mrb[0].mxu0
        %v4021 = vadd.f32 0.0, %v4020
        %v4022 = vpop.f32.mrb[0].mxu0
        %4023 = vdwg.mxu0
        %v4024 = vadd.f32 %v3940, %v4016
        %v4025 = vadd.f32 %v3941, %v4021
        %v4026 = vrot.slane %v2632, 7
        %v4027 = vrot.slane %v2633, 7
        %v4028 = vsel %vm3264, %v4026, %v4027
        %v4029 = vsel %vm698, %v4028, 0
        %v4031 = vsel %vm698, %v4027, 0
        %4033 = vmatprep.subr.mxu0 0.0
        %4034 = vmatpush1.msra.mxu0 %v2670
        %4035 = vmatprep.subr.mxu0 0.0
        %4036 = vmatpush1.msra.mxu0 %v2671
        %4037 = vmatprep.subr.mxu0 0.0
        %4038 = vmatpush1.msra.mxu0 %v2672
        %4039 = vmatprep.subr.mxu0 0.0
        %4040 = vmatpush1.msra.mxu0 %v2673
        %4041 = vmatprep.subr.mxu0 0.0
        %4042 = vmatpush1.msra.mxu0 0.0
        %4043 = vmatprep.subr.mxu0 0.0
        %4044 = vmatpush1.msra.mxu0 0.0
        %4045 = vmatprep.subr.mxu0 0.0
        %4046 = vmatpush1.msra.mxu0 0.0
        %4047 = vmatprep.subr.mxu0 0.0
        %4048 = vmatpush1.msra.mxu0 0.0
        %4049 = vmatprep.subr.mxu0 0.0
        %4050 = vmatpush1.msra.mxu0 0.0
        %4051 = vmatprep.subr.mxu0 0.0
        %4052 = vmatpush1.msra.mxu0 0.0
        %4053 = vmatprep.subr.mxu0 0.0
        %4054 = vmatpush1.msra.mxu0 0.0
        %4055 = vmatprep.subr.mxu0 0.0
        %4056 = vmatpush1.msra.mxu0 0.0
        %4057 = vmatprep.subr.mxu0 0.0
        %4058 = vmatpush1.msra.mxu0 0.0
        %4059 = vmatprep.subr.mxu0 0.0
        %4060 = vmatpush1.msra.mxu0 0.0
        %4061 = vmatprep.subr.mxu0 0.0
        %4062 = vmatpush1.msra.mxu0 0.0
        %4063 = vmatprep.subr.mxu0 0.0
        %4064 = vmatpush1.msra.mxu0 0.0
        %4065 = vmatprep.subr.mxu0 0.0
        %4066 = vmatpush1.msra.mxu0 0.0
        %4067 = vmatprep.subr.mxu0 0.0
        %4068 = vmatpush1.msra.mxu0 0.0
        %4069 = vmatprep.subr.mxu0 0.0
        %4070 = vmatpush1.msra.mxu0 0.0
        %4071 = vmatprep.subr.mxu0 0.0
        %4072 = vmatpush1.msra.mxu0 0.0
        %4073 = vmatprep.subr.mxu0 0.0
        %4074 = vmatpush1.msra.mxu0 0.0
        %4075 = vmatprep.subr.mxu0 0.0
        %4076 = vmatpush1.msra.mxu0 0.0
        %4077 = vmatprep.subr.mxu0 0.0
        %4078 = vmatpush1.msra.mxu0 0.0
        %4079 = vmatprep.subr.mxu0 0.0
        %4080 = vmatpush1.msra.mxu0 0.0
        %4081 = vmatprep.subr.mxu0 0.0
        %4082 = vmatpush1.msra.mxu0 0.0
        %4083 = vmatprep.subr.mxu0 0.0
        %4084 = vmatpush1.msra.mxu0 0.0
        %4085 = vmatprep.subr.mxu0 0.0
        %4086 = vmatpush1.msra.mxu0 0.0
        %4087 = vmatprep.subr.mxu0 0.0
        %4088 = vmatpush1.msra.mxu0 0.0
        %4089 = vmatprep.subr.mxu0 0.0
        %4090 = vmatpush1.msra.mxu0 0.0
        %4091 = vmatprep.subr.mxu0 0.0
        %4092 = vmatpush1.msra.mxu0 0.0
        %4093 = vmatprep.subr.mxu0 0.0
        %4094 = vmatpush1.msra.mxu0 0.0
        %4095 = vmatprep.subr.mxu0 0.0
        %4096 = vmatpush1.msra.mxu0 0.0
        %4097 = vmatprep.mubr.f32.mxu0 0.0
        %4098 = vmatmul.mubr.f32.gmra.mrb[0].mxu0 %v4029
        %v4099 = vpop.f32.mrb[0].mxu0
        %v4100 = vadd.f32 0.0, %v4099
        %v4101 = vpop.f32.mrb[0].mxu0
        %4102 = vmatprep.mubr.f32.mxu0 0.0
        %4103 = vmatmul.mubr.f32.gmra.mrb[0].mxu0 %v4031
        %v4104 = vpop.f32.mrb[0].mxu0
        %v4105 = vadd.f32 0.0, %v4104
        %v4106 = vpop.f32.mrb[0].mxu0
        %4107 = vdwg.mxu0
        %v4108 = vadd.f32 %v4024, %v4100
        %v4109 = vadd.f32 %v4025, %v4105
        %v4111 = vsel %vm698, %v2634, 0
        %4113 = vmatprep.subr.mxu0 0.0
        %4114 = vmatpush1.msra.mxu0 %v2675
        %4115 = vmatprep.subr.mxu0 0.0
        %4116 = vmatpush1.msra.mxu0 %v2676
        %4117 = vmatprep.subr.mxu0 0.0
        %4118 = vmatpush1.msra.mxu0 %v2677
        %4119 = vmatprep.subr.mxu0 0.0
        %4120 = vmatpush1.msra.mxu0 %v2678
        %4121 = vmatprep.subr.mxu0 0.0
        %4122 = vmatpush1.msra.mxu0 0.0
        %4123 = vmatprep.subr.mxu0 0.0
        %4124 = vmatpush1.msra.mxu0 0.0
        %4125 = vmatprep.subr.mxu0 0.0
        %4126 = vmatpush1.msra.mxu0 0.0
        %4127 = vmatprep.subr.mxu0 0.0
        %4128 = vmatpush1.msra.mxu0 0.0
        %4129 = vmatprep.subr.mxu0 0.0
        %4130 = vmatpush1.msra.mxu0 0.0
        %4131 = vmatprep.subr.mxu0 0.0
        %4132 = vmatpush1.msra.mxu0 0.0
        %4133 = vmatprep.subr.mxu0 0.0
        %4134 = vmatpush1.msra.mxu0 0.0
        %4135 = vmatprep.subr.mxu0 0.0
        %4136 = vmatpush1.msra.mxu0 0.0
        %4137 = vmatprep.subr.mxu0 0.0
        %4138 = vmatpush1.msra.mxu0 0.0
        %4139 = vmatprep.subr.mxu0 0.0
        %4140 = vmatpush1.msra.mxu0 0.0
        %4141 = vmatprep.subr.mxu0 0.0
        %4142 = vmatpush1.msra.mxu0 0.0
        %4143 = vmatprep.subr.mxu0 0.0
        %4144 = vmatpush1.msra.mxu0 0.0
        %4145 = vmatprep.subr.mxu0 0.0
        %4146 = vmatpush1.msra.mxu0 0.0
        %4147 = vmatprep.subr.mxu0 0.0
        %4148 = vmatpush1.msra.mxu0 0.0
        %4149 = vmatprep.subr.mxu0 0.0
        %4150 = vmatpush1.msra.mxu0 0.0
        %4151 = vmatprep.subr.mxu0 0.0
        %4152 = vmatpush1.msra.mxu0 0.0
        %4153 = vmatprep.subr.mxu0 0.0
        %4154 = vmatpush1.msra.mxu0 0.0
        %4155 = vmatprep.subr.mxu0 0.0
        %4156 = vmatpush1.msra.mxu0 0.0
        %4157 = vmatprep.subr.mxu0 0.0
        %4158 = vmatpush1.msra.mxu0 0.0
        %4159 = vmatprep.subr.mxu0 0.0
        %4160 = vmatpush1.msra.mxu0 0.0
        %4161 = vmatprep.subr.mxu0 0.0
        %4162 = vmatpush1.msra.mxu0 0.0
        %4163 = vmatprep.subr.mxu0 0.0
        %4164 = vmatpush1.msra.mxu0 0.0
        %4165 = vmatprep.subr.mxu0 0.0
        %4166 = vmatpush1.msra.mxu0 0.0
        %4167 = vmatprep.subr.mxu0 0.0
        %4168 = vmatpush1.msra.mxu0 0.0
        %4169 = vmatprep.subr.mxu0 0.0
        %4170 = vmatpush1.msra.mxu0 0.0
        %4171 = vmatprep.subr.mxu0 0.0
        %4172 = vmatpush1.msra.mxu0 0.0
        %4173 = vmatprep.subr.mxu0 0.0
        %4174 = vmatpush1.msra.mxu0 0.0
        %4175 = vmatprep.subr.mxu0 0.0
        %4176 = vmatpush1.msra.mxu0 0.0
        %4177 = vmatprep.mubr.f32.mxu0 0.0
        %4178 = vmatmul.mubr.f32.gmra.mrb[0].mxu0 %v3529
        %v4179 = vpop.f32.mrb[0].mxu0
        %v4180 = vadd.f32 0.0, %v4179
        %v4181 = vpop.f32.mrb[0].mxu0
        %4182 = vmatprep.mubr.f32.mxu0 0.0
        %4183 = vmatmul.mubr.f32.gmra.mrb[0].mxu0 %v4111
        %v4184 = vpop.f32.mrb[0].mxu0
        %v4185 = vadd.f32 0.0, %v4184
        %v4186 = vpop.f32.mrb[0].mxu0
        %4187 = vdwg.mxu0
        %v4188 = vadd.f32 %v4108, %v4180
        %v4189 = vadd.f32 %v4109, %v4185
        %v4190 = vadd.f32 %v4188, %v3433
        %v4191 = vadd.f32 %v4189, %v3433
        %vm4192 = vcmp.ge.f32.partialorder %v4190, 0.0
        %vm4193 = vcmp.ge.f32.partialorder %v4191, 0.0
        %v4194 = vmul.f32 %v4190, 0.01
        %v4195 = vmul.f32 %v4191, 0.01
        %v4196 = vsel %vm4192, %v4190, %v4194
        %v4197 = vsel %vm4193, %v4191, %v4195
        %v4198 = vsel %vm698, %v3441, 0.0
        %v4199 = vsel %vm2543, %v3442, 0.0
        %v4200 = vadd.f32 %v4198, %v4199
        %v4201 = vrot.slane %v4200, 4
        %v4202 = vadd.f32 %v4200, %v4201
        %v4203 = vrot.slane %v4202, 2
        %v4204 = vadd.f32 %v4202, %v4203
        %v4205 = vrot.slane %v4204, 1
        %v4206 = vadd.f32 %v4204, %v4205
        %v4207 = vadd.f32 %v4206, 0.0
        %v4208 = vsel %vm698, %v4196, 0.0
        %v4209 = vsel %vm2543, %v4197, 0.0
        %v4210 = vadd.f32 %v4208, %v4209
        %v4211 = vrot.slane %v4210, 4
        %v4212 = vadd.f32 %v4210, %v4211
        %v4213 = vrot.slane %v4212, 2
        %v4214 = vadd.f32 %v4212, %v4213
        %v4215 = vrot.slane %v4214, 1
        %v4216 = vadd.f32 %v4214, %v4215
        %v4217 = vadd.f32 %v4207, %v4216
        %v4218 = vrcp.pop 18.0
        %v4219 = vmul.f32 %v4217, %v4218
        %v4220 = vsub.f32 %v3441, %v4219
        %v4221 = vsub.f32 %v3442, %v4219
        %v4222 = vmul.f32 %v4220, %v4220
        %v4223 = vmul.f32 %v4221, %v4221
        %v4224 = vsel %vm698, %v4222, 0.0
        %v4225 = vsel %vm2543, %v4223, 0.0
        %v4226 = vadd.f32 %v4224, %v4225
        %v4227 = vrot.slane %v4226, 4
        %v4228 = vadd.f32 %v4226, %v4227
        %v4229 = vrot.slane %v4228, 2
        %v4230 = vadd.f32 %v4228, %v4229
        %v4231 = vrot.slane %v4230, 1
        %v4232 = vadd.f32 %v4230, %v4231
        %v4233 = vadd.f32 %v4232, 0.0
        %v4234 = vsub.f32 %v4196, %v4219
        %v4235 = vsub.f32 %v4197, %v4219
        %v4236 = vmul.f32 %v4234, %v4234
        %v4237 = vmul.f32 %v4235, %v4235
        %v4238 = vsel %vm698, %v4236, 0.0
        %v4239 = vsel %vm2543, %v4237, 0.0
        %v4240 = vadd.f32 %v4238, %v4239
        %v4241 = vrot.slane %v4240, 4
        %v4242 = vadd.f32 %v4240, %v4241
        %v4243 = vrot.slane %v4242, 2
        %v4244 = vadd.f32 %v4242, %v4243
        %v4245 = vrot.slane %v4244, 1
        %v4246 = vadd.f32 %v4244, %v4245
        %v4247 = vadd.f32 %v4233, %v4246
        %v4248 = vmul.f32 %v4247, %v4218
        %v4249 = vld [vmem:[%s658] sm:$0x1]
        %v4250 = vadd.f32 %v4248, 1e-05
        %v4251 = vrsqrt.pop %v4250
        %v4252 = vmul.f32 %v4249, %v4251
        %v4253 = vld [vmem:[%s661] sm:$0x1]
        %v4254 = vmul.f32 %v4219, %v4252
        %v4255 = vsub.f32 %v4253, %v4254
        %v4257 = vlaneseq
        %v4258 = vshrl.u32 %v4257, 7
        %v4259 = vsub.s32 0, %v4258
        %v4260 = vrot.slane %v4252, %v4259
        %v4262 = vmul.f32 %v3441, %v4260
        %v4263 = vmul.f32 %v3442, %v4260
        %v4265 = vlaneseq
        %v4266 = vshrl.u32 %v4265, 7
        %v4267 = vsub.s32 0, %v4266
        %v4268 = vrot.slane %v4255, %v4267
        %v4270 = vadd.f32 %v4262, %v4268
        %v4271 = vadd.f32 %v4263, %v4268
        %v4272 = vmul.f32 %v4196, %v4260
        %v4273 = vmul.f32 %v4197, %v4260
        %v4274 = vadd.f32 %v4272, %v4268
        %v4275 = vadd.f32 %v4273, %v4268
        %4276 = vst.msk [vmem:[%s666] sm:$0xff] %vm698, %v4270
        %4277 = vst.msk [vmem:[%s666 + $0x8] sm:$0x1] %vm2543, %v4271
        %s4278 = scalar_lea.vmem %s666, 16
        %4279 = vst.msk [vmem:[%s4278] sm:$0xff] %vm698, %v4274
        %4280 = vst.msk [vmem:[%s4278 + $0x8] sm:$0x1] %vm2543, %v4275
        %p4281 = scmp.lt.s32.totalorder %s30, 1
        %s4282 = scalar_select %p4281, %s30, 1
        %s4283 = smul.addr %s4282, 4
        %s4284 = smul.addr %s4283, 8
        %s4285 = scalar_lea.vmem %s13, %s4284
        // Predicated region
        $region81: #{affinity_net_forward.2} parent=71 // pred_check
          %p4286 = pneg %p386
        $region82: #{affinity_net_forward.2} parent=71 // pred_check_branch
          %4288 = sbr.rel (%p4286) target = $region84
        $region83: #{affinity_net_forward.2} parent=71 // pred_region
          _
        $region84: #{affinity_net_forward.2} parent=71 // pred_fallthru
          _
      $region72: #{affinity_net_forward.2} parent=5 // pred_fallthru
        _
      %p4289 = scmp.le.s32.totalorder 2, %s25
      // Predicated region
      $region85: #{affinity_net_forward.2} parent=5 // pred_check
        %p4290 = pneg %p4289
      $region86: #{affinity_net_forward.2} parent=5 // pred_check_branch
        %4292 = sbr.rel (%p4290) target = $region88
      $region87: #{affinity_net_forward.2} parent=5 // pred_region
        %s4293 = ssub.s32 %s25, 2
        // Predicated region
        $region89: #{affinity_net_forward.2} parent=87 // pred_check
          %p4294 = pneg %p392
        $region90: #{affinity_net_forward.2} parent=87 // pred_check_branch
          %4296 = sbr.rel (%p4294) target = $region92
        $region91: #{affinity_net_forward.2} parent=87 // pred_region
          %p4297 = scmp.lt.s32.totalorder %s31, 1
          %s4298 = scalar_select %p4297, %s31, 1
          %s4299 = smul.addr %s4298, 4
          %s4300 = smul.addr %s4299, 8
          %s4301 = scalar_lea.vmem %s13, %s4300
        $region92: #{affinity_net_forward.2} parent=87 // pred_fallthru
          _
      $region88: #{affinity_net_forward.2} parent=5 // pred_fallthru
        _
    $region6: #{affinity_net_forward.2} parent=1 // loop_footer
      %s29 = sadd.s32 1, %s25
    $region7: #{affinity_net_forward.2} parent=1 // loop_footer_branch
      %24 = sbr.rel target = $region3
    $region8: #{affinity_net_forward.2} parent=1 // loop_exit
      _
    %4302 = vsyncpa [#allocation3], 1
    %s4303 = scalar_lea.sflag [#allocation3], 1
    %4304 = vsyncpa %s4303, 1
    %4305 = vsyncpa [#allocation5], 1
    %s4306 = scalar_lea.sflag [#allocation5], 1
    %4307 = vsyncpa %s4306, 1

</llo_original>
